<compile_context>
chip_gen: v5e
topology: v5e:2x2
jax: 0.10.0
libtpu: 0.0.40
codegen_flags: <defaults>
</compile_context>

<pallas_src>
import math
import numpy as np

import jax
import jax.numpy as jnp
from jax import lax
from jax.experimental import pallas as pl
from jax.experimental.pallas import tpu as pltpu

# ----------------------- small config -----------------------
D_MODEL = 32
DFF = 64
NUM_HEADS = 4
NUM_LAYERS = 2
INPUT_VOCAB = 50
TARGET_VOCAB = 40
PE_INPUT = 8          # encoder max position (== encoder seq len, required by LayerNorm([pe, d]))
PE_TARGET = 8
BATCH = 2
S_ENC = PE_INPUT
S_DEC = 8
DEPTH = D_MODEL // NUM_HEADS

MM_DTYPE = jnp.float32   # set to jnp.bfloat16 on v6e/v7x for MXU-native bf16 (f32 accumulate)


# ----------------------- in-kernel building blocks -----------------------
def _mm(a, b):
    return jnp.dot(a.astype(MM_DTYPE), b.astype(MM_DTYPE),
                   preferred_element_type=jnp.float32)


def _mm_nt(a, b):
    # a @ b.T  via dot_general (contract last dim of both) -- no materialized transpose
    return lax.dot_general(a.astype(MM_DTYPE), b.astype(MM_DTYPE),
                           dimension_numbers=(((1,), (1,)), ((), ())),
                           preferred_element_type=jnp.float32)


def _mha_block(q_in, kv_in, wqkv, bqkv, wo, bo, neg_mask, self_attn, need_weights=False):
    """Multi-head attention on a single batch element, fully in registers/VMEM.

    q_in: (Sq, D), kv_in: (Sk, D), wqkv: (D, 3D), bqkv: (1, 3D), wo: (D, D), bo: (1, D)
    neg_mask: broadcastable to (Sq, Sk), already scaled by -1e9.
    """
    D = D_MODEL
    if self_attn:
        qkv = _mm(q_in, wqkv) + bqkv                  # single fused QKV matmul
        q = qkv[:, :D]
        k = qkv[:, D:2 * D]
        v = qkv[:, 2 * D:]
    else:
        q = _mm(q_in, wqkv[:, :D]) + bqkv[:, :D]
        kv = _mm(kv_in, wqkv[:, D:]) + bqkv[:, D:]
        k = kv[:, :D]
        v = kv[:, D:]

    q = q * (1.0 / math.sqrt(DEPTH))                  # fold 1/sqrt(dk) into q

    head_outs = []
    head_ps = []
    for h in range(NUM_HEADS):
        sl = slice(h * DEPTH, (h + 1) * DEPTH)
        logits = _mm_nt(q[:, sl], k[:, sl]) + neg_mask          # (Sq, Sk)
        logits = logits - jnp.max(logits, axis=-1, keepdims=True)
        e = jnp.exp(logits)
        denom = jnp.sum(e, axis=-1, keepdims=True)
        p = e * pl.reciprocal(denom, approx=True)               # EUP reciprocal
        if need_weights:
            head_ps.append(p)
        head_outs.append(_mm(p, v[:, sl]))                      # (Sq, depth)

    attn = jnp.concatenate(head_outs, axis=-1)                  # (Sq, D)
    out = _mm(attn, wo) + bo
    attw = jnp.concatenate(head_ps, axis=-1) if need_weights else None   # (Sq, H*Sk)
    return out, attw


def _layer_norm_2d(x, g, b, eps=1e-5):
    # torch nn.LayerNorm([S, D]): normalize over BOTH dims of the (S, D) slab.
    mean = jnp.mean(x)
    var = jnp.mean(jnp.square(x - mean))
    return (x - mean) * lax.rsqrt(var + eps) * g + b


def _ffn_block(x, w1, b1, w2, b2):
    h = jnp.maximum(_mm(x, w1) + b1, 0.0)
    return _mm(h, w2) + b2


# ----------------------- fused Pallas kernels -----------------------
def _encoder_kernel(x_ref, pad_ref,
                    wqkv_ref, bqkv_ref, wo_ref, bo_ref,
                    w1_ref, b1_ref, w2_ref, b2_ref,
                    ln1g_ref, ln1b_ref, ln2g_ref, ln2b_ref,
                    o_ref):
    x = x_ref[0]                                   # (S, D)
    neg = pad_ref[0] * (-1e9)                      # (1, S) -> broadcast over query rows
    for l in range(NUM_LAYERS):
        attn, _ = _mha_block(x, x, wqkv_ref[l], bqkv_ref[l], wo_ref[l], bo_ref[l],
                             neg, self_attn=True, need_weights=False)
        x = _layer_norm_2d(x + attn, ln1g_ref[l], ln1b_ref[l])
        f = _ffn_block(x, w1_ref[l], b1_ref[l], w2_ref[l], b2_ref[l])
        x = _layer_norm_2d(x + f, ln2g_ref[l], ln2b_ref[l])
    o_ref[0] = x


def _decoder_kernel(x_ref, enc_ref, la_ref, pad_ref,
                    wqkv1_ref, bqkv1_ref, wo1_ref, bo1_ref,
                    wqkv2_ref, bqkv2_ref, wo2_ref, bo2_ref,
                    w1_ref, b1_ref, w2_ref, b2_ref,
                    ln1g_ref, ln1b_ref, ln2g_ref, ln2b_ref, ln3g_ref, ln3b_ref,
                    fw_ref, fb_ref,
                    logits_ref, aw1_ref, aw2_ref):
    x = x_ref[0]                                   # (Sd, D)
    enc = enc_ref[0]                               # (Se, D)
    neg_la = la_ref[0] * (-1e9)                    # (Sd, Sd)
    neg_pad = pad_ref[0] * (-1e9)                  # (1, Se)
    for l in range(NUM_LAYERS):
        a1, p1 = _mha_block(x, x, wqkv1_ref[l], bqkv1_ref[l], wo1_ref[l], bo1_ref[l],
                            neg_la, self_attn=True, need_weights=True)
        x = _layer_norm_2d(a1 + x, ln1g_ref[l], ln1b_ref[l])
        a2, p2 = _mha_block(x, enc, wqkv2_ref[l], bqkv2_ref[l], wo2_ref[l], bo2_ref[l],
                            neg_pad, self_attn=False, need_weights=True)
        x = _layer_norm_2d(a2 + x, ln2g_ref[l], ln2b_ref[l])
        f = _ffn_block(x, w1_ref[l], b1_ref[l], w2_ref[l], b2_ref[l])
        x = _layer_norm_2d(f + x, ln3g_ref[l], ln3b_ref[l])
        aw1_ref[l, 0] = p1                         # lane-dense (Sd, H*Sd)
        aw2_ref[l, 0] = p2                         # lane-dense (Sd, H*Se)
    # fused final vocab projection (TARGET_VOCAB=40 < 128 lanes: accepted masked store)
    logits_ref[0] = _mm(x, fw_ref[...]) + fb_ref[...]


# ----------------------- kernel wrappers -----------------------
def _full_spec(arr):
    n = arr.ndim
    return pl.BlockSpec(arr.shape, lambda b, n=n: (0,) * n)


def encoder_forward(p, inp_tok, enc_pad_mask):
    B, S = inp_tok.shape
    x = jnp.take(p['embedding'], inp_tok, axis=0) * jnp.float32(math.sqrt(D_MODEL))
    x = x + p['pos_encoding'][:, :S, :]
    # dropout -> identity (eval)
    weights = (p['wqkv'], p['bqkv'], p['wo'], p['bo'],
               p['w1'], p['b1'], p['w2'], p['b2'],
               p['ln1_g'], p['ln1_b'], p['ln2_g'], p['ln2_b'])
    return pl.pallas_call(
        _encoder_kernel,
        out_shape=jax.ShapeDtypeStruct((B, S, D_MODEL), jnp.float32),
        grid=(B,),
        in_specs=[pl.BlockSpec((1, S, D_MODEL), lambda b: (b, 0, 0)),
                  pl.BlockSpec((1, 1, S), lambda b: (b, 0, 0))]
                 + [_full_spec(w) for w in weights],
        out_specs=pl.BlockSpec((1, S, D_MODEL), lambda b: (b, 0, 0)),
        compiler_params=pltpu.CompilerParams(dimension_semantics=("parallel",)),
    )(x, enc_pad_mask, *weights)


def decoder_forward(p, tar_tok, enc_out, la_mask, pad_mask, final_w, final_b):
    B, Sd = tar_tok.shape
    Se = enc_out.shape[1]
    L = NUM_LAYERS
    x = jnp.take(p['embedding'], tar_tok, axis=0) * jnp.float32(math.sqrt(D_MODEL))
    x = x + p['pos_encoding'][:, :Sd, :]
    # dropout -> identity (eval)
    weights = (p['wqkv1'], p['bqkv1'], p['wo1'], p['bo1'],
               p['wqkv2'], p['bqkv2'], p['wo2'], p['bo2'],
               p['w1'], p['b1'], p['w2'], p['b2'],
               p['ln1_g'], p['ln1_b'], p['ln2_g'], p['ln2_b'], p['ln3_g'], p['ln3_b'],
               final_w, final_b)
    logits, aw1, aw2 = pl.pallas_call(
        _decoder_kernel,
        out_shape=(jax.ShapeDtypeStruct((B, Sd, TARGET_VOCAB), jnp.float32),
                   jax.ShapeDtypeStruct((L, B, Sd, NUM_HEADS * Sd), jnp.float32),
                   jax.ShapeDtypeStruct((L, B, Sd, NUM_HEADS * Se), jnp.float32)),
        grid=(B,),
        in_specs=[pl.BlockSpec((1, Sd, D_MODEL), lambda b: (b, 0, 0)),
                  pl.BlockSpec((1, Se, D_MODEL), lambda b: (b, 0, 0)),
                  pl.BlockSpec((1, Sd, Sd), lambda b: (b, 0, 0)),
                  pl.BlockSpec((1, 1, Se), lambda b: (b, 0, 0))]
                 + [_full_spec(w) for w in weights],
        out_specs=(pl.BlockSpec((1, Sd, TARGET_VOCAB), lambda b: (b, 0, 0)),
                   pl.BlockSpec((L, 1, Sd, NUM_HEADS * Sd), lambda b: (0, b, 0, 0)),
                   pl.BlockSpec((L, 1, Sd, NUM_HEADS * Se), lambda b: (0, b, 0, 0))),
        compiler_params=pltpu.CompilerParams(dimension_semantics=("parallel",)),
    )(x, enc_out, la_mask, pad_mask, *weights)

    # layout plumbing: (L, B, Sq, H*Sk) -> per-layer (B, H, Sq, Sk)
    a1 = aw1.reshape(L, B, Sd, NUM_HEADS, Sd).transpose(0, 1, 3, 2, 4)
    a2 = aw2.reshape(L, B, Sd, NUM_HEADS, Se).transpose(0, 1, 3, 2, 4)
    attention_weights = {}
    for l in range(L):
        attention_weights['decoder_layer{}_block1'.format(l + 1)] = a1[l]
        attention_weights['decoder_layer{}_block2'.format(l + 1)] = a2[l]
    return logits, attention_weights


# ----------------------- masks / top-level forward -----------------------
def create_padding_mask(seq):
    # (B, S) int tokens -> (B, 1, S) float pad indicator (broadcast to (Sq, Sk) in-kernel)
    return (seq == 0).astype(jnp.float32)[:, None, :]


def create_look_ahead_mask(size):
    return jnp.triu(jnp.ones((size, size), jnp.float32), k=1)


def create_masks(inp, tar):
    enc_padding_mask = create_padding_mask(inp)                     # (B, 1, Se)
    dec_padding_mask = create_padding_mask(inp)                     # (B, 1, Se)
    look_ahead = create_look_ahead_mask(tar.shape[1])               # (Sd, Sd)
    tar_pad = (tar == 0).astype(jnp.float32)                        # (B, Sd)
    look_ahead_mask = jnp.maximum(tar_pad[:, None, :], look_ahead[None, :, :])  # (B, Sd, Sd)
    return enc_padding_mask, look_ahead_mask, dec_padding_mask


def transformer_forward(params, inputs):
    inp, tar, enc_output = inputs
    enc_padding_mask, look_ahead_mask, dec_padding_mask = create_masks(inp, tar)
    if enc_output is None:
        enc_output = encoder_forward(params['encoder'], inp, enc_padding_mask)
    final_output, attention_weights = decoder_forward(
        params['decoder'], tar, enc_output, look_ahead_mask, dec_padding_mask,
        params['final_w'], params['final_b'])
    return final_output, attention_weights, enc_output


@jax.jit
def transformer_forward_from_tokens(params, inp, tar):
    return transformer_forward(params, (inp, tar, None))


# ----------------------- params / positional encoding -----------------------
def positional_encoding(position, d_model):
    pos = np.arange(position)[:, None]
    i = np.arange(d_model)[None, :]
    angle_rates = 1 / np.power(10000, 2 * (i // 2) / np.float32(d_model))
    angle_rads = pos * angle_rates
    angle_rads[:, 0::2] = np.sin(angle_rads[:, 0::2])
    angle_rads[:, 1::2] = np.cos(angle_rads[:, 1::2])
    return jnp.asarray(angle_rads[None], dtype=jnp.float32)


def _init_linear(key, fan_in, fan_out):
    bound = 1.0 / math.sqrt(fan_in)
    kw, kb = jax.random.split(key)
    w = jax.random.uniform(kw, (fan_in, fan_out), jnp.float32, -bound, bound)
    b = jax.random.uniform(kb, (fan_out,), jnp.float32, -bound, bound)
    return w, b


def _init_mha(key):
    ks = jax.random.split(key, 4)
    wq, bq = _init_linear(ks[0], D_MODEL, D_MODEL)
    wk, bk = _init_linear(ks[1], D_MODEL, D_MODEL)
    wv, bv = _init_linear(ks[2], D_MODEL, D_MODEL)
    wo, bo = _init_linear(ks[3], D_MODEL, D_MODEL)
    wqkv = jnp.concatenate([wq, wk, wv], axis=1)      # (D, 3D) fused QKV weight
    bqkv = jnp.concatenate([bq, bk, bv])[None, :]     # (1, 3D)
    return wqkv, bqkv, wo, bo[None, :]


def init_params(key):
    k_enc_emb, k_dec_emb, k_enc, k_dec, k_fin = jax.random.split(key, 5)

    # ---- encoder (per-layer weights stacked along a leading L axis) ----
    enc_names = ('wqkv', 'bqkv', 'wo', 'bo', 'w1', 'b1', 'w2', 'b2',
                 'ln1_g', 'ln1_b', 'ln2_g', 'ln2_b')
    acc = {n: [] for n in enc_names}
    for k in jax.random.split(k_enc, NUM_LAYERS):
        km, kf = jax.random.split(k)
        wqkv, bqkv, wo, bo = _init_mha(km)
        k1, k2 = jax.random.split(kf)
        w1, b1 = _init_linear(k1, D_MODEL, DFF)
        w2, b2 = _init_linear(k2, DFF, D_MODEL)
        vals = dict(wqkv=wqkv, bqkv=bqkv, wo=wo, bo=bo,
                    w1=w1, b1=b1[None], w2=w2, b2=b2[None],
                    ln1_g=jnp.ones((PE_INPUT, D_MODEL), jnp.float32),
                    ln1_b=jnp.zeros((PE_INPUT, D_MODEL), jnp.float32),
                    ln2_g=jnp.ones((PE_INPUT, D_MODEL), jnp.float32),
                    ln2_b=jnp.zeros((PE_INPUT, D_MODEL), jnp.float32))
        for n in enc_names:
            acc[n].append(vals[n])
    encoder = {'embedding': jax.random.normal(k_enc_emb, (INPUT_VOCAB, D_MODEL), jnp.float32),
               'pos_encoding': positional_encoding(PE_INPUT, D_MODEL)}
    encoder.update({n: jnp.stack(acc[n]) for n in enc_names})

    # ---- decoder ----
    dec_names = ('wqkv1', 'bqkv1', 'wo1', 'bo1', 'wqkv2', 'bqkv2', 'wo2', 'bo2',
                 'w1', 'b1', 'w2', 'b2',
                 'ln1_g', 'ln1_b', 'ln2_g', 'ln2_b', 'ln3_g', 'ln3_b')
    acc = {n: [] for n in dec_names}
    for k in jax.random.split(k_dec, NUM_LAYERS):
        km1, km2, kf = jax.random.split(k, 3)
        wqkv1, bqkv1, wo1, bo1 = _init_mha(km1)
        wqkv2, bqkv2, wo2, bo2 = _init_mha(km2)
        k1, k2 = jax.random.split(kf)
        w1, b1 = _init_linear(k1, D_MODEL, DFF)
        w2, b2 = _init_linear(k2, DFF, D_MODEL)
        # module picks layernorms[seq_len - 1] == LayerNorm([S_DEC, d_model])
        vals = dict(wqkv1=wqkv1, bqkv1=bqkv1, wo1=wo1, bo1=bo1,
                    wqkv2=wqkv2, bqkv2=bqkv2, wo2=wo2, bo2=bo2,
                    w1=w1, b1=b1[None], w2=w2, b2=b2[None],
                    ln1_g=jnp.ones((S_DEC, D_MODEL), jnp.float32),
                    ln1_b=jnp.zeros((S_DEC, D_MODEL), jnp.float32),
                    ln2_g=jnp.ones((S_DEC, D_MODEL), jnp.float32),
                    ln2_b=jnp.zeros((S_DEC, D_MODEL), jnp.float32),
                    ln3_g=jnp.ones((S_DEC, D_MODEL), jnp.float32),
                    ln3_b=jnp.zeros((S_DEC, D_MODEL), jnp.float32))
        for n in dec_names:
            acc[n].append(vals[n])
    decoder = {'embedding': jax.random.normal(k_dec_emb, (TARGET_VOCAB, D_MODEL), jnp.float32),
               'pos_encoding': positional_encoding(PE_TARGET, D_MODEL)}
    decoder.update({n: jnp.stack(acc[n]) for n in dec_names})

    final_w, final_b = _init_linear(k_fin, D_MODEL, TARGET_VOCAB)

    return {'encoder': encoder, 'decoder': decoder,
            'final_w': final_w, 'final_b': final_b[None]}


# ----------------------- main -----------------------
if __name__ == "__main__":
    key = jax.random.PRNGKey(0)
    k_inp, k_tar, k_par = jax.random.split(key, 3)

    params = init_params(k_par)

    inp = jax.random.randint(k_inp, (BATCH, S_ENC), 1, INPUT_VOCAB, dtype=jnp.int32)
    inp = inp.at[:, -2:].set(0)     # trailing padding tokens (exercise padding mask)
    tar = jax.random.randint(k_tar, (BATCH, S_DEC), 1, TARGET_VOCAB, dtype=jnp.int32)
    tar = tar.at[:, -3:].set(0)

    final_out, attn_weights, enc_out = transformer_forward_from_tokens(params, inp, tar)

    jax.block_until_ready(final_out)
    jax.block_until_ready(enc_out)
    for v in attn_weights.values():
        jax.block_until_ready(v)

    assert final_out.shape == (BATCH, S_DEC, TARGET_VOCAB)
    assert enc_out.shape == (BATCH, S_ENC, D_MODEL)
    assert attn_weights['decoder_layer1_block1'].shape == (BATCH, NUM_HEADS, S_DEC, S_DEC)
    assert attn_weights['decoder_layer1_block2'].shape == (BATCH, NUM_HEADS, S_DEC, S_ENC)
    assert bool(jnp.all(jnp.isfinite(final_out)))
    print("KERNEL_OK")
</pallas_src>

<mosaic_0001>
module attributes {stable_mosaic.version = 11 : i64} {
  func.func @_encoder_kernel(%arg0: i32, %arg1: memref<1x8x32xf32, #tpu.memory_space<vmem>>, %arg2: memref<1x1x8xf32, #tpu.memory_space<vmem>>, %arg3: memref<2x32x96xf32, #tpu.memory_space<vmem>>, %arg4: memref<2x1x96xf32, #tpu.memory_space<vmem>>, %arg5: memref<2x32x32xf32, #tpu.memory_space<vmem>>, %arg6: memref<2x1x32xf32, #tpu.memory_space<vmem>>, %arg7: memref<2x32x64xf32, #tpu.memory_space<vmem>>, %arg8: memref<2x1x64xf32, #tpu.memory_space<vmem>>, %arg9: memref<2x64x32xf32, #tpu.memory_space<vmem>>, %arg10: memref<2x1x32xf32, #tpu.memory_space<vmem>>, %arg11: memref<2x8x32xf32, #tpu.memory_space<vmem>>, %arg12: memref<2x8x32xf32, #tpu.memory_space<vmem>>, %arg13: memref<2x8x32xf32, #tpu.memory_space<vmem>>, %arg14: memref<2x8x32xf32, #tpu.memory_space<vmem>>, %arg15: memref<1x8x32xf32, #tpu.memory_space<vmem>>) attributes {dimension_semantics = [#tpu.dimension_semantics<parallel>], iteration_bounds = array<i64: 2>, scalar_prefetch = 0 : i64, scratch_operands = 0 : i64, tpu.core_type = #tpu.core_type<tc>, window_params = [{transform_indices = @transform_0, window_bounds = array<i64: 1, 8, 32>}, {transform_indices = @transform_1, window_bounds = array<i64: 1, 1, 8>}, {pipeline_mode = #tpu.pipeline_mode<synchronous>, transform_indices = @transform_2, window_bounds = array<i64: 2, 32, 96>}, {pipeline_mode = #tpu.pipeline_mode<synchronous>, transform_indices = @transform_3, window_bounds = array<i64: 2, 1, 96>}, {pipeline_mode = #tpu.pipeline_mode<synchronous>, transform_indices = @transform_4, window_bounds = array<i64: 2, 32, 32>}, {pipeline_mode = #tpu.pipeline_mode<synchronous>, transform_indices = @transform_5, window_bounds = array<i64: 2, 1, 32>}, {pipeline_mode = #tpu.pipeline_mode<synchronous>, transform_indices = @transform_6, window_bounds = array<i64: 2, 32, 64>}, {pipeline_mode = #tpu.pipeline_mode<synchronous>, transform_indices = @transform_7, window_bounds = array<i64: 2, 1, 64>}, {pipeline_mode = #tpu.pipeline_mode<synchronous>, transform_indices = @transform_8, window_bounds = array<i64: 2, 64, 32>}, {pipeline_mode = #tpu.pipeline_mode<synchronous>, transform_indices = @transform_9, window_bounds = array<i64: 2, 1, 32>}, {pipeline_mode = #tpu.pipeline_mode<synchronous>, transform_indices = @transform_10, window_bounds = array<i64: 2, 8, 32>}, {pipeline_mode = #tpu.pipeline_mode<synchronous>, transform_indices = @transform_11, window_bounds = array<i64: 2, 8, 32>}, {pipeline_mode = #tpu.pipeline_mode<synchronous>, transform_indices = @transform_12, window_bounds = array<i64: 2, 8, 32>}, {pipeline_mode = #tpu.pipeline_mode<synchronous>, transform_indices = @transform_13, window_bounds = array<i64: 2, 8, 32>}, {transform_indices = @transform_14, window_bounds = array<i64: 1, 8, 32>}]} {
    %c0 = arith.constant 0 : index
    %c0_0 = arith.constant 0 : index
    %c0_1 = arith.constant 0 : index
    %0 = vector.load %arg1[%c0, %c0_0, %c0_1] : memref<1x8x32xf32, #tpu.memory_space<vmem>>, vector<1x8x32xf32>
    %1 = vector.shape_cast %0 : vector<1x8x32xf32> to vector<8x32xf32>
    %c0_2 = arith.constant 0 : index
    %c0_3 = arith.constant 0 : index
    %c0_4 = arith.constant 0 : index
    %2 = vector.load %arg2[%c0_2, %c0_3, %c0_4] : memref<1x1x8xf32, #tpu.memory_space<vmem>>, vector<1x1x8xf32>
    %3 = vector.shape_cast %2 : vector<1x1x8xf32> to vector<1x8xf32>
    %cst = arith.constant -1.000000e+09 : f32
    %4 = vector.broadcast %cst : f32 to vector<1x8xf32>
    %5 = arith.mulf %3, %4 : vector<1x8xf32>
    %c0_5 = arith.constant 0 : index
    %c0_6 = arith.constant 0 : index
    %c0_7 = arith.constant 0 : index
    %6 = vector.load %arg3[%c0_5, %c0_6, %c0_7] : memref<2x32x96xf32, #tpu.memory_space<vmem>>, vector<1x32x96xf32>
    %7 = vector.shape_cast %6 : vector<1x32x96xf32> to vector<32x96xf32>
    %c0_8 = arith.constant 0 : index
    %c0_9 = arith.constant 0 : index
    %c0_10 = arith.constant 0 : index
    %8 = vector.load %arg4[%c0_8, %c0_9, %c0_10] : memref<2x1x96xf32, #tpu.memory_space<vmem>>, vector<1x1x96xf32>
    %9 = vector.shape_cast %8 : vector<1x1x96xf32> to vector<1x96xf32>
    %c0_11 = arith.constant 0 : index
    %c0_12 = arith.constant 0 : index
    %c0_13 = arith.constant 0 : index
    %10 = vector.load %arg5[%c0_11, %c0_12, %c0_13] : memref<2x32x32xf32, #tpu.memory_space<vmem>>, vector<1x32x32xf32>
    %11 = vector.shape_cast %10 : vector<1x32x32xf32> to vector<32x32xf32>
    %c0_14 = arith.constant 0 : index
    %c0_15 = arith.constant 0 : index
    %c0_16 = arith.constant 0 : index
    %12 = vector.load %arg6[%c0_14, %c0_15, %c0_16] : memref<2x1x32xf32, #tpu.memory_space<vmem>>, vector<1x1x32xf32>
    %13 = vector.shape_cast %12 : vector<1x1x32xf32> to vector<1x32xf32>
    %cst_17 = arith.constant dense<0.000000e+00> : vector<8x96xf32>
    %14 = tpu.matmul %1, %7, %cst_17 {dimension_numbers = #tpu.dot_dimension_numbers<[1], [0], [0], [1], [0, 0, 1, 1], [], []>} : vector<8x32xf32>, vector<32x96xf32>, vector<8x96xf32> -> vector<8x96xf32>
    %15 = vector.broadcast %9 : vector<1x96xf32> to vector<8x96xf32>
    %16 = arith.addf %14, %15 : vector<8x96xf32>
    %17 = vector.extract_strided_slice %16 {offsets = [0, 0], sizes = [8, 32], strides = [1, 1]} : vector<8x96xf32> to vector<8x32xf32>
    %18 = vector.extract_strided_slice %16 {offsets = [0, 32], sizes = [8, 32], strides = [1, 1]} : vector<8x96xf32> to vector<8x32xf32>
    %19 = vector.extract_strided_slice %16 {offsets = [0, 64], sizes = [8, 32], strides = [1, 1]} : vector<8x96xf32> to vector<8x32xf32>
    %cst_18 = arith.constant 0.353553385 : f32
    %20 = vector.broadcast %cst_18 : f32 to vector<8x32xf32>
    %21 = arith.mulf %17, %20 : vector<8x32xf32>
    %22 = vector.extract_strided_slice %21 {offsets = [0, 0], sizes = [8, 8], strides = [1, 1]} : vector<8x32xf32> to vector<8x8xf32>
    %23 = vector.extract_strided_slice %18 {offsets = [0, 0], sizes = [8, 8], strides = [1, 1]} : vector<8x32xf32> to vector<8x8xf32>
    %cst_19 = arith.constant dense<0.000000e+00> : vector<8x8xf32>
    %24 = tpu.matmul %22, %23, %cst_19 {dimension_numbers = #tpu.dot_dimension_numbers<[1], [1], [0], [0], [0, 0, 1, 0], [], []>} : vector<8x8xf32>, vector<8x8xf32>, vector<8x8xf32> -> vector<8x8xf32>
    %25 = vector.broadcast %5 : vector<1x8xf32> to vector<8x8xf32>
    %26 = arith.addf %24, %25 : vector<8x8xf32>
    %cst_20 = arith.constant dense<0xFF800000> : vector<8xf32>
    %27 = vector.multi_reduction <maximumf>, %26, %cst_20 [1] : vector<8x8xf32> to vector<8xf32>
    %28 = vector.shape_cast %27 : vector<8xf32> to vector<8x1xf32>
    %29 = vector.broadcast %28 : vector<8x1xf32> to vector<8x8xf32>
    %30 = arith.subf %26, %29 : vector<8x8xf32>
    %31 = math.exp %30 : vector<8x8xf32>
    %cst_21 = arith.constant dense<0.000000e+00> : vector<8xf32>
    %32 = vector.multi_reduction <add>, %31, %cst_21 [1] : vector<8x8xf32> to vector<8xf32>
    %33 = vector.shape_cast %32 : vector<8xf32> to vector<8x1xf32>
    %34 = tpu.reciprocal %33 {approx = true} : vector<8x1xf32> -> vector<8x1xf32>
    %35 = vector.broadcast %34 : vector<8x1xf32> to vector<8x8xf32>
    %36 = arith.mulf %31, %35 : vector<8x8xf32>
    %37 = vector.extract_strided_slice %19 {offsets = [0, 0], sizes = [8, 8], strides = [1, 1]} : vector<8x32xf32> to vector<8x8xf32>
    %cst_22 = arith.constant dense<0.000000e+00> : vector<8x8xf32>
    %38 = tpu.matmul %36, %37, %cst_22 {dimension_numbers = #tpu.dot_dimension_numbers<[1], [0], [0], [1], [0, 0, 1, 1], [], []>} : vector<8x8xf32>, vector<8x8xf32>, vector<8x8xf32> -> vector<8x8xf32>
    %39 = vector.extract_strided_slice %21 {offsets = [0, 8], sizes = [8, 8], strides = [1, 1]} : vector<8x32xf32> to vector<8x8xf32>
    %40 = vector.extract_strided_slice %18 {offsets = [0, 8], sizes = [8, 8], strides = [1, 1]} : vector<8x32xf32> to vector<8x8xf32>
    %cst_23 = arith.constant dense<0.000000e+00> : vector<8x8xf32>
    %41 = tpu.matmul %39, %40, %cst_23 {dimension_numbers = #tpu.dot_dimension_numbers<[1], [1], [0], [0], [0, 0, 1, 0], [], []>} : vector<8x8xf32>, vector<8x8xf32>, vector<8x8xf32> -> vector<8x8xf32>
    %42 = vector.broadcast %5 : vector<1x8xf32> to vector<8x8xf32>
    %43 = arith.addf %41, %42 : vector<8x8xf32>
    %cst_24 = arith.constant dense<0xFF800000> : vector<8xf32>
    %44 = vector.multi_reduction <maximumf>, %43, %cst_24 [1] : vector<8x8xf32> to vector<8xf32>
    %45 = vector.shape_cast %44 : vector<8xf32> to vector<8x1xf32>
    %46 = vector.broadcast %45 : vector<8x1xf32> to vector<8x8xf32>
    %47 = arith.subf %43, %46 : vector<8x8xf32>
    %48 = math.exp %47 : vector<8x8xf32>
    %cst_25 = arith.constant dense<0.000000e+00> : vector<8xf32>
    %49 = vector.multi_reduction <add>, %48, %cst_25 [1] : vector<8x8xf32> to vector<8xf32>
    %50 = vector.shape_cast %49 : vector<8xf32> to vector<8x1xf32>
    %51 = tpu.reciprocal %50 {approx = true} : vector<8x1xf32> -> vector<8x1xf32>
    %52 = vector.broadcast %51 : vector<8x1xf32> to vector<8x8xf32>
    %53 = arith.mulf %48, %52 : vector<8x8xf32>
    %54 = vector.extract_strided_slice %19 {offsets = [0, 8], sizes = [8, 8], strides = [1, 1]} : vector<8x32xf32> to vector<8x8xf32>
    %cst_26 = arith.constant dense<0.000000e+00> : vector<8x8xf32>
    %55 = tpu.matmul %53, %54, %cst_26 {dimension_numbers = #tpu.dot_dimension_numbers<[1], [0], [0], [1], [0, 0, 1, 1], [], []>} : vector<8x8xf32>, vector<8x8xf32>, vector<8x8xf32> -> vector<8x8xf32>
    %56 = vector.extract_strided_slice %21 {offsets = [0, 16], sizes = [8, 8], strides = [1, 1]} : vector<8x32xf32> to vector<8x8xf32>
    %57 = vector.extract_strided_slice %18 {offsets = [0, 16], sizes = [8, 8], strides = [1, 1]} : vector<8x32xf32> to vector<8x8xf32>
    %cst_27 = arith.constant dense<0.000000e+00> : vector<8x8xf32>
    %58 = tpu.matmul %56, %57, %cst_27 {dimension_numbers = #tpu.dot_dimension_numbers<[1], [1], [0], [0], [0, 0, 1, 0], [], []>} : vector<8x8xf32>, vector<8x8xf32>, vector<8x8xf32> -> vector<8x8xf32>
    %59 = vector.broadcast %5 : vector<1x8xf32> to vector<8x8xf32>
    %60 = arith.addf %58, %59 : vector<8x8xf32>
    %cst_28 = arith.constant dense<0xFF800000> : vector<8xf32>
    %61 = vector.multi_reduction <maximumf>, %60, %cst_28 [1] : vector<8x8xf32> to vector<8xf32>
    %62 = vector.shape_cast %61 : vector<8xf32> to vector<8x1xf32>
    %63 = vector.broadcast %62 : vector<8x1xf32> to vector<8x8xf32>
    %64 = arith.subf %60, %63 : vector<8x8xf32>
    %65 = math.exp %64 : vector<8x8xf32>
    %cst_29 = arith.constant dense<0.000000e+00> : vector<8xf32>
    %66 = vector.multi_reduction <add>, %65, %cst_29 [1] : vector<8x8xf32> to vector<8xf32>
    %67 = vector.shape_cast %66 : vector<8xf32> to vector<8x1xf32>
    %68 = tpu.reciprocal %67 {approx = true} : vector<8x1xf32> -> vector<8x1xf32>
    %69 = vector.broadcast %68 : vector<8x1xf32> to vector<8x8xf32>
    %70 = arith.mulf %65, %69 : vector<8x8xf32>
    %71 = vector.extract_strided_slice %19 {offsets = [0, 16], sizes = [8, 8], strides = [1, 1]} : vector<8x32xf32> to vector<8x8xf32>
    %cst_30 = arith.constant dense<0.000000e+00> : vector<8x8xf32>
    %72 = tpu.matmul %70, %71, %cst_30 {dimension_numbers = #tpu.dot_dimension_numbers<[1], [0], [0], [1], [0, 0, 1, 1], [], []>} : vector<8x8xf32>, vector<8x8xf32>, vector<8x8xf32> -> vector<8x8xf32>
    %73 = vector.extract_strided_slice %21 {offsets = [0, 24], sizes = [8, 8], strides = [1, 1]} : vector<8x32xf32> to vector<8x8xf32>
    %74 = vector.extract_strided_slice %18 {offsets = [0, 24], sizes = [8, 8], strides = [1, 1]} : vector<8x32xf32> to vector<8x8xf32>
    %cst_31 = arith.constant dense<0.000000e+00> : vector<8x8xf32>
    %75 = tpu.matmul %73, %74, %cst_31 {dimension_numbers = #tpu.dot_dimension_numbers<[1], [1], [0], [0], [0, 0, 1, 0], [], []>} : vector<8x8xf32>, vector<8x8xf32>, vector<8x8xf32> -> vector<8x8xf32>
    %76 = vector.broadcast %5 : vector<1x8xf32> to vector<8x8xf32>
    %77 = arith.addf %75, %76 : vector<8x8xf32>
    %cst_32 = arith.constant dense<0xFF800000> : vector<8xf32>
    %78 = vector.multi_reduction <maximumf>, %77, %cst_32 [1] : vector<8x8xf32> to vector<8xf32>
    %79 = vector.shape_cast %78 : vector<8xf32> to vector<8x1xf32>
    %80 = vector.broadcast %79 : vector<8x1xf32> to vector<8x8xf32>
    %81 = arith.subf %77, %80 : vector<8x8xf32>
    %82 = math.exp %81 : vector<8x8xf32>
    %cst_33 = arith.constant dense<0.000000e+00> : vector<8xf32>
    %83 = vector.multi_reduction <add>, %82, %cst_33 [1] : vector<8x8xf32> to vector<8xf32>
    %84 = vector.shape_cast %83 : vector<8xf32> to vector<8x1xf32>
    %85 = tpu.reciprocal %84 {approx = true} : vector<8x1xf32> -> vector<8x1xf32>
    %86 = vector.broadcast %85 : vector<8x1xf32> to vector<8x8xf32>
    %87 = arith.mulf %82, %86 : vector<8x8xf32>
    %88 = vector.extract_strided_slice %19 {offsets = [0, 24], sizes = [8, 8], strides = [1, 1]} : vector<8x32xf32> to vector<8x8xf32>
    %cst_34 = arith.constant dense<0.000000e+00> : vector<8x8xf32>
    %89 = tpu.matmul %87, %88, %cst_34 {dimension_numbers = #tpu.dot_dimension_numbers<[1], [0], [0], [1], [0, 0, 1, 1], [], []>} : vector<8x8xf32>, vector<8x8xf32>, vector<8x8xf32> -> vector<8x8xf32>
    %90 = tpu.concatenate %38, %55, %72, %89 in 1 : vector<8x8xf32>, vector<8x8xf32>, vector<8x8xf32>, vector<8x8xf32> -> vector<8x32xf32>
    %cst_35 = arith.constant dense<0.000000e+00> : vector<8x32xf32>
    %91 = tpu.matmul %90, %11, %cst_35 {dimension_numbers = #tpu.dot_dimension_numbers<[1], [0], [0], [1], [0, 0, 1, 1], [], []>} : vector<8x32xf32>, vector<32x32xf32>, vector<8x32xf32> -> vector<8x32xf32>
    %92 = vector.broadcast %13 : vector<1x32xf32> to vector<8x32xf32>
    %93 = arith.addf %91, %92 : vector<8x32xf32>
    %94 = arith.addf %1, %93 : vector<8x32xf32>
    %c0_36 = arith.constant 0 : index
    %c0_37 = arith.constant 0 : index
    %c0_38 = arith.constant 0 : index
    %95 = vector.load %arg11[%c0_36, %c0_37, %c0_38] : memref<2x8x32xf32, #tpu.memory_space<vmem>>, vector<1x8x32xf32>
    %96 = vector.shape_cast %95 : vector<1x8x32xf32> to vector<8x32xf32>
    %c0_39 = arith.constant 0 : index
    %c0_40 = arith.constant 0 : index
    %c0_41 = arith.constant 0 : index
    %97 = vector.load %arg12[%c0_39, %c0_40, %c0_41] : memref<2x8x32xf32, #tpu.memory_space<vmem>>, vector<1x8x32xf32>
    %98 = vector.shape_cast %97 : vector<1x8x32xf32> to vector<8x32xf32>
    %99 = vector.shape_cast %94 : vector<8x32xf32> to vector<1x8x32xf32>
    %cst_42 = arith.constant dense<0.000000e+00> : vector<1xf32>
    %100 = vector.multi_reduction <add>, %99, %cst_42 [1, 2] : vector<1x8x32xf32> to vector<1xf32>
    %101 = vector.shape_cast %100 : vector<1xf32> to vector<1x1x1xf32>
    %102 = vector.extract %101[0, 0, 0] : f32 from vector<1x1x1xf32>
    %cst_43 = arith.constant 2.560000e+02 : f32
    %103 = arith.divf %102, %cst_43 : f32
    %104 = vector.broadcast %103 : f32 to vector<8x32xf32>
    %105 = arith.subf %94, %104 : vector<8x32xf32>
    %106 = arith.mulf %105, %105 : vector<8x32xf32>
    %107 = vector.shape_cast %106 : vector<8x32xf32> to vector<1x8x32xf32>
    %cst_44 = arith.constant dense<0.000000e+00> : vector<1xf32>
    %108 = vector.multi_reduction <add>, %107, %cst_44 [1, 2] : vector<1x8x32xf32> to vector<1xf32>
    %109 = vector.shape_cast %108 : vector<1xf32> to vector<1x1x1xf32>
    %110 = vector.extract %109[0, 0, 0] : f32 from vector<1x1x1xf32>
    %cst_45 = arith.constant 2.560000e+02 : f32
    %111 = arith.divf %110, %cst_45 : f32
    %112 = vector.broadcast %103 : f32 to vector<8x32xf32>
    %113 = arith.subf %94, %112 : vector<8x32xf32>
    %cst_46 = arith.constant 9.99999974E-6 : f32
    %114 = arith.addf %111, %cst_46 : f32
    %115 = math.rsqrt %114 : f32
    %116 = vector.broadcast %115 : f32 to vector<8x32xf32>
    %117 = arith.mulf %113, %116 : vector<8x32xf32>
    %118 = arith.mulf %117, %96 : vector<8x32xf32>
    %119 = arith.addf %118, %98 : vector<8x32xf32>
    %c0_47 = arith.constant 0 : index
    %c0_48 = arith.constant 0 : index
    %c0_49 = arith.constant 0 : index
    %120 = vector.load %arg7[%c0_47, %c0_48, %c0_49] : memref<2x32x64xf32, #tpu.memory_space<vmem>>, vector<1x32x64xf32>
    %121 = vector.shape_cast %120 : vector<1x32x64xf32> to vector<32x64xf32>
    %c0_50 = arith.constant 0 : index
    %c0_51 = arith.constant 0 : index
    %c0_52 = arith.constant 0 : index
    %122 = vector.load %arg8[%c0_50, %c0_51, %c0_52] : memref<2x1x64xf32, #tpu.memory_space<vmem>>, vector<1x1x64xf32>
    %123 = vector.shape_cast %122 : vector<1x1x64xf32> to vector<1x64xf32>
    %c0_53 = arith.constant 0 : index
    %c0_54 = arith.constant 0 : index
    %c0_55 = arith.constant 0 : index
    %124 = vector.load %arg9[%c0_53, %c0_54, %c0_55] : memref<2x64x32xf32, #tpu.memory_space<vmem>>, vector<1x64x32xf32>
    %125 = vector.shape_cast %124 : vector<1x64x32xf32> to vector<64x32xf32>
    %c0_56 = arith.constant 0 : index
    %c0_57 = arith.constant 0 : index
    %c0_58 = arith.constant 0 : index
    %126 = vector.load %arg10[%c0_56, %c0_57, %c0_58] : memref<2x1x32xf32, #tpu.memory_space<vmem>>, vector<1x1x32xf32>
    %127 = vector.shape_cast %126 : vector<1x1x32xf32> to vector<1x32xf32>
    %cst_59 = arith.constant dense<0.000000e+00> : vector<8x64xf32>
    %128 = tpu.matmul %119, %121, %cst_59 {dimension_numbers = #tpu.dot_dimension_numbers<[1], [0], [0], [1], [0, 0, 1, 1], [], []>} : vector<8x32xf32>, vector<32x64xf32>, vector<8x64xf32> -> vector<8x64xf32>
    %129 = vector.broadcast %123 : vector<1x64xf32> to vector<8x64xf32>
    %130 = arith.addf %128, %129 : vector<8x64xf32>
    %cst_60 = arith.constant 0.000000e+00 : f32
    %131 = vector.broadcast %cst_60 : f32 to vector<8x64xf32>
    %132 = arith.maximumf %130, %131 : vector<8x64xf32>
    %cst_61 = arith.constant dense<0.000000e+00> : vector<8x32xf32>
    %133 = tpu.matmul %132, %125, %cst_61 {dimension_numbers = #tpu.dot_dimension_numbers<[1], [0], [0], [1], [0, 0, 1, 1], [], []>} : vector<8x64xf32>, vector<64x32xf32>, vector<8x32xf32> -> vector<8x32xf32>
    %134 = vector.broadcast %127 : vector<1x32xf32> to vector<8x32xf32>
    %135 = arith.addf %133, %134 : vector<8x32xf32>
    %136 = arith.addf %119, %135 : vector<8x32xf32>
    %c0_62 = arith.constant 0 : index
    %c0_63 = arith.constant 0 : index
    %c0_64 = arith.constant 0 : index
    %137 = vector.load %arg13[%c0_62, %c0_63, %c0_64] : memref<2x8x32xf32, #tpu.memory_space<vmem>>, vector<1x8x32xf32>
    %138 = vector.shape_cast %137 : vector<1x8x32xf32> to vector<8x32xf32>
    %c0_65 = arith.constant 0 : index
    %c0_66 = arith.constant 0 : index
    %c0_67 = arith.constant 0 : index
    %139 = vector.load %arg14[%c0_65, %c0_66, %c0_67] : memref<2x8x32xf32, #tpu.memory_space<vmem>>, vector<1x8x32xf32>
    %140 = vector.shape_cast %139 : vector<1x8x32xf32> to vector<8x32xf32>
    %141 = vector.shape_cast %136 : vector<8x32xf32> to vector<1x8x32xf32>
    %cst_68 = arith.constant dense<0.000000e+00> : vector<1xf32>
    %142 = vector.multi_reduction <add>, %141, %cst_68 [1, 2] : vector<1x8x32xf32> to vector<1xf32>
    %143 = vector.shape_cast %142 : vector<1xf32> to vector<1x1x1xf32>
    %144 = vector.extract %143[0, 0, 0] : f32 from vector<1x1x1xf32>
    %cst_69 = arith.constant 2.560000e+02 : f32
    %145 = arith.divf %144, %cst_69 : f32
    %146 = vector.broadcast %145 : f32 to vector<8x32xf32>
    %147 = arith.subf %136, %146 : vector<8x32xf32>
    %148 = arith.mulf %147, %147 : vector<8x32xf32>
    %149 = vector.shape_cast %148 : vector<8x32xf32> to vector<1x8x32xf32>
    %cst_70 = arith.constant dense<0.000000e+00> : vector<1xf32>
    %150 = vector.multi_reduction <add>, %149, %cst_70 [1, 2] : vector<1x8x32xf32> to vector<1xf32>
    %151 = vector.shape_cast %150 : vector<1xf32> to vector<1x1x1xf32>
    %152 = vector.extract %151[0, 0, 0] : f32 from vector<1x1x1xf32>
    %cst_71 = arith.constant 2.560000e+02 : f32
    %153 = arith.divf %152, %cst_71 : f32
    %154 = vector.broadcast %145 : f32 to vector<8x32xf32>
    %155 = arith.subf %136, %154 : vector<8x32xf32>
    %cst_72 = arith.constant 9.99999974E-6 : f32
    %156 = arith.addf %153, %cst_72 : f32
    %157 = math.rsqrt %156 : f32
    %158 = vector.broadcast %157 : f32 to vector<8x32xf32>
    %159 = arith.mulf %155, %158 : vector<8x32xf32>
    %160 = arith.mulf %159, %138 : vector<8x32xf32>
    %161 = arith.addf %160, %140 : vector<8x32xf32>
    %c1 = arith.constant 1 : index
    %c0_73 = arith.constant 0 : index
    %c0_74 = arith.constant 0 : index
    %162 = vector.load %arg3[%c1, %c0_73, %c0_74] : memref<2x32x96xf32, #tpu.memory_space<vmem>>, vector<1x32x96xf32>
    %163 = vector.shape_cast %162 : vector<1x32x96xf32> to vector<32x96xf32>
    %c1_75 = arith.constant 1 : index
    %c0_76 = arith.constant 0 : index
    %c0_77 = arith.constant 0 : index
    %164 = vector.load %arg4[%c1_75, %c0_76, %c0_77] : memref<2x1x96xf32, #tpu.memory_space<vmem>>, vector<1x1x96xf32>
    %165 = vector.shape_cast %164 : vector<1x1x96xf32> to vector<1x96xf32>
    %c1_78 = arith.constant 1 : index
    %c0_79 = arith.constant 0 : index
    %c0_80 = arith.constant 0 : index
    %166 = vector.load %arg5[%c1_78, %c0_79, %c0_80] : memref<2x32x32xf32, #tpu.memory_space<vmem>>, vector<1x32x32xf32>
    %167 = vector.shape_cast %166 : vector<1x32x32xf32> to vector<32x32xf32>
    %c1_81 = arith.constant 1 : index
    %c0_82 = arith.constant 0 : index
    %c0_83 = arith.constant 0 : index
    %168 = vector.load %arg6[%c1_81, %c0_82, %c0_83] : memref<2x1x32xf32, #tpu.memory_space<vmem>>, vector<1x1x32xf32>
    %169 = vector.shape_cast %168 : vector<1x1x32xf32> to vector<1x32xf32>
    %cst_84 = arith.constant dense<0.000000e+00> : vector<8x96xf32>
    %170 = tpu.matmul %161, %163, %cst_84 {dimension_numbers = #tpu.dot_dimension_numbers<[1], [0], [0], [1], [0, 0, 1, 1], [], []>} : vector<8x32xf32>, vector<32x96xf32>, vector<8x96xf32> -> vector<8x96xf32>
    %171 = vector.broadcast %165 : vector<1x96xf32> to vector<8x96xf32>
    %172 = arith.addf %170, %171 : vector<8x96xf32>
    %173 = vector.extract_strided_slice %172 {offsets = [0, 0], sizes = [8, 32], strides = [1, 1]} : vector<8x96xf32> to vector<8x32xf32>
    %174 = vector.extract_strided_slice %172 {offsets = [0, 32], sizes = [8, 32], strides = [1, 1]} : vector<8x96xf32> to vector<8x32xf32>
    %175 = vector.extract_strided_slice %172 {offsets = [0, 64], sizes = [8, 32], strides = [1, 1]} : vector<8x96xf32> to vector<8x32xf32>
    %cst_85 = arith.constant 0.353553385 : f32
    %176 = vector.broadcast %cst_85 : f32 to vector<8x32xf32>
    %177 = arith.mulf %173, %176 : vector<8x32xf32>
    %178 = vector.extract_strided_slice %177 {offsets = [0, 0], sizes = [8, 8], strides = [1, 1]} : vector<8x32xf32> to vector<8x8xf32>
    %179 = vector.extract_strided_slice %174 {offsets = [0, 0], sizes = [8, 8], strides = [1, 1]} : vector<8x32xf32> to vector<8x8xf32>
    %cst_86 = arith.constant dense<0.000000e+00> : vector<8x8xf32>
    %180 = tpu.matmul %178, %179, %cst_86 {dimension_numbers = #tpu.dot_dimension_numbers<[1], [1], [0], [0], [0, 0, 1, 0], [], []>} : vector<8x8xf32>, vector<8x8xf32>, vector<8x8xf32> -> vector<8x8xf32>
    %181 = vector.broadcast %5 : vector<1x8xf32> to vector<8x8xf32>
    %182 = arith.addf %180, %181 : vector<8x8xf32>
    %cst_87 = arith.constant dense<0xFF800000> : vector<8xf32>
    %183 = vector.multi_reduction <maximumf>, %182, %cst_87 [1] : vector<8x8xf32> to vector<8xf32>
    %184 = vector.shape_cast %183 : vector<8xf32> to vector<8x1xf32>
    %185 = vector.broadcast %184 : vector<8x1xf32> to vector<8x8xf32>
    %186 = arith.subf %182, %185 : vector<8x8xf32>
    %187 = math.exp %186 : vector<8x8xf32>
    %cst_88 = arith.constant dense<0.000000e+00> : vector<8xf32>
    %188 = vector.multi_reduction <add>, %187, %cst_88 [1] : vector<8x8xf32> to vector<8xf32>
    %189 = vector.shape_cast %188 : vector<8xf32> to vector<8x1xf32>
    %190 = tpu.reciprocal %189 {approx = true} : vector<8x1xf32> -> vector<8x1xf32>
    %191 = vector.broadcast %190 : vector<8x1xf32> to vector<8x8xf32>
    %192 = arith.mulf %187, %191 : vector<8x8xf32>
    %193 = vector.extract_strided_slice %175 {offsets = [0, 0], sizes = [8, 8], strides = [1, 1]} : vector<8x32xf32> to vector<8x8xf32>
    %cst_89 = arith.constant dense<0.000000e+00> : vector<8x8xf32>
    %194 = tpu.matmul %192, %193, %cst_89 {dimension_numbers = #tpu.dot_dimension_numbers<[1], [0], [0], [1], [0, 0, 1, 1], [], []>} : vector<8x8xf32>, vector<8x8xf32>, vector<8x8xf32> -> vector<8x8xf32>
    %195 = vector.extract_strided_slice %177 {offsets = [0, 8], sizes = [8, 8], strides = [1, 1]} : vector<8x32xf32> to vector<8x8xf32>
    %196 = vector.extract_strided_slice %174 {offsets = [0, 8], sizes = [8, 8], strides = [1, 1]} : vector<8x32xf32> to vector<8x8xf32>
    %cst_90 = arith.constant dense<0.000000e+00> : vector<8x8xf32>
    %197 = tpu.matmul %195, %196, %cst_90 {dimension_numbers = #tpu.dot_dimension_numbers<[1], [1], [0], [0], [0, 0, 1, 0], [], []>} : vector<8x8xf32>, vector<8x8xf32>, vector<8x8xf32> -> vector<8x8xf32>
    %198 = vector.broadcast %5 : vector<1x8xf32> to vector<8x8xf32>
    %199 = arith.addf %197, %198 : vector<8x8xf32>
    %cst_91 = arith.constant dense<0xFF800000> : vector<8xf32>
    %200 = vector.multi_reduction <maximumf>, %199, %cst_91 [1] : vector<8x8xf32> to vector<8xf32>
    %201 = vector.shape_cast %200 : vector<8xf32> to vector<8x1xf32>
    %202 = vector.broadcast %201 : vector<8x1xf32> to vector<8x8xf32>
    %203 = arith.subf %199, %202 : vector<8x8xf32>
    %204 = math.exp %203 : vector<8x8xf32>
    %cst_92 = arith.constant dense<0.000000e+00> : vector<8xf32>
    %205 = vector.multi_reduction <add>, %204, %cst_92 [1] : vector<8x8xf32> to vector<8xf32>
    %206 = vector.shape_cast %205 : vector<8xf32> to vector<8x1xf32>
    %207 = tpu.reciprocal %206 {approx = true} : vector<8x1xf32> -> vector<8x1xf32>
    %208 = vector.broadcast %207 : vector<8x1xf32> to vector<8x8xf32>
    %209 = arith.mulf %204, %208 : vector<8x8xf32>
    %210 = vector.extract_strided_slice %175 {offsets = [0, 8], sizes = [8, 8], strides = [1, 1]} : vector<8x32xf32> to vector<8x8xf32>
    %cst_93 = arith.constant dense<0.000000e+00> : vector<8x8xf32>
    %211 = tpu.matmul %209, %210, %cst_93 {dimension_numbers = #tpu.dot_dimension_numbers<[1], [0], [0], [1], [0, 0, 1, 1], [], []>} : vector<8x8xf32>, vector<8x8xf32>, vector<8x8xf32> -> vector<8x8xf32>
    %212 = vector.extract_strided_slice %177 {offsets = [0, 16], sizes = [8, 8], strides = [1, 1]} : vector<8x32xf32> to vector<8x8xf32>
    %213 = vector.extract_strided_slice %174 {offsets = [0, 16], sizes = [8, 8], strides = [1, 1]} : vector<8x32xf32> to vector<8x8xf32>
    %cst_94 = arith.constant dense<0.000000e+00> : vector<8x8xf32>
    %214 = tpu.matmul %212, %213, %cst_94 {dimension_numbers = #tpu.dot_dimension_numbers<[1], [1], [0], [0], [0, 0, 1, 0], [], []>} : vector<8x8xf32>, vector<8x8xf32>, vector<8x8xf32> -> vector<8x8xf32>
    %215 = vector.broadcast %5 : vector<1x8xf32> to vector<8x8xf32>
    %216 = arith.addf %214, %215 : vector<8x8xf32>
    %cst_95 = arith.constant dense<0xFF800000> : vector<8xf32>
    %217 = vector.multi_reduction <maximumf>, %216, %cst_95 [1] : vector<8x8xf32> to vector<8xf32>
    %218 = vector.shape_cast %217 : vector<8xf32> to vector<8x1xf32>
    %219 = vector.broadcast %218 : vector<8x1xf32> to vector<8x8xf32>
    %220 = arith.subf %216, %219 : vector<8x8xf32>
    %221 = math.exp %220 : vector<8x8xf32>
    %cst_96 = arith.constant dense<0.000000e+00> : vector<8xf32>
    %222 = vector.multi_reduction <add>, %221, %cst_96 [1] : vector<8x8xf32> to vector<8xf32>
    %223 = vector.shape_cast %222 : vector<8xf32> to vector<8x1xf32>
    %224 = tpu.reciprocal %223 {approx = true} : vector<8x1xf32> -> vector<8x1xf32>
    %225 = vector.broadcast %224 : vector<8x1xf32> to vector<8x8xf32>
    %226 = arith.mulf %221, %225 : vector<8x8xf32>
    %227 = vector.extract_strided_slice %175 {offsets = [0, 16], sizes = [8, 8], strides = [1, 1]} : vector<8x32xf32> to vector<8x8xf32>
    %cst_97 = arith.constant dense<0.000000e+00> : vector<8x8xf32>
    %228 = tpu.matmul %226, %227, %cst_97 {dimension_numbers = #tpu.dot_dimension_numbers<[1], [0], [0], [1], [0, 0, 1, 1], [], []>} : vector<8x8xf32>, vector<8x8xf32>, vector<8x8xf32> -> vector<8x8xf32>
    %229 = vector.extract_strided_slice %177 {offsets = [0, 24], sizes = [8, 8], strides = [1, 1]} : vector<8x32xf32> to vector<8x8xf32>
    %230 = vector.extract_strided_slice %174 {offsets = [0, 24], sizes = [8, 8], strides = [1, 1]} : vector<8x32xf32> to vector<8x8xf32>
    %cst_98 = arith.constant dense<0.000000e+00> : vector<8x8xf32>
    %231 = tpu.matmul %229, %230, %cst_98 {dimension_numbers = #tpu.dot_dimension_numbers<[1], [1], [0], [0], [0, 0, 1, 0], [], []>} : vector<8x8xf32>, vector<8x8xf32>, vector<8x8xf32> -> vector<8x8xf32>
    %232 = vector.broadcast %5 : vector<1x8xf32> to vector<8x8xf32>
    %233 = arith.addf %231, %232 : vector<8x8xf32>
    %cst_99 = arith.constant dense<0xFF800000> : vector<8xf32>
    %234 = vector.multi_reduction <maximumf>, %233, %cst_99 [1] : vector<8x8xf32> to vector<8xf32>
    %235 = vector.shape_cast %234 : vector<8xf32> to vector<8x1xf32>
    %236 = vector.broadcast %235 : vector<8x1xf32> to vector<8x8xf32>
    %237 = arith.subf %233, %236 : vector<8x8xf32>
    %238 = math.exp %237 : vector<8x8xf32>
    %cst_100 = arith.constant dense<0.000000e+00> : vector<8xf32>
    %239 = vector.multi_reduction <add>, %238, %cst_100 [1] : vector<8x8xf32> to vector<8xf32>
    %240 = vector.shape_cast %239 : vector<8xf32> to vector<8x1xf32>
    %241 = tpu.reciprocal %240 {approx = true} : vector<8x1xf32> -> vector<8x1xf32>
    %242 = vector.broadcast %241 : vector<8x1xf32> to vector<8x8xf32>
    %243 = arith.mulf %238, %242 : vector<8x8xf32>
    %244 = vector.extract_strided_slice %175 {offsets = [0, 24], sizes = [8, 8], strides = [1, 1]} : vector<8x32xf32> to vector<8x8xf32>
    %cst_101 = arith.constant dense<0.000000e+00> : vector<8x8xf32>
    %245 = tpu.matmul %243, %244, %cst_101 {dimension_numbers = #tpu.dot_dimension_numbers<[1], [0], [0], [1], [0, 0, 1, 1], [], []>} : vector<8x8xf32>, vector<8x8xf32>, vector<8x8xf32> -> vector<8x8xf32>
    %246 = tpu.concatenate %194, %211, %228, %245 in 1 : vector<8x8xf32>, vector<8x8xf32>, vector<8x8xf32>, vector<8x8xf32> -> vector<8x32xf32>
    %cst_102 = arith.constant dense<0.000000e+00> : vector<8x32xf32>
    %247 = tpu.matmul %246, %167, %cst_102 {dimension_numbers = #tpu.dot_dimension_numbers<[1], [0], [0], [1], [0, 0, 1, 1], [], []>} : vector<8x32xf32>, vector<32x32xf32>, vector<8x32xf32> -> vector<8x32xf32>
    %248 = vector.broadcast %169 : vector<1x32xf32> to vector<8x32xf32>
    %249 = arith.addf %247, %248 : vector<8x32xf32>
    %250 = arith.addf %161, %249 : vector<8x32xf32>
    %c1_103 = arith.constant 1 : index
    %c0_104 = arith.constant 0 : index
    %c0_105 = arith.constant 0 : index
    %251 = vector.load %arg11[%c1_103, %c0_104, %c0_105] : memref<2x8x32xf32, #tpu.memory_space<vmem>>, vector<1x8x32xf32>
    %252 = vector.shape_cast %251 : vector<1x8x32xf32> to vector<8x32xf32>
    %c1_106 = arith.constant 1 : index
    %c0_107 = arith.constant 0 : index
    %c0_108 = arith.constant 0 : index
    %253 = vector.load %arg12[%c1_106, %c0_107, %c0_108] : memref<2x8x32xf32, #tpu.memory_space<vmem>>, vector<1x8x32xf32>
    %254 = vector.shape_cast %253 : vector<1x8x32xf32> to vector<8x32xf32>
    %255 = vector.shape_cast %250 : vector<8x32xf32> to vector<1x8x32xf32>
    %cst_109 = arith.constant dense<0.000000e+00> : vector<1xf32>
    %256 = vector.multi_reduction <add>, %255, %cst_109 [1, 2] : vector<1x8x32xf32> to vector<1xf32>
    %257 = vector.shape_cast %256 : vector<1xf32> to vector<1x1x1xf32>
    %258 = vector.extract %257[0, 0, 0] : f32 from vector<1x1x1xf32>
    %cst_110 = arith.constant 2.560000e+02 : f32
    %259 = arith.divf %258, %cst_110 : f32
    %260 = vector.broadcast %259 : f32 to vector<8x32xf32>
    %261 = arith.subf %250, %260 : vector<8x32xf32>
    %262 = arith.mulf %261, %261 : vector<8x32xf32>
    %263 = vector.shape_cast %262 : vector<8x32xf32> to vector<1x8x32xf32>
    %cst_111 = arith.constant dense<0.000000e+00> : vector<1xf32>
    %264 = vector.multi_reduction <add>, %263, %cst_111 [1, 2] : vector<1x8x32xf32> to vector<1xf32>
    %265 = vector.shape_cast %264 : vector<1xf32> to vector<1x1x1xf32>
    %266 = vector.extract %265[0, 0, 0] : f32 from vector<1x1x1xf32>
    %cst_112 = arith.constant 2.560000e+02 : f32
    %267 = arith.divf %266, %cst_112 : f32
    %268 = vector.broadcast %259 : f32 to vector<8x32xf32>
    %269 = arith.subf %250, %268 : vector<8x32xf32>
    %cst_113 = arith.constant 9.99999974E-6 : f32
    %270 = arith.addf %267, %cst_113 : f32
    %271 = math.rsqrt %270 : f32
    %272 = vector.broadcast %271 : f32 to vector<8x32xf32>
    %273 = arith.mulf %269, %272 : vector<8x32xf32>
    %274 = arith.mulf %273, %252 : vector<8x32xf32>
    %275 = arith.addf %274, %254 : vector<8x32xf32>
    %c1_114 = arith.constant 1 : index
    %c0_115 = arith.constant 0 : index
    %c0_116 = arith.constant 0 : index
    %276 = vector.load %arg7[%c1_114, %c0_115, %c0_116] : memref<2x32x64xf32, #tpu.memory_space<vmem>>, vector<1x32x64xf32>
    %277 = vector.shape_cast %276 : vector<1x32x64xf32> to vector<32x64xf32>
    %c1_117 = arith.constant 1 : index
    %c0_118 = arith.constant 0 : index
    %c0_119 = arith.constant 0 : index
    %278 = vector.load %arg8[%c1_117, %c0_118, %c0_119] : memref<2x1x64xf32, #tpu.memory_space<vmem>>, vector<1x1x64xf32>
    %279 = vector.shape_cast %278 : vector<1x1x64xf32> to vector<1x64xf32>
    %c1_120 = arith.constant 1 : index
    %c0_121 = arith.constant 0 : index
    %c0_122 = arith.constant 0 : index
    %280 = vector.load %arg9[%c1_120, %c0_121, %c0_122] : memref<2x64x32xf32, #tpu.memory_space<vmem>>, vector<1x64x32xf32>
    %281 = vector.shape_cast %280 : vector<1x64x32xf32> to vector<64x32xf32>
    %c1_123 = arith.constant 1 : index
    %c0_124 = arith.constant 0 : index
    %c0_125 = arith.constant 0 : index
    %282 = vector.load %arg10[%c1_123, %c0_124, %c0_125] : memref<2x1x32xf32, #tpu.memory_space<vmem>>, vector<1x1x32xf32>
    %283 = vector.shape_cast %282 : vector<1x1x32xf32> to vector<1x32xf32>
    %cst_126 = arith.constant dense<0.000000e+00> : vector<8x64xf32>
    %284 = tpu.matmul %275, %277, %cst_126 {dimension_numbers = #tpu.dot_dimension_numbers<[1], [0], [0], [1], [0, 0, 1, 1], [], []>} : vector<8x32xf32>, vector<32x64xf32>, vector<8x64xf32> -> vector<8x64xf32>
    %285 = vector.broadcast %279 : vector<1x64xf32> to vector<8x64xf32>
    %286 = arith.addf %284, %285 : vector<8x64xf32>
    %cst_127 = arith.constant 0.000000e+00 : f32
    %287 = vector.broadcast %cst_127 : f32 to vector<8x64xf32>
    %288 = arith.maximumf %286, %287 : vector<8x64xf32>
    %cst_128 = arith.constant dense<0.000000e+00> : vector<8x32xf32>
    %289 = tpu.matmul %288, %281, %cst_128 {dimension_numbers = #tpu.dot_dimension_numbers<[1], [0], [0], [1], [0, 0, 1, 1], [], []>} : vector<8x64xf32>, vector<64x32xf32>, vector<8x32xf32> -> vector<8x32xf32>
    %290 = vector.broadcast %283 : vector<1x32xf32> to vector<8x32xf32>
    %291 = arith.addf %289, %290 : vector<8x32xf32>
    %292 = arith.addf %275, %291 : vector<8x32xf32>
    %c1_129 = arith.constant 1 : index
    %c0_130 = arith.constant 0 : index
    %c0_131 = arith.constant 0 : index
    %293 = vector.load %arg13[%c1_129, %c0_130, %c0_131] : memref<2x8x32xf32, #tpu.memory_space<vmem>>, vector<1x8x32xf32>
    %294 = vector.shape_cast %293 : vector<1x8x32xf32> to vector<8x32xf32>
    %c1_132 = arith.constant 1 : index
    %c0_133 = arith.constant 0 : index
    %c0_134 = arith.constant 0 : index
    %295 = vector.load %arg14[%c1_132, %c0_133, %c0_134] : memref<2x8x32xf32, #tpu.memory_space<vmem>>, vector<1x8x32xf32>
    %296 = vector.shape_cast %295 : vector<1x8x32xf32> to vector<8x32xf32>
    %297 = vector.shape_cast %292 : vector<8x32xf32> to vector<1x8x32xf32>
    %cst_135 = arith.constant dense<0.000000e+00> : vector<1xf32>
    %298 = vector.multi_reduction <add>, %297, %cst_135 [1, 2] : vector<1x8x32xf32> to vector<1xf32>
    %299 = vector.shape_cast %298 : vector<1xf32> to vector<1x1x1xf32>
    %300 = vector.extract %299[0, 0, 0] : f32 from vector<1x1x1xf32>
    %cst_136 = arith.constant 2.560000e+02 : f32
    %301 = arith.divf %300, %cst_136 : f32
    %302 = vector.broadcast %301 : f32 to vector<8x32xf32>
    %303 = arith.subf %292, %302 : vector<8x32xf32>
    %304 = arith.mulf %303, %303 : vector<8x32xf32>
    %305 = vector.shape_cast %304 : vector<8x32xf32> to vector<1x8x32xf32>
    %cst_137 = arith.constant dense<0.000000e+00> : vector<1xf32>
    %306 = vector.multi_reduction <add>, %305, %cst_137 [1, 2] : vector<1x8x32xf32> to vector<1xf32>
    %307 = vector.shape_cast %306 : vector<1xf32> to vector<1x1x1xf32>
    %308 = vector.extract %307[0, 0, 0] : f32 from vector<1x1x1xf32>
    %cst_138 = arith.constant 2.560000e+02 : f32
    %309 = arith.divf %308, %cst_138 : f32
    %310 = vector.broadcast %301 : f32 to vector<8x32xf32>
    %311 = arith.subf %292, %310 : vector<8x32xf32>
    %cst_139 = arith.constant 9.99999974E-6 : f32
    %312 = arith.addf %309, %cst_139 : f32
    %313 = math.rsqrt %312 : f32
    %314 = vector.broadcast %313 : f32 to vector<8x32xf32>
    %315 = arith.mulf %311, %314 : vector<8x32xf32>
    %316 = arith.mulf %315, %294 : vector<8x32xf32>
    %317 = arith.addf %316, %296 : vector<8x32xf32>
    %c0_140 = arith.constant 0 : index
    %c0_141 = arith.constant 0 : index
    %c0_142 = arith.constant 0 : index
    %318 = vector.load %arg15[%c0_140, %c0_141, %c0_142] : memref<1x8x32xf32, #tpu.memory_space<vmem>>, vector<1x8x32xf32>
    %319 = vector.shape_cast %318 : vector<1x8x32xf32> to vector<8x32xf32>
    %320 = vector.shape_cast %317 : vector<8x32xf32> to vector<1x8x32xf32>
    tpu.vector_store %arg15[%c0_140, %c0_141, %c0_142], %320 {strides = array<i32>} : memref<1x8x32xf32, #tpu.memory_space<vmem>>, vector<1x8x32xf32>,
    return
  }
  func.func @transform_0(%arg0: i32) -> (i32, i32, i32) {
    %c0_i32 = arith.constant 0 : i32
    %c0_i32_0 = arith.constant 0 : i32
    %c0_i32_1 = arith.constant 0 : i32
    return %arg0, %c0_i32, %c0_i32_0 : i32, i32, i32
  }
  func.func @transform_1(%arg0: i32) -> (i32, i32, i32) {
    %c0_i32 = arith.constant 0 : i32
    %c0_i32_0 = arith.constant 0 : i32
    %c0_i32_1 = arith.constant 0 : i32
    return %arg0, %c0_i32, %c0_i32_0 : i32, i32, i32
  }
  func.func @transform_2(%arg0: i32) -> (i32, i32, i32) {
    %c0_i32 = arith.constant 0 : i32
    %c0_i32_0 = arith.constant 0 : i32
    %c0_i32_1 = arith.constant 0 : i32
    %c0_i32_2 = arith.constant 0 : i32
    return %c0_i32, %c0_i32_0, %c0_i32_1 : i32, i32, i32
  }
  func.func @transform_3(%arg0: i32) -> (i32, i32, i32) {
    %c0_i32 = arith.constant 0 : i32
    %c0_i32_0 = arith.constant 0 : i32
    %c0_i32_1 = arith.constant 0 : i32
    %c0_i32_2 = arith.constant 0 : i32
    return %c0_i32, %c0_i32_0, %c0_i32_1 : i32, i32, i32
  }
  func.func @transform_4(%arg0: i32) -> (i32, i32, i32) {
    %c0_i32 = arith.constant 0 : i32
    %c0_i32_0 = arith.constant 0 : i32
    %c0_i32_1 = arith.constant 0 : i32
    %c0_i32_2 = arith.constant 0 : i32
    return %c0_i32, %c0_i32_0, %c0_i32_1 : i32, i32, i32
  }
  func.func @transform_5(%arg0: i32) -> (i32, i32, i32) {
    %c0_i32 = arith.constant 0 : i32
    %c0_i32_0 = arith.constant 0 : i32
    %c0_i32_1 = arith.constant 0 : i32
    %c0_i32_2 = arith.constant 0 : i32
    return %c0_i32, %c0_i32_0, %c0_i32_1 : i32, i32, i32
  }
  func.func @transform_6(%arg0: i32) -> (i32, i32, i32) {
    %c0_i32 = arith.constant 0 : i32
    %c0_i32_0 = arith.constant 0 : i32
    %c0_i32_1 = arith.constant 0 : i32
    %c0_i32_2 = arith.constant 0 : i32
    return %c0_i32, %c0_i32_0, %c0_i32_1 : i32, i32, i32
  }
  func.func @transform_7(%arg0: i32) -> (i32, i32, i32) {
    %c0_i32 = arith.constant 0 : i32
    %c0_i32_0 = arith.constant 0 : i32
    %c0_i32_1 = arith.constant 0 : i32
    %c0_i32_2 = arith.constant 0 : i32
    return %c0_i32, %c0_i32_0, %c0_i32_1 : i32, i32, i32
  }
  func.func @transform_8(%arg0: i32) -> (i32, i32, i32) {
    %c0_i32 = arith.constant 0 : i32
    %c0_i32_0 = arith.constant 0 : i32
    %c0_i32_1 = arith.constant 0 : i32
    %c0_i32_2 = arith.constant 0 : i32
    return %c0_i32, %c0_i32_0, %c0_i32_1 : i32, i32, i32
  }
  func.func @transform_9(%arg0: i32) -> (i32, i32, i32) {
    %c0_i32 = arith.constant 0 : i32
    %c0_i32_0 = arith.constant 0 : i32
    %c0_i32_1 = arith.constant 0 : i32
    %c0_i32_2 = arith.constant 0 : i32
    return %c0_i32, %c0_i32_0, %c0_i32_1 : i32, i32, i32
  }
  func.func @transform_10(%arg0: i32) -> (i32, i32, i32) {
    %c0_i32 = arith.constant 0 : i32
    %c0_i32_0 = arith.constant 0 : i32
    %c0_i32_1 = arith.constant 0 : i32
    %c0_i32_2 = arith.constant 0 : i32
    return %c0_i32, %c0_i32_0, %c0_i32_1 : i32, i32, i32
  }
  func.func @transform_11(%arg0: i32) -> (i32, i32, i32) {
    %c0_i32 = arith.constant 0 : i32
    %c0_i32_0 = arith.constant 0 : i32
    %c0_i32_1 = arith.constant 0 : i32
    %c0_i32_2 = arith.constant 0 : i32
    return %c0_i32, %c0_i32_0, %c0_i32_1 : i32, i32, i32
  }
  func.func @transform_12(%arg0: i32) -> (i32, i32, i32) {
    %c0_i32 = arith.constant 0 : i32
    %c0_i32_0 = arith.constant 0 : i32
    %c0_i32_1 = arith.constant 0 : i32
    %c0_i32_2 = arith.constant 0 : i32
    return %c0_i32, %c0_i32_0, %c0_i32_1 : i32, i32, i32
  }
  func.func @transform_13(%arg0: i32) -> (i32, i32, i32) {
    %c0_i32 = arith.constant 0 : i32
    %c0_i32_0 = arith.constant 0 : i32
    %c0_i32_1 = arith.constant 0 : i32
    %c0_i32_2 = arith.constant 0 : i32
    return %c0_i32, %c0_i32_0, %c0_i32_1 : i32, i32, i32
  }
  func.func @transform_14(%arg0: i32) -> (i32, i32, i32) {
    %c0_i32 = arith.constant 0 : i32
    %c0_i32_0 = arith.constant 0 : i32
    %c0_i32_1 = arith.constant 0 : i32
    return %arg0, %c0_i32, %c0_i32_0 : i32, i32, i32
  }
}

module attributes {stable_mosaic.version = 11 : i64} {
  func.func @_decoder_kernel(%arg0: i32, %arg1: memref<1x8x32xf32, #tpu.memory_space<vmem>>, %arg2: memref<1x8x32xf32, #tpu.memory_space<vmem>>, %arg3: memref<1x8x8xf32, #tpu.memory_space<vmem>>, %arg4: memref<1x1x8xf32, #tpu.memory_space<vmem>>, %arg5: memref<2x32x96xf32, #tpu.memory_space<vmem>>, %arg6: memref<2x1x96xf32, #tpu.memory_space<vmem>>, %arg7: memref<2x32x32xf32, #tpu.memory_space<vmem>>, %arg8: memref<2x1x32xf32, #tpu.memory_space<vmem>>, %arg9: memref<2x32x96xf32, #tpu.memory_space<vmem>>, %arg10: memref<2x1x96xf32, #tpu.memory_space<vmem>>, %arg11: memref<2x32x32xf32, #tpu.memory_space<vmem>>, %arg12: memref<2x1x32xf32, #tpu.memory_space<vmem>>, %arg13: memref<2x32x64xf32, #tpu.memory_space<vmem>>, %arg14: memref<2x1x64xf32, #tpu.memory_space<vmem>>, %arg15: memref<2x64x32xf32, #tpu.memory_space<vmem>>, %arg16: memref<2x1x32xf32, #tpu.memory_space<vmem>>, %arg17: memref<2x8x32xf32, #tpu.memory_space<vmem>>, %arg18: memref<2x8x32xf32, #tpu.memory_space<vmem>>, %arg19: memref<2x8x32xf32, #tpu.memory_space<vmem>>, %arg20: memref<2x8x32xf32, #tpu.memory_space<vmem>>, %arg21: memref<2x8x32xf32, #tpu.memory_space<vmem>>, %arg22: memref<2x8x32xf32, #tpu.memory_space<vmem>>, %arg23: memref<32x40xf32, #tpu.memory_space<vmem>>, %arg24: memref<1x40xf32, #tpu.memory_space<vmem>>, %arg25: memref<1x8x40xf32, #tpu.memory_space<vmem>>, %arg26: memref<2x1x8x32xf32, #tpu.memory_space<vmem>>, %arg27: memref<2x1x8x32xf32, #tpu.memory_space<vmem>>) attributes {dimension_semantics = [#tpu.dimension_semantics<parallel>], iteration_bounds = array<i64: 2>, scalar_prefetch = 0 : i64, scratch_operands = 0 : i64, tpu.core_type = #tpu.core_type<tc>, window_params = [{transform_indices = @transform_0, window_bounds = array<i64: 1, 8, 32>}, {transform_indices = @transform_1, window_bounds = array<i64: 1, 8, 32>}, {transform_indices = @transform_2, window_bounds = array<i64: 1, 8, 8>}, {transform_indices = @transform_3, window_bounds = array<i64: 1, 1, 8>}, {pipeline_mode = #tpu.pipeline_mode<synchronous>, transform_indices = @transform_4, window_bounds = array<i64: 2, 32, 96>}, {pipeline_mode = #tpu.pipeline_mode<synchronous>, transform_indices = @transform_5, window_bounds = array<i64: 2, 1, 96>}, {pipeline_mode = #tpu.pipeline_mode<synchronous>, transform_indices = @transform_6, window_bounds = array<i64: 2, 32, 32>}, {pipeline_mode = #tpu.pipeline_mode<synchronous>, transform_indices = @transform_7, window_bounds = array<i64: 2, 1, 32>}, {pipeline_mode = #tpu.pipeline_mode<synchronous>, transform_indices = @transform_8, window_bounds = array<i64: 2, 32, 96>}, {pipeline_mode = #tpu.pipeline_mode<synchronous>, transform_indices = @transform_9, window_bounds = array<i64: 2, 1, 96>}, {pipeline_mode = #tpu.pipeline_mode<synchronous>, transform_indices = @transform_10, window_bounds = array<i64: 2, 32, 32>}, {pipeline_mode = #tpu.pipeline_mode<synchronous>, transform_indices = @transform_11, window_bounds = array<i64: 2, 1, 32>}, {pipeline_mode = #tpu.pipeline_mode<synchronous>, transform_indices = @transform_12, window_bounds = array<i64: 2, 32, 64>}, {pipeline_mode = #tpu.pipeline_mode<synchronous>, transform_indices = @transform_13, window_bounds = array<i64: 2, 1, 64>}, {pipeline_mode = #tpu.pipeline_mode<synchronous>, transform_indices = @transform_14, window_bounds = array<i64: 2, 64, 32>}, {pipeline_mode = #tpu.pipeline_mode<synchronous>, transform_indices = @transform_15, window_bounds = array<i64: 2, 1, 32>}, {pipeline_mode = #tpu.pipeline_mode<synchronous>, transform_indices = @transform_16, window_bounds = array<i64: 2, 8, 32>}, {pipeline_mode = #tpu.pipeline_mode<synchronous>, transform_indices = @transform_17, window_bounds = array<i64: 2, 8, 32>}, {pipeline_mode = #tpu.pipeline_mode<synchronous>, transform_indices = @transform_18, window_bounds = array<i64: 2, 8, 32>}, {pipeline_mode = #tpu.pipeline_mode<synchronous>, transform_indices = @transform_19, window_bounds = array<i64: 2, 8, 32>}, {pipeline_mode = #tpu.pipeline_mode<synchronous>, transform_indices = @transform_20, window_bounds = array<i64: 2, 8, 32>}, {pipeline_mode = #tpu.pipeline_mode<synchronous>, transform_indices = @transform_21, window_bounds = array<i64: 2, 8, 32>}, {pipeline_mode = #tpu.pipeline_mode<synchronous>, transform_indices = @transform_22, window_bounds = array<i64: 32, 40>}, {pipeline_mode = #tpu.pipeline_mode<synchronous>, transform_indices = @transform_23, window_bounds = array<i64: 1, 40>}, {transform_indices = @transform_24, window_bounds = array<i64: 1, 8, 40>}, {transform_indices = @transform_25, window_bounds = array<i64: 2, 1, 8, 32>}, {transform_indices = @transform_26, window_bounds = array<i64: 2, 1, 8, 32>}]} {
    %c0 = arith.constant 0 : index
    %c0_0 = arith.constant 0 : index
    %c0_1 = arith.constant 0 : index
    %0 = vector.load %arg1[%c0, %c0_0, %c0_1] : memref<1x8x32xf32, #tpu.memory_space<vmem>>, vector<1x8x32xf32>
    %1 = vector.shape_cast %0 : vector<1x8x32xf32> to vector<8x32xf32>
    %c0_2 = arith.constant 0 : index
    %c0_3 = arith.constant 0 : index
    %c0_4 = arith.constant 0 : index
    %2 = vector.load %arg2[%c0_2, %c0_3, %c0_4] : memref<1x8x32xf32, #tpu.memory_space<vmem>>, vector<1x8x32xf32>
    %3 = vector.shape_cast %2 : vector<1x8x32xf32> to vector<8x32xf32>
    %c0_5 = arith.constant 0 : index
    %c0_6 = arith.constant 0 : index
    %c0_7 = arith.constant 0 : index
    %4 = vector.load %arg3[%c0_5, %c0_6, %c0_7] : memref<1x8x8xf32, #tpu.memory_space<vmem>>, vector<1x8x8xf32>
    %5 = vector.shape_cast %4 : vector<1x8x8xf32> to vector<8x8xf32>
    %cst = arith.constant -1.000000e+09 : f32
    %6 = vector.broadcast %cst : f32 to vector<8x8xf32>
    %7 = arith.mulf %5, %6 : vector<8x8xf32>
    %c0_8 = arith.constant 0 : index
    %c0_9 = arith.constant 0 : index
    %c0_10 = arith.constant 0 : index
    %8 = vector.load %arg4[%c0_8, %c0_9, %c0_10] : memref<1x1x8xf32, #tpu.memory_space<vmem>>, vector<1x1x8xf32>
    %9 = vector.shape_cast %8 : vector<1x1x8xf32> to vector<1x8xf32>
    %cst_11 = arith.constant -1.000000e+09 : f32
    %10 = vector.broadcast %cst_11 : f32 to vector<1x8xf32>
    %11 = arith.mulf %9, %10 : vector<1x8xf32>
    %c0_12 = arith.constant 0 : index
    %c0_13 = arith.constant 0 : index
    %c0_14 = arith.constant 0 : index
    %12 = vector.load %arg5[%c0_12, %c0_13, %c0_14] : memref<2x32x96xf32, #tpu.memory_space<vmem>>, vector<1x32x96xf32>
    %13 = vector.shape_cast %12 : vector<1x32x96xf32> to vector<32x96xf32>
    %c0_15 = arith.constant 0 : index
    %c0_16 = arith.constant 0 : index
    %c0_17 = arith.constant 0 : index
    %14 = vector.load %arg6[%c0_15, %c0_16, %c0_17] : memref<2x1x96xf32, #tpu.memory_space<vmem>>, vector<1x1x96xf32>
    %15 = vector.shape_cast %14 : vector<1x1x96xf32> to vector<1x96xf32>
    %c0_18 = arith.constant 0 : index
    %c0_19 = arith.constant 0 : index
    %c0_20 = arith.constant 0 : index
    %16 = vector.load %arg7[%c0_18, %c0_19, %c0_20] : memref<2x32x32xf32, #tpu.memory_space<vmem>>, vector<1x32x32xf32>
    %17 = vector.shape_cast %16 : vector<1x32x32xf32> to vector<32x32xf32>
    %c0_21 = arith.constant 0 : index
    %c0_22 = arith.constant 0 : index
    %c0_23 = arith.constant 0 : index
    %18 = vector.load %arg8[%c0_21, %c0_22, %c0_23] : memref<2x1x32xf32, #tpu.memory_space<vmem>>, vector<1x1x32xf32>
    %19 = vector.shape_cast %18 : vector<1x1x32xf32> to vector<1x32xf32>
    %cst_24 = arith.constant dense<0.000000e+00> : vector<8x96xf32>
    %20 = tpu.matmul %1, %13, %cst_24 {dimension_numbers = #tpu.dot_dimension_numbers<[1], [0], [0], [1], [0, 0, 1, 1], [], []>} : vector<8x32xf32>, vector<32x96xf32>, vector<8x96xf32> -> vector<8x96xf32>
    %21 = vector.broadcast %15 : vector<1x96xf32> to vector<8x96xf32>
    %22 = arith.addf %20, %21 : vector<8x96xf32>
    %23 = vector.extract_strided_slice %22 {offsets = [0, 0], sizes = [8, 32], strides = [1, 1]} : vector<8x96xf32> to vector<8x32xf32>
    %24 = vector.extract_strided_slice %22 {offsets = [0, 32], sizes = [8, 32], strides = [1, 1]} : vector<8x96xf32> to vector<8x32xf32>
    %25 = vector.extract_strided_slice %22 {offsets = [0, 64], sizes = [8, 32], strides = [1, 1]} : vector<8x96xf32> to vector<8x32xf32>
    %cst_25 = arith.constant 0.353553385 : f32
    %26 = vector.broadcast %cst_25 : f32 to vector<8x32xf32>
    %27 = arith.mulf %23, %26 : vector<8x32xf32>
    %28 = vector.extract_strided_slice %27 {offsets = [0, 0], sizes = [8, 8], strides = [1, 1]} : vector<8x32xf32> to vector<8x8xf32>
    %29 = vector.extract_strided_slice %24 {offsets = [0, 0], sizes = [8, 8], strides = [1, 1]} : vector<8x32xf32> to vector<8x8xf32>
    %cst_26 = arith.constant dense<0.000000e+00> : vector<8x8xf32>
    %30 = tpu.matmul %28, %29, %cst_26 {dimension_numbers = #tpu.dot_dimension_numbers<[1], [1], [0], [0], [0, 0, 1, 0], [], []>} : vector<8x8xf32>, vector<8x8xf32>, vector<8x8xf32> -> vector<8x8xf32>
    %31 = arith.addf %30, %7 : vector<8x8xf32>
    %cst_27 = arith.constant dense<0xFF800000> : vector<8xf32>
    %32 = vector.multi_reduction <maximumf>, %31, %cst_27 [1] : vector<8x8xf32> to vector<8xf32>
    %33 = vector.shape_cast %32 : vector<8xf32> to vector<8x1xf32>
    %34 = vector.broadcast %33 : vector<8x1xf32> to vector<8x8xf32>
    %35 = arith.subf %31, %34 : vector<8x8xf32>
    %36 = math.exp %35 : vector<8x8xf32>
    %cst_28 = arith.constant dense<0.000000e+00> : vector<8xf32>
    %37 = vector.multi_reduction <add>, %36, %cst_28 [1] : vector<8x8xf32> to vector<8xf32>
    %38 = vector.shape_cast %37 : vector<8xf32> to vector<8x1xf32>
    %39 = tpu.reciprocal %38 {approx = true} : vector<8x1xf32> -> vector<8x1xf32>
    %40 = vector.broadcast %39 : vector<8x1xf32> to vector<8x8xf32>
    %41 = arith.mulf %36, %40 : vector<8x8xf32>
    %42 = vector.extract_strided_slice %25 {offsets = [0, 0], sizes = [8, 8], strides = [1, 1]} : vector<8x32xf32> to vector<8x8xf32>
    %cst_29 = arith.constant dense<0.000000e+00> : vector<8x8xf32>
    %43 = tpu.matmul %41, %42, %cst_29 {dimension_numbers = #tpu.dot_dimension_numbers<[1], [0], [0], [1], [0, 0, 1, 1], [], []>} : vector<8x8xf32>, vector<8x8xf32>, vector<8x8xf32> -> vector<8x8xf32>
    %44 = vector.extract_strided_slice %27 {offsets = [0, 8], sizes = [8, 8], strides = [1, 1]} : vector<8x32xf32> to vector<8x8xf32>
    %45 = vector.extract_strided_slice %24 {offsets = [0, 8], sizes = [8, 8], strides = [1, 1]} : vector<8x32xf32> to vector<8x8xf32>
    %cst_30 = arith.constant dense<0.000000e+00> : vector<8x8xf32>
    %46 = tpu.matmul %44, %45, %cst_30 {dimension_numbers = #tpu.dot_dimension_numbers<[1], [1], [0], [0], [0, 0, 1, 0], [], []>} : vector<8x8xf32>, vector<8x8xf32>, vector<8x8xf32> -> vector<8x8xf32>
    %47 = arith.addf %46, %7 : vector<8x8xf32>
    %cst_31 = arith.constant dense<0xFF800000> : vector<8xf32>
    %48 = vector.multi_reduction <maximumf>, %47, %cst_31 [1] : vector<8x8xf32> to vector<8xf32>
    %49 = vector.shape_cast %48 : vector<8xf32> to vector<8x1xf32>
    %50 = vector.broadcast %49 : vector<8x1xf32> to vector<8x8xf32>
    %51 = arith.subf %47, %50 : vector<8x8xf32>
    %52 = math.exp %51 : vector<8x8xf32>
    %cst_32 = arith.constant dense<0.000000e+00> : vector<8xf32>
    %53 = vector.multi_reduction <add>, %52, %cst_32 [1] : vector<8x8xf32> to vector<8xf32>
    %54 = vector.shape_cast %53 : vector<8xf32> to vector<8x1xf32>
    %55 = tpu.reciprocal %54 {approx = true} : vector<8x1xf32> -> vector<8x1xf32>
    %56 = vector.broadcast %55 : vector<8x1xf32> to vector<8x8xf32>
    %57 = arith.mulf %52, %56 : vector<8x8xf32>
    %58 = vector.extract_strided_slice %25 {offsets = [0, 8], sizes = [8, 8], strides = [1, 1]} : vector<8x32xf32> to vector<8x8xf32>
    %cst_33 = arith.constant dense<0.000000e+00> : vector<8x8xf32>
    %59 = tpu.matmul %57, %58, %cst_33 {dimension_numbers = #tpu.dot_dimension_numbers<[1], [0], [0], [1], [0, 0, 1, 1], [], []>} : vector<8x8xf32>, vector<8x8xf32>, vector<8x8xf32> -> vector<8x8xf32>
    %60 = vector.extract_strided_slice %27 {offsets = [0, 16], sizes = [8, 8], strides = [1, 1]} : vector<8x32xf32> to vector<8x8xf32>
    %61 = vector.extract_strided_slice %24 {offsets = [0, 16], sizes = [8, 8], strides = [1, 1]} : vector<8x32xf32> to vector<8x8xf32>
    %cst_34 = arith.constant dense<0.000000e+00> : vector<8x8xf32>
    %62 = tpu.matmul %60, %61, %cst_34 {dimension_numbers = #tpu.dot_dimension_numbers<[1], [1], [0], [0], [0, 0, 1, 0], [], []>} : vector<8x8xf32>, vector<8x8xf32>, vector<8x8xf32> -> vector<8x8xf32>
    %63 = arith.addf %62, %7 : vector<8x8xf32>
    %cst_35 = arith.constant dense<0xFF800000> : vector<8xf32>
    %64 = vector.multi_reduction <maximumf>, %63, %cst_35 [1] : vector<8x8xf32> to vector<8xf32>
    %65 = vector.shape_cast %64 : vector<8xf32> to vector<8x1xf32>
    %66 = vector.broadcast %65 : vector<8x1xf32> to vector<8x8xf32>
    %67 = arith.subf %63, %66 : vector<8x8xf32>
    %68 = math.exp %67 : vector<8x8xf32>
    %cst_36 = arith.constant dense<0.000000e+00> : vector<8xf32>
    %69 = vector.multi_reduction <add>, %68, %cst_36 [1] : vector<8x8xf32> to vector<8xf32>
    %70 = vector.shape_cast %69 : vector<8xf32> to vector<8x1xf32>
    %71 = tpu.reciprocal %70 {approx = true} : vector<8x1xf32> -> vector<8x1xf32>
    %72 = vector.broadcast %71 : vector<8x1xf32> to vector<8x8xf32>
    %73 = arith.mulf %68, %72 : vector<8x8xf32>
    %74 = vector.extract_strided_slice %25 {offsets = [0, 16], sizes = [8, 8], strides = [1, 1]} : vector<8x32xf32> to vector<8x8xf32>
    %cst_37 = arith.constant dense<0.000000e+00> : vector<8x8xf32>
    %75 = tpu.matmul %73, %74, %cst_37 {dimension_numbers = #tpu.dot_dimension_numbers<[1], [0], [0], [1], [0, 0, 1, 1], [], []>} : vector<8x8xf32>, vector<8x8xf32>, vector<8x8xf32> -> vector<8x8xf32>
    %76 = vector.extract_strided_slice %27 {offsets = [0, 24], sizes = [8, 8], strides = [1, 1]} : vector<8x32xf32> to vector<8x8xf32>
    %77 = vector.extract_strided_slice %24 {offsets = [0, 24], sizes = [8, 8], strides = [1, 1]} : vector<8x32xf32> to vector<8x8xf32>
    %cst_38 = arith.constant dense<0.000000e+00> : vector<8x8xf32>
    %78 = tpu.matmul %76, %77, %cst_38 {dimension_numbers = #tpu.dot_dimension_numbers<[1], [1], [0], [0], [0, 0, 1, 0], [], []>} : vector<8x8xf32>, vector<8x8xf32>, vector<8x8xf32> -> vector<8x8xf32>
    %79 = arith.addf %78, %7 : vector<8x8xf32>
    %cst_39 = arith.constant dense<0xFF800000> : vector<8xf32>
    %80 = vector.multi_reduction <maximumf>, %79, %cst_39 [1] : vector<8x8xf32> to vector<8xf32>
    %81 = vector.shape_cast %80 : vector<8xf32> to vector<8x1xf32>
    %82 = vector.broadcast %81 : vector<8x1xf32> to vector<8x8xf32>
    %83 = arith.subf %79, %82 : vector<8x8xf32>
    %84 = math.exp %83 : vector<8x8xf32>
    %cst_40 = arith.constant dense<0.000000e+00> : vector<8xf32>
    %85 = vector.multi_reduction <add>, %84, %cst_40 [1] : vector<8x8xf32> to vector<8xf32>
    %86 = vector.shape_cast %85 : vector<8xf32> to vector<8x1xf32>
    %87 = tpu.reciprocal %86 {approx = true} : vector<8x1xf32> -> vector<8x1xf32>
    %88 = vector.broadcast %87 : vector<8x1xf32> to vector<8x8xf32>
    %89 = arith.mulf %84, %88 : vector<8x8xf32>
    %90 = vector.extract_strided_slice %25 {offsets = [0, 24], sizes = [8, 8], strides = [1, 1]} : vector<8x32xf32> to vector<8x8xf32>
    %cst_41 = arith.constant dense<0.000000e+00> : vector<8x8xf32>
    %91 = tpu.matmul %89, %90, %cst_41 {dimension_numbers = #tpu.dot_dimension_numbers<[1], [0], [0], [1], [0, 0, 1, 1], [], []>} : vector<8x8xf32>, vector<8x8xf32>, vector<8x8xf32> -> vector<8x8xf32>
    %92 = tpu.concatenate %43, %59, %75, %91 in 1 : vector<8x8xf32>, vector<8x8xf32>, vector<8x8xf32>, vector<8x8xf32> -> vector<8x32xf32>
    %cst_42 = arith.constant dense<0.000000e+00> : vector<8x32xf32>
    %93 = tpu.matmul %92, %17, %cst_42 {dimension_numbers = #tpu.dot_dimension_numbers<[1], [0], [0], [1], [0, 0, 1, 1], [], []>} : vector<8x32xf32>, vector<32x32xf32>, vector<8x32xf32> -> vector<8x32xf32>
    %94 = vector.broadcast %19 : vector<1x32xf32> to vector<8x32xf32>
    %95 = arith.addf %93, %94 : vector<8x32xf32>
    %96 = tpu.concatenate %41, %57, %73, %89 in 1 : vector<8x8xf32>, vector<8x8xf32>, vector<8x8xf32>, vector<8x8xf32> -> vector<8x32xf32>
    %97 = arith.addf %95, %1 : vector<8x32xf32>
    %c0_43 = arith.constant 0 : index
    %c0_44 = arith.constant 0 : index
    %c0_45 = arith.constant 0 : index
    %98 = vector.load %arg17[%c0_43, %c0_44, %c0_45] : memref<2x8x32xf32, #tpu.memory_space<vmem>>, vector<1x8x32xf32>
    %99 = vector.shape_cast %98 : vector<1x8x32xf32> to vector<8x32xf32>
    %c0_46 = arith.constant 0 : index
    %c0_47 = arith.constant 0 : index
    %c0_48 = arith.constant 0 : index
    %100 = vector.load %arg18[%c0_46, %c0_47, %c0_48] : memref<2x8x32xf32, #tpu.memory_space<vmem>>, vector<1x8x32xf32>
    %101 = vector.shape_cast %100 : vector<1x8x32xf32> to vector<8x32xf32>
    %102 = vector.shape_cast %97 : vector<8x32xf32> to vector<1x8x32xf32>
    %cst_49 = arith.constant dense<0.000000e+00> : vector<1xf32>
    %103 = vector.multi_reduction <add>, %102, %cst_49 [1, 2] : vector<1x8x32xf32> to vector<1xf32>
    %104 = vector.shape_cast %103 : vector<1xf32> to vector<1x1x1xf32>
    %105 = vector.extract %104[0, 0, 0] : f32 from vector<1x1x1xf32>
    %cst_50 = arith.constant 2.560000e+02 : f32
    %106 = arith.divf %105, %cst_50 : f32
    %107 = vector.broadcast %106 : f32 to vector<8x32xf32>
    %108 = arith.subf %97, %107 : vector<8x32xf32>
    %109 = arith.mulf %108, %108 : vector<8x32xf32>
    %110 = vector.shape_cast %109 : vector<8x32xf32> to vector<1x8x32xf32>
    %cst_51 = arith.constant dense<0.000000e+00> : vector<1xf32>
    %111 = vector.multi_reduction <add>, %110, %cst_51 [1, 2] : vector<1x8x32xf32> to vector<1xf32>
    %112 = vector.shape_cast %111 : vector<1xf32> to vector<1x1x1xf32>
    %113 = vector.extract %112[0, 0, 0] : f32 from vector<1x1x1xf32>
    %cst_52 = arith.constant 2.560000e+02 : f32
    %114 = arith.divf %113, %cst_52 : f32
    %115 = vector.broadcast %106 : f32 to vector<8x32xf32>
    %116 = arith.subf %97, %115 : vector<8x32xf32>
    %cst_53 = arith.constant 9.99999974E-6 : f32
    %117 = arith.addf %114, %cst_53 : f32
    %118 = math.rsqrt %117 : f32
    %119 = vector.broadcast %118 : f32 to vector<8x32xf32>
    %120 = arith.mulf %116, %119 : vector<8x32xf32>
    %121 = arith.mulf %120, %99 : vector<8x32xf32>
    %122 = arith.addf %121, %101 : vector<8x32xf32>
    %c0_54 = arith.constant 0 : index
    %c0_55 = arith.constant 0 : index
    %c0_56 = arith.constant 0 : index
    %123 = vector.load %arg9[%c0_54, %c0_55, %c0_56] : memref<2x32x96xf32, #tpu.memory_space<vmem>>, vector<1x32x96xf32>
    %124 = vector.shape_cast %123 : vector<1x32x96xf32> to vector<32x96xf32>
    %c0_57 = arith.constant 0 : index
    %c0_58 = arith.constant 0 : index
    %c0_59 = arith.constant 0 : index
    %125 = vector.load %arg10[%c0_57, %c0_58, %c0_59] : memref<2x1x96xf32, #tpu.memory_space<vmem>>, vector<1x1x96xf32>
    %126 = vector.shape_cast %125 : vector<1x1x96xf32> to vector<1x96xf32>
    %c0_60 = arith.constant 0 : index
    %c0_61 = arith.constant 0 : index
    %c0_62 = arith.constant 0 : index
    %127 = vector.load %arg11[%c0_60, %c0_61, %c0_62] : memref<2x32x32xf32, #tpu.memory_space<vmem>>, vector<1x32x32xf32>
    %128 = vector.shape_cast %127 : vector<1x32x32xf32> to vector<32x32xf32>
    %c0_63 = arith.constant 0 : index
    %c0_64 = arith.constant 0 : index
    %c0_65 = arith.constant 0 : index
    %129 = vector.load %arg12[%c0_63, %c0_64, %c0_65] : memref<2x1x32xf32, #tpu.memory_space<vmem>>, vector<1x1x32xf32>
    %130 = vector.shape_cast %129 : vector<1x1x32xf32> to vector<1x32xf32>
    %131 = vector.extract_strided_slice %124 {offsets = [0, 0], sizes = [32, 32], strides = [1, 1]} : vector<32x96xf32> to vector<32x32xf32>
    %cst_66 = arith.constant dense<0.000000e+00> : vector<8x32xf32>
    %132 = tpu.matmul %122, %131, %cst_66 {dimension_numbers = #tpu.dot_dimension_numbers<[1], [0], [0], [1], [0, 0, 1, 1], [], []>} : vector<8x32xf32>, vector<32x32xf32>, vector<8x32xf32> -> vector<8x32xf32>
    %133 = vector.extract_strided_slice %126 {offsets = [0, 0], sizes = [1, 32], strides = [1, 1]} : vector<1x96xf32> to vector<1x32xf32>
    %134 = vector.broadcast %133 : vector<1x32xf32> to vector<8x32xf32>
    %135 = arith.addf %132, %134 : vector<8x32xf32>
    %136 = vector.extract_strided_slice %124 {offsets = [0, 32], sizes = [32, 64], strides = [1, 1]} : vector<32x96xf32> to vector<32x64xf32>
    %cst_67 = arith.constant dense<0.000000e+00> : vector<8x64xf32>
    %137 = tpu.matmul %3, %136, %cst_67 {dimension_numbers = #tpu.dot_dimension_numbers<[1], [0], [0], [1], [0, 0, 1, 1], [], []>} : vector<8x32xf32>, vector<32x64xf32>, vector<8x64xf32> -> vector<8x64xf32>
    %138 = vector.extract_strided_slice %126 {offsets = [0, 32], sizes = [1, 64], strides = [1, 1]} : vector<1x96xf32> to vector<1x64xf32>
    %139 = vector.broadcast %138 : vector<1x64xf32> to vector<8x64xf32>
    %140 = arith.addf %137, %139 : vector<8x64xf32>
    %141 = vector.extract_strided_slice %140 {offsets = [0, 0], sizes = [8, 32], strides = [1, 1]} : vector<8x64xf32> to vector<8x32xf32>
    %142 = vector.extract_strided_slice %140 {offsets = [0, 32], sizes = [8, 32], strides = [1, 1]} : vector<8x64xf32> to vector<8x32xf32>
    %cst_68 = arith.constant 0.353553385 : f32
    %143 = vector.broadcast %cst_68 : f32 to vector<8x32xf32>
    %144 = arith.mulf %135, %143 : vector<8x32xf32>
    %145 = vector.extract_strided_slice %144 {offsets = [0, 0], sizes = [8, 8], strides = [1, 1]} : vector<8x32xf32> to vector<8x8xf32>
    %146 = vector.extract_strided_slice %141 {offsets = [0, 0], sizes = [8, 8], strides = [1, 1]} : vector<8x32xf32> to vector<8x8xf32>
    %cst_69 = arith.constant dense<0.000000e+00> : vector<8x8xf32>
    %147 = tpu.matmul %145, %146, %cst_69 {dimension_numbers = #tpu.dot_dimension_numbers<[1], [1], [0], [0], [0, 0, 1, 0], [], []>} : vector<8x8xf32>, vector<8x8xf32>, vector<8x8xf32> -> vector<8x8xf32>
    %148 = vector.broadcast %11 : vector<1x8xf32> to vector<8x8xf32>
    %149 = arith.addf %147, %148 : vector<8x8xf32>
    %cst_70 = arith.constant dense<0xFF800000> : vector<8xf32>
    %150 = vector.multi_reduction <maximumf>, %149, %cst_70 [1] : vector<8x8xf32> to vector<8xf32>
    %151 = vector.shape_cast %150 : vector<8xf32> to vector<8x1xf32>
    %152 = vector.broadcast %151 : vector<8x1xf32> to vector<8x8xf32>
    %153 = arith.subf %149, %152 : vector<8x8xf32>
    %154 = math.exp %153 : vector<8x8xf32>
    %cst_71 = arith.constant dense<0.000000e+00> : vector<8xf32>
    %155 = vector.multi_reduction <add>, %154, %cst_71 [1] : vector<8x8xf32> to vector<8xf32>
    %156 = vector.shape_cast %155 : vector<8xf32> to vector<8x1xf32>
    %157 = tpu.reciprocal %156 {approx = true} : vector<8x1xf32> -> vector<8x1xf32>
    %158 = vector.broadcast %157 : vector<8x1xf32> to vector<8x8xf32>
    %159 = arith.mulf %154, %158 : vector<8x8xf32>
    %160 = vector.extract_strided_slice %142 {offsets = [0, 0], sizes = [8, 8], strides = [1, 1]} : vector<8x32xf32> to vector<8x8xf32>
    %cst_72 = arith.constant dense<0.000000e+00> : vector<8x8xf32>
    %161 = tpu.matmul %159, %160, %cst_72 {dimension_numbers = #tpu.dot_dimension_numbers<[1], [0], [0], [1], [0, 0, 1, 1], [], []>} : vector<8x8xf32>, vector<8x8xf32>, vector<8x8xf32> -> vector<8x8xf32>
    %162 = vector.extract_strided_slice %144 {offsets = [0, 8], sizes = [8, 8], strides = [1, 1]} : vector<8x32xf32> to vector<8x8xf32>
    %163 = vector.extract_strided_slice %141 {offsets = [0, 8], sizes = [8, 8], strides = [1, 1]} : vector<8x32xf32> to vector<8x8xf32>
    %cst_73 = arith.constant dense<0.000000e+00> : vector<8x8xf32>
    %164 = tpu.matmul %162, %163, %cst_73 {dimension_numbers = #tpu.dot_dimension_numbers<[1], [1], [0], [0], [0, 0, 1, 0], [], []>} : vector<8x8xf32>, vector<8x8xf32>, vector<8x8xf32> -> vector<8x8xf32>
    %165 = vector.broadcast %11 : vector<1x8xf32> to vector<8x8xf32>
    %166 = arith.addf %164, %165 : vector<8x8xf32>
    %cst_74 = arith.constant dense<0xFF800000> : vector<8xf32>
    %167 = vector.multi_reduction <maximumf>, %166, %cst_74 [1] : vector<8x8xf32> to vector<8xf32>
    %168 = vector.shape_cast %167 : vector<8xf32> to vector<8x1xf32>
    %169 = vector.broadcast %168 : vector<8x1xf32> to vector<8x8xf32>
    %170 = arith.subf %166, %169 : vector<8x8xf32>
    %171 = math.exp %170 : vector<8x8xf32>
    %cst_75 = arith.constant dense<0.000000e+00> : vector<8xf32>
    %172 = vector.multi_reduction <add>, %171, %cst_75 [1] : vector<8x8xf32> to vector<8xf32>
    %173 = vector.shape_cast %172 : vector<8xf32> to vector<8x1xf32>
    %174 = tpu.reciprocal %173 {approx = true} : vector<8x1xf32> -> vector<8x1xf32>
    %175 = vector.broadcast %174 : vector<8x1xf32> to vector<8x8xf32>
    %176 = arith.mulf %171, %175 : vector<8x8xf32>
    %177 = vector.extract_strided_slice %142 {offsets = [0, 8], sizes = [8, 8], strides = [1, 1]} : vector<8x32xf32> to vector<8x8xf32>
    %cst_76 = arith.constant dense<0.000000e+00> : vector<8x8xf32>
    %178 = tpu.matmul %176, %177, %cst_76 {dimension_numbers = #tpu.dot_dimension_numbers<[1], [0], [0], [1], [0, 0, 1, 1], [], []>} : vector<8x8xf32>, vector<8x8xf32>, vector<8x8xf32> -> vector<8x8xf32>
    %179 = vector.extract_strided_slice %144 {offsets = [0, 16], sizes = [8, 8], strides = [1, 1]} : vector<8x32xf32> to vector<8x8xf32>
    %180 = vector.extract_strided_slice %141 {offsets = [0, 16], sizes = [8, 8], strides = [1, 1]} : vector<8x32xf32> to vector<8x8xf32>
    %cst_77 = arith.constant dense<0.000000e+00> : vector<8x8xf32>
    %181 = tpu.matmul %179, %180, %cst_77 {dimension_numbers = #tpu.dot_dimension_numbers<[1], [1], [0], [0], [0, 0, 1, 0], [], []>} : vector<8x8xf32>, vector<8x8xf32>, vector<8x8xf32> -> vector<8x8xf32>
    %182 = vector.broadcast %11 : vector<1x8xf32> to vector<8x8xf32>
    %183 = arith.addf %181, %182 : vector<8x8xf32>
    %cst_78 = arith.constant dense<0xFF800000> : vector<8xf32>
    %184 = vector.multi_reduction <maximumf>, %183, %cst_78 [1] : vector<8x8xf32> to vector<8xf32>
    %185 = vector.shape_cast %184 : vector<8xf32> to vector<8x1xf32>
    %186 = vector.broadcast %185 : vector<8x1xf32> to vector<8x8xf32>
    %187 = arith.subf %183, %186 : vector<8x8xf32>
    %188 = math.exp %187 : vector<8x8xf32>
    %cst_79 = arith.constant dense<0.000000e+00> : vector<8xf32>
    %189 = vector.multi_reduction <add>, %188, %cst_79 [1] : vector<8x8xf32> to vector<8xf32>
    %190 = vector.shape_cast %189 : vector<8xf32> to vector<8x1xf32>
    %191 = tpu.reciprocal %190 {approx = true} : vector<8x1xf32> -> vector<8x1xf32>
    %192 = vector.broadcast %191 : vector<8x1xf32> to vector<8x8xf32>
    %193 = arith.mulf %188, %192 : vector<8x8xf32>
    %194 = vector.extract_strided_slice %142 {offsets = [0, 16], sizes = [8, 8], strides = [1, 1]} : vector<8x32xf32> to vector<8x8xf32>
    %cst_80 = arith.constant dense<0.000000e+00> : vector<8x8xf32>
    %195 = tpu.matmul %193, %194, %cst_80 {dimension_numbers = #tpu.dot_dimension_numbers<[1], [0], [0], [1], [0, 0, 1, 1], [], []>} : vector<8x8xf32>, vector<8x8xf32>, vector<8x8xf32> -> vector<8x8xf32>
    %196 = vector.extract_strided_slice %144 {offsets = [0, 24], sizes = [8, 8], strides = [1, 1]} : vector<8x32xf32> to vector<8x8xf32>
    %197 = vector.extract_strided_slice %141 {offsets = [0, 24], sizes = [8, 8], strides = [1, 1]} : vector<8x32xf32> to vector<8x8xf32>
    %cst_81 = arith.constant dense<0.000000e+00> : vector<8x8xf32>
    %198 = tpu.matmul %196, %197, %cst_81 {dimension_numbers = #tpu.dot_dimension_numbers<[1], [1], [0], [0], [0, 0, 1, 0], [], []>} : vector<8x8xf32>, vector<8x8xf32>, vector<8x8xf32> -> vector<8x8xf32>
    %199 = vector.broadcast %11 : vector<1x8xf32> to vector<8x8xf32>
    %200 = arith.addf %198, %199 : vector<8x8xf32>
    %cst_82 = arith.constant dense<0xFF800000> : vector<8xf32>
    %201 = vector.multi_reduction <maximumf>, %200, %cst_82 [1] : vector<8x8xf32> to vector<8xf32>
    %202 = vector.shape_cast %201 : vector<8xf32> to vector<8x1xf32>
    %203 = vector.broadcast %202 : vector<8x1xf32> to vector<8x8xf32>
    %204 = arith.subf %200, %203 : vector<8x8xf32>
    %205 = math.exp %204 : vector<8x8xf32>
    %cst_83 = arith.constant dense<0.000000e+00> : vector<8xf32>
    %206 = vector.multi_reduction <add>, %205, %cst_83 [1] : vector<8x8xf32> to vector<8xf32>
    %207 = vector.shape_cast %206 : vector<8xf32> to vector<8x1xf32>
    %208 = tpu.reciprocal %207 {approx = true} : vector<8x1xf32> -> vector<8x1xf32>
    %209 = vector.broadcast %208 : vector<8x1xf32> to vector<8x8xf32>
    %210 = arith.mulf %205, %209 : vector<8x8xf32>
    %211 = vector.extract_strided_slice %142 {offsets = [0, 24], sizes = [8, 8], strides = [1, 1]} : vector<8x32xf32> to vector<8x8xf32>
    %cst_84 = arith.constant dense<0.000000e+00> : vector<8x8xf32>
    %212 = tpu.matmul %210, %211, %cst_84 {dimension_numbers = #tpu.dot_dimension_numbers<[1], [0], [0], [1], [0, 0, 1, 1], [], []>} : vector<8x8xf32>, vector<8x8xf32>, vector<8x8xf32> -> vector<8x8xf32>
    %213 = tpu.concatenate %161, %178, %195, %212 in 1 : vector<8x8xf32>, vector<8x8xf32>, vector<8x8xf32>, vector<8x8xf32> -> vector<8x32xf32>
    %cst_85 = arith.constant dense<0.000000e+00> : vector<8x32xf32>
    %214 = tpu.matmul %213, %128, %cst_85 {dimension_numbers = #tpu.dot_dimension_numbers<[1], [0], [0], [1], [0, 0, 1, 1], [], []>} : vector<8x32xf32>, vector<32x32xf32>, vector<8x32xf32> -> vector<8x32xf32>
    %215 = vector.broadcast %130 : vector<1x32xf32> to vector<8x32xf32>
    %216 = arith.addf %214, %215 : vector<8x32xf32>
    %217 = tpu.concatenate %159, %176, %193, %210 in 1 : vector<8x8xf32>, vector<8x8xf32>, vector<8x8xf32>, vector<8x8xf32> -> vector<8x32xf32>
    %218 = arith.addf %216, %122 : vector<8x32xf32>
    %c0_86 = arith.constant 0 : index
    %c0_87 = arith.constant 0 : index
    %c0_88 = arith.constant 0 : index
    %219 = vector.load %arg19[%c0_86, %c0_87, %c0_88] : memref<2x8x32xf32, #tpu.memory_space<vmem>>, vector<1x8x32xf32>
    %220 = vector.shape_cast %219 : vector<1x8x32xf32> to vector<8x32xf32>
    %c0_89 = arith.constant 0 : index
    %c0_90 = arith.constant 0 : index
    %c0_91 = arith.constant 0 : index
    %221 = vector.load %arg20[%c0_89, %c0_90, %c0_91] : memref<2x8x32xf32, #tpu.memory_space<vmem>>, vector<1x8x32xf32>
    %222 = vector.shape_cast %221 : vector<1x8x32xf32> to vector<8x32xf32>
    %223 = vector.shape_cast %218 : vector<8x32xf32> to vector<1x8x32xf32>
    %cst_92 = arith.constant dense<0.000000e+00> : vector<1xf32>
    %224 = vector.multi_reduction <add>, %223, %cst_92 [1, 2] : vector<1x8x32xf32> to vector<1xf32>
    %225 = vector.shape_cast %224 : vector<1xf32> to vector<1x1x1xf32>
    %226 = vector.extract %225[0, 0, 0] : f32 from vector<1x1x1xf32>
    %cst_93 = arith.constant 2.560000e+02 : f32
    %227 = arith.divf %226, %cst_93 : f32
    %228 = vector.broadcast %227 : f32 to vector<8x32xf32>
    %229 = arith.subf %218, %228 : vector<8x32xf32>
    %230 = arith.mulf %229, %229 : vector<8x32xf32>
    %231 = vector.shape_cast %230 : vector<8x32xf32> to vector<1x8x32xf32>
    %cst_94 = arith.constant dense<0.000000e+00> : vector<1xf32>
    %232 = vector.multi_reduction <add>, %231, %cst_94 [1, 2] : vector<1x8x32xf32> to vector<1xf32>
    %233 = vector.shape_cast %232 : vector<1xf32> to vector<1x1x1xf32>
    %234 = vector.extract %233[0, 0, 0] : f32 from vector<1x1x1xf32>
    %cst_95 = arith.constant 2.560000e+02 : f32
    %235 = arith.divf %234, %cst_95 : f32
    %236 = vector.broadcast %227 : f32 to vector<8x32xf32>
    %237 = arith.subf %218, %236 : vector<8x32xf32>
    %cst_96 = arith.constant 9.99999974E-6 : f32
    %238 = arith.addf %235, %cst_96 : f32
    %239 = math.rsqrt %238 : f32
    %240 = vector.broadcast %239 : f32 to vector<8x32xf32>
    %241 = arith.mulf %237, %240 : vector<8x32xf32>
    %242 = arith.mulf %241, %220 : vector<8x32xf32>
    %243 = arith.addf %242, %222 : vector<8x32xf32>
    %c0_97 = arith.constant 0 : index
    %c0_98 = arith.constant 0 : index
    %c0_99 = arith.constant 0 : index
    %244 = vector.load %arg13[%c0_97, %c0_98, %c0_99] : memref<2x32x64xf32, #tpu.memory_space<vmem>>, vector<1x32x64xf32>
    %245 = vector.shape_cast %244 : vector<1x32x64xf32> to vector<32x64xf32>
    %c0_100 = arith.constant 0 : index
    %c0_101 = arith.constant 0 : index
    %c0_102 = arith.constant 0 : index
    %246 = vector.load %arg14[%c0_100, %c0_101, %c0_102] : memref<2x1x64xf32, #tpu.memory_space<vmem>>, vector<1x1x64xf32>
    %247 = vector.shape_cast %246 : vector<1x1x64xf32> to vector<1x64xf32>
    %c0_103 = arith.constant 0 : index
    %c0_104 = arith.constant 0 : index
    %c0_105 = arith.constant 0 : index
    %248 = vector.load %arg15[%c0_103, %c0_104, %c0_105] : memref<2x64x32xf32, #tpu.memory_space<vmem>>, vector<1x64x32xf32>
    %249 = vector.shape_cast %248 : vector<1x64x32xf32> to vector<64x32xf32>
    %c0_106 = arith.constant 0 : index
    %c0_107 = arith.constant 0 : index
    %c0_108 = arith.constant 0 : index
    %250 = vector.load %arg16[%c0_106, %c0_107, %c0_108] : memref<2x1x32xf32, #tpu.memory_space<vmem>>, vector<1x1x32xf32>
    %251 = vector.shape_cast %250 : vector<1x1x32xf32> to vector<1x32xf32>
    %cst_109 = arith.constant dense<0.000000e+00> : vector<8x64xf32>
    %252 = tpu.matmul %243, %245, %cst_109 {dimension_numbers = #tpu.dot_dimension_numbers<[1], [0], [0], [1], [0, 0, 1, 1], [], []>} : vector<8x32xf32>, vector<32x64xf32>, vector<8x64xf32> -> vector<8x64xf32>
    %253 = vector.broadcast %247 : vector<1x64xf32> to vector<8x64xf32>
    %254 = arith.addf %252, %253 : vector<8x64xf32>
    %cst_110 = arith.constant 0.000000e+00 : f32
    %255 = vector.broadcast %cst_110 : f32 to vector<8x64xf32>
    %256 = arith.maximumf %254, %255 : vector<8x64xf32>
    %cst_111 = arith.constant dense<0.000000e+00> : vector<8x32xf32>
    %257 = tpu.matmul %256, %249, %cst_111 {dimension_numbers = #tpu.dot_dimension_numbers<[1], [0], [0], [1], [0, 0, 1, 1], [], []>} : vector<8x64xf32>, vector<64x32xf32>, vector<8x32xf32> -> vector<8x32xf32>
    %258 = vector.broadcast %251 : vector<1x32xf32> to vector<8x32xf32>
    %259 = arith.addf %257, %258 : vector<8x32xf32>
    %260 = arith.addf %259, %243 : vector<8x32xf32>
    %c0_112 = arith.constant 0 : index
    %c0_113 = arith.constant 0 : index
    %c0_114 = arith.constant 0 : index
    %261 = vector.load %arg21[%c0_112, %c0_113, %c0_114] : memref<2x8x32xf32, #tpu.memory_space<vmem>>, vector<1x8x32xf32>
    %262 = vector.shape_cast %261 : vector<1x8x32xf32> to vector<8x32xf32>
    %c0_115 = arith.constant 0 : index
    %c0_116 = arith.constant 0 : index
    %c0_117 = arith.constant 0 : index
    %263 = vector.load %arg22[%c0_115, %c0_116, %c0_117] : memref<2x8x32xf32, #tpu.memory_space<vmem>>, vector<1x8x32xf32>
    %264 = vector.shape_cast %263 : vector<1x8x32xf32> to vector<8x32xf32>
    %265 = vector.shape_cast %260 : vector<8x32xf32> to vector<1x8x32xf32>
    %cst_118 = arith.constant dense<0.000000e+00> : vector<1xf32>
    %266 = vector.multi_reduction <add>, %265, %cst_118 [1, 2] : vector<1x8x32xf32> to vector<1xf32>
    %267 = vector.shape_cast %266 : vector<1xf32> to vector<1x1x1xf32>
    %268 = vector.extract %267[0, 0, 0] : f32 from vector<1x1x1xf32>
    %cst_119 = arith.constant 2.560000e+02 : f32
    %269 = arith.divf %268, %cst_119 : f32
    %270 = vector.broadcast %269 : f32 to vector<8x32xf32>
    %271 = arith.subf %260, %270 : vector<8x32xf32>
    %272 = arith.mulf %271, %271 : vector<8x32xf32>
    %273 = vector.shape_cast %272 : vector<8x32xf32> to vector<1x8x32xf32>
    %cst_120 = arith.constant dense<0.000000e+00> : vector<1xf32>
    %274 = vector.multi_reduction <add>, %273, %cst_120 [1, 2] : vector<1x8x32xf32> to vector<1xf32>
    %275 = vector.shape_cast %274 : vector<1xf32> to vector<1x1x1xf32>
    %276 = vector.extract %275[0, 0, 0] : f32 from vector<1x1x1xf32>
    %cst_121 = arith.constant 2.560000e+02 : f32
    %277 = arith.divf %276, %cst_121 : f32
    %278 = vector.broadcast %269 : f32 to vector<8x32xf32>
    %279 = arith.subf %260, %278 : vector<8x32xf32>
    %cst_122 = arith.constant 9.99999974E-6 : f32
    %280 = arith.addf %277, %cst_122 : f32
    %281 = math.rsqrt %280 : f32
    %282 = vector.broadcast %281 : f32 to vector<8x32xf32>
    %283 = arith.mulf %279, %282 : vector<8x32xf32>
    %284 = arith.mulf %283, %262 : vector<8x32xf32>
    %285 = arith.addf %284, %264 : vector<8x32xf32>
    %c0_123 = arith.constant 0 : index
    %c0_124 = arith.constant 0 : index
    %c0_125 = arith.constant 0 : index
    %c0_126 = arith.constant 0 : index
    %286 = vector.load %arg26[%c0_123, %c0_124, %c0_125, %c0_126] : memref<2x1x8x32xf32, #tpu.memory_space<vmem>>, vector<1x1x8x32xf32>
    %287 = vector.shape_cast %286 : vector<1x1x8x32xf32> to vector<8x32xf32>
    %288 = vector.shape_cast %96 : vector<8x32xf32> to vector<1x1x8x32xf32>
    tpu.vector_store %arg26[%c0_123, %c0_124, %c0_125, %c0_126], %288 {strides = array<i32>} : memref<2x1x8x32xf32, #tpu.memory_space<vmem>>, vector<1x1x8x32xf32>,
    %c0_127 = arith.constant 0 : index
    %c0_128 = arith.constant 0 : index
    %c0_129 = arith.constant 0 : index
    %c0_130 = arith.constant 0 : index
    %289 = vector.load %arg27[%c0_127, %c0_128, %c0_129, %c0_130] : memref<2x1x8x32xf32, #tpu.memory_space<vmem>>, vector<1x1x8x32xf32>
    %290 = vector.shape_cast %289 : vector<1x1x8x32xf32> to vector<8x32xf32>
    %291 = vector.shape_cast %217 : vector<8x32xf32> to vector<1x1x8x32xf32>
    tpu.vector_store %arg27[%c0_127, %c0_128, %c0_129, %c0_130], %291 {strides = array<i32>} : memref<2x1x8x32xf32, #tpu.memory_space<vmem>>, vector<1x1x8x32xf32>,
    %c1 = arith.constant 1 : index
    %c0_131 = arith.constant 0 : index
    %c0_132 = arith.constant 0 : index
    %292 = vector.load %arg5[%c1, %c0_131, %c0_132] : memref<2x32x96xf32, #tpu.memory_space<vmem>>, vector<1x32x96xf32>
    %293 = vector.shape_cast %292 : vector<1x32x96xf32> to vector<32x96xf32>
    %c1_133 = arith.constant 1 : index
    %c0_134 = arith.constant 0 : index
    %c0_135 = arith.constant 0 : index
    %294 = vector.load %arg6[%c1_133, %c0_134, %c0_135] : memref<2x1x96xf32, #tpu.memory_space<vmem>>, vector<1x1x96xf32>
    %295 = vector.shape_cast %294 : vector<1x1x96xf32> to vector<1x96xf32>
    %c1_136 = arith.constant 1 : index
    %c0_137 = arith.constant 0 : index
    %c0_138 = arith.constant 0 : index
    %296 = vector.load %arg7[%c1_136, %c0_137, %c0_138] : memref<2x32x32xf32, #tpu.memory_space<vmem>>, vector<1x32x32xf32>
    %297 = vector.shape_cast %296 : vector<1x32x32xf32> to vector<32x32xf32>
    %c1_139 = arith.constant 1 : index
    %c0_140 = arith.constant 0 : index
    %c0_141 = arith.constant 0 : index
    %298 = vector.load %arg8[%c1_139, %c0_140, %c0_141] : memref<2x1x32xf32, #tpu.memory_space<vmem>>, vector<1x1x32xf32>
    %299 = vector.shape_cast %298 : vector<1x1x32xf32> to vector<1x32xf32>
    %cst_142 = arith.constant dense<0.000000e+00> : vector<8x96xf32>
    %300 = tpu.matmul %285, %293, %cst_142 {dimension_numbers = #tpu.dot_dimension_numbers<[1], [0], [0], [1], [0, 0, 1, 1], [], []>} : vector<8x32xf32>, vector<32x96xf32>, vector<8x96xf32> -> vector<8x96xf32>
    %301 = vector.broadcast %295 : vector<1x96xf32> to vector<8x96xf32>
    %302 = arith.addf %300, %301 : vector<8x96xf32>
    %303 = vector.extract_strided_slice %302 {offsets = [0, 0], sizes = [8, 32], strides = [1, 1]} : vector<8x96xf32> to vector<8x32xf32>
    %304 = vector.extract_strided_slice %302 {offsets = [0, 32], sizes = [8, 32], strides = [1, 1]} : vector<8x96xf32> to vector<8x32xf32>
    %305 = vector.extract_strided_slice %302 {offsets = [0, 64], sizes = [8, 32], strides = [1, 1]} : vector<8x96xf32> to vector<8x32xf32>
    %cst_143 = arith.constant 0.353553385 : f32
    %306 = vector.broadcast %cst_143 : f32 to vector<8x32xf32>
    %307 = arith.mulf %303, %306 : vector<8x32xf32>
    %308 = vector.extract_strided_slice %307 {offsets = [0, 0], sizes = [8, 8], strides = [1, 1]} : vector<8x32xf32> to vector<8x8xf32>
    %309 = vector.extract_strided_slice %304 {offsets = [0, 0], sizes = [8, 8], strides = [1, 1]} : vector<8x32xf32> to vector<8x8xf32>
    %cst_144 = arith.constant dense<0.000000e+00> : vector<8x8xf32>
    %310 = tpu.matmul %308, %309, %cst_144 {dimension_numbers = #tpu.dot_dimension_numbers<[1], [1], [0], [0], [0, 0, 1, 0], [], []>} : vector<8x8xf32>, vector<8x8xf32>, vector<8x8xf32> -> vector<8x8xf32>
    %311 = arith.addf %310, %7 : vector<8x8xf32>
    %cst_145 = arith.constant dense<0xFF800000> : vector<8xf32>
    %312 = vector.multi_reduction <maximumf>, %311, %cst_145 [1] : vector<8x8xf32> to vector<8xf32>
    %313 = vector.shape_cast %312 : vector<8xf32> to vector<8x1xf32>
    %314 = vector.broadcast %313 : vector<8x1xf32> to vector<8x8xf32>
    %315 = arith.subf %311, %314 : vector<8x8xf32>
    %316 = math.exp %315 : vector<8x8xf32>
    %cst_146 = arith.constant dense<0.000000e+00> : vector<8xf32>
    %317 = vector.multi_reduction <add>, %316, %cst_146 [1] : vector<8x8xf32> to vector<8xf32>
    %318 = vector.shape_cast %317 : vector<8xf32> to vector<8x1xf32>
    %319 = tpu.reciprocal %318 {approx = true} : vector<8x1xf32> -> vector<8x1xf32>
    %320 = vector.broadcast %319 : vector<8x1xf32> to vector<8x8xf32>
    %321 = arith.mulf %316, %320 : vector<8x8xf32>
    %322 = vector.extract_strided_slice %305 {offsets = [0, 0], sizes = [8, 8], strides = [1, 1]} : vector<8x32xf32> to vector<8x8xf32>
    %cst_147 = arith.constant dense<0.000000e+00> : vector<8x8xf32>
    %323 = tpu.matmul %321, %322, %cst_147 {dimension_numbers = #tpu.dot_dimension_numbers<[1], [0], [0], [1], [0, 0, 1, 1], [], []>} : vector<8x8xf32>, vector<8x8xf32>, vector<8x8xf32> -> vector<8x8xf32>
    %324 = vector.extract_strided_slice %307 {offsets = [0, 8], sizes = [8, 8], strides = [1, 1]} : vector<8x32xf32> to vector<8x8xf32>
    %325 = vector.extract_strided_slice %304 {offsets = [0, 8], sizes = [8, 8], strides = [1, 1]} : vector<8x32xf32> to vector<8x8xf32>
    %cst_148 = arith.constant dense<0.000000e+00> : vector<8x8xf32>
    %326 = tpu.matmul %324, %325, %cst_148 {dimension_numbers = #tpu.dot_dimension_numbers<[1], [1], [0], [0], [0, 0, 1, 0], [], []>} : vector<8x8xf32>, vector<8x8xf32>, vector<8x8xf32> -> vector<8x8xf32>
    %327 = arith.addf %326, %7 : vector<8x8xf32>
    %cst_149 = arith.constant dense<0xFF800000> : vector<8xf32>
    %328 = vector.multi_reduction <maximumf>, %327, %cst_149 [1] : vector<8x8xf32> to vector<8xf32>
    %329 = vector.shape_cast %328 : vector<8xf32> to vector<8x1xf32>
    %330 = vector.broadcast %329 : vector<8x1xf32> to vector<8x8xf32>
    %331 = arith.subf %327, %330 : vector<8x8xf32>
    %332 = math.exp %331 : vector<8x8xf32>
    %cst_150 = arith.constant dense<0.000000e+00> : vector<8xf32>
    %333 = vector.multi_reduction <add>, %332, %cst_150 [1] : vector<8x8xf32> to vector<8xf32>
    %334 = vector.shape_cast %333 : vector<8xf32> to vector<8x1xf32>
    %335 = tpu.reciprocal %334 {approx = true} : vector<8x1xf32> -> vector<8x1xf32>
    %336 = vector.broadcast %335 : vector<8x1xf32> to vector<8x8xf32>
    %337 = arith.mulf %332, %336 : vector<8x8xf32>
    %338 = vector.extract_strided_slice %305 {offsets = [0, 8], sizes = [8, 8], strides = [1, 1]} : vector<8x32xf32> to vector<8x8xf32>
    %cst_151 = arith.constant dense<0.000000e+00> : vector<8x8xf32>
    %339 = tpu.matmul %337, %338, %cst_151 {dimension_numbers = #tpu.dot_dimension_numbers<[1], [0], [0], [1], [0, 0, 1, 1], [], []>} : vector<8x8xf32>, vector<8x8xf32>, vector<8x8xf32> -> vector<8x8xf32>
    %340 = vector.extract_strided_slice %307 {offsets = [0, 16], sizes = [8, 8], strides = [1, 1]} : vector<8x32xf32> to vector<8x8xf32>
    %341 = vector.extract_strided_slice %304 {offsets = [0, 16], sizes = [8, 8], strides = [1, 1]} : vector<8x32xf32> to vector<8x8xf32>
    %cst_152 = arith.constant dense<0.000000e+00> : vector<8x8xf32>
    %342 = tpu.matmul %340, %341, %cst_152 {dimension_numbers = #tpu.dot_dimension_numbers<[1], [1], [0], [0], [0, 0, 1, 0], [], []>} : vector<8x8xf32>, vector<8x8xf32>, vector<8x8xf32> -> vector<8x8xf32>
    %343 = arith.addf %342, %7 : vector<8x8xf32>
    %cst_153 = arith.constant dense<0xFF800000> : vector<8xf32>
    %344 = vector.multi_reduction <maximumf>, %343, %cst_153 [1] : vector<8x8xf32> to vector<8xf32>
    %345 = vector.shape_cast %344 : vector<8xf32> to vector<8x1xf32>
    %346 = vector.broadcast %345 : vector<8x1xf32> to vector<8x8xf32>
    %347 = arith.subf %343, %346 : vector<8x8xf32>
    %348 = math.exp %347 : vector<8x8xf32>
    %cst_154 = arith.constant dense<0.000000e+00> : vector<8xf32>
    %349 = vector.multi_reduction <add>, %348, %cst_154 [1] : vector<8x8xf32> to vector<8xf32>
    %350 = vector.shape_cast %349 : vector<8xf32> to vector<8x1xf32>
    %351 = tpu.reciprocal %350 {approx = true} : vector<8x1xf32> -> vector<8x1xf32>
    %352 = vector.broadcast %351 : vector<8x1xf32> to vector<8x8xf32>
    %353 = arith.mulf %348, %352 : vector<8x8xf32>
    %354 = vector.extract_strided_slice %305 {offsets = [0, 16], sizes = [8, 8], strides = [1, 1]} : vector<8x32xf32> to vector<8x8xf32>
    %cst_155 = arith.constant dense<0.000000e+00> : vector<8x8xf32>
    %355 = tpu.matmul %353, %354, %cst_155 {dimension_numbers = #tpu.dot_dimension_numbers<[1], [0], [0], [1], [0, 0, 1, 1], [], []>} : vector<8x8xf32>, vector<8x8xf32>, vector<8x8xf32> -> vector<8x8xf32>
    %356 = vector.extract_strided_slice %307 {offsets = [0, 24], sizes = [8, 8], strides = [1, 1]} : vector<8x32xf32> to vector<8x8xf32>
    %357 = vector.extract_strided_slice %304 {offsets = [0, 24], sizes = [8, 8], strides = [1, 1]} : vector<8x32xf32> to vector<8x8xf32>
    %cst_156 = arith.constant dense<0.000000e+00> : vector<8x8xf32>
    %358 = tpu.matmul %356, %357, %cst_156 {dimension_numbers = #tpu.dot_dimension_numbers<[1], [1], [0], [0], [0, 0, 1, 0], [], []>} : vector<8x8xf32>, vector<8x8xf32>, vector<8x8xf32> -> vector<8x8xf32>
    %359 = arith.addf %358, %7 : vector<8x8xf32>
    %cst_157 = arith.constant dense<0xFF800000> : vector<8xf32>
    %360 = vector.multi_reduction <maximumf>, %359, %cst_157 [1] : vector<8x8xf32> to vector<8xf32>
    %361 = vector.shape_cast %360 : vector<8xf32> to vector<8x1xf32>
    %362 = vector.broadcast %361 : vector<8x1xf32> to vector<8x8xf32>
    %363 = arith.subf %359, %362 : vector<8x8xf32>
    %364 = math.exp %363 : vector<8x8xf32>
    %cst_158 = arith.constant dense<0.000000e+00> : vector<8xf32>
    %365 = vector.multi_reduction <add>, %364, %cst_158 [1] : vector<8x8xf32> to vector<8xf32>
    %366 = vector.shape_cast %365 : vector<8xf32> to vector<8x1xf32>
    %367 = tpu.reciprocal %366 {approx = true} : vector<8x1xf32> -> vector<8x1xf32>
    %368 = vector.broadcast %367 : vector<8x1xf32> to vector<8x8xf32>
    %369 = arith.mulf %364, %368 : vector<8x8xf32>
    %370 = vector.extract_strided_slice %305 {offsets = [0, 24], sizes = [8, 8], strides = [1, 1]} : vector<8x32xf32> to vector<8x8xf32>
    %cst_159 = arith.constant dense<0.000000e+00> : vector<8x8xf32>
    %371 = tpu.matmul %369, %370, %cst_159 {dimension_numbers = #tpu.dot_dimension_numbers<[1], [0], [0], [1], [0, 0, 1, 1], [], []>} : vector<8x8xf32>, vector<8x8xf32>, vector<8x8xf32> -> vector<8x8xf32>
    %372 = tpu.concatenate %323, %339, %355, %371 in 1 : vector<8x8xf32>, vector<8x8xf32>, vector<8x8xf32>, vector<8x8xf32> -> vector<8x32xf32>
    %cst_160 = arith.constant dense<0.000000e+00> : vector<8x32xf32>
    %373 = tpu.matmul %372, %297, %cst_160 {dimension_numbers = #tpu.dot_dimension_numbers<[1], [0], [0], [1], [0, 0, 1, 1], [], []>} : vector<8x32xf32>, vector<32x32xf32>, vector<8x32xf32> -> vector<8x32xf32>
    %374 = vector.broadcast %299 : vector<1x32xf32> to vector<8x32xf32>
    %375 = arith.addf %373, %374 : vector<8x32xf32>
    %376 = tpu.concatenate %321, %337, %353, %369 in 1 : vector<8x8xf32>, vector<8x8xf32>, vector<8x8xf32>, vector<8x8xf32> -> vector<8x32xf32>
    %377 = arith.addf %375, %285 : vector<8x32xf32>
    %c1_161 = arith.constant 1 : index
    %c0_162 = arith.constant 0 : index
    %c0_163 = arith.constant 0 : index
    %378 = vector.load %arg17[%c1_161, %c0_162, %c0_163] : memref<2x8x32xf32, #tpu.memory_space<vmem>>, vector<1x8x32xf32>
    %379 = vector.shape_cast %378 : vector<1x8x32xf32> to vector<8x32xf32>
    %c1_164 = arith.constant 1 : index
    %c0_165 = arith.constant 0 : index
    %c0_166 = arith.constant 0 : index
    %380 = vector.load %arg18[%c1_164, %c0_165, %c0_166] : memref<2x8x32xf32, #tpu.memory_space<vmem>>, vector<1x8x32xf32>
    %381 = vector.shape_cast %380 : vector<1x8x32xf32> to vector<8x32xf32>
    %382 = vector.shape_cast %377 : vector<8x32xf32> to vector<1x8x32xf32>
    %cst_167 = arith.constant dense<0.000000e+00> : vector<1xf32>
    %383 = vector.multi_reduction <add>, %382, %cst_167 [1, 2] : vector<1x8x32xf32> to vector<1xf32>
    %384 = vector.shape_cast %383 : vector<1xf32> to vector<1x1x1xf32>
    %385 = vector.extract %384[0, 0, 0] : f32 from vector<1x1x1xf32>
    %cst_168 = arith.constant 2.560000e+02 : f32
    %386 = arith.divf %385, %cst_168 : f32
    %387 = vector.broadcast %386 : f32 to vector<8x32xf32>
    %388 = arith.subf %377, %387 : vector<8x32xf32>
    %389 = arith.mulf %388, %388 : vector<8x32xf32>
    %390 = vector.shape_cast %389 : vector<8x32xf32> to vector<1x8x32xf32>
    %cst_169 = arith.constant dense<0.000000e+00> : vector<1xf32>
    %391 = vector.multi_reduction <add>, %390, %cst_169 [1, 2] : vector<1x8x32xf32> to vector<1xf32>
    %392 = vector.shape_cast %391 : vector<1xf32> to vector<1x1x1xf32>
    %393 = vector.extract %392[0, 0, 0] : f32 from vector<1x1x1xf32>
    %cst_170 = arith.constant 2.560000e+02 : f32
    %394 = arith.divf %393, %cst_170 : f32
    %395 = vector.broadcast %386 : f32 to vector<8x32xf32>
    %396 = arith.subf %377, %395 : vector<8x32xf32>
    %cst_171 = arith.constant 9.99999974E-6 : f32
    %397 = arith.addf %394, %cst_171 : f32
    %398 = math.rsqrt %397 : f32
    %399 = vector.broadcast %398 : f32 to vector<8x32xf32>
    %400 = arith.mulf %396, %399 : vector<8x32xf32>
    %401 = arith.mulf %400, %379 : vector<8x32xf32>
    %402 = arith.addf %401, %381 : vector<8x32xf32>
    %c1_172 = arith.constant 1 : index
    %c0_173 = arith.constant 0 : index
    %c0_174 = arith.constant 0 : index
    %403 = vector.load %arg9[%c1_172, %c0_173, %c0_174] : memref<2x32x96xf32, #tpu.memory_space<vmem>>, vector<1x32x96xf32>
    %404 = vector.shape_cast %403 : vector<1x32x96xf32> to vector<32x96xf32>
    %c1_175 = arith.constant 1 : index
    %c0_176 = arith.constant 0 : index
    %c0_177 = arith.constant 0 : index
    %405 = vector.load %arg10[%c1_175, %c0_176, %c0_177] : memref<2x1x96xf32, #tpu.memory_space<vmem>>, vector<1x1x96xf32>
    %406 = vector.shape_cast %405 : vector<1x1x96xf32> to vector<1x96xf32>
    %c1_178 = arith.constant 1 : index
    %c0_179 = arith.constant 0 : index
    %c0_180 = arith.constant 0 : index
    %407 = vector.load %arg11[%c1_178, %c0_179, %c0_180] : memref<2x32x32xf32, #tpu.memory_space<vmem>>, vector<1x32x32xf32>
    %408 = vector.shape_cast %407 : vector<1x32x32xf32> to vector<32x32xf32>
    %c1_181 = arith.constant 1 : index
    %c0_182 = arith.constant 0 : index
    %c0_183 = arith.constant 0 : index
    %409 = vector.load %arg12[%c1_181, %c0_182, %c0_183] : memref<2x1x32xf32, #tpu.memory_space<vmem>>, vector<1x1x32xf32>
    %410 = vector.shape_cast %409 : vector<1x1x32xf32> to vector<1x32xf32>
    %411 = vector.extract_strided_slice %404 {offsets = [0, 0], sizes = [32, 32], strides = [1, 1]} : vector<32x96xf32> to vector<32x32xf32>
    %cst_184 = arith.constant dense<0.000000e+00> : vector<8x32xf32>
    %412 = tpu.matmul %402, %411, %cst_184 {dimension_numbers = #tpu.dot_dimension_numbers<[1], [0], [0], [1], [0, 0, 1, 1], [], []>} : vector<8x32xf32>, vector<32x32xf32>, vector<8x32xf32> -> vector<8x32xf32>
    %413 = vector.extract_strided_slice %406 {offsets = [0, 0], sizes = [1, 32], strides = [1, 1]} : vector<1x96xf32> to vector<1x32xf32>
    %414 = vector.broadcast %413 : vector<1x32xf32> to vector<8x32xf32>
    %415 = arith.addf %412, %414 : vector<8x32xf32>
    %416 = vector.extract_strided_slice %404 {offsets = [0, 32], sizes = [32, 64], strides = [1, 1]} : vector<32x96xf32> to vector<32x64xf32>
    %cst_185 = arith.constant dense<0.000000e+00> : vector<8x64xf32>
    %417 = tpu.matmul %3, %416, %cst_185 {dimension_numbers = #tpu.dot_dimension_numbers<[1], [0], [0], [1], [0, 0, 1, 1], [], []>} : vector<8x32xf32>, vector<32x64xf32>, vector<8x64xf32> -> vector<8x64xf32>
    %418 = vector.extract_strided_slice %406 {offsets = [0, 32], sizes = [1, 64], strides = [1, 1]} : vector<1x96xf32> to vector<1x64xf32>
    %419 = vector.broadcast %418 : vector<1x64xf32> to vector<8x64xf32>
    %420 = arith.addf %417, %419 : vector<8x64xf32>
    %421 = vector.extract_strided_slice %420 {offsets = [0, 0], sizes = [8, 32], strides = [1, 1]} : vector<8x64xf32> to vector<8x32xf32>
    %422 = vector.extract_strided_slice %420 {offsets = [0, 32], sizes = [8, 32], strides = [1, 1]} : vector<8x64xf32> to vector<8x32xf32>
    %cst_186 = arith.constant 0.353553385 : f32
    %423 = vector.broadcast %cst_186 : f32 to vector<8x32xf32>
    %424 = arith.mulf %415, %423 : vector<8x32xf32>
    %425 = vector.extract_strided_slice %424 {offsets = [0, 0], sizes = [8, 8], strides = [1, 1]} : vector<8x32xf32> to vector<8x8xf32>
    %426 = vector.extract_strided_slice %421 {offsets = [0, 0], sizes = [8, 8], strides = [1, 1]} : vector<8x32xf32> to vector<8x8xf32>
    %cst_187 = arith.constant dense<0.000000e+00> : vector<8x8xf32>
    %427 = tpu.matmul %425, %426, %cst_187 {dimension_numbers = #tpu.dot_dimension_numbers<[1], [1], [0], [0], [0, 0, 1, 0], [], []>} : vector<8x8xf32>, vector<8x8xf32>, vector<8x8xf32> -> vector<8x8xf32>
    %428 = vector.broadcast %11 : vector<1x8xf32> to vector<8x8xf32>
    %429 = arith.addf %427, %428 : vector<8x8xf32>
    %cst_188 = arith.constant dense<0xFF800000> : vector<8xf32>
    %430 = vector.multi_reduction <maximumf>, %429, %cst_188 [1] : vector<8x8xf32> to vector<8xf32>
    %431 = vector.shape_cast %430 : vector<8xf32> to vector<8x1xf32>
    %432 = vector.broadcast %431 : vector<8x1xf32> to vector<8x8xf32>
    %433 = arith.subf %429, %432 : vector<8x8xf32>
    %434 = math.exp %433 : vector<8x8xf32>
    %cst_189 = arith.constant dense<0.000000e+00> : vector<8xf32>
    %435 = vector.multi_reduction <add>, %434, %cst_189 [1] : vector<8x8xf32> to vector<8xf32>
    %436 = vector.shape_cast %435 : vector<8xf32> to vector<8x1xf32>
    %437 = tpu.reciprocal %436 {approx = true} : vector<8x1xf32> -> vector<8x1xf32>
    %438 = vector.broadcast %437 : vector<8x1xf32> to vector<8x8xf32>
    %439 = arith.mulf %434, %438 : vector<8x8xf32>
    %440 = vector.extract_strided_slice %422 {offsets = [0, 0], sizes = [8, 8], strides = [1, 1]} : vector<8x32xf32> to vector<8x8xf32>
    %cst_190 = arith.constant dense<0.000000e+00> : vector<8x8xf32>
    %441 = tpu.matmul %439, %440, %cst_190 {dimension_numbers = #tpu.dot_dimension_numbers<[1], [0], [0], [1], [0, 0, 1, 1], [], []>} : vector<8x8xf32>, vector<8x8xf32>, vector<8x8xf32> -> vector<8x8xf32>
    %442 = vector.extract_strided_slice %424 {offsets = [0, 8], sizes = [8, 8], strides = [1, 1]} : vector<8x32xf32> to vector<8x8xf32>
    %443 = vector.extract_strided_slice %421 {offsets = [0, 8], sizes = [8, 8], strides = [1, 1]} : vector<8x32xf32> to vector<8x8xf32>
    %cst_191 = arith.constant dense<0.000000e+00> : vector<8x8xf32>
    %444 = tpu.matmul %442, %443, %cst_191 {dimension_numbers = #tpu.dot_dimension_numbers<[1], [1], [0], [0], [0, 0, 1, 0], [], []>} : vector<8x8xf32>, vector<8x8xf32>, vector<8x8xf32> -> vector<8x8xf32>
    %445 = vector.broadcast %11 : vector<1x8xf32> to vector<8x8xf32>
    %446 = arith.addf %444, %445 : vector<8x8xf32>
    %cst_192 = arith.constant dense<0xFF800000> : vector<8xf32>
    %447 = vector.multi_reduction <maximumf>, %446, %cst_192 [1] : vector<8x8xf32> to vector<8xf32>
    %448 = vector.shape_cast %447 : vector<8xf32> to vector<8x1xf32>
    %449 = vector.broadcast %448 : vector<8x1xf32> to vector<8x8xf32>
    %450 = arith.subf %446, %449 : vector<8x8xf32>
    %451 = math.exp %450 : vector<8x8xf32>
    %cst_193 = arith.constant dense<0.000000e+00> : vector<8xf32>
    %452 = vector.multi_reduction <add>, %451, %cst_193 [1] : vector<8x8xf32> to vector<8xf32>
    %453 = vector.shape_cast %452 : vector<8xf32> to vector<8x1xf32>
    %454 = tpu.reciprocal %453 {approx = true} : vector<8x1xf32> -> vector<8x1xf32>
    %455 = vector.broadcast %454 : vector<8x1xf32> to vector<8x8xf32>
    %456 = arith.mulf %451, %455 : vector<8x8xf32>
    %457 = vector.extract_strided_slice %422 {offsets = [0, 8], sizes = [8, 8], strides = [1, 1]} : vector<8x32xf32> to vector<8x8xf32>
    %cst_194 = arith.constant dense<0.000000e+00> : vector<8x8xf32>
    %458 = tpu.matmul %456, %457, %cst_194 {dimension_numbers = #tpu.dot_dimension_numbers<[1], [0], [0], [1], [0, 0, 1, 1], [], []>} : vector<8x8xf32>, vector<8x8xf32>, vector<8x8xf32> -> vector<8x8xf32>
    %459 = vector.extract_strided_slice %424 {offsets = [0, 16], sizes = [8, 8], strides = [1, 1]} : vector<8x32xf32> to vector<8x8xf32>
    %460 = vector.extract_strided_slice %421 {offsets = [0, 16], sizes = [8, 8], strides = [1, 1]} : vector<8x32xf32> to vector<8x8xf32>
    %cst_195 = arith.constant dense<0.000000e+00> : vector<8x8xf32>
    %461 = tpu.matmul %459, %460, %cst_195 {dimension_numbers = #tpu.dot_dimension_numbers<[1], [1], [0], [0], [0, 0, 1, 0], [], []>} : vector<8x8xf32>, vector<8x8xf32>, vector<8x8xf32> -> vector<8x8xf32>
    %462 = vector.broadcast %11 : vector<1x8xf32> to vector<8x8xf32>
    %463 = arith.addf %461, %462 : vector<8x8xf32>
    %cst_196 = arith.constant dense<0xFF800000> : vector<8xf32>
    %464 = vector.multi_reduction <maximumf>, %463, %cst_196 [1] : vector<8x8xf32> to vector<8xf32>
    %465 = vector.shape_cast %464 : vector<8xf32> to vector<8x1xf32>
    %466 = vector.broadcast %465 : vector<8x1xf32> to vector<8x8xf32>
    %467 = arith.subf %463, %466 : vector<8x8xf32>
    %468 = math.exp %467 : vector<8x8xf32>
    %cst_197 = arith.constant dense<0.000000e+00> : vector<8xf32>
    %469 = vector.multi_reduction <add>, %468, %cst_197 [1] : vector<8x8xf32> to vector<8xf32>
    %470 = vector.shape_cast %469 : vector<8xf32> to vector<8x1xf32>
    %471 = tpu.reciprocal %470 {approx = true} : vector<8x1xf32> -> vector<8x1xf32>
    %472 = vector.broadcast %471 : vector<8x1xf32> to vector<8x8xf32>
    %473 = arith.mulf %468, %472 : vector<8x8xf32>
    %474 = vector.extract_strided_slice %422 {offsets = [0, 16], sizes = [8, 8], strides = [1, 1]} : vector<8x32xf32> to vector<8x8xf32>
    %cst_198 = arith.constant dense<0.000000e+00> : vector<8x8xf32>
    %475 = tpu.matmul %473, %474, %cst_198 {dimension_numbers = #tpu.dot_dimension_numbers<[1], [0], [0], [1], [0, 0, 1, 1], [], []>} : vector<8x8xf32>, vector<8x8xf32>, vector<8x8xf32> -> vector<8x8xf32>
    %476 = vector.extract_strided_slice %424 {offsets = [0, 24], sizes = [8, 8], strides = [1, 1]} : vector<8x32xf32> to vector<8x8xf32>
    %477 = vector.extract_strided_slice %421 {offsets = [0, 24], sizes = [8, 8], strides = [1, 1]} : vector<8x32xf32> to vector<8x8xf32>
    %cst_199 = arith.constant dense<0.000000e+00> : vector<8x8xf32>
    %478 = tpu.matmul %476, %477, %cst_199 {dimension_numbers = #tpu.dot_dimension_numbers<[1], [1], [0], [0], [0, 0, 1, 0], [], []>} : vector<8x8xf32>, vector<8x8xf32>, vector<8x8xf32> -> vector<8x8xf32>
    %479 = vector.broadcast %11 : vector<1x8xf32> to vector<8x8xf32>
    %480 = arith.addf %478, %479 : vector<8x8xf32>
    %cst_200 = arith.constant dense<0xFF800000> : vector<8xf32>
    %481 = vector.multi_reduction <maximumf>, %480, %cst_200 [1] : vector<8x8xf32> to vector<8xf32>
    %482 = vector.shape_cast %481 : vector<8xf32> to vector<8x1xf32>
    %483 = vector.broadcast %482 : vector<8x1xf32> to vector<8x8xf32>
    %484 = arith.subf %480, %483 : vector<8x8xf32>
    %485 = math.exp %484 : vector<8x8xf32>
    %cst_201 = arith.constant dense<0.000000e+00> : vector<8xf32>
    %486 = vector.multi_reduction <add>, %485, %cst_201 [1] : vector<8x8xf32> to vector<8xf32>
    %487 = vector.shape_cast %486 : vector<8xf32> to vector<8x1xf32>
    %488 = tpu.reciprocal %487 {approx = true} : vector<8x1xf32> -> vector<8x1xf32>
    %489 = vector.broadcast %488 : vector<8x1xf32> to vector<8x8xf32>
    %490 = arith.mulf %485, %489 : vector<8x8xf32>
    %491 = vector.extract_strided_slice %422 {offsets = [0, 24], sizes = [8, 8], strides = [1, 1]} : vector<8x32xf32> to vector<8x8xf32>
    %cst_202 = arith.constant dense<0.000000e+00> : vector<8x8xf32>
    %492 = tpu.matmul %490, %491, %cst_202 {dimension_numbers = #tpu.dot_dimension_numbers<[1], [0], [0], [1], [0, 0, 1, 1], [], []>} : vector<8x8xf32>, vector<8x8xf32>, vector<8x8xf32> -> vector<8x8xf32>
    %493 = tpu.concatenate %441, %458, %475, %492 in 1 : vector<8x8xf32>, vector<8x8xf32>, vector<8x8xf32>, vector<8x8xf32> -> vector<8x32xf32>
    %cst_203 = arith.constant dense<0.000000e+00> : vector<8x32xf32>
    %494 = tpu.matmul %493, %408, %cst_203 {dimension_numbers = #tpu.dot_dimension_numbers<[1], [0], [0], [1], [0, 0, 1, 1], [], []>} : vector<8x32xf32>, vector<32x32xf32>, vector<8x32xf32> -> vector<8x32xf32>
    %495 = vector.broadcast %410 : vector<1x32xf32> to vector<8x32xf32>
    %496 = arith.addf %494, %495 : vector<8x32xf32>
    %497 = tpu.concatenate %439, %456, %473, %490 in 1 : vector<8x8xf32>, vector<8x8xf32>, vector<8x8xf32>, vector<8x8xf32> -> vector<8x32xf32>
    %498 = arith.addf %496, %402 : vector<8x32xf32>
    %c1_204 = arith.constant 1 : index
    %c0_205 = arith.constant 0 : index
    %c0_206 = arith.constant 0 : index
    %499 = vector.load %arg19[%c1_204, %c0_205, %c0_206] : memref<2x8x32xf32, #tpu.memory_space<vmem>>, vector<1x8x32xf32>
    %500 = vector.shape_cast %499 : vector<1x8x32xf32> to vector<8x32xf32>
    %c1_207 = arith.constant 1 : index
    %c0_208 = arith.constant 0 : index
    %c0_209 = arith.constant 0 : index
    %501 = vector.load %arg20[%c1_207, %c0_208, %c0_209] : memref<2x8x32xf32, #tpu.memory_space<vmem>>, vector<1x8x32xf32>
    %502 = vector.shape_cast %501 : vector<1x8x32xf32> to vector<8x32xf32>
    %503 = vector.shape_cast %498 : vector<8x32xf32> to vector<1x8x32xf32>
    %cst_210 = arith.constant dense<0.000000e+00> : vector<1xf32>
    %504 = vector.multi_reduction <add>, %503, %cst_210 [1, 2] : vector<1x8x32xf32> to vector<1xf32>
    %505 = vector.shape_cast %504 : vector<1xf32> to vector<1x1x1xf32>
    %506 = vector.extract %505[0, 0, 0] : f32 from vector<1x1x1xf32>
    %cst_211 = arith.constant 2.560000e+02 : f32
    %507 = arith.divf %506, %cst_211 : f32
    %508 = vector.broadcast %507 : f32 to vector<8x32xf32>
    %509 = arith.subf %498, %508 : vector<8x32xf32>
    %510 = arith.mulf %509, %509 : vector<8x32xf32>
    %511 = vector.shape_cast %510 : vector<8x32xf32> to vector<1x8x32xf32>
    %cst_212 = arith.constant dense<0.000000e+00> : vector<1xf32>
    %512 = vector.multi_reduction <add>, %511, %cst_212 [1, 2] : vector<1x8x32xf32> to vector<1xf32>
    %513 = vector.shape_cast %512 : vector<1xf32> to vector<1x1x1xf32>
    %514 = vector.extract %513[0, 0, 0] : f32 from vector<1x1x1xf32>
    %cst_213 = arith.constant 2.560000e+02 : f32
    %515 = arith.divf %514, %cst_213 : f32
    %516 = vector.broadcast %507 : f32 to vector<8x32xf32>
    %517 = arith.subf %498, %516 : vector<8x32xf32>
    %cst_214 = arith.constant 9.99999974E-6 : f32
    %518 = arith.addf %515, %cst_214 : f32
    %519 = math.rsqrt %518 : f32
    %520 = vector.broadcast %519 : f32 to vector<8x32xf32>
    %521 = arith.mulf %517, %520 : vector<8x32xf32>
    %522 = arith.mulf %521, %500 : vector<8x32xf32>
    %523 = arith.addf %522, %502 : vector<8x32xf32>
    %c1_215 = arith.constant 1 : index
    %c0_216 = arith.constant 0 : index
    %c0_217 = arith.constant 0 : index
    %524 = vector.load %arg13[%c1_215, %c0_216, %c0_217] : memref<2x32x64xf32, #tpu.memory_space<vmem>>, vector<1x32x64xf32>
    %525 = vector.shape_cast %524 : vector<1x32x64xf32> to vector<32x64xf32>
    %c1_218 = arith.constant 1 : index
    %c0_219 = arith.constant 0 : index
    %c0_220 = arith.constant 0 : index
    %526 = vector.load %arg14[%c1_218, %c0_219, %c0_220] : memref<2x1x64xf32, #tpu.memory_space<vmem>>, vector<1x1x64xf32>
    %527 = vector.shape_cast %526 : vector<1x1x64xf32> to vector<1x64xf32>
    %c1_221 = arith.constant 1 : index
    %c0_222 = arith.constant 0 : index
    %c0_223 = arith.constant 0 : index
    %528 = vector.load %arg15[%c1_221, %c0_222, %c0_223] : memref<2x64x32xf32, #tpu.memory_space<vmem>>, vector<1x64x32xf32>
    %529 = vector.shape_cast %528 : vector<1x64x32xf32> to vector<64x32xf32>
    %c1_224 = arith.constant 1 : index
    %c0_225 = arith.constant 0 : index
    %c0_226 = arith.constant 0 : index
    %530 = vector.load %arg16[%c1_224, %c0_225, %c0_226] : memref<2x1x32xf32, #tpu.memory_space<vmem>>, vector<1x1x32xf32>
    %531 = vector.shape_cast %530 : vector<1x1x32xf32> to vector<1x32xf32>
    %cst_227 = arith.constant dense<0.000000e+00> : vector<8x64xf32>
    %532 = tpu.matmul %523, %525, %cst_227 {dimension_numbers = #tpu.dot_dimension_numbers<[1], [0], [0], [1], [0, 0, 1, 1], [], []>} : vector<8x32xf32>, vector<32x64xf32>, vector<8x64xf32> -> vector<8x64xf32>
    %533 = vector.broadcast %527 : vector<1x64xf32> to vector<8x64xf32>
    %534 = arith.addf %532, %533 : vector<8x64xf32>
    %cst_228 = arith.constant 0.000000e+00 : f32
    %535 = vector.broadcast %cst_228 : f32 to vector<8x64xf32>
    %536 = arith.maximumf %534, %535 : vector<8x64xf32>
    %cst_229 = arith.constant dense<0.000000e+00> : vector<8x32xf32>
    %537 = tpu.matmul %536, %529, %cst_229 {dimension_numbers = #tpu.dot_dimension_numbers<[1], [0], [0], [1], [0, 0, 1, 1], [], []>} : vector<8x64xf32>, vector<64x32xf32>, vector<8x32xf32> -> vector<8x32xf32>
    %538 = vector.broadcast %531 : vector<1x32xf32> to vector<8x32xf32>
    %539 = arith.addf %537, %538 : vector<8x32xf32>
    %540 = arith.addf %539, %523 : vector<8x32xf32>
    %c1_230 = arith.constant 1 : index
    %c0_231 = arith.constant 0 : index
    %c0_232 = arith.constant 0 : index
    %541 = vector.load %arg21[%c1_230, %c0_231, %c0_232] : memref<2x8x32xf32, #tpu.memory_space<vmem>>, vector<1x8x32xf32>
    %542 = vector.shape_cast %541 : vector<1x8x32xf32> to vector<8x32xf32>
    %c1_233 = arith.constant 1 : index
    %c0_234 = arith.constant 0 : index
    %c0_235 = arith.constant 0 : index
    %543 = vector.load %arg22[%c1_233, %c0_234, %c0_235] : memref<2x8x32xf32, #tpu.memory_space<vmem>>, vector<1x8x32xf32>
    %544 = vector.shape_cast %543 : vector<1x8x32xf32> to vector<8x32xf32>
    %545 = vector.shape_cast %540 : vector<8x32xf32> to vector<1x8x32xf32>
    %cst_236 = arith.constant dense<0.000000e+00> : vector<1xf32>
    %546 = vector.multi_reduction <add>, %545, %cst_236 [1, 2] : vector<1x8x32xf32> to vector<1xf32>
    %547 = vector.shape_cast %546 : vector<1xf32> to vector<1x1x1xf32>
    %548 = vector.extract %547[0, 0, 0] : f32 from vector<1x1x1xf32>
    %cst_237 = arith.constant 2.560000e+02 : f32
    %549 = arith.divf %548, %cst_237 : f32
    %550 = vector.broadcast %549 : f32 to vector<8x32xf32>
    %551 = arith.subf %540, %550 : vector<8x32xf32>
    %552 = arith.mulf %551, %551 : vector<8x32xf32>
    %553 = vector.shape_cast %552 : vector<8x32xf32> to vector<1x8x32xf32>
    %cst_238 = arith.constant dense<0.000000e+00> : vector<1xf32>
    %554 = vector.multi_reduction <add>, %553, %cst_238 [1, 2] : vector<1x8x32xf32> to vector<1xf32>
    %555 = vector.shape_cast %554 : vector<1xf32> to vector<1x1x1xf32>
    %556 = vector.extract %555[0, 0, 0] : f32 from vector<1x1x1xf32>
    %cst_239 = arith.constant 2.560000e+02 : f32
    %557 = arith.divf %556, %cst_239 : f32
    %558 = vector.broadcast %549 : f32 to vector<8x32xf32>
    %559 = arith.subf %540, %558 : vector<8x32xf32>
    %cst_240 = arith.constant 9.99999974E-6 : f32
    %560 = arith.addf %557, %cst_240 : f32
    %561 = math.rsqrt %560 : f32
    %562 = vector.broadcast %561 : f32 to vector<8x32xf32>
    %563 = arith.mulf %559, %562 : vector<8x32xf32>
    %564 = arith.mulf %563, %542 : vector<8x32xf32>
    %565 = arith.addf %564, %544 : vector<8x32xf32>
    %c1_241 = arith.constant 1 : index
    %c0_242 = arith.constant 0 : index
    %c0_243 = arith.constant 0 : index
    %c0_244 = arith.constant 0 : index
    %566 = vector.load %arg26[%c1_241, %c0_242, %c0_243, %c0_244] : memref<2x1x8x32xf32, #tpu.memory_space<vmem>>, vector<1x1x8x32xf32>
    %567 = vector.shape_cast %566 : vector<1x1x8x32xf32> to vector<8x32xf32>
    %568 = vector.shape_cast %376 : vector<8x32xf32> to vector<1x1x8x32xf32>
    tpu.vector_store %arg26[%c1_241, %c0_242, %c0_243, %c0_244], %568 {strides = array<i32>} : memref<2x1x8x32xf32, #tpu.memory_space<vmem>>, vector<1x1x8x32xf32>,
    %c1_245 = arith.constant 1 : index
    %c0_246 = arith.constant 0 : index
    %c0_247 = arith.constant 0 : index
    %c0_248 = arith.constant 0 : index
    %569 = vector.load %arg27[%c1_245, %c0_246, %c0_247, %c0_248] : memref<2x1x8x32xf32, #tpu.memory_space<vmem>>, vector<1x1x8x32xf32>
    %570 = vector.shape_cast %569 : vector<1x1x8x32xf32> to vector<8x32xf32>
    %571 = vector.shape_cast %497 : vector<8x32xf32> to vector<1x1x8x32xf32>
    tpu.vector_store %arg27[%c1_245, %c0_246, %c0_247, %c0_248], %571 {strides = array<i32>} : memref<2x1x8x32xf32, #tpu.memory_space<vmem>>, vector<1x1x8x32xf32>,
    %c0_249 = arith.constant 0 : index
    %c0_250 = arith.constant 0 : index
    %572 = vector.load %arg23[%c0_249, %c0_250] : memref<32x40xf32, #tpu.memory_space<vmem>>, vector<32x40xf32>
    %cst_251 = arith.constant dense<0.000000e+00> : vector<8x40xf32>
    %573 = tpu.matmul %565, %572, %cst_251 {dimension_numbers = #tpu.dot_dimension_numbers<[1], [0], [0], [1], [0, 0, 1, 1], [], []>} : vector<8x32xf32>, vector<32x40xf32>, vector<8x40xf32> -> vector<8x40xf32>
    %c0_252 = arith.constant 0 : index
    %c0_253 = arith.constant 0 : index
    %574 = vector.load %arg24[%c0_252, %c0_253] : memref<1x40xf32, #tpu.memory_space<vmem>>, vector<1x40xf32>
    %575 = vector.broadcast %574 : vector<1x40xf32> to vector<8x40xf32>
    %576 = arith.addf %573, %575 : vector<8x40xf32>
    %c0_254 = arith.constant 0 : index
    %c0_255 = arith.constant 0 : index
    %c0_256 = arith.constant 0 : index
    %577 = vector.load %arg25[%c0_254, %c0_255, %c0_256] : memref<1x8x40xf32, #tpu.memory_space<vmem>>, vector<1x8x40xf32>
    %578 = vector.shape_cast %577 : vector<1x8x40xf32> to vector<8x40xf32>
    %579 = vector.shape_cast %576 : vector<8x40xf32> to vector<1x8x40xf32>
    tpu.vector_store %arg25[%c0_254, %c0_255, %c0_256], %579 {strides = array<i32>} : memref<1x8x40xf32, #tpu.memory_space<vmem>>, vector<1x8x40xf32>,
    return
  }
  func.func @transform_0(%arg0: i32) -> (i32, i32, i32) {
    %c0_i32 = arith.constant 0 : i32
    %c0_i32_0 = arith.constant 0 : i32
    %c0_i32_1 = arith.constant 0 : i32
    return %arg0, %c0_i32, %c0_i32_0 : i32, i32, i32
  }
  func.func @transform_1(%arg0: i32) -> (i32, i32, i32) {
    %c0_i32 = arith.constant 0 : i32
    %c0_i32_0 = arith.constant 0 : i32
    %c0_i32_1 = arith.constant 0 : i32
    return %arg0, %c0_i32, %c0_i32_0 : i32, i32, i32
  }
  func.func @transform_2(%arg0: i32) -> (i32, i32, i32) {
    %c0_i32 = arith.constant 0 : i32
    %c0_i32_0 = arith.constant 0 : i32
    %c0_i32_1 = arith.constant 0 : i32
    return %arg0, %c0_i32, %c0_i32_0 : i32, i32, i32
  }
  func.func @transform_3(%arg0: i32) -> (i32, i32, i32) {
    %c0_i32 = arith.constant 0 : i32
    %c0_i32_0 = arith.constant 0 : i32
    %c0_i32_1 = arith.constant 0 : i32
    return %arg0, %c0_i32, %c0_i32_0 : i32, i32, i32
  }
  func.func @transform_4(%arg0: i32) -> (i32, i32, i32) {
    %c0_i32 = arith.constant 0 : i32
    %c0_i32_0 = arith.constant 0 : i32
    %c0_i32_1 = arith.constant 0 : i32
    %c0_i32_2 = arith.constant 0 : i32
    return %c0_i32, %c0_i32_0, %c0_i32_1 : i32, i32, i32
  }
  func.func @transform_5(%arg0: i32) -> (i32, i32, i32) {
    %c0_i32 = arith.constant 0 : i32
    %c0_i32_0 = arith.constant 0 : i32
    %c0_i32_1 = arith.constant 0 : i32
    %c0_i32_2 = arith.constant 0 : i32
    return %c0_i32, %c0_i32_0, %c0_i32_1 : i32, i32, i32
  }
  func.func @transform_6(%arg0: i32) -> (i32, i32, i32) {
    %c0_i32 = arith.constant 0 : i32
    %c0_i32_0 = arith.constant 0 : i32
    %c0_i32_1 = arith.constant 0 : i32
    %c0_i32_2 = arith.constant 0 : i32
    return %c0_i32, %c0_i32_0, %c0_i32_1 : i32, i32, i32
  }
  func.func @transform_7(%arg0: i32) -> (i32, i32, i32) {
    %c0_i32 = arith.constant 0 : i32
    %c0_i32_0 = arith.constant 0 : i32
    %c0_i32_1 = arith.constant 0 : i32
    %c0_i32_2 = arith.constant 0 : i32
    return %c0_i32, %c0_i32_0, %c0_i32_1 : i32, i32, i32
  }
  func.func @transform_8(%arg0: i32) -> (i32, i32, i32) {
    %c0_i32 = arith.constant 0 : i32
    %c0_i32_0 = arith.constant 0 : i32
    %c0_i32_1 = arith.constant 0 : i32
    %c0_i32_2 = arith.constant 0 : i32
    return %c0_i32, %c0_i32_0, %c0_i32_1 : i32, i32, i32
  }
  func.func @transform_9(%arg0: i32) -> (i32, i32, i32) {
    %c0_i32 = arith.constant 0 : i32
    %c0_i32_0 = arith.constant 0 : i32
    %c0_i32_1 = arith.constant 0 : i32
    %c0_i32_2 = arith.constant 0 : i32
    return %c0_i32, %c0_i32_0, %c0_i32_1 : i32, i32, i32
  }
  func.func @transform_10(%arg0: i32) -> (i32, i32, i32) {
    %c0_i32 = arith.constant 0 : i32
    %c0_i32_0 = arith.constant 0 : i32
    %c0_i32_1 = arith.constant 0 : i32
    %c0_i32_2 = arith.constant 0 : i32
    return %c0_i32, %c0_i32_0, %c0_i32_1 : i32, i32, i32
  }
  func.func @transform_11(%arg0: i32) -> (i32, i32, i32) {
    %c0_i32 = arith.constant 0 : i32
    %c0_i32_0 = arith.constant 0 : i32
    %c0_i32_1 = arith.constant 0 : i32
    %c0_i32_2 = arith.constant 0 : i32
    return %c0_i32, %c0_i32_0, %c0_i32_1 : i32, i32, i32
  }
  func.func @transform_12(%arg0: i32) -> (i32, i32, i32) {
    %c0_i32 = arith.constant 0 : i32
    %c0_i32_0 = arith.constant 0 : i32
    %c0_i32_1 = arith.constant 0 : i32
    %c0_i32_2 = arith.constant 0 : i32
    return %c0_i32, %c0_i32_0, %c0_i32_1 : i32, i32, i32
  }
  func.func @transform_13(%arg0: i32) -> (i32, i32, i32) {
    %c0_i32 = arith.constant 0 : i32
    %c0_i32_0 = arith.constant 0 : i32
    %c0_i32_1 = arith.constant 0 : i32
    %c0_i32_2 = arith.constant 0 : i32
    return %c0_i32, %c0_i32_0, %c0_i32_1 : i32, i32, i32
  }
  func.func @transform_14(%arg0: i32) -> (i32, i32, i32) {
    %c0_i32 = arith.constant 0 : i32
    %c0_i32_0 = arith.constant 0 : i32
    %c0_i32_1 = arith.constant 0 : i32
    %c0_i32_2 = arith.constant 0 : i32
    return %c0_i32, %c0_i32_0, %c0_i32_1 : i32, i32, i32
  }
  func.func @transform_15(%arg0: i32) -> (i32, i32, i32) {
    %c0_i32 = arith.constant 0 : i32
    %c0_i32_0 = arith.constant 0 : i32
    %c0_i32_1 = arith.constant 0 : i32
    %c0_i32_2 = arith.constant 0 : i32
    return %c0_i32, %c0_i32_0, %c0_i32_1 : i32, i32, i32
  }
  func.func @transform_16(%arg0: i32) -> (i32, i32, i32) {
    %c0_i32 = arith.constant 0 : i32
    %c0_i32_0 = arith.constant 0 : i32
    %c0_i32_1 = arith.constant 0 : i32
    %c0_i32_2 = arith.constant 0 : i32
    return %c0_i32, %c0_i32_0, %c0_i32_1 : i32, i32, i32
  }
  func.func @transform_17(%arg0: i32) -> (i32, i32, i32) {
    %c0_i32 = arith.constant 0 : i32
    %c0_i32_0 = arith.constant 0 : i32
    %c0_i32_1 = arith.constant 0 : i32
    %c0_i32_2 = arith.constant 0 : i32
    return %c0_i32, %c0_i32_0, %c0_i32_1 : i32, i32, i32
  }
  func.func @transform_18(%arg0: i32) -> (i32, i32, i32) {
    %c0_i32 = arith.constant 0 : i32
    %c0_i32_0 = arith.constant 0 : i32
    %c0_i32_1 = arith.constant 0 : i32
    %c0_i32_2 = arith.constant 0 : i32
    return %c0_i32, %c0_i32_0, %c0_i32_1 : i32, i32, i32
  }
  func.func @transform_19(%arg0: i32) -> (i32, i32, i32) {
    %c0_i32 = arith.constant 0 : i32
    %c0_i32_0 = arith.constant 0 : i32
    %c0_i32_1 = arith.constant 0 : i32
    %c0_i32_2 = arith.constant 0 : i32
    return %c0_i32, %c0_i32_0, %c0_i32_1 : i32, i32, i32
  }
  func.func @transform_20(%arg0: i32) -> (i32, i32, i32) {
    %c0_i32 = arith.constant 0 : i32
    %c0_i32_0 = arith.constant 0 : i32
    %c0_i32_1 = arith.constant 0 : i32
    %c0_i32_2 = arith.constant 0 : i32
    return %c0_i32, %c0_i32_0, %c0_i32_1 : i32, i32, i32
  }
  func.func @transform_21(%arg0: i32) -> (i32, i32, i32) {
    %c0_i32 = arith.constant 0 : i32
    %c0_i32_0 = arith.constant 0 : i32
    %c0_i32_1 = arith.constant 0 : i32
    %c0_i32_2 = arith.constant 0 : i32
    return %c0_i32, %c0_i32_0, %c0_i32_1 : i32, i32, i32
  }
  func.func @transform_22(%arg0: i32) -> (i32, i32) {
    %c0_i32 = arith.constant 0 : i32
    %c0_i32_0 = arith.constant 0 : i32
    %c0_i32_1 = arith.constant 0 : i32
    return %c0_i32, %c0_i32_0 : i32, i32
  }
  func.func @transform_23(%arg0: i32) -> (i32, i32) {
    %c0_i32 = arith.constant 0 : i32
    %c0_i32_0 = arith.constant 0 : i32
    %c0_i32_1 = arith.constant 0 : i32
    return %c0_i32, %c0_i32_0 : i32, i32
  }
  func.func @transform_24(%arg0: i32) -> (i32, i32, i32) {
    %c0_i32 = arith.constant 0 : i32
    %c0_i32_0 = arith.constant 0 : i32
    %c0_i32_1 = arith.constant 0 : i32
    return %arg0, %c0_i32, %c0_i32_0 : i32, i32, i32
  }
  func.func @transform_25(%arg0: i32) -> (i32, i32, i32, i32) {
    %c0_i32 = arith.constant 0 : i32
    %c0_i32_0 = arith.constant 0 : i32
    %c0_i32_1 = arith.constant 0 : i32
    %c0_i32_2 = arith.constant 0 : i32
    return %c0_i32, %arg0, %c0_i32_0, %c0_i32_1 : i32, i32, i32, i32
  }
  func.func @transform_26(%arg0: i32) -> (i32, i32, i32, i32) {
    %c0_i32 = arith.constant 0 : i32
    %c0_i32_0 = arith.constant 0 : i32
    %c0_i32_1 = arith.constant 0 : i32
    %c0_i32_2 = arith.constant 0 : i32
    return %c0_i32, %arg0, %c0_i32_0, %c0_i32_1 : i32, i32, i32, i32
  }
}

</mosaic_0001>

<llo_original>
// kernel: transformer_forward_from_tokens.2
$region0: #{transformer_forward_from_tokens.2}
  #allocation0 [shape = 'u32[]', space=smem, size = 0x4, offset = 0x4, fixed_abs, tag = 'smem constant byte address 0x4 - core index']
  #allocation1 [shape = 'u32[72,128]{1,0:T(1,128)}', space=vmem, size = 0x9000, scoped, tag = 'internal scratch']
  %s0 = inlined_call_operand.vmem [shape: f32[2,8,32], index: 0, kind: input, shape index: {}]
  %s1 = inlined_call_operand.vmem [shape: f32[2,1,8], index: 1, kind: input, shape index: {}]
  %s2 = inlined_call_operand.vmem [shape: f32[2,32,96], index: 2, kind: input, shape index: {}]
  %s3 = inlined_call_operand.vmem [shape: f32[2,1,96], index: 3, kind: input, shape index: {}]
  %s4 = inlined_call_operand.vmem [shape: f32[2,32,32], index: 4, kind: input, shape index: {}]
  %s5 = inlined_call_operand.vmem [shape: f32[2,1,32], index: 5, kind: input, shape index: {}]
  %s6 = inlined_call_operand.vmem [shape: f32[2,32,64], index: 6, kind: input, shape index: {}]
  %s7 = inlined_call_operand.vmem [shape: f32[2,1,64], index: 7, kind: input, shape index: {}]
  %s8 = inlined_call_operand.vmem [shape: f32[2,64,32], index: 8, kind: input, shape index: {}]
  %s9 = inlined_call_operand.vmem [shape: f32[2,1,32], index: 9, kind: input, shape index: {}]
  %s10 = inlined_call_operand.vmem [shape: f32[2,8,32], index: 10, kind: input, shape index: {}]
  %s11 = inlined_call_operand.vmem [shape: f32[2,8,32], index: 11, kind: input, shape index: {}]
  %s12 = inlined_call_operand.vmem [shape: f32[2,8,32], index: 12, kind: input, shape index: {}]
  %s13 = inlined_call_operand.vmem [shape: f32[2,8,32], index: 13, kind: input, shape index: {}]
  %s14 = inlined_call_operand.vmem [shape: f32[2,8,32], index: 14, kind: output, shape index: {}]
  %s15 = sld [smem:[#allocation0]]
  $region89: #{transformer_forward_from_tokens.2} parent=0
    _
  %s17 = ssub.s32 1, %s15
  %s18 = scalar_select 0, %s17, %s15
  loop: start=0, step=1, limit=4
  $region2: #{transformer_forward_from_tokens.2} parent=0 // loop_pre_header
    _
  $region3: #{transformer_forward_from_tokens.2} parent=0 // loop_header
    %s20 = sphi 0, %s24
    %p21 = scmp.ge.s32.totalorder %s20, 4
    %s30 = sphi 0, %s32
    %s33 = sphi 0, %s30
    %s34 = sphi 0, %s33
    %s50 = sphi 0, %s34
    %s56 = sphi 0, %s58
    %s59 = sphi 0, %s56
    %s60 = sphi 0, %s59
    %s76 = sphi 0, %s60
    %s80 = sphi 0, %s80
    %s82 = sphi 0, %s80
    %s83 = sphi 0, %s82
    %s97 = sphi 0, %s83
    %s101 = sphi 0, %s101
    %s103 = sphi 0, %s101
    %s104 = sphi 0, %s103
    %s118 = sphi 0, %s104
    %s122 = sphi 0, %s122
    %s124 = sphi 0, %s122
    %s125 = sphi 0, %s124
    %s139 = sphi 0, %s125
    %s143 = sphi 0, %s143
    %s145 = sphi 0, %s143
    %s146 = sphi 0, %s145
    %s160 = sphi 0, %s146
    %s164 = sphi 0, %s164
    %s166 = sphi 0, %s164
    %s167 = sphi 0, %s166
    %s181 = sphi 0, %s167
    %s185 = sphi 0, %s185
    %s187 = sphi 0, %s185
    %s188 = sphi 0, %s187
    %s202 = sphi 0, %s188
    %s206 = sphi 0, %s206
    %s208 = sphi 0, %s206
    %s209 = sphi 0, %s208
    %s223 = sphi 0, %s209
    %s227 = sphi 0, %s227
    %s229 = sphi 0, %s227
    %s230 = sphi 0, %s229
    %s244 = sphi 0, %s230
    %s248 = sphi 0, %s248
    %s250 = sphi 0, %s248
    %s251 = sphi 0, %s250
    %s265 = sphi 0, %s251
    %s269 = sphi 0, %s269
    %s271 = sphi 0, %s269
    %s272 = sphi 0, %s271
    %s286 = sphi 0, %s272
    %s290 = sphi 0, %s290
    %s292 = sphi 0, %s290
    %s293 = sphi 0, %s292
    %s307 = sphi 0, %s293
    %s311 = sphi 0, %s311
    %s313 = sphi 0, %s311
    %s314 = sphi 0, %s313
    %s328 = sphi 0, %s314
    %s334 = sphi 0, %s336
    %s337 = sphi 0, %s334
    %s338 = sphi 0, %s337
    %s354 = sphi 0, %s338
  $region4: #{transformer_forward_from_tokens.2} parent=0 // loop_header_branch
    %23 = sbr.rel (%p21) target = $region8
  $region5: #{transformer_forward_from_tokens.2} parent=0 // loop_body
    %s25 = ssub.s32 %s20, 1
    %s26 = ssub.s32 %s20, 2
    %s27 = sadd.s32 %s20, 1
    %s28 = ssub.s32 %s20, %s27
    %p29 = scmp.eq.s32.totalorder %s28, 0
    %s31 = sadd.s32 %s30, 1
    %s32 = scalar_select %p29, %s30, %s31
    %p35 = pneg %p29
    %p36 = scmp.eq.s32.totalorder %s20, 1
    %p37 = por %p35, %p36
    %p38 = scmp.ne.s32.totalorder %s30, %s33
    %p39 = scmp.eq.s32.totalorder %s20, 0
    %p40 = por %p38, %p39
    %p41 = scmp.ne.s32.totalorder %s30, %s33
    %p42 = scmp.eq.s32.totalorder %s25, 1
    %p43 = por %p41, %p42
    %p44 = scmp.ne.s32.totalorder %s33, %s34
    %p45 = scmp.eq.s32.totalorder %s25, 0
    %p46 = por %p44, %p45
    %p47 = scmp.ne.s32.totalorder %s33, %s34
    %p48 = scmp.eq.s32.totalorder %s26, 1
    %p49 = por %p47, %p48
    %p51 = scmp.ne.s32.totalorder %s34, %s50
    %p52 = scmp.eq.s32.totalorder %s26, 0
    %p53 = por %p51, %p52
    %s54 = ssub.s32 %s20, %s27
    %p55 = scmp.eq.s32.totalorder %s54, 0
    %s57 = sadd.s32 %s56, 1
    %s58 = scalar_select %p55, %s56, %s57
    %p61 = pneg %p55
    %p62 = scmp.eq.s32.totalorder %s20, 1
    %p63 = por %p61, %p62
    %p64 = scmp.ne.s32.totalorder %s56, %s59
    %p65 = scmp.eq.s32.totalorder %s20, 0
    %p66 = por %p64, %p65
    %p67 = scmp.ne.s32.totalorder %s56, %s59
    %p68 = scmp.eq.s32.totalorder %s25, 1
    %p69 = por %p67, %p68
    %p70 = scmp.ne.s32.totalorder %s59, %s60
    %p71 = scmp.eq.s32.totalorder %s25, 0
    %p72 = por %p70, %p71
    %p73 = scmp.ne.s32.totalorder %s59, %s60
    %p74 = scmp.eq.s32.totalorder %s26, 1
    %p75 = por %p73, %p74
    %p77 = scmp.ne.s32.totalorder %s60, %s76
    %p78 = scmp.eq.s32.totalorder %s26, 0
    %p79 = por %p77, %p78
    %s81 = sadd.s32 %s80, 1
    %p84 = scmp.eq.s32.totalorder %s20, 1
    %p85 = scmp.ne.s32.totalorder %s80, %s82
    %p86 = scmp.eq.s32.totalorder %s20, 0
    %p87 = por %p85, %p86
    %p88 = scmp.ne.s32.totalorder %s80, %s82
    %p89 = scmp.eq.s32.totalorder %s25, 1
    %p90 = por %p88, %p89
    %p91 = scmp.ne.s32.totalorder %s82, %s83
    %p92 = scmp.eq.s32.totalorder %s25, 0
    %p93 = por %p91, %p92
    %p94 = scmp.ne.s32.totalorder %s82, %s83
    %p95 = scmp.eq.s32.totalorder %s26, 1
    %p96 = por %p94, %p95
    %p98 = scmp.ne.s32.totalorder %s83, %s97
    %p99 = scmp.eq.s32.totalorder %s26, 0
    %p100 = por %p98, %p99
    %s102 = sadd.s32 %s101, 1
    %p105 = scmp.eq.s32.totalorder %s20, 1
    %p106 = scmp.ne.s32.totalorder %s101, %s103
    %p107 = scmp.eq.s32.totalorder %s20, 0
    %p108 = por %p106, %p107
    %p109 = scmp.ne.s32.totalorder %s101, %s103
    %p110 = scmp.eq.s32.totalorder %s25, 1
    %p111 = por %p109, %p110
    %p112 = scmp.ne.s32.totalorder %s103, %s104
    %p113 = scmp.eq.s32.totalorder %s25, 0
    %p114 = por %p112, %p113
    %p115 = scmp.ne.s32.totalorder %s103, %s104
    %p116 = scmp.eq.s32.totalorder %s26, 1
    %p117 = por %p115, %p116
    %p119 = scmp.ne.s32.totalorder %s104, %s118
    %p120 = scmp.eq.s32.totalorder %s26, 0
    %p121 = por %p119, %p120
    %s123 = sadd.s32 %s122, 1
    %p126 = scmp.eq.s32.totalorder %s20, 1
    %p127 = scmp.ne.s32.totalorder %s122, %s124
    %p128 = scmp.eq.s32.totalorder %s20, 0
    %p129 = por %p127, %p128
    %p130 = scmp.ne.s32.totalorder %s122, %s124
    %p131 = scmp.eq.s32.totalorder %s25, 1
    %p132 = por %p130, %p131
    %p133 = scmp.ne.s32.totalorder %s124, %s125
    %p134 = scmp.eq.s32.totalorder %s25, 0
    %p135 = por %p133, %p134
    %p136 = scmp.ne.s32.totalorder %s124, %s125
    %p137 = scmp.eq.s32.totalorder %s26, 1
    %p138 = por %p136, %p137
    %p140 = scmp.ne.s32.totalorder %s125, %s139
    %p141 = scmp.eq.s32.totalorder %s26, 0
    %p142 = por %p140, %p141
    %s144 = sadd.s32 %s143, 1
    %p147 = scmp.eq.s32.totalorder %s20, 1
    %p148 = scmp.ne.s32.totalorder %s143, %s145
    %p149 = scmp.eq.s32.totalorder %s20, 0
    %p150 = por %p148, %p149
    %p151 = scmp.ne.s32.totalorder %s143, %s145
    %p152 = scmp.eq.s32.totalorder %s25, 1
    %p153 = por %p151, %p152
    %p154 = scmp.ne.s32.totalorder %s145, %s146
    %p155 = scmp.eq.s32.totalorder %s25, 0
    %p156 = por %p154, %p155
    %p157 = scmp.ne.s32.totalorder %s145, %s146
    %p158 = scmp.eq.s32.totalorder %s26, 1
    %p159 = por %p157, %p158
    %p161 = scmp.ne.s32.totalorder %s146, %s160
    %p162 = scmp.eq.s32.totalorder %s26, 0
    %p163 = por %p161, %p162
    %s165 = sadd.s32 %s164, 1
    %p168 = scmp.eq.s32.totalorder %s20, 1
    %p169 = scmp.ne.s32.totalorder %s164, %s166
    %p170 = scmp.eq.s32.totalorder %s20, 0
    %p171 = por %p169, %p170
    %p172 = scmp.ne.s32.totalorder %s164, %s166
    %p173 = scmp.eq.s32.totalorder %s25, 1
    %p174 = por %p172, %p173
    %p175 = scmp.ne.s32.totalorder %s166, %s167
    %p176 = scmp.eq.s32.totalorder %s25, 0
    %p177 = por %p175, %p176
    %p178 = scmp.ne.s32.totalorder %s166, %s167
    %p179 = scmp.eq.s32.totalorder %s26, 1
    %p180 = por %p178, %p179
    %p182 = scmp.ne.s32.totalorder %s167, %s181
    %p183 = scmp.eq.s32.totalorder %s26, 0
    %p184 = por %p182, %p183
    %s186 = sadd.s32 %s185, 1
    %p189 = scmp.eq.s32.totalorder %s20, 1
    %p190 = scmp.ne.s32.totalorder %s185, %s187
    %p191 = scmp.eq.s32.totalorder %s20, 0
    %p192 = por %p190, %p191
    %p193 = scmp.ne.s32.totalorder %s185, %s187
    %p194 = scmp.eq.s32.totalorder %s25, 1
    %p195 = por %p193, %p194
    %p196 = scmp.ne.s32.totalorder %s187, %s188
    %p197 = scmp.eq.s32.totalorder %s25, 0
    %p198 = por %p196, %p197
    %p199 = scmp.ne.s32.totalorder %s187, %s188
    %p200 = scmp.eq.s32.totalorder %s26, 1
    %p201 = por %p199, %p200
    %p203 = scmp.ne.s32.totalorder %s188, %s202
    %p204 = scmp.eq.s32.totalorder %s26, 0
    %p205 = por %p203, %p204
    %s207 = sadd.s32 %s206, 1
    %p210 = scmp.eq.s32.totalorder %s20, 1
    %p211 = scmp.ne.s32.totalorder %s206, %s208
    %p212 = scmp.eq.s32.totalorder %s20, 0
    %p213 = por %p211, %p212
    %p214 = scmp.ne.s32.totalorder %s206, %s208
    %p215 = scmp.eq.s32.totalorder %s25, 1
    %p216 = por %p214, %p215
    %p217 = scmp.ne.s32.totalorder %s208, %s209
    %p218 = scmp.eq.s32.totalorder %s25, 0
    %p219 = por %p217, %p218
    %p220 = scmp.ne.s32.totalorder %s208, %s209
    %p221 = scmp.eq.s32.totalorder %s26, 1
    %p222 = por %p220, %p221
    %p224 = scmp.ne.s32.totalorder %s209, %s223
    %p225 = scmp.eq.s32.totalorder %s26, 0
    %p226 = por %p224, %p225
    %s228 = sadd.s32 %s227, 1
    %p231 = scmp.eq.s32.totalorder %s20, 1
    %p232 = scmp.ne.s32.totalorder %s227, %s229
    %p233 = scmp.eq.s32.totalorder %s20, 0
    %p234 = por %p232, %p233
    %p235 = scmp.ne.s32.totalorder %s227, %s229
    %p236 = scmp.eq.s32.totalorder %s25, 1
    %p237 = por %p235, %p236
    %p238 = scmp.ne.s32.totalorder %s229, %s230
    %p239 = scmp.eq.s32.totalorder %s25, 0
    %p240 = por %p238, %p239
    %p241 = scmp.ne.s32.totalorder %s229, %s230
    %p242 = scmp.eq.s32.totalorder %s26, 1
    %p243 = por %p241, %p242
    %p245 = scmp.ne.s32.totalorder %s230, %s244
    %p246 = scmp.eq.s32.totalorder %s26, 0
    %p247 = por %p245, %p246
    %s249 = sadd.s32 %s248, 1
    %p252 = scmp.eq.s32.totalorder %s20, 1
    %p253 = scmp.ne.s32.totalorder %s248, %s250
    %p254 = scmp.eq.s32.totalorder %s20, 0
    %p255 = por %p253, %p254
    %p256 = scmp.ne.s32.totalorder %s248, %s250
    %p257 = scmp.eq.s32.totalorder %s25, 1
    %p258 = por %p256, %p257
    %p259 = scmp.ne.s32.totalorder %s250, %s251
    %p260 = scmp.eq.s32.totalorder %s25, 0
    %p261 = por %p259, %p260
    %p262 = scmp.ne.s32.totalorder %s250, %s251
    %p263 = scmp.eq.s32.totalorder %s26, 1
    %p264 = por %p262, %p263
    %p266 = scmp.ne.s32.totalorder %s251, %s265
    %p267 = scmp.eq.s32.totalorder %s26, 0
    %p268 = por %p266, %p267
    %s270 = sadd.s32 %s269, 1
    %p273 = scmp.eq.s32.totalorder %s20, 1
    %p274 = scmp.ne.s32.totalorder %s269, %s271
    %p275 = scmp.eq.s32.totalorder %s20, 0
    %p276 = por %p274, %p275
    %p277 = scmp.ne.s32.totalorder %s269, %s271
    %p278 = scmp.eq.s32.totalorder %s25, 1
    %p279 = por %p277, %p278
    %p280 = scmp.ne.s32.totalorder %s271, %s272
    %p281 = scmp.eq.s32.totalorder %s25, 0
    %p282 = por %p280, %p281
    %p283 = scmp.ne.s32.totalorder %s271, %s272
    %p284 = scmp.eq.s32.totalorder %s26, 1
    %p285 = por %p283, %p284
    %p287 = scmp.ne.s32.totalorder %s272, %s286
    %p288 = scmp.eq.s32.totalorder %s26, 0
    %p289 = por %p287, %p288
    %s291 = sadd.s32 %s290, 1
    %p294 = scmp.eq.s32.totalorder %s20, 1
    %p295 = scmp.ne.s32.totalorder %s290, %s292
    %p296 = scmp.eq.s32.totalorder %s20, 0
    %p297 = por %p295, %p296
    %p298 = scmp.ne.s32.totalorder %s290, %s292
    %p299 = scmp.eq.s32.totalorder %s25, 1
    %p300 = por %p298, %p299
    %p301 = scmp.ne.s32.totalorder %s292, %s293
    %p302 = scmp.eq.s32.totalorder %s25, 0
    %p303 = por %p301, %p302
    %p304 = scmp.ne.s32.totalorder %s292, %s293
    %p305 = scmp.eq.s32.totalorder %s26, 1
    %p306 = por %p304, %p305
    %p308 = scmp.ne.s32.totalorder %s293, %s307
    %p309 = scmp.eq.s32.totalorder %s26, 0
    %p310 = por %p308, %p309
    %s312 = sadd.s32 %s311, 1
    %p315 = scmp.eq.s32.totalorder %s20, 1
    %p316 = scmp.ne.s32.totalorder %s311, %s313
    %p317 = scmp.eq.s32.totalorder %s20, 0
    %p318 = por %p316, %p317
    %p319 = scmp.ne.s32.totalorder %s311, %s313
    %p320 = scmp.eq.s32.totalorder %s25, 1
    %p321 = por %p319, %p320
    %p322 = scmp.ne.s32.totalorder %s313, %s314
    %p323 = scmp.eq.s32.totalorder %s25, 0
    %p324 = por %p322, %p323
    %p325 = scmp.ne.s32.totalorder %s313, %s314
    %p326 = scmp.eq.s32.totalorder %s26, 1
    %p327 = por %p325, %p326
    %p329 = scmp.ne.s32.totalorder %s314, %s328
    %p330 = scmp.eq.s32.totalorder %s26, 0
    %p331 = por %p329, %p330
    %s332 = ssub.s32 %s20, %s27
    %p333 = scmp.eq.s32.totalorder %s332, 0
    %s335 = sadd.s32 %s334, 1
    %s336 = scalar_select %p333, %s334, %s335
    %p339 = pneg %p333
    %p340 = scmp.eq.s32.totalorder %s20, 1
    %p341 = por %p339, %p340
    %p342 = scmp.ne.s32.totalorder %s334, %s337
    %p343 = scmp.eq.s32.totalorder %s20, 0
    %p344 = por %p342, %p343
    %p345 = scmp.ne.s32.totalorder %s334, %s337
    %p346 = scmp.eq.s32.totalorder %s25, 1
    %p347 = por %p345, %p346
    %p348 = scmp.ne.s32.totalorder %s337, %s338
    %p349 = scmp.eq.s32.totalorder %s25, 0
    %p350 = por %p348, %p349
    %p351 = scmp.ne.s32.totalorder %s337, %s338
    %p352 = scmp.eq.s32.totalorder %s26, 1
    %p353 = por %p351, %p352
    %p355 = scmp.ne.s32.totalorder %s338, %s354
    %p356 = scmp.eq.s32.totalorder %s26, 0
    %p357 = por %p355, %p356
    %p358 = scmp.le.s32.totalorder 1, %s20
    %p359 = scmp.lt.s32.totalorder %s20, 3
    %p360 = pnand %p358, %p359
    %p361 = pneg %p360
    // Predicated region
    $region9: #{transformer_forward_from_tokens.2} parent=5 // pred_check
      _
    $region10: #{transformer_forward_from_tokens.2} parent=5 // pred_check_branch
      %363 = sbr.rel (%p360) target = $region12
    $region11: #{transformer_forward_from_tokens.2} parent=5 // pred_region
      %s364 = ssub.s32 %s20, 1
      // Predicated region
      $region13: #{transformer_forward_from_tokens.2} parent=11 // pred_check
        %p365 = pneg %p93
      $region14: #{transformer_forward_from_tokens.2} parent=11 // pred_check_branch
        %367 = sbr.rel (%p365) target = $region16
      $region15: #{transformer_forward_from_tokens.2} parent=11 // pred_region
        _
      $region16: #{transformer_forward_from_tokens.2} parent=11 // pred_fallthru
        _
      // Predicated region
      $region17: #{transformer_forward_from_tokens.2} parent=11 // pred_check
        %p368 = pneg %p114
      $region18: #{transformer_forward_from_tokens.2} parent=11 // pred_check_branch
        %370 = sbr.rel (%p368) target = $region20
      $region19: #{transformer_forward_from_tokens.2} parent=11 // pred_region
        _
      $region20: #{transformer_forward_from_tokens.2} parent=11 // pred_fallthru
        _
      // Predicated region
      $region21: #{transformer_forward_from_tokens.2} parent=11 // pred_check
        %p371 = pneg %p135
      $region22: #{transformer_forward_from_tokens.2} parent=11 // pred_check_branch
        %373 = sbr.rel (%p371) target = $region24
      $region23: #{transformer_forward_from_tokens.2} parent=11 // pred_region
        _
      $region24: #{transformer_forward_from_tokens.2} parent=11 // pred_fallthru
        _
      // Predicated region
      $region25: #{transformer_forward_from_tokens.2} parent=11 // pred_check
        %p374 = pneg %p156
      $region26: #{transformer_forward_from_tokens.2} parent=11 // pred_check_branch
        %376 = sbr.rel (%p374) target = $region28
      $region27: #{transformer_forward_from_tokens.2} parent=11 // pred_region
        _
      $region28: #{transformer_forward_from_tokens.2} parent=11 // pred_fallthru
        _
      // Predicated region
      $region29: #{transformer_forward_from_tokens.2} parent=11 // pred_check
        %p377 = pneg %p177
      $region30: #{transformer_forward_from_tokens.2} parent=11 // pred_check_branch
        %379 = sbr.rel (%p377) target = $region32
      $region31: #{transformer_forward_from_tokens.2} parent=11 // pred_region
        _
      $region32: #{transformer_forward_from_tokens.2} parent=11 // pred_fallthru
        _
      // Predicated region
      $region33: #{transformer_forward_from_tokens.2} parent=11 // pred_check
        %p380 = pneg %p198
      $region34: #{transformer_forward_from_tokens.2} parent=11 // pred_check_branch
        %382 = sbr.rel (%p380) target = $region36
      $region35: #{transformer_forward_from_tokens.2} parent=11 // pred_region
        _
      $region36: #{transformer_forward_from_tokens.2} parent=11 // pred_fallthru
        _
      // Predicated region
      $region37: #{transformer_forward_from_tokens.2} parent=11 // pred_check
        %p383 = pneg %p219
      $region38: #{transformer_forward_from_tokens.2} parent=11 // pred_check_branch
        %385 = sbr.rel (%p383) target = $region40
      $region39: #{transformer_forward_from_tokens.2} parent=11 // pred_region
        _
      $region40: #{transformer_forward_from_tokens.2} parent=11 // pred_fallthru
        _
      // Predicated region
      $region41: #{transformer_forward_from_tokens.2} parent=11 // pred_check
        %p386 = pneg %p240
      $region42: #{transformer_forward_from_tokens.2} parent=11 // pred_check_branch
        %388 = sbr.rel (%p386) target = $region44
      $region43: #{transformer_forward_from_tokens.2} parent=11 // pred_region
        _
      $region44: #{transformer_forward_from_tokens.2} parent=11 // pred_fallthru
        _
      // Predicated region
      $region45: #{transformer_forward_from_tokens.2} parent=11 // pred_check
        %p389 = pneg %p261
      $region46: #{transformer_forward_from_tokens.2} parent=11 // pred_check_branch
        %391 = sbr.rel (%p389) target = $region48
      $region47: #{transformer_forward_from_tokens.2} parent=11 // pred_region
        _
      $region48: #{transformer_forward_from_tokens.2} parent=11 // pred_fallthru
        _
      // Predicated region
      $region49: #{transformer_forward_from_tokens.2} parent=11 // pred_check
        %p392 = pneg %p282
      $region50: #{transformer_forward_from_tokens.2} parent=11 // pred_check_branch
        %394 = sbr.rel (%p392) target = $region52
      $region51: #{transformer_forward_from_tokens.2} parent=11 // pred_region
        _
      $region52: #{transformer_forward_from_tokens.2} parent=11 // pred_fallthru
        _
      // Predicated region
      $region53: #{transformer_forward_from_tokens.2} parent=11 // pred_check
        %p395 = pneg %p303
      $region54: #{transformer_forward_from_tokens.2} parent=11 // pred_check_branch
        %397 = sbr.rel (%p395) target = $region56
      $region55: #{transformer_forward_from_tokens.2} parent=11 // pred_region
        _
      $region56: #{transformer_forward_from_tokens.2} parent=11 // pred_fallthru
        _
      // Predicated region
      $region57: #{transformer_forward_from_tokens.2} parent=11 // pred_check
        %p398 = pneg %p324
      $region58: #{transformer_forward_from_tokens.2} parent=11 // pred_check_branch
        %400 = sbr.rel (%p398) target = $region60
      $region59: #{transformer_forward_from_tokens.2} parent=11 // pred_region
        _
      $region60: #{transformer_forward_from_tokens.2} parent=11 // pred_fallthru
        _
    $region12: #{transformer_forward_from_tokens.2} parent=5 // pred_fallthru
      _
    %p401 = scmp.lt.s32.totalorder %s20, 2
    // Predicated region
    $region61: #{transformer_forward_from_tokens.2} parent=5 // pred_check
      %p402 = pneg %p401
    $region62: #{transformer_forward_from_tokens.2} parent=5 // pred_check_branch
      %404 = sbr.rel (%p402) target = $region64
    $region63: #{transformer_forward_from_tokens.2} parent=5 // pred_region
      // Predicated region
      $region65: #{transformer_forward_from_tokens.2} parent=63 // pred_check
        %p405 = pneg %p40
      $region66: #{transformer_forward_from_tokens.2} parent=63 // pred_check_branch
        %407 = sbr.rel (%p405) target = $region68
      $region67: #{transformer_forward_from_tokens.2} parent=63 // pred_region
        %p408 = scmp.lt.s32.totalorder %s20, 1
        %s409 = scalar_select %p408, %s20, 1
        %s410 = smul.addr %s409, 8
        %s411 = scalar_lea.vmem %s0, %s410
      $region68: #{transformer_forward_from_tokens.2} parent=63 // pred_fallthru
        _
      // Predicated region
      $region69: #{transformer_forward_from_tokens.2} parent=63 // pred_check
        %p412 = pneg %p66
      $region70: #{transformer_forward_from_tokens.2} parent=63 // pred_check_branch
        %414 = sbr.rel (%p412) target = $region72
      $region71: #{transformer_forward_from_tokens.2} parent=63 // pred_region
        %p415 = scmp.lt.s32.totalorder %s20, 1
        %s416 = scalar_select %p415, %s20, 1
        %s417 = scalar_lea.vmem %s1, %s416
      $region72: #{transformer_forward_from_tokens.2} parent=63 // pred_fallthru
        _
    $region64: #{transformer_forward_from_tokens.2} parent=5 // pred_fallthru
      _
    %p418 = scmp.le.s32.totalorder 1, %s20
    %p419 = scmp.lt.s32.totalorder %s20, 3
    %p420 = pnand %p418, %p419
    %p421 = pneg %p420
    // Predicated region
    $region73: #{transformer_forward_from_tokens.2} parent=5 // pred_check
      _
    $region74: #{transformer_forward_from_tokens.2} parent=5 // pred_check_branch
      %423 = sbr.rel (%p420) target = $region76
    $region75: #{transformer_forward_from_tokens.2} parent=5 // pred_region
      %s424 = ssub.s32 %s20, 1
      %p425 = scmp.lt.s32.totalorder %s25, 1
      %s426 = scalar_select %p425, %s25, 1
      %s427 = smul.addr %s426, 8
      %s428 = scalar_lea.vmem %s0, %s427
      %p429 = pneg %p46
      %p430 = pneg %p43
      %p431 = scmp.lt.s32.totalorder %s25, 1
      %s432 = scalar_select %p431, %s25, 1
      %s433 = scalar_lea.vmem %s1, %s432
      %p434 = pneg %p72
      %p435 = pneg %p69
      %p436 = pneg %p93
      %p437 = pneg %p90
      %p438 = pneg %p114
      %p439 = pneg %p111
      %p440 = pneg %p135
      %p441 = pneg %p132
      %p442 = pneg %p156
      %p443 = pneg %p153
      %p444 = pneg %p177
      %p445 = pneg %p174
      %p446 = pneg %p198
      %p447 = pneg %p195
      %p448 = pneg %p219
      %p449 = pneg %p216
      %p450 = pneg %p240
      %p451 = pneg %p237
      %p452 = pneg %p261
      %p453 = pneg %p258
      %p454 = pneg %p282
      %p455 = pneg %p279
      %p456 = pneg %p303
      %p457 = pneg %p300
      %p458 = pneg %p324
      %p459 = pneg %p321
      %p460 = pneg %p350
      %p461 = pneg %p347
      %p462 = scmp.lt.s32.totalorder %s25, 1
      %s463 = scalar_select %p462, %s25, 1
      %s464 = smul.addr %s463, 8
      %s465 = scalar_lea.vmem %s14, %s464
      %p466 = scmp.lt.s32.totalorder %s25, 1
      %s467 = scalar_select %p466, %s25, 1
      %s468 = smul.addr %s467, 8
      %s469 = scalar_lea.vmem %s0, %s468
      %p470 = scmp.lt.s32.totalorder %s25, 1
      %s471 = scalar_select %p470, %s25, 1
      %s472 = scalar_lea.vmem %s1, %s471
      %p473 = scmp.lt.s32.totalorder %s25, 1
      %s474 = scalar_select %p473, %s25, 1
      %s475 = smul.addr %s474, 8
      %s476 = scalar_lea.vmem %s14, %s475
      %v477 = vld [vmem:[%s469] sm:$0xff]
      %v478 = vld [vmem:[%s472] sm:$0x1]
      %v479 = vmul.f32 %v478, -1e+09
      %v480 = vld [vmem:[%s2] sm:$0xff]
      %v481 = vld [vmem:[%s2 + $0x8] sm:$0xff]
      %v482 = vld [vmem:[%s2 + $0x10] sm:$0xff]
      %v483 = vld [vmem:[%s2 + $0x18] sm:$0xff]
      %v484 = vld [vmem:[%s3] sm:$0x1]
      %v485 = vld [vmem:[%s4] sm:$0xff]
      %v486 = vld [vmem:[%s4 + $0x8] sm:$0xff]
      %v487 = vld [vmem:[%s4 + $0x10] sm:$0xff]
      %v488 = vld [vmem:[%s4 + $0x18] sm:$0xff]
      %v489 = vld [vmem:[%s5] sm:$0x1]
      %v491 = vperm.slane %v484, 0
      %vm493 = vcmask 261120
      %v495 = vsel %vm493, %v477, 0
      %497 = vmatpush.msra.mxu0 0.0
      %498 = vmatpush.msra.mxu0 0.0
      %499 = vmatpush.msra.mxu0 0.0
      %500 = vmatpush.msra.mxu0 0.0
      %501 = vmatpush.msra.mxu0 0.0
      %502 = vmatpush.msra.mxu0 0.0
      %503 = vmatpush.msra.mxu0 0.0
      %504 = vmatpush.msra.mxu0 0.0
      %505 = vmatpush.msra.mxu0 0.0
      %506 = vmatpush.msra.mxu0 0.0
      %507 = vmatpush.msra.mxu0 0.0
      %508 = vmatpush.msra.mxu0 0.0
      %509 = vmatpush.msra.mxu0 %v483
      %510 = vmatpush.msra.mxu0 %v482
      %511 = vmatpush.msra.mxu0 %v481
      %512 = vmatpush.msra.mxu0 %v480
      %513 = vmatmul.f32.gmra.mxu0 %v495
      %v514 = vpop.f32.mrf.mxu0
      %v515 = vadd.f32 %v491, %v514
      %516 = vdwg.mxu0
      %v517 = vmul.f32 %v515, 0.35355338
      %v519 = vperm.slane %v479, 0
      %522 = vrot.lane.b32.xlu0 %v515, 96
      %v523 = vpop.permute.xlu0 %522
      %vm524 = vcmask 64512
      %v526 = vsel %vm524, %v517, 0
      %v528 = vsel %vm524, %v523, 0
      %530 = vmatpush.xpose.msra.mxu0 0.0
      %531 = vmatpush.xpose.msra.mxu0 0.0
      %532 = vmatpush.xpose.msra.mxu0 0.0
      %533 = vmatpush.xpose.msra.mxu0 0.0
      %534 = vmatpush.xpose.msra.mxu0 0.0
      %535 = vmatpush.xpose.msra.mxu0 0.0
      %536 = vmatpush.xpose.msra.mxu0 0.0
      %537 = vmatpush.xpose.msra.mxu0 0.0
      %538 = vmatpush.xpose.msra.mxu0 0.0
      %539 = vmatpush.xpose.msra.mxu0 0.0
      %540 = vmatpush.xpose.msra.mxu0 0.0
      %541 = vmatpush.xpose.msra.mxu0 0.0
      %542 = vmatpush.xpose.msra.mxu0 0.0
      %543 = vmatpush.xpose.msra.mxu0 0.0
      %544 = vmatpush.xpose.msra.mxu0 0.0
      %545 = vmatpush.xpose.msra.mxu0 %v528
      %546 = vmatmul.f32.gmra.mxu0 %v526
      %v547 = vpop.f32.mrf.mxu0
      %v548 = vadd.f32 %v519, %v547
      %549 = vdwg.mxu0
      %v550 = vsel %vm524, %v548, -inf
      %551 = vmax.xlane.f32.xlu0 %v550
      %v552 = vpop.xlane.xlu0 %551
      %v553 = vsub.f32 %v548, %v552
      %v554 = vmul.f32 %v553, 1.442695
      %v555 = vpow.pop %v554
      %v556 = vsel %vm524, %v555, 0.0
      %557 = vadd.xlane.f32.xlu0 %v556
      %v558 = vpop.xlane.xlu0 %557
      %v559 = vrcp.pop %v558
      %v560 = vmul.f32 %v555, %v559
      %561 = vrot.lane.b32.xlu0 %v515, 64
      %v562 = vpop.permute.xlu0 %561
      %v565 = vsel %vm524, %v560, 0
      %567 = vmatpush.msra.mxu0 0.0
      %568 = vmatpush.msra.mxu0 0.0
      %569 = vmatpush.msra.mxu0 0.0
      %570 = vmatpush.msra.mxu0 0.0
      %571 = vmatpush.msra.mxu0 0.0
      %572 = vmatpush.msra.mxu0 0.0
      %573 = vmatpush.msra.mxu0 0.0
      %574 = vmatpush.msra.mxu0 0.0
      %575 = vmatpush.msra.mxu0 0.0
      %576 = vmatpush.msra.mxu0 0.0
      %577 = vmatpush.msra.mxu0 0.0
      %578 = vmatpush.msra.mxu0 0.0
      %579 = vmatpush.msra.mxu0 0.0
      %580 = vmatpush.msra.mxu0 0.0
      %581 = vmatpush.msra.mxu0 0.0
      %582 = vmatpush.msra.mxu0 %v562
      %583 = vmatmul.f32.gmra.mxu0 %v565
      %v584 = vpop.f32.mrf.mxu0
      %v585 = vadd.f32 0.0, %v584
      %586 = vdwg.mxu0
      %587 = vrot.lane.b32.xlu0 %v517, 120
      %v588 = vpop.permute.xlu0 %587
      %589 = vrot.lane.b32.xlu0 %v515, 88
      %v590 = vpop.permute.xlu0 %589
      %v591 = vsel %vm524, %v588, 0
      %v593 = vsel %vm524, %v590, 0
      %595 = vmatpush.xpose.msra.mxu0 0.0
      %596 = vmatpush.xpose.msra.mxu0 0.0
      %597 = vmatpush.xpose.msra.mxu0 0.0
      %598 = vmatpush.xpose.msra.mxu0 0.0
      %599 = vmatpush.xpose.msra.mxu0 0.0
      %600 = vmatpush.xpose.msra.mxu0 0.0
      %601 = vmatpush.xpose.msra.mxu0 0.0
      %602 = vmatpush.xpose.msra.mxu0 0.0
      %603 = vmatpush.xpose.msra.mxu0 0.0
      %604 = vmatpush.xpose.msra.mxu0 0.0
      %605 = vmatpush.xpose.msra.mxu0 0.0
      %606 = vmatpush.xpose.msra.mxu0 0.0
      %607 = vmatpush.xpose.msra.mxu0 0.0
      %608 = vmatpush.xpose.msra.mxu0 0.0
      %609 = vmatpush.xpose.msra.mxu0 0.0
      %610 = vmatpush.xpose.msra.mxu0 %v593
      %611 = vmatmul.f32.gmra.mxu0 %v591
      %v612 = vpop.f32.mrf.mxu0
      %v613 = vadd.f32 %v519, %v612
      %614 = vdwg.mxu0
      %v615 = vsel %vm524, %v613, -inf
      %616 = vmax.xlane.f32.xlu0 %v615
      %v617 = vpop.xlane.xlu0 %616
      %v618 = vsub.f32 %v613, %v617
      %v619 = vmul.f32 %v618, 1.442695
      %v620 = vpow.pop %v619
      %v621 = vsel %vm524, %v620, 0.0
      %622 = vadd.xlane.f32.xlu0 %v621
      %v623 = vpop.xlane.xlu0 %622
      %v624 = vrcp.pop %v623
      %v625 = vmul.f32 %v620, %v624
      %626 = vrot.lane.b32.xlu0 %v515, 56
      %v627 = vpop.permute.xlu0 %626
      %v630 = vsel %vm524, %v625, 0
      %632 = vmatpush.msra.mxu0 0.0
      %633 = vmatpush.msra.mxu0 0.0
      %634 = vmatpush.msra.mxu0 0.0
      %635 = vmatpush.msra.mxu0 0.0
      %636 = vmatpush.msra.mxu0 0.0
      %637 = vmatpush.msra.mxu0 0.0
      %638 = vmatpush.msra.mxu0 0.0
      %639 = vmatpush.msra.mxu0 0.0
      %640 = vmatpush.msra.mxu0 0.0
      %641 = vmatpush.msra.mxu0 0.0
      %642 = vmatpush.msra.mxu0 0.0
      %643 = vmatpush.msra.mxu0 0.0
      %644 = vmatpush.msra.mxu0 0.0
      %645 = vmatpush.msra.mxu0 0.0
      %646 = vmatpush.msra.mxu0 0.0
      %647 = vmatpush.msra.mxu0 %v627
      %648 = vmatmul.f32.gmra.mxu0 %v630
      %v649 = vpop.f32.mrf.mxu0
      %v650 = vadd.f32 0.0, %v649
      %651 = vdwg.mxu0
      %652 = vrot.lane.b32.xlu0 %v517, 112
      %v653 = vpop.permute.xlu0 %652
      %654 = vrot.lane.b32.xlu0 %v515, 80
      %v655 = vpop.permute.xlu0 %654
      %v656 = vsel %vm524, %v653, 0
      %v658 = vsel %vm524, %v655, 0
      %660 = vmatpush.xpose.msra.mxu0 0.0
      %661 = vmatpush.xpose.msra.mxu0 0.0
      %662 = vmatpush.xpose.msra.mxu0 0.0
      %663 = vmatpush.xpose.msra.mxu0 0.0
      %664 = vmatpush.xpose.msra.mxu0 0.0
      %665 = vmatpush.xpose.msra.mxu0 0.0
      %666 = vmatpush.xpose.msra.mxu0 0.0
      %667 = vmatpush.xpose.msra.mxu0 0.0
      %668 = vmatpush.xpose.msra.mxu0 0.0
      %669 = vmatpush.xpose.msra.mxu0 0.0
      %670 = vmatpush.xpose.msra.mxu0 0.0
      %671 = vmatpush.xpose.msra.mxu0 0.0
      %672 = vmatpush.xpose.msra.mxu0 0.0
      %673 = vmatpush.xpose.msra.mxu0 0.0
      %674 = vmatpush.xpose.msra.mxu0 0.0
      %675 = vmatpush.xpose.msra.mxu0 %v658
      %676 = vmatmul.f32.gmra.mxu0 %v656
      %v677 = vpop.f32.mrf.mxu0
      %v678 = vadd.f32 %v519, %v677
      %679 = vdwg.mxu0
      %v680 = vsel %vm524, %v678, -inf
      %681 = vmax.xlane.f32.xlu0 %v680
      %v682 = vpop.xlane.xlu0 %681
      %v683 = vsub.f32 %v678, %v682
      %v684 = vmul.f32 %v683, 1.442695
      %v685 = vpow.pop %v684
      %v686 = vsel %vm524, %v685, 0.0
      %687 = vadd.xlane.f32.xlu0 %v686
      %v688 = vpop.xlane.xlu0 %687
      %v689 = vrcp.pop %v688
      %v690 = vmul.f32 %v685, %v689
      %691 = vrot.lane.b32.xlu0 %v515, 48
      %v692 = vpop.permute.xlu0 %691
      %v695 = vsel %vm524, %v690, 0
      %697 = vmatpush.msra.mxu0 0.0
      %698 = vmatpush.msra.mxu0 0.0
      %699 = vmatpush.msra.mxu0 0.0
      %700 = vmatpush.msra.mxu0 0.0
      %701 = vmatpush.msra.mxu0 0.0
      %702 = vmatpush.msra.mxu0 0.0
      %703 = vmatpush.msra.mxu0 0.0
      %704 = vmatpush.msra.mxu0 0.0
      %705 = vmatpush.msra.mxu0 0.0
      %706 = vmatpush.msra.mxu0 0.0
      %707 = vmatpush.msra.mxu0 0.0
      %708 = vmatpush.msra.mxu0 0.0
      %709 = vmatpush.msra.mxu0 0.0
      %710 = vmatpush.msra.mxu0 0.0
      %711 = vmatpush.msra.mxu0 0.0
      %712 = vmatpush.msra.mxu0 %v692
      %713 = vmatmul.f32.gmra.mxu0 %v695
      %v714 = vpop.f32.mrf.mxu0
      %v715 = vadd.f32 0.0, %v714
      %716 = vdwg.mxu0
      %717 = vrot.lane.b32.xlu0 %v517, 104
      %v718 = vpop.permute.xlu0 %717
      %719 = vrot.lane.b32.xlu0 %v515, 72
      %v720 = vpop.permute.xlu0 %719
      %v721 = vsel %vm524, %v718, 0
      %v723 = vsel %vm524, %v720, 0
      %725 = vmatpush.xpose.msra.mxu0 0.0
      %726 = vmatpush.xpose.msra.mxu0 0.0
      %727 = vmatpush.xpose.msra.mxu0 0.0
      %728 = vmatpush.xpose.msra.mxu0 0.0
      %729 = vmatpush.xpose.msra.mxu0 0.0
      %730 = vmatpush.xpose.msra.mxu0 0.0
      %731 = vmatpush.xpose.msra.mxu0 0.0
      %732 = vmatpush.xpose.msra.mxu0 0.0
      %733 = vmatpush.xpose.msra.mxu0 0.0
      %734 = vmatpush.xpose.msra.mxu0 0.0
      %735 = vmatpush.xpose.msra.mxu0 0.0
      %736 = vmatpush.xpose.msra.mxu0 0.0
      %737 = vmatpush.xpose.msra.mxu0 0.0
      %738 = vmatpush.xpose.msra.mxu0 0.0
      %739 = vmatpush.xpose.msra.mxu0 0.0
      %740 = vmatpush.xpose.msra.mxu0 %v723
      %741 = vmatmul.f32.gmra.mxu0 %v721
      %v742 = vpop.f32.mrf.mxu0
      %v743 = vadd.f32 %v519, %v742
      %744 = vdwg.mxu0
      %v745 = vsel %vm524, %v743, -inf
      %746 = vmax.xlane.f32.xlu0 %v745
      %v747 = vpop.xlane.xlu0 %746
      %v748 = vsub.f32 %v743, %v747
      %v749 = vmul.f32 %v748, 1.442695
      %v750 = vpow.pop %v749
      %v751 = vsel %vm524, %v750, 0.0
      %752 = vadd.xlane.f32.xlu0 %v751
      %v753 = vpop.xlane.xlu0 %752
      %v754 = vrcp.pop %v753
      %v755 = vmul.f32 %v750, %v754
      %756 = vrot.lane.b32.xlu0 %v515, 40
      %v757 = vpop.permute.xlu0 %756
      %v760 = vsel %vm524, %v755, 0
      %762 = vmatpush.msra.mxu0 0.0
      %763 = vmatpush.msra.mxu0 0.0
      %764 = vmatpush.msra.mxu0 0.0
      %765 = vmatpush.msra.mxu0 0.0
      %766 = vmatpush.msra.mxu0 0.0
      %767 = vmatpush.msra.mxu0 0.0
      %768 = vmatpush.msra.mxu0 0.0
      %769 = vmatpush.msra.mxu0 0.0
      %770 = vmatpush.msra.mxu0 0.0
      %771 = vmatpush.msra.mxu0 0.0
      %772 = vmatpush.msra.mxu0 0.0
      %773 = vmatpush.msra.mxu0 0.0
      %774 = vmatpush.msra.mxu0 0.0
      %775 = vmatpush.msra.mxu0 0.0
      %776 = vmatpush.msra.mxu0 0.0
      %777 = vmatpush.msra.mxu0 %v757
      %778 = vmatmul.f32.gmra.mxu0 %v760
      %v779 = vpop.f32.mrf.mxu0
      %v780 = vadd.f32 0.0, %v779
      %781 = vdwg.mxu0
      %783 = vrot.lane.b32.xlu0 %v650, 8
      %v784 = vpop.permute.xlu0 %783
      %787 = vrot.lane.b32.xlu0 %v715, 16
      %v788 = vpop.permute.xlu0 %787
      %791 = vrot.lane.b32.xlu0 %v780, 24
      %v792 = vpop.permute.xlu0 %791
      %v794 = vsel %vm524, %v585, %v784
      %vm795 = vcmask 130048
      %v796 = vsel %vm795, %v794, %v788
      %vm797 = vcmask 195584
      %v798 = vsel %vm797, %v796, %v792
      %v800 = vperm.slane %v489, 0
      %v803 = vsel %vm493, %v798, 0
      %805 = vmatpush.msra.mxu0 0.0
      %806 = vmatpush.msra.mxu0 0.0
      %807 = vmatpush.msra.mxu0 0.0
      %808 = vmatpush.msra.mxu0 0.0
      %809 = vmatpush.msra.mxu0 0.0
      %810 = vmatpush.msra.mxu0 0.0
      %811 = vmatpush.msra.mxu0 0.0
      %812 = vmatpush.msra.mxu0 0.0
      %813 = vmatpush.msra.mxu0 0.0
      %814 = vmatpush.msra.mxu0 0.0
      %815 = vmatpush.msra.mxu0 0.0
      %816 = vmatpush.msra.mxu0 0.0
      %817 = vmatpush.msra.mxu0 %v488
      %818 = vmatpush.msra.mxu0 %v487
      %819 = vmatpush.msra.mxu0 %v486
      %820 = vmatpush.msra.mxu0 %v485
      %821 = vmatmul.f32.gmra.mxu0 %v803
      %v822 = vpop.f32.mrf.mxu0
      %v823 = vadd.f32 %v800, %v822
      %824 = vdwg.mxu0
      %v825 = vadd.f32 %v477, %v823
      %v826 = vld [vmem:[%s10] sm:$0xff]
      %v827 = vld [vmem:[%s11] sm:$0xff]
      %v828 = vsel %vm493, %v825, 0.0
      %829 = vadd.xlane.f32.xlu0 %v828
      %v830 = vpop.xlane.xlu0 %829
      %v831 = vrot.slane %v830, 4
      %v832 = vadd.f32 %v830, %v831
      %v833 = vrot.slane %v832, 2
      %v834 = vadd.f32 %v832, %v833
      %v835 = vrot.slane %v834, 1
      %v836 = vadd.f32 %v834, %v835
      %s837 = vtos %v836
      %v838 = vrcp.pop 256.0
      %v839 = vmul.f32 256.0, %v838
      %v840 = vsub.f32 1.0, %v839
      %v841 = vmul.f32 %v838, %v840
      %v842 = vadd.f32 %v838, %v841
      %vm843 = vweird.f32 %v838
      %v844 = vsel %vm843, %v838, %v842
      %s845 = vtos %v844
      %s846 = smul.f32 %s837, %s845
      %v847 = vstv %s846
      %v848 = vsub.f32 %v825, %v847
      %v849 = vmul.f32 %v848, %v848
      %v850 = vsel %vm493, %v849, 0.0
      %851 = vadd.xlane.f32.xlu0 %v850
      %v852 = vpop.xlane.xlu0 %851
      %v853 = vrot.slane %v852, 4
      %v854 = vadd.f32 %v852, %v853
      %v855 = vrot.slane %v854, 2
      %v856 = vadd.f32 %v854, %v855
      %v857 = vrot.slane %v856, 1
      %v858 = vadd.f32 %v856, %v857
      %s859 = vtos %v858
      %v860 = vrcp.pop 256.0
      %v861 = vmul.f32 256.0, %v860
      %v862 = vsub.f32 1.0, %v861
      %v863 = vmul.f32 %v860, %v862
      %v864 = vadd.f32 %v860, %v863
      %vm865 = vweird.f32 %v860
      %v866 = vsel %vm865, %v860, %v864
      %s867 = vtos %v866
      %s868 = smul.f32 %s859, %s867
      %s869 = sadd.f32 %s868, 1e-05
      %v870 = vstv %s869
      %v871 = vrsqrt.pop %v870
      %v872 = vmul.f32 %v871, %v870
      %v873 = vmul.f32 %v872, %v871
      %v874 = vmul.f32 0.5, %v873
      %v875 = vsub.f32 1.5, %v874
      %v876 = vmul.f32 %v871, %v875
      %vm877 = vweird.f32 %v870
      %vm878 = vweird.f32 %v871
      %vm879 = vmor %vm877, %vm878
      %v880 = vsel %vm879, %v871, %v876
      %s881 = vtos %v880
      %v882 = vstv %s881
      %v883 = vmul.f32 %v848, %v882
      %v884 = vmul.f32 %v883, %v826
      %v885 = vadd.f32 %v884, %v827
      %v886 = vld [vmem:[%s6] sm:$0xff]
      %v887 = vld [vmem:[%s6 + $0x8] sm:$0xff]
      %v888 = vld [vmem:[%s6 + $0x10] sm:$0xff]
      %v889 = vld [vmem:[%s6 + $0x18] sm:$0xff]
      %v890 = vld [vmem:[%s7] sm:$0x1]
      %v891 = vld [vmem:[%s8] sm:$0xff]
      %v892 = vld [vmem:[%s8 + $0x8] sm:$0xff]
      %v893 = vld [vmem:[%s8 + $0x10] sm:$0xff]
      %v894 = vld [vmem:[%s8 + $0x18] sm:$0xff]
      %v895 = vld [vmem:[%s8 + $0x20] sm:$0xff]
      %v896 = vld [vmem:[%s8 + $0x28] sm:$0xff]
      %v897 = vld [vmem:[%s8 + $0x30] sm:$0xff]
      %v898 = vld [vmem:[%s8 + $0x38] sm:$0xff]
      %v899 = vld [vmem:[%s9] sm:$0x1]
      %v901 = vperm.slane %v890, 0
      %v904 = vsel %vm493, %v885, 0
      %906 = vmatpush.msra.mxu0 0.0
      %907 = vmatpush.msra.mxu0 0.0
      %908 = vmatpush.msra.mxu0 0.0
      %909 = vmatpush.msra.mxu0 0.0
      %910 = vmatpush.msra.mxu0 0.0
      %911 = vmatpush.msra.mxu0 0.0
      %912 = vmatpush.msra.mxu0 0.0
      %913 = vmatpush.msra.mxu0 0.0
      %914 = vmatpush.msra.mxu0 0.0
      %915 = vmatpush.msra.mxu0 0.0
      %916 = vmatpush.msra.mxu0 0.0
      %917 = vmatpush.msra.mxu0 0.0
      %918 = vmatpush.msra.mxu0 %v889
      %919 = vmatpush.msra.mxu0 %v888
      %920 = vmatpush.msra.mxu0 %v887
      %921 = vmatpush.msra.mxu0 %v886
      %922 = vmatmul.f32.gmra.mxu0 %v904
      %v923 = vpop.f32.mrf.mxu0
      %v924 = vadd.f32 %v901, %v923
      %925 = vdwg.mxu0
      %v926 = vmax.f32 %v924, 0.0
      %v928 = vperm.slane %v899, 0
      %vm930 = vcmask 523264
      %v932 = vsel %vm930, %v926, 0
      %934 = vmatpush.msra.mxu0 0.0
      %935 = vmatpush.msra.mxu0 0.0
      %936 = vmatpush.msra.mxu0 0.0
      %937 = vmatpush.msra.mxu0 0.0
      %938 = vmatpush.msra.mxu0 0.0
      %939 = vmatpush.msra.mxu0 0.0
      %940 = vmatpush.msra.mxu0 0.0
      %941 = vmatpush.msra.mxu0 0.0
      %942 = vmatpush.msra.mxu0 %v898
      %943 = vmatpush.msra.mxu0 %v897
      %944 = vmatpush.msra.mxu0 %v896
      %945 = vmatpush.msra.mxu0 %v895
      %946 = vmatpush.msra.mxu0 %v894
      %947 = vmatpush.msra.mxu0 %v893
      %948 = vmatpush.msra.mxu0 %v892
      %949 = vmatpush.msra.mxu0 %v891
      %950 = vmatmul.f32.gmra.mxu0 %v932
      %v951 = vpop.f32.mrf.mxu0
      %v952 = vadd.f32 %v928, %v951
      %953 = vdwg.mxu0
      %v954 = vadd.f32 %v885, %v952
      %v955 = vld [vmem:[%s12] sm:$0xff]
      %v956 = vld [vmem:[%s13] sm:$0xff]
      %v957 = vsel %vm493, %v954, 0.0
      %958 = vadd.xlane.f32.xlu0 %v957
      %v959 = vpop.xlane.xlu0 %958
      %v960 = vrot.slane %v959, 4
      %v961 = vadd.f32 %v959, %v960
      %v962 = vrot.slane %v961, 2
      %v963 = vadd.f32 %v961, %v962
      %v964 = vrot.slane %v963, 1
      %v965 = vadd.f32 %v963, %v964
      %s966 = vtos %v965
      %v967 = vrcp.pop 256.0
      %v968 = vmul.f32 256.0, %v967
      %v969 = vsub.f32 1.0, %v968
      %v970 = vmul.f32 %v967, %v969
      %v971 = vadd.f32 %v967, %v970
      %vm972 = vweird.f32 %v967
      %v973 = vsel %vm972, %v967, %v971
      %s974 = vtos %v973
      %s975 = smul.f32 %s966, %s974
      %v976 = vstv %s975
      %v977 = vsub.f32 %v954, %v976
      %v978 = vmul.f32 %v977, %v977
      %v979 = vsel %vm493, %v978, 0.0
      %980 = vadd.xlane.f32.xlu0 %v979
      %v981 = vpop.xlane.xlu0 %980
      %v982 = vrot.slane %v981, 4
      %v983 = vadd.f32 %v981, %v982
      %v984 = vrot.slane %v983, 2
      %v985 = vadd.f32 %v983, %v984
      %v986 = vrot.slane %v985, 1
      %v987 = vadd.f32 %v985, %v986
      %s988 = vtos %v987
      %v989 = vrcp.pop 256.0
      %v990 = vmul.f32 256.0, %v989
      %v991 = vsub.f32 1.0, %v990
      %v992 = vmul.f32 %v989, %v991
      %v993 = vadd.f32 %v989, %v992
      %vm994 = vweird.f32 %v989
      %v995 = vsel %vm994, %v989, %v993
      %s996 = vtos %v995
      %s997 = smul.f32 %s988, %s996
      %s998 = sadd.f32 %s997, 1e-05
      %v999 = vstv %s998
      %v1000 = vrsqrt.pop %v999
      %v1001 = vmul.f32 %v1000, %v999
      %v1002 = vmul.f32 %v1001, %v1000
      %v1003 = vmul.f32 0.5, %v1002
      %v1004 = vsub.f32 1.5, %v1003
      %v1005 = vmul.f32 %v1000, %v1004
      %vm1006 = vweird.f32 %v999
      %vm1007 = vweird.f32 %v1000
      %vm1008 = vmor %vm1006, %vm1007
      %v1009 = vsel %vm1008, %v1000, %v1005
      %s1010 = vtos %v1009
      %v1011 = vstv %s1010
      %v1012 = vmul.f32 %v977, %v1011
      %v1013 = vmul.f32 %v1012, %v955
      %v1014 = vadd.f32 %v1013, %v956
      %s1015 = scalar_lea.vmem %s2, 32
      %v1016 = vld [vmem:[%s1015] sm:$0xff]
      %v1017 = vld [vmem:[%s1015 + $0x8] sm:$0xff]
      %v1018 = vld [vmem:[%s1015 + $0x10] sm:$0xff]
      %v1019 = vld [vmem:[%s1015 + $0x18] sm:$0xff]
      %s1020 = scalar_lea.vmem %s3, 1
      %v1021 = vld [vmem:[%s1020] sm:$0x1]
      %s1022 = scalar_lea.vmem %s4, 32
      %v1023 = vld [vmem:[%s1022] sm:$0xff]
      %v1024 = vld [vmem:[%s1022 + $0x8] sm:$0xff]
      %v1025 = vld [vmem:[%s1022 + $0x10] sm:$0xff]
      %v1026 = vld [vmem:[%s1022 + $0x18] sm:$0xff]
      %s1027 = scalar_lea.vmem %s5, 1
      %v1028 = vld [vmem:[%s1027] sm:$0x1]
      %v1030 = vperm.slane %v1021, 0
      %v1033 = vsel %vm493, %v1014, 0
      %1035 = vmatpush.msra.mxu0 0.0
      %1036 = vmatpush.msra.mxu0 0.0
      %1037 = vmatpush.msra.mxu0 0.0
      %1038 = vmatpush.msra.mxu0 0.0
      %1039 = vmatpush.msra.mxu0 0.0
      %1040 = vmatpush.msra.mxu0 0.0
      %1041 = vmatpush.msra.mxu0 0.0
      %1042 = vmatpush.msra.mxu0 0.0
      %1043 = vmatpush.msra.mxu0 0.0
      %1044 = vmatpush.msra.mxu0 0.0
      %1045 = vmatpush.msra.mxu0 0.0
      %1046 = vmatpush.msra.mxu0 0.0
      %1047 = vmatpush.msra.mxu0 %v1019
      %1048 = vmatpush.msra.mxu0 %v1018
      %1049 = vmatpush.msra.mxu0 %v1017
      %1050 = vmatpush.msra.mxu0 %v1016
      %1051 = vmatmul.f32.gmra.mxu0 %v1033
      %v1052 = vpop.f32.mrf.mxu0
      %v1053 = vadd.f32 %v1030, %v1052
      %1054 = vdwg.mxu0
      %v1055 = vmul.f32 %v1053, 0.35355338
      %1057 = vrot.lane.b32.xlu0 %v1053, 96
      %v1058 = vpop.permute.xlu0 %1057
      %v1060 = vsel %vm524, %v1055, 0
      %v1062 = vsel %vm524, %v1058, 0
      %1064 = vmatpush.xpose.msra.mxu0 0.0
      %1065 = vmatpush.xpose.msra.mxu0 0.0
      %1066 = vmatpush.xpose.msra.mxu0 0.0
      %1067 = vmatpush.xpose.msra.mxu0 0.0
      %1068 = vmatpush.xpose.msra.mxu0 0.0
      %1069 = vmatpush.xpose.msra.mxu0 0.0
      %1070 = vmatpush.xpose.msra.mxu0 0.0
      %1071 = vmatpush.xpose.msra.mxu0 0.0
      %1072 = vmatpush.xpose.msra.mxu0 0.0
      %1073 = vmatpush.xpose.msra.mxu0 0.0
      %1074 = vmatpush.xpose.msra.mxu0 0.0
      %1075 = vmatpush.xpose.msra.mxu0 0.0
      %1076 = vmatpush.xpose.msra.mxu0 0.0
      %1077 = vmatpush.xpose.msra.mxu0 0.0
      %1078 = vmatpush.xpose.msra.mxu0 0.0
      %1079 = vmatpush.xpose.msra.mxu0 %v1062
      %1080 = vmatmul.f32.gmra.mxu0 %v1060
      %v1081 = vpop.f32.mrf.mxu0
      %v1082 = vadd.f32 %v519, %v1081
      %1083 = vdwg.mxu0
      %v1084 = vsel %vm524, %v1082, -inf
      %1085 = vmax.xlane.f32.xlu0 %v1084
      %v1086 = vpop.xlane.xlu0 %1085
      %v1087 = vsub.f32 %v1082, %v1086
      %v1088 = vmul.f32 %v1087, 1.442695
      %v1089 = vpow.pop %v1088
      %v1090 = vsel %vm524, %v1089, 0.0
      %1091 = vadd.xlane.f32.xlu0 %v1090
      %v1092 = vpop.xlane.xlu0 %1091
      %v1093 = vrcp.pop %v1092
      %v1094 = vmul.f32 %v1089, %v1093
      %1095 = vrot.lane.b32.xlu0 %v1053, 64
      %v1096 = vpop.permute.xlu0 %1095
      %v1099 = vsel %vm524, %v1094, 0
      %1101 = vmatpush.msra.mxu0 0.0
      %1102 = vmatpush.msra.mxu0 0.0
      %1103 = vmatpush.msra.mxu0 0.0
      %1104 = vmatpush.msra.mxu0 0.0
      %1105 = vmatpush.msra.mxu0 0.0
      %1106 = vmatpush.msra.mxu0 0.0
      %1107 = vmatpush.msra.mxu0 0.0
      %1108 = vmatpush.msra.mxu0 0.0
      %1109 = vmatpush.msra.mxu0 0.0
      %1110 = vmatpush.msra.mxu0 0.0
      %1111 = vmatpush.msra.mxu0 0.0
      %1112 = vmatpush.msra.mxu0 0.0
      %1113 = vmatpush.msra.mxu0 0.0
      %1114 = vmatpush.msra.mxu0 0.0
      %1115 = vmatpush.msra.mxu0 0.0
      %1116 = vmatpush.msra.mxu0 %v1096
      %1117 = vmatmul.f32.gmra.mxu0 %v1099
      %v1118 = vpop.f32.mrf.mxu0
      %v1119 = vadd.f32 0.0, %v1118
      %1120 = vdwg.mxu0
      %1121 = vrot.lane.b32.xlu0 %v1055, 120
      %v1122 = vpop.permute.xlu0 %1121
      %1123 = vrot.lane.b32.xlu0 %v1053, 88
      %v1124 = vpop.permute.xlu0 %1123
      %v1125 = vsel %vm524, %v1122, 0
      %v1127 = vsel %vm524, %v1124, 0
      %1129 = vmatpush.xpose.msra.mxu0 0.0
      %1130 = vmatpush.xpose.msra.mxu0 0.0
      %1131 = vmatpush.xpose.msra.mxu0 0.0
      %1132 = vmatpush.xpose.msra.mxu0 0.0
      %1133 = vmatpush.xpose.msra.mxu0 0.0
      %1134 = vmatpush.xpose.msra.mxu0 0.0
      %1135 = vmatpush.xpose.msra.mxu0 0.0
      %1136 = vmatpush.xpose.msra.mxu0 0.0
      %1137 = vmatpush.xpose.msra.mxu0 0.0
      %1138 = vmatpush.xpose.msra.mxu0 0.0
      %1139 = vmatpush.xpose.msra.mxu0 0.0
      %1140 = vmatpush.xpose.msra.mxu0 0.0
      %1141 = vmatpush.xpose.msra.mxu0 0.0
      %1142 = vmatpush.xpose.msra.mxu0 0.0
      %1143 = vmatpush.xpose.msra.mxu0 0.0
      %1144 = vmatpush.xpose.msra.mxu0 %v1127
      %1145 = vmatmul.f32.gmra.mxu0 %v1125
      %v1146 = vpop.f32.mrf.mxu0
      %v1147 = vadd.f32 %v519, %v1146
      %1148 = vdwg.mxu0
      %v1149 = vsel %vm524, %v1147, -inf
      %1150 = vmax.xlane.f32.xlu0 %v1149
      %v1151 = vpop.xlane.xlu0 %1150
      %v1152 = vsub.f32 %v1147, %v1151
      %v1153 = vmul.f32 %v1152, 1.442695
      %v1154 = vpow.pop %v1153
      %v1155 = vsel %vm524, %v1154, 0.0
      %1156 = vadd.xlane.f32.xlu0 %v1155
      %v1157 = vpop.xlane.xlu0 %1156
      %v1158 = vrcp.pop %v1157
      %v1159 = vmul.f32 %v1154, %v1158
      %1160 = vrot.lane.b32.xlu0 %v1053, 56
      %v1161 = vpop.permute.xlu0 %1160
      %v1164 = vsel %vm524, %v1159, 0
      %1166 = vmatpush.msra.mxu0 0.0
      %1167 = vmatpush.msra.mxu0 0.0
      %1168 = vmatpush.msra.mxu0 0.0
      %1169 = vmatpush.msra.mxu0 0.0
      %1170 = vmatpush.msra.mxu0 0.0
      %1171 = vmatpush.msra.mxu0 0.0
      %1172 = vmatpush.msra.mxu0 0.0
      %1173 = vmatpush.msra.mxu0 0.0
      %1174 = vmatpush.msra.mxu0 0.0
      %1175 = vmatpush.msra.mxu0 0.0
      %1176 = vmatpush.msra.mxu0 0.0
      %1177 = vmatpush.msra.mxu0 0.0
      %1178 = vmatpush.msra.mxu0 0.0
      %1179 = vmatpush.msra.mxu0 0.0
      %1180 = vmatpush.msra.mxu0 0.0
      %1181 = vmatpush.msra.mxu0 %v1161
      %1182 = vmatmul.f32.gmra.mxu0 %v1164
      %v1183 = vpop.f32.mrf.mxu0
      %v1184 = vadd.f32 0.0, %v1183
      %1185 = vdwg.mxu0
      %1186 = vrot.lane.b32.xlu0 %v1055, 112
      %v1187 = vpop.permute.xlu0 %1186
      %1188 = vrot.lane.b32.xlu0 %v1053, 80
      %v1189 = vpop.permute.xlu0 %1188
      %v1190 = vsel %vm524, %v1187, 0
      %v1192 = vsel %vm524, %v1189, 0
      %1194 = vmatpush.xpose.msra.mxu0 0.0
      %1195 = vmatpush.xpose.msra.mxu0 0.0
      %1196 = vmatpush.xpose.msra.mxu0 0.0
      %1197 = vmatpush.xpose.msra.mxu0 0.0
      %1198 = vmatpush.xpose.msra.mxu0 0.0
      %1199 = vmatpush.xpose.msra.mxu0 0.0
      %1200 = vmatpush.xpose.msra.mxu0 0.0
      %1201 = vmatpush.xpose.msra.mxu0 0.0
      %1202 = vmatpush.xpose.msra.mxu0 0.0
      %1203 = vmatpush.xpose.msra.mxu0 0.0
      %1204 = vmatpush.xpose.msra.mxu0 0.0
      %1205 = vmatpush.xpose.msra.mxu0 0.0
      %1206 = vmatpush.xpose.msra.mxu0 0.0
      %1207 = vmatpush.xpose.msra.mxu0 0.0
      %1208 = vmatpush.xpose.msra.mxu0 0.0
      %1209 = vmatpush.xpose.msra.mxu0 %v1192
      %1210 = vmatmul.f32.gmra.mxu0 %v1190
      %v1211 = vpop.f32.mrf.mxu0
      %v1212 = vadd.f32 %v519, %v1211
      %1213 = vdwg.mxu0
      %v1214 = vsel %vm524, %v1212, -inf
      %1215 = vmax.xlane.f32.xlu0 %v1214
      %v1216 = vpop.xlane.xlu0 %1215
      %v1217 = vsub.f32 %v1212, %v1216
      %v1218 = vmul.f32 %v1217, 1.442695
      %v1219 = vpow.pop %v1218
      %v1220 = vsel %vm524, %v1219, 0.0
      %1221 = vadd.xlane.f32.xlu0 %v1220
      %v1222 = vpop.xlane.xlu0 %1221
      %v1223 = vrcp.pop %v1222
      %v1224 = vmul.f32 %v1219, %v1223
      %1225 = vrot.lane.b32.xlu0 %v1053, 48
      %v1226 = vpop.permute.xlu0 %1225
      %v1229 = vsel %vm524, %v1224, 0
      %1231 = vmatpush.msra.mxu0 0.0
      %1232 = vmatpush.msra.mxu0 0.0
      %1233 = vmatpush.msra.mxu0 0.0
      %1234 = vmatpush.msra.mxu0 0.0
      %1235 = vmatpush.msra.mxu0 0.0
      %1236 = vmatpush.msra.mxu0 0.0
      %1237 = vmatpush.msra.mxu0 0.0
      %1238 = vmatpush.msra.mxu0 0.0
      %1239 = vmatpush.msra.mxu0 0.0
      %1240 = vmatpush.msra.mxu0 0.0
      %1241 = vmatpush.msra.mxu0 0.0
      %1242 = vmatpush.msra.mxu0 0.0
      %1243 = vmatpush.msra.mxu0 0.0
      %1244 = vmatpush.msra.mxu0 0.0
      %1245 = vmatpush.msra.mxu0 0.0
      %1246 = vmatpush.msra.mxu0 %v1226
      %1247 = vmatmul.f32.gmra.mxu0 %v1229
      %v1248 = vpop.f32.mrf.mxu0
      %v1249 = vadd.f32 0.0, %v1248
      %1250 = vdwg.mxu0
      %1251 = vrot.lane.b32.xlu0 %v1055, 104
      %v1252 = vpop.permute.xlu0 %1251
      %1253 = vrot.lane.b32.xlu0 %v1053, 72
      %v1254 = vpop.permute.xlu0 %1253
      %v1255 = vsel %vm524, %v1252, 0
      %v1257 = vsel %vm524, %v1254, 0
      %1259 = vmatpush.xpose.msra.mxu0 0.0
      %1260 = vmatpush.xpose.msra.mxu0 0.0
      %1261 = vmatpush.xpose.msra.mxu0 0.0
      %1262 = vmatpush.xpose.msra.mxu0 0.0
      %1263 = vmatpush.xpose.msra.mxu0 0.0
      %1264 = vmatpush.xpose.msra.mxu0 0.0
      %1265 = vmatpush.xpose.msra.mxu0 0.0
      %1266 = vmatpush.xpose.msra.mxu0 0.0
      %1267 = vmatpush.xpose.msra.mxu0 0.0
      %1268 = vmatpush.xpose.msra.mxu0 0.0
      %1269 = vmatpush.xpose.msra.mxu0 0.0
      %1270 = vmatpush.xpose.msra.mxu0 0.0
      %1271 = vmatpush.xpose.msra.mxu0 0.0
      %1272 = vmatpush.xpose.msra.mxu0 0.0
      %1273 = vmatpush.xpose.msra.mxu0 0.0
      %1274 = vmatpush.xpose.msra.mxu0 %v1257
      %1275 = vmatmul.f32.gmra.mxu0 %v1255
      %v1276 = vpop.f32.mrf.mxu0
      %v1277 = vadd.f32 %v519, %v1276
      %1278 = vdwg.mxu0
      %v1279 = vsel %vm524, %v1277, -inf
      %1280 = vmax.xlane.f32.xlu0 %v1279
      %v1281 = vpop.xlane.xlu0 %1280
      %v1282 = vsub.f32 %v1277, %v1281
      %v1283 = vmul.f32 %v1282, 1.442695
      %v1284 = vpow.pop %v1283
      %v1285 = vsel %vm524, %v1284, 0.0
      %1286 = vadd.xlane.f32.xlu0 %v1285
      %v1287 = vpop.xlane.xlu0 %1286
      %v1288 = vrcp.pop %v1287
      %v1289 = vmul.f32 %v1284, %v1288
      %1290 = vrot.lane.b32.xlu0 %v1053, 40
      %v1291 = vpop.permute.xlu0 %1290
      %v1294 = vsel %vm524, %v1289, 0
      %1296 = vmatpush.msra.mxu0 0.0
      %1297 = vmatpush.msra.mxu0 0.0
      %1298 = vmatpush.msra.mxu0 0.0
      %1299 = vmatpush.msra.mxu0 0.0
      %1300 = vmatpush.msra.mxu0 0.0
      %1301 = vmatpush.msra.mxu0 0.0
      %1302 = vmatpush.msra.mxu0 0.0
      %1303 = vmatpush.msra.mxu0 0.0
      %1304 = vmatpush.msra.mxu0 0.0
      %1305 = vmatpush.msra.mxu0 0.0
      %1306 = vmatpush.msra.mxu0 0.0
      %1307 = vmatpush.msra.mxu0 0.0
      %1308 = vmatpush.msra.mxu0 0.0
      %1309 = vmatpush.msra.mxu0 0.0
      %1310 = vmatpush.msra.mxu0 0.0
      %1311 = vmatpush.msra.mxu0 %v1291
      %1312 = vmatmul.f32.gmra.mxu0 %v1294
      %v1313 = vpop.f32.mrf.mxu0
      %v1314 = vadd.f32 0.0, %v1313
      %1315 = vdwg.mxu0
      %1317 = vrot.lane.b32.xlu0 %v1184, 8
      %v1318 = vpop.permute.xlu0 %1317
      %1321 = vrot.lane.b32.xlu0 %v1249, 16
      %v1322 = vpop.permute.xlu0 %1321
      %1325 = vrot.lane.b32.xlu0 %v1314, 24
      %v1326 = vpop.permute.xlu0 %1325
      %v1328 = vsel %vm524, %v1119, %v1318
      %v1329 = vsel %vm795, %v1328, %v1322
      %v1330 = vsel %vm797, %v1329, %v1326
      %v1332 = vperm.slane %v1028, 0
      %v1335 = vsel %vm493, %v1330, 0
      %1337 = vmatpush.msra.mxu0 0.0
      %1338 = vmatpush.msra.mxu0 0.0
      %1339 = vmatpush.msra.mxu0 0.0
      %1340 = vmatpush.msra.mxu0 0.0
      %1341 = vmatpush.msra.mxu0 0.0
      %1342 = vmatpush.msra.mxu0 0.0
      %1343 = vmatpush.msra.mxu0 0.0
      %1344 = vmatpush.msra.mxu0 0.0
      %1345 = vmatpush.msra.mxu0 0.0
      %1346 = vmatpush.msra.mxu0 0.0
      %1347 = vmatpush.msra.mxu0 0.0
      %1348 = vmatpush.msra.mxu0 0.0
      %1349 = vmatpush.msra.mxu0 %v1026
      %1350 = vmatpush.msra.mxu0 %v1025
      %1351 = vmatpush.msra.mxu0 %v1024
      %1352 = vmatpush.msra.mxu0 %v1023
      %1353 = vmatmul.f32.gmra.mxu0 %v1335
      %v1354 = vpop.f32.mrf.mxu0
      %v1355 = vadd.f32 %v1332, %v1354
      %1356 = vdwg.mxu0
      %v1357 = vadd.f32 %v1014, %v1355
      %s1358 = scalar_lea.vmem %s10, 8
      %v1359 = vld [vmem:[%s1358] sm:$0xff]
      %s1360 = scalar_lea.vmem %s11, 8
      %v1361 = vld [vmem:[%s1360] sm:$0xff]
      %v1362 = vsel %vm493, %v1357, 0.0
      %1363 = vadd.xlane.f32.xlu0 %v1362
      %v1364 = vpop.xlane.xlu0 %1363
      %v1365 = vrot.slane %v1364, 4
      %v1366 = vadd.f32 %v1364, %v1365
      %v1367 = vrot.slane %v1366, 2
      %v1368 = vadd.f32 %v1366, %v1367
      %v1369 = vrot.slane %v1368, 1
      %v1370 = vadd.f32 %v1368, %v1369
      %s1371 = vtos %v1370
      %v1372 = vrcp.pop 256.0
      %v1373 = vmul.f32 256.0, %v1372
      %v1374 = vsub.f32 1.0, %v1373
      %v1375 = vmul.f32 %v1372, %v1374
      %v1376 = vadd.f32 %v1372, %v1375
      %vm1377 = vweird.f32 %v1372
      %v1378 = vsel %vm1377, %v1372, %v1376
      %s1379 = vtos %v1378
      %s1380 = smul.f32 %s1371, %s1379
      %v1381 = vstv %s1380
      %v1382 = vsub.f32 %v1357, %v1381
      %v1383 = vmul.f32 %v1382, %v1382
      %v1384 = vsel %vm493, %v1383, 0.0
      %1385 = vadd.xlane.f32.xlu0 %v1384
      %v1386 = vpop.xlane.xlu0 %1385
      %v1387 = vrot.slane %v1386, 4
      %v1388 = vadd.f32 %v1386, %v1387
      %v1389 = vrot.slane %v1388, 2
      %v1390 = vadd.f32 %v1388, %v1389
      %v1391 = vrot.slane %v1390, 1
      %v1392 = vadd.f32 %v1390, %v1391
      %s1393 = vtos %v1392
      %v1394 = vrcp.pop 256.0
      %v1395 = vmul.f32 256.0, %v1394
      %v1396 = vsub.f32 1.0, %v1395
      %v1397 = vmul.f32 %v1394, %v1396
      %v1398 = vadd.f32 %v1394, %v1397
      %vm1399 = vweird.f32 %v1394
      %v1400 = vsel %vm1399, %v1394, %v1398
      %s1401 = vtos %v1400
      %s1402 = smul.f32 %s1393, %s1401
      %s1403 = sadd.f32 %s1402, 1e-05
      %v1404 = vstv %s1403
      %v1405 = vrsqrt.pop %v1404
      %v1406 = vmul.f32 %v1405, %v1404
      %v1407 = vmul.f32 %v1406, %v1405
      %v1408 = vmul.f32 0.5, %v1407
      %v1409 = vsub.f32 1.5, %v1408
      %v1410 = vmul.f32 %v1405, %v1409
      %vm1411 = vweird.f32 %v1404
      %vm1412 = vweird.f32 %v1405
      %vm1413 = vmor %vm1411, %vm1412
      %v1414 = vsel %vm1413, %v1405, %v1410
      %s1415 = vtos %v1414
      %v1416 = vstv %s1415
      %v1417 = vmul.f32 %v1382, %v1416
      %v1418 = vmul.f32 %v1417, %v1359
      %v1419 = vadd.f32 %v1418, %v1361
      %s1420 = scalar_lea.vmem %s6, 32
      %v1421 = vld [vmem:[%s1420] sm:$0xff]
      %v1422 = vld [vmem:[%s1420 + $0x8] sm:$0xff]
      %v1423 = vld [vmem:[%s1420 + $0x10] sm:$0xff]
      %v1424 = vld [vmem:[%s1420 + $0x18] sm:$0xff]
      %s1425 = scalar_lea.vmem %s7, 1
      %v1426 = vld [vmem:[%s1425] sm:$0x1]
      %s1427 = scalar_lea.vmem %s8, 64
      %v1428 = vld [vmem:[%s1427] sm:$0xff]
      %v1429 = vld [vmem:[%s1427 + $0x8] sm:$0xff]
      %v1430 = vld [vmem:[%s1427 + $0x10] sm:$0xff]
      %v1431 = vld [vmem:[%s1427 + $0x18] sm:$0xff]
      %v1432 = vld [vmem:[%s1427 + $0x20] sm:$0xff]
      %v1433 = vld [vmem:[%s1427 + $0x28] sm:$0xff]
      %v1434 = vld [vmem:[%s1427 + $0x30] sm:$0xff]
      %v1435 = vld [vmem:[%s1427 + $0x38] sm:$0xff]
      %s1436 = scalar_lea.vmem %s9, 1
      %v1437 = vld [vmem:[%s1436] sm:$0x1]
      %v1439 = vperm.slane %v1426, 0
      %v1442 = vsel %vm493, %v1419, 0
      %1444 = vmatpush.msra.mxu0 0.0
      %1445 = vmatpush.msra.mxu0 0.0
      %1446 = vmatpush.msra.mxu0 0.0
      %1447 = vmatpush.msra.mxu0 0.0
      %1448 = vmatpush.msra.mxu0 0.0
      %1449 = vmatpush.msra.mxu0 0.0
      %1450 = vmatpush.msra.mxu0 0.0
      %1451 = vmatpush.msra.mxu0 0.0
      %1452 = vmatpush.msra.mxu0 0.0
      %1453 = vmatpush.msra.mxu0 0.0
      %1454 = vmatpush.msra.mxu0 0.0
      %1455 = vmatpush.msra.mxu0 0.0
      %1456 = vmatpush.msra.mxu0 %v1424
      %1457 = vmatpush.msra.mxu0 %v1423
      %1458 = vmatpush.msra.mxu0 %v1422
      %1459 = vmatpush.msra.mxu0 %v1421
      %1460 = vmatmul.f32.gmra.mxu0 %v1442
      %v1461 = vpop.f32.mrf.mxu0
      %v1462 = vadd.f32 %v1439, %v1461
      %1463 = vdwg.mxu0
      %v1464 = vmax.f32 %v1462, 0.0
      %v1466 = vperm.slane %v1437, 0
      %v1469 = vsel %vm930, %v1464, 0
      %1471 = vmatpush.msra.mxu0 0.0
      %1472 = vmatpush.msra.mxu0 0.0
      %1473 = vmatpush.msra.mxu0 0.0
      %1474 = vmatpush.msra.mxu0 0.0
      %1475 = vmatpush.msra.mxu0 0.0
      %1476 = vmatpush.msra.mxu0 0.0
      %1477 = vmatpush.msra.mxu0 0.0
      %1478 = vmatpush.msra.mxu0 0.0
      %1479 = vmatpush.msra.mxu0 %v1435
      %1480 = vmatpush.msra.mxu0 %v1434
      %1481 = vmatpush.msra.mxu0 %v1433
      %1482 = vmatpush.msra.mxu0 %v1432
      %1483 = vmatpush.msra.mxu0 %v1431
      %1484 = vmatpush.msra.mxu0 %v1430
      %1485 = vmatpush.msra.mxu0 %v1429
      %1486 = vmatpush.msra.mxu0 %v1428
      %1487 = vmatmul.f32.gmra.mxu0 %v1469
      %v1488 = vpop.f32.mrf.mxu0
      %v1489 = vadd.f32 %v1466, %v1488
      %1490 = vdwg.mxu0
      %v1491 = vadd.f32 %v1419, %v1489
      %s1492 = scalar_lea.vmem %s12, 8
      %v1493 = vld [vmem:[%s1492] sm:$0xff]
      %s1494 = scalar_lea.vmem %s13, 8
      %v1495 = vld [vmem:[%s1494] sm:$0xff]
      %v1496 = vsel %vm493, %v1491, 0.0
      %1497 = vadd.xlane.f32.xlu0 %v1496
      %v1498 = vpop.xlane.xlu0 %1497
      %v1499 = vrot.slane %v1498, 4
      %v1500 = vadd.f32 %v1498, %v1499
      %v1501 = vrot.slane %v1500, 2
      %v1502 = vadd.f32 %v1500, %v1501
      %v1503 = vrot.slane %v1502, 1
      %v1504 = vadd.f32 %v1502, %v1503
      %s1505 = vtos %v1504
      %v1506 = vrcp.pop 256.0
      %v1507 = vmul.f32 256.0, %v1506
      %v1508 = vsub.f32 1.0, %v1507
      %v1509 = vmul.f32 %v1506, %v1508
      %v1510 = vadd.f32 %v1506, %v1509
      %vm1511 = vweird.f32 %v1506
      %v1512 = vsel %vm1511, %v1506, %v1510
      %s1513 = vtos %v1512
      %s1514 = smul.f32 %s1505, %s1513
      %v1515 = vstv %s1514
      %v1516 = vsub.f32 %v1491, %v1515
      %v1517 = vmul.f32 %v1516, %v1516
      %v1518 = vsel %vm493, %v1517, 0.0
      %1519 = vadd.xlane.f32.xlu0 %v1518
      %v1520 = vpop.xlane.xlu0 %1519
      %v1521 = vrot.slane %v1520, 4
      %v1522 = vadd.f32 %v1520, %v1521
      %v1523 = vrot.slane %v1522, 2
      %v1524 = vadd.f32 %v1522, %v1523
      %v1525 = vrot.slane %v1524, 1
      %v1526 = vadd.f32 %v1524, %v1525
      %s1527 = vtos %v1526
      %v1528 = vrcp.pop 256.0
      %v1529 = vmul.f32 256.0, %v1528
      %v1530 = vsub.f32 1.0, %v1529
      %v1531 = vmul.f32 %v1528, %v1530
      %v1532 = vadd.f32 %v1528, %v1531
      %vm1533 = vweird.f32 %v1528
      %v1534 = vsel %vm1533, %v1528, %v1532
      %s1535 = vtos %v1534
      %s1536 = smul.f32 %s1527, %s1535
      %s1537 = sadd.f32 %s1536, 1e-05
      %v1538 = vstv %s1537
      %v1539 = vrsqrt.pop %v1538
      %v1540 = vmul.f32 %v1539, %v1538
      %v1541 = vmul.f32 %v1540, %v1539
      %v1542 = vmul.f32 0.5, %v1541
      %v1543 = vsub.f32 1.5, %v1542
      %v1544 = vmul.f32 %v1539, %v1543
      %vm1545 = vweird.f32 %v1538
      %vm1546 = vweird.f32 %v1539
      %vm1547 = vmor %vm1545, %vm1546
      %v1548 = vsel %vm1547, %v1539, %v1544
      %s1549 = vtos %v1548
      %v1550 = vstv %s1549
      %v1551 = vmul.f32 %v1516, %v1550
      %v1552 = vmul.f32 %v1551, %v1493
      %v1553 = vadd.f32 %v1552, %v1495
      %1554 = vst.msk [vmem:[%s476] sm:$0xff] %vm493, %v1553
      %p1555 = scmp.lt.s32.totalorder %s25, 1
      %s1556 = scalar_select %p1555, %s25, 1
      %s1557 = smul.addr %s1556, 8
      %s1558 = scalar_lea.vmem %s14, %s1557
      // Predicated region
      $region77: #{transformer_forward_from_tokens.2} parent=75 // pred_check
        %p1559 = pneg %p347
      $region78: #{transformer_forward_from_tokens.2} parent=75 // pred_check_branch
        %1561 = sbr.rel (%p1559) target = $region80
      $region79: #{transformer_forward_from_tokens.2} parent=75 // pred_region
        _
      $region80: #{transformer_forward_from_tokens.2} parent=75 // pred_fallthru
        _
    $region76: #{transformer_forward_from_tokens.2} parent=5 // pred_fallthru
      _
    %p1562 = scmp.le.s32.totalorder 2, %s20
    // Predicated region
    $region81: #{transformer_forward_from_tokens.2} parent=5 // pred_check
      %p1563 = pneg %p1562
    $region82: #{transformer_forward_from_tokens.2} parent=5 // pred_check_branch
      %1565 = sbr.rel (%p1563) target = $region84
    $region83: #{transformer_forward_from_tokens.2} parent=5 // pred_region
      %s1566 = ssub.s32 %s20, 2
      // Predicated region
      $region85: #{transformer_forward_from_tokens.2} parent=83 // pred_check
        %p1567 = pneg %p353
      $region86: #{transformer_forward_from_tokens.2} parent=83 // pred_check_branch
        %1569 = sbr.rel (%p1567) target = $region88
      $region87: #{transformer_forward_from_tokens.2} parent=83 // pred_region
        %p1570 = scmp.lt.s32.totalorder %s26, 1
        %s1571 = scalar_select %p1570, %s26, 1
        %s1572 = smul.addr %s1571, 8
        %s1573 = scalar_lea.vmem %s14, %s1572
      $region88: #{transformer_forward_from_tokens.2} parent=83 // pred_fallthru
        _
    $region84: #{transformer_forward_from_tokens.2} parent=5 // pred_fallthru
      _
  $region6: #{transformer_forward_from_tokens.2} parent=0 // loop_footer
    %s24 = sadd.s32 1, %s20
  $region7: #{transformer_forward_from_tokens.2} parent=0 // loop_footer_branch
    %19 = sbr.rel target = $region3
  $region8: #{transformer_forward_from_tokens.2} parent=0 // loop_exit
    _

// kernel: transformer_forward_from_tokens.3
$region0: #{transformer_forward_from_tokens.3}
  #allocation0 [shape = 'u32[]', space=smem, size = 0x4, offset = 0x4, fixed_abs, tag = 'smem constant byte address 0x4 - core index']
  #allocation1 [shape = 'u32[72,128]{1,0:T(1,128)}', space=vmem, size = 0x9000, scoped, tag = 'internal scratch']
  %s0 = inlined_call_operand.vmem [shape: f32[2,8,32], index: 0, kind: input, shape index: {}]
  %s1 = inlined_call_operand.vmem [shape: f32[2,8,32], index: 1, kind: input, shape index: {}]
  %s2 = inlined_call_operand.vmem [shape: f32[2,8,8], index: 2, kind: input, shape index: {}]
  %s3 = inlined_call_operand.vmem [shape: f32[2,1,8], index: 3, kind: input, shape index: {}]
  %s4 = inlined_call_operand.vmem [shape: f32[2,32,96], index: 4, kind: input, shape index: {}]
  %s5 = inlined_call_operand.vmem [shape: f32[2,1,96], index: 5, kind: input, shape index: {}]
  %s6 = inlined_call_operand.vmem [shape: f32[2,32,32], index: 6, kind: input, shape index: {}]
  %s7 = inlined_call_operand.vmem [shape: f32[2,1,32], index: 7, kind: input, shape index: {}]
  %s8 = inlined_call_operand.vmem [shape: f32[2,32,96], index: 8, kind: input, shape index: {}]
  %s9 = inlined_call_operand.vmem [shape: f32[2,1,96], index: 9, kind: input, shape index: {}]
  %s10 = inlined_call_operand.vmem [shape: f32[2,32,32], index: 10, kind: input, shape index: {}]
  %s11 = inlined_call_operand.vmem [shape: f32[2,1,32], index: 11, kind: input, shape index: {}]
  %s12 = inlined_call_operand.vmem [shape: f32[2,32,64], index: 12, kind: input, shape index: {}]
  %s13 = inlined_call_operand.vmem [shape: f32[2,1,64], index: 13, kind: input, shape index: {}]
  %s14 = inlined_call_operand.vmem [shape: f32[2,64,32], index: 14, kind: input, shape index: {}]
  %s15 = inlined_call_operand.vmem [shape: f32[2,1,32], index: 15, kind: input, shape index: {}]
  %s16 = inlined_call_operand.vmem [shape: f32[2,8,32], index: 16, kind: input, shape index: {}]
  %s17 = inlined_call_operand.vmem [shape: f32[2,8,32], index: 17, kind: input, shape index: {}]
  %s18 = inlined_call_operand.vmem [shape: f32[2,8,32], index: 18, kind: input, shape index: {}]
  %s19 = inlined_call_operand.vmem [shape: f32[2,8,32], index: 19, kind: input, shape index: {}]
  %s20 = inlined_call_operand.vmem [shape: f32[2,8,32], index: 20, kind: input, shape index: {}]
  %s21 = inlined_call_operand.vmem [shape: f32[2,8,32], index: 21, kind: input, shape index: {}]
  %s22 = inlined_call_operand.vmem [shape: f32[32,40], index: 22, kind: input, shape index: {}]
  %s23 = inlined_call_operand.vmem [shape: f32[1,40], index: 23, kind: input, shape index: {}]
  %s24 = inlined_call_operand.hbm [shape: f32[2,8,40], index: 24, kind: output, shape index: {0}]
  %s25 = inlined_call_operand.vmem [shape: f32[2,2,8,32], index: 25, kind: output, shape index: {1}]
  %s26 = inlined_call_operand.vmem [shape: f32[2,2,8,32], index: 26, kind: output, shape index: {2}]
  %27 = xla_tuple %s24, %s25, %s26
  %s28 = sld [smem:[#allocation0]]
  $region213: #{transformer_forward_from_tokens.3} parent=0
    _
  %s30 = ssub.s32 1, %s28
  %s31 = scalar_select 0, %s30, %s28
  $region1: #{transformer_forward_from_tokens.3} parent=0
    #allocation2 [shape = 'u8[8192]{0}', space=vmem, size = 0x2000, scoped, tag = 'output window, operand 0']
    #allocation3 [shape = 's32[2]{0}', space=sflag, size = 0x8, scoped, tag = 'scoped memory for transformer_forward_from_tokens.3']
    #allocation4 [shape = 'u8[16384]{0}', space=vmem, size = 0x4000, scoped, tag = 'output window, operand 1']
    #allocation5 [shape = 'u8[16384]{0}', space=vmem, size = 0x4000, scoped, tag = 'output window, operand 2']
    %32 = vsyncpa [#allocation3], 0
    %s33 = scalar_lea.sflag [#allocation3], 1
    %34 = vsyncpa %s33, 0
    loop: start=0, step=1, limit=4
    $region2: #{transformer_forward_from_tokens.3} parent=1 // loop_pre_header
      _
    $region3: #{transformer_forward_from_tokens.3} parent=1 // loop_header
      %s36 = sphi 0, %s40
      %p37 = scmp.ge.s32.totalorder %s36, 4
      %s46 = sphi 0, %s48
      %s49 = sphi 0, %s46
      %s50 = sphi 0, %s49
      %s66 = sphi 0, %s50
      %s72 = sphi 0, %s74
      %s75 = sphi 0, %s72
      %s76 = sphi 0, %s75
      %s92 = sphi 0, %s76
      %s98 = sphi 0, %s100
      %s101 = sphi 0, %s98
      %s102 = sphi 0, %s101
      %s118 = sphi 0, %s102
      %s124 = sphi 0, %s126
      %s127 = sphi 0, %s124
      %s128 = sphi 0, %s127
      %s144 = sphi 0, %s128
      %s148 = sphi 0, %s148
      %s150 = sphi 0, %s148
      %s151 = sphi 0, %s150
      %s165 = sphi 0, %s151
      %s169 = sphi 0, %s169
      %s171 = sphi 0, %s169
      %s172 = sphi 0, %s171
      %s186 = sphi 0, %s172
      %s190 = sphi 0, %s190
      %s192 = sphi 0, %s190
      %s193 = sphi 0, %s192
      %s207 = sphi 0, %s193
      %s211 = sphi 0, %s211
      %s213 = sphi 0, %s211
      %s214 = sphi 0, %s213
      %s228 = sphi 0, %s214
      %s232 = sphi 0, %s232
      %s234 = sphi 0, %s232
      %s235 = sphi 0, %s234
      %s249 = sphi 0, %s235
      %s253 = sphi 0, %s253
      %s255 = sphi 0, %s253
      %s256 = sphi 0, %s255
      %s270 = sphi 0, %s256
      %s274 = sphi 0, %s274
      %s276 = sphi 0, %s274
      %s277 = sphi 0, %s276
      %s291 = sphi 0, %s277
      %s295 = sphi 0, %s295
      %s297 = sphi 0, %s295
      %s298 = sphi 0, %s297
      %s312 = sphi 0, %s298
      %s316 = sphi 0, %s316
      %s318 = sphi 0, %s316
      %s319 = sphi 0, %s318
      %s333 = sphi 0, %s319
      %s337 = sphi 0, %s337
      %s339 = sphi 0, %s337
      %s340 = sphi 0, %s339
      %s354 = sphi 0, %s340
      %s358 = sphi 0, %s358
      %s360 = sphi 0, %s358
      %s361 = sphi 0, %s360
      %s375 = sphi 0, %s361
      %s379 = sphi 0, %s379
      %s381 = sphi 0, %s379
      %s382 = sphi 0, %s381
      %s396 = sphi 0, %s382
      %s400 = sphi 0, %s400
      %s402 = sphi 0, %s400
      %s403 = sphi 0, %s402
      %s417 = sphi 0, %s403
      %s421 = sphi 0, %s421
      %s423 = sphi 0, %s421
      %s424 = sphi 0, %s423
      %s438 = sphi 0, %s424
      %s442 = sphi 0, %s442
      %s444 = sphi 0, %s442
      %s445 = sphi 0, %s444
      %s459 = sphi 0, %s445
      %s463 = sphi 0, %s463
      %s465 = sphi 0, %s463
      %s466 = sphi 0, %s465
      %s480 = sphi 0, %s466
      %s484 = sphi 0, %s484
      %s486 = sphi 0, %s484
      %s487 = sphi 0, %s486
      %s501 = sphi 0, %s487
      %s505 = sphi 0, %s505
      %s507 = sphi 0, %s505
      %s508 = sphi 0, %s507
      %s522 = sphi 0, %s508
      %s526 = sphi 0, %s526
      %s528 = sphi 0, %s526
      %s529 = sphi 0, %s528
      %s543 = sphi 0, %s529
      %s547 = sphi 0, %s547
      %s549 = sphi 0, %s547
      %s550 = sphi 0, %s549
      %s564 = sphi 0, %s550
      %s570 = sphi 0, %s572
      %s573 = sphi 0, %s570
      %s574 = sphi 0, %s573
      %s590 = sphi 0, %s574
      %s596 = sphi 0, %s598
      %s599 = sphi 0, %s596
      %s600 = sphi 0, %s599
      %s616 = sphi 0, %s600
      %s622 = sphi 0, %s624
      %s625 = sphi 0, %s622
      %s626 = sphi 0, %s625
      %s642 = sphi 0, %s626
    $region4: #{transformer_forward_from_tokens.3} parent=1 // loop_header_branch
      %39 = sbr.rel (%p37) target = $region8
    $region5: #{transformer_forward_from_tokens.3} parent=1 // loop_body
      %s41 = ssub.s32 %s36, 1
      %s42 = ssub.s32 %s36, 2
      %s43 = sadd.s32 %s36, 1
      %s44 = ssub.s32 %s36, %s43
      %p45 = scmp.eq.s32.totalorder %s44, 0
      %s47 = sadd.s32 %s46, 1
      %s48 = scalar_select %p45, %s46, %s47
      %p51 = pneg %p45
      %p52 = scmp.eq.s32.totalorder %s36, 1
      %p53 = por %p51, %p52
      %p54 = scmp.ne.s32.totalorder %s46, %s49
      %p55 = scmp.eq.s32.totalorder %s36, 0
      %p56 = por %p54, %p55
      %p57 = scmp.ne.s32.totalorder %s46, %s49
      %p58 = scmp.eq.s32.totalorder %s41, 1
      %p59 = por %p57, %p58
      %p60 = scmp.ne.s32.totalorder %s49, %s50
      %p61 = scmp.eq.s32.totalorder %s41, 0
      %p62 = por %p60, %p61
      %p63 = scmp.ne.s32.totalorder %s49, %s50
      %p64 = scmp.eq.s32.totalorder %s42, 1
      %p65 = por %p63, %p64
      %p67 = scmp.ne.s32.totalorder %s50, %s66
      %p68 = scmp.eq.s32.totalorder %s42, 0
      %p69 = por %p67, %p68
      %s70 = ssub.s32 %s36, %s43
      %p71 = scmp.eq.s32.totalorder %s70, 0
      %s73 = sadd.s32 %s72, 1
      %s74 = scalar_select %p71, %s72, %s73
      %p77 = pneg %p71
      %p78 = scmp.eq.s32.totalorder %s36, 1
      %p79 = por %p77, %p78
      %p80 = scmp.ne.s32.totalorder %s72, %s75
      %p81 = scmp.eq.s32.totalorder %s36, 0
      %p82 = por %p80, %p81
      %p83 = scmp.ne.s32.totalorder %s72, %s75
      %p84 = scmp.eq.s32.totalorder %s41, 1
      %p85 = por %p83, %p84
      %p86 = scmp.ne.s32.totalorder %s75, %s76
      %p87 = scmp.eq.s32.totalorder %s41, 0
      %p88 = por %p86, %p87
      %p89 = scmp.ne.s32.totalorder %s75, %s76
      %p90 = scmp.eq.s32.totalorder %s42, 1
      %p91 = por %p89, %p90
      %p93 = scmp.ne.s32.totalorder %s76, %s92
      %p94 = scmp.eq.s32.totalorder %s42, 0
      %p95 = por %p93, %p94
      %s96 = ssub.s32 %s36, %s43
      %p97 = scmp.eq.s32.totalorder %s96, 0
      %s99 = sadd.s32 %s98, 1
      %s100 = scalar_select %p97, %s98, %s99
      %p103 = pneg %p97
      %p104 = scmp.eq.s32.totalorder %s36, 1
      %p105 = por %p103, %p104
      %p106 = scmp.ne.s32.totalorder %s98, %s101
      %p107 = scmp.eq.s32.totalorder %s36, 0
      %p108 = por %p106, %p107
      %p109 = scmp.ne.s32.totalorder %s98, %s101
      %p110 = scmp.eq.s32.totalorder %s41, 1
      %p111 = por %p109, %p110
      %p112 = scmp.ne.s32.totalorder %s101, %s102
      %p113 = scmp.eq.s32.totalorder %s41, 0
      %p114 = por %p112, %p113
      %p115 = scmp.ne.s32.totalorder %s101, %s102
      %p116 = scmp.eq.s32.totalorder %s42, 1
      %p117 = por %p115, %p116
      %p119 = scmp.ne.s32.totalorder %s102, %s118
      %p120 = scmp.eq.s32.totalorder %s42, 0
      %p121 = por %p119, %p120
      %s122 = ssub.s32 %s36, %s43
      %p123 = scmp.eq.s32.totalorder %s122, 0
      %s125 = sadd.s32 %s124, 1
      %s126 = scalar_select %p123, %s124, %s125
      %p129 = pneg %p123
      %p130 = scmp.eq.s32.totalorder %s36, 1
      %p131 = por %p129, %p130
      %p132 = scmp.ne.s32.totalorder %s124, %s127
      %p133 = scmp.eq.s32.totalorder %s36, 0
      %p134 = por %p132, %p133
      %p135 = scmp.ne.s32.totalorder %s124, %s127
      %p136 = scmp.eq.s32.totalorder %s41, 1
      %p137 = por %p135, %p136
      %p138 = scmp.ne.s32.totalorder %s127, %s128
      %p139 = scmp.eq.s32.totalorder %s41, 0
      %p140 = por %p138, %p139
      %p141 = scmp.ne.s32.totalorder %s127, %s128
      %p142 = scmp.eq.s32.totalorder %s42, 1
      %p143 = por %p141, %p142
      %p145 = scmp.ne.s32.totalorder %s128, %s144
      %p146 = scmp.eq.s32.totalorder %s42, 0
      %p147 = por %p145, %p146
      %s149 = sadd.s32 %s148, 1
      %p152 = scmp.eq.s32.totalorder %s36, 1
      %p153 = scmp.ne.s32.totalorder %s148, %s150
      %p154 = scmp.eq.s32.totalorder %s36, 0
      %p155 = por %p153, %p154
      %p156 = scmp.ne.s32.totalorder %s148, %s150
      %p157 = scmp.eq.s32.totalorder %s41, 1
      %p158 = por %p156, %p157
      %p159 = scmp.ne.s32.totalorder %s150, %s151
      %p160 = scmp.eq.s32.totalorder %s41, 0
      %p161 = por %p159, %p160
      %p162 = scmp.ne.s32.totalorder %s150, %s151
      %p163 = scmp.eq.s32.totalorder %s42, 1
      %p164 = por %p162, %p163
      %p166 = scmp.ne.s32.totalorder %s151, %s165
      %p167 = scmp.eq.s32.totalorder %s42, 0
      %p168 = por %p166, %p167
      %s170 = sadd.s32 %s169, 1
      %p173 = scmp.eq.s32.totalorder %s36, 1
      %p174 = scmp.ne.s32.totalorder %s169, %s171
      %p175 = scmp.eq.s32.totalorder %s36, 0
      %p176 = por %p174, %p175
      %p177 = scmp.ne.s32.totalorder %s169, %s171
      %p178 = scmp.eq.s32.totalorder %s41, 1
      %p179 = por %p177, %p178
      %p180 = scmp.ne.s32.totalorder %s171, %s172
      %p181 = scmp.eq.s32.totalorder %s41, 0
      %p182 = por %p180, %p181
      %p183 = scmp.ne.s32.totalorder %s171, %s172
      %p184 = scmp.eq.s32.totalorder %s42, 1
      %p185 = por %p183, %p184
      %p187 = scmp.ne.s32.totalorder %s172, %s186
      %p188 = scmp.eq.s32.totalorder %s42, 0
      %p189 = por %p187, %p188
      %s191 = sadd.s32 %s190, 1
      %p194 = scmp.eq.s32.totalorder %s36, 1
      %p195 = scmp.ne.s32.totalorder %s190, %s192
      %p196 = scmp.eq.s32.totalorder %s36, 0
      %p197 = por %p195, %p196
      %p198 = scmp.ne.s32.totalorder %s190, %s192
      %p199 = scmp.eq.s32.totalorder %s41, 1
      %p200 = por %p198, %p199
      %p201 = scmp.ne.s32.totalorder %s192, %s193
      %p202 = scmp.eq.s32.totalorder %s41, 0
      %p203 = por %p201, %p202
      %p204 = scmp.ne.s32.totalorder %s192, %s193
      %p205 = scmp.eq.s32.totalorder %s42, 1
      %p206 = por %p204, %p205
      %p208 = scmp.ne.s32.totalorder %s193, %s207
      %p209 = scmp.eq.s32.totalorder %s42, 0
      %p210 = por %p208, %p209
      %s212 = sadd.s32 %s211, 1
      %p215 = scmp.eq.s32.totalorder %s36, 1
      %p216 = scmp.ne.s32.totalorder %s211, %s213
      %p217 = scmp.eq.s32.totalorder %s36, 0
      %p218 = por %p216, %p217
      %p219 = scmp.ne.s32.totalorder %s211, %s213
      %p220 = scmp.eq.s32.totalorder %s41, 1
      %p221 = por %p219, %p220
      %p222 = scmp.ne.s32.totalorder %s213, %s214
      %p223 = scmp.eq.s32.totalorder %s41, 0
      %p224 = por %p222, %p223
      %p225 = scmp.ne.s32.totalorder %s213, %s214
      %p226 = scmp.eq.s32.totalorder %s42, 1
      %p227 = por %p225, %p226
      %p229 = scmp.ne.s32.totalorder %s214, %s228
      %p230 = scmp.eq.s32.totalorder %s42, 0
      %p231 = por %p229, %p230
      %s233 = sadd.s32 %s232, 1
      %p236 = scmp.eq.s32.totalorder %s36, 1
      %p237 = scmp.ne.s32.totalorder %s232, %s234
      %p238 = scmp.eq.s32.totalorder %s36, 0
      %p239 = por %p237, %p238
      %p240 = scmp.ne.s32.totalorder %s232, %s234
      %p241 = scmp.eq.s32.totalorder %s41, 1
      %p242 = por %p240, %p241
      %p243 = scmp.ne.s32.totalorder %s234, %s235
      %p244 = scmp.eq.s32.totalorder %s41, 0
      %p245 = por %p243, %p244
      %p246 = scmp.ne.s32.totalorder %s234, %s235
      %p247 = scmp.eq.s32.totalorder %s42, 1
      %p248 = por %p246, %p247
      %p250 = scmp.ne.s32.totalorder %s235, %s249
      %p251 = scmp.eq.s32.totalorder %s42, 0
      %p252 = por %p250, %p251
      %s254 = sadd.s32 %s253, 1
      %p257 = scmp.eq.s32.totalorder %s36, 1
      %p258 = scmp.ne.s32.totalorder %s253, %s255
      %p259 = scmp.eq.s32.totalorder %s36, 0
      %p260 = por %p258, %p259
      %p261 = scmp.ne.s32.totalorder %s253, %s255
      %p262 = scmp.eq.s32.totalorder %s41, 1
      %p263 = por %p261, %p262
      %p264 = scmp.ne.s32.totalorder %s255, %s256
      %p265 = scmp.eq.s32.totalorder %s41, 0
      %p266 = por %p264, %p265
      %p267 = scmp.ne.s32.totalorder %s255, %s256
      %p268 = scmp.eq.s32.totalorder %s42, 1
      %p269 = por %p267, %p268
      %p271 = scmp.ne.s32.totalorder %s256, %s270
      %p272 = scmp.eq.s32.totalorder %s42, 0
      %p273 = por %p271, %p272
      %s275 = sadd.s32 %s274, 1
      %p278 = scmp.eq.s32.totalorder %s36, 1
      %p279 = scmp.ne.s32.totalorder %s274, %s276
      %p280 = scmp.eq.s32.totalorder %s36, 0
      %p281 = por %p279, %p280
      %p282 = scmp.ne.s32.totalorder %s274, %s276
      %p283 = scmp.eq.s32.totalorder %s41, 1
      %p284 = por %p282, %p283
      %p285 = scmp.ne.s32.totalorder %s276, %s277
      %p286 = scmp.eq.s32.totalorder %s41, 0
      %p287 = por %p285, %p286
      %p288 = scmp.ne.s32.totalorder %s276, %s277
      %p289 = scmp.eq.s32.totalorder %s42, 1
      %p290 = por %p288, %p289
      %p292 = scmp.ne.s32.totalorder %s277, %s291
      %p293 = scmp.eq.s32.totalorder %s42, 0
      %p294 = por %p292, %p293
      %s296 = sadd.s32 %s295, 1
      %p299 = scmp.eq.s32.totalorder %s36, 1
      %p300 = scmp.ne.s32.totalorder %s295, %s297
      %p301 = scmp.eq.s32.totalorder %s36, 0
      %p302 = por %p300, %p301
      %p303 = scmp.ne.s32.totalorder %s295, %s297
      %p304 = scmp.eq.s32.totalorder %s41, 1
      %p305 = por %p303, %p304
      %p306 = scmp.ne.s32.totalorder %s297, %s298
      %p307 = scmp.eq.s32.totalorder %s41, 0
      %p308 = por %p306, %p307
      %p309 = scmp.ne.s32.totalorder %s297, %s298
      %p310 = scmp.eq.s32.totalorder %s42, 1
      %p311 = por %p309, %p310
      %p313 = scmp.ne.s32.totalorder %s298, %s312
      %p314 = scmp.eq.s32.totalorder %s42, 0
      %p315 = por %p313, %p314
      %s317 = sadd.s32 %s316, 1
      %p320 = scmp.eq.s32.totalorder %s36, 1
      %p321 = scmp.ne.s32.totalorder %s316, %s318
      %p322 = scmp.eq.s32.totalorder %s36, 0
      %p323 = por %p321, %p322
      %p324 = scmp.ne.s32.totalorder %s316, %s318
      %p325 = scmp.eq.s32.totalorder %s41, 1
      %p326 = por %p324, %p325
      %p327 = scmp.ne.s32.totalorder %s318, %s319
      %p328 = scmp.eq.s32.totalorder %s41, 0
      %p329 = por %p327, %p328
      %p330 = scmp.ne.s32.totalorder %s318, %s319
      %p331 = scmp.eq.s32.totalorder %s42, 1
      %p332 = por %p330, %p331
      %p334 = scmp.ne.s32.totalorder %s319, %s333
      %p335 = scmp.eq.s32.totalorder %s42, 0
      %p336 = por %p334, %p335
      %s338 = sadd.s32 %s337, 1
      %p341 = scmp.eq.s32.totalorder %s36, 1
      %p342 = scmp.ne.s32.totalorder %s337, %s339
      %p343 = scmp.eq.s32.totalorder %s36, 0
      %p344 = por %p342, %p343
      %p345 = scmp.ne.s32.totalorder %s337, %s339
      %p346 = scmp.eq.s32.totalorder %s41, 1
      %p347 = por %p345, %p346
      %p348 = scmp.ne.s32.totalorder %s339, %s340
      %p349 = scmp.eq.s32.totalorder %s41, 0
      %p350 = por %p348, %p349
      %p351 = scmp.ne.s32.totalorder %s339, %s340
      %p352 = scmp.eq.s32.totalorder %s42, 1
      %p353 = por %p351, %p352
      %p355 = scmp.ne.s32.totalorder %s340, %s354
      %p356 = scmp.eq.s32.totalorder %s42, 0
      %p357 = por %p355, %p356
      %s359 = sadd.s32 %s358, 1
      %p362 = scmp.eq.s32.totalorder %s36, 1
      %p363 = scmp.ne.s32.totalorder %s358, %s360
      %p364 = scmp.eq.s32.totalorder %s36, 0
      %p365 = por %p363, %p364
      %p366 = scmp.ne.s32.totalorder %s358, %s360
      %p367 = scmp.eq.s32.totalorder %s41, 1
      %p368 = por %p366, %p367
      %p369 = scmp.ne.s32.totalorder %s360, %s361
      %p370 = scmp.eq.s32.totalorder %s41, 0
      %p371 = por %p369, %p370
      %p372 = scmp.ne.s32.totalorder %s360, %s361
      %p373 = scmp.eq.s32.totalorder %s42, 1
      %p374 = por %p372, %p373
      %p376 = scmp.ne.s32.totalorder %s361, %s375
      %p377 = scmp.eq.s32.totalorder %s42, 0
      %p378 = por %p376, %p377
      %s380 = sadd.s32 %s379, 1
      %p383 = scmp.eq.s32.totalorder %s36, 1
      %p384 = scmp.ne.s32.totalorder %s379, %s381
      %p385 = scmp.eq.s32.totalorder %s36, 0
      %p386 = por %p384, %p385
      %p387 = scmp.ne.s32.totalorder %s379, %s381
      %p388 = scmp.eq.s32.totalorder %s41, 1
      %p389 = por %p387, %p388
      %p390 = scmp.ne.s32.totalorder %s381, %s382
      %p391 = scmp.eq.s32.totalorder %s41, 0
      %p392 = por %p390, %p391
      %p393 = scmp.ne.s32.totalorder %s381, %s382
      %p394 = scmp.eq.s32.totalorder %s42, 1
      %p395 = por %p393, %p394
      %p397 = scmp.ne.s32.totalorder %s382, %s396
      %p398 = scmp.eq.s32.totalorder %s42, 0
      %p399 = por %p397, %p398
      %s401 = sadd.s32 %s400, 1
      %p404 = scmp.eq.s32.totalorder %s36, 1
      %p405 = scmp.ne.s32.totalorder %s400, %s402
      %p406 = scmp.eq.s32.totalorder %s36, 0
      %p407 = por %p405, %p406
      %p408 = scmp.ne.s32.totalorder %s400, %s402
      %p409 = scmp.eq.s32.totalorder %s41, 1
      %p410 = por %p408, %p409
      %p411 = scmp.ne.s32.totalorder %s402, %s403
      %p412 = scmp.eq.s32.totalorder %s41, 0
      %p413 = por %p411, %p412
      %p414 = scmp.ne.s32.totalorder %s402, %s403
      %p415 = scmp.eq.s32.totalorder %s42, 1
      %p416 = por %p414, %p415
      %p418 = scmp.ne.s32.totalorder %s403, %s417
      %p419 = scmp.eq.s32.totalorder %s42, 0
      %p420 = por %p418, %p419
      %s422 = sadd.s32 %s421, 1
      %p425 = scmp.eq.s32.totalorder %s36, 1
      %p426 = scmp.ne.s32.totalorder %s421, %s423
      %p427 = scmp.eq.s32.totalorder %s36, 0
      %p428 = por %p426, %p427
      %p429 = scmp.ne.s32.totalorder %s421, %s423
      %p430 = scmp.eq.s32.totalorder %s41, 1
      %p431 = por %p429, %p430
      %p432 = scmp.ne.s32.totalorder %s423, %s424
      %p433 = scmp.eq.s32.totalorder %s41, 0
      %p434 = por %p432, %p433
      %p435 = scmp.ne.s32.totalorder %s423, %s424
      %p436 = scmp.eq.s32.totalorder %s42, 1
      %p437 = por %p435, %p436
      %p439 = scmp.ne.s32.totalorder %s424, %s438
      %p440 = scmp.eq.s32.totalorder %s42, 0
      %p441 = por %p439, %p440
      %s443 = sadd.s32 %s442, 1
      %p446 = scmp.eq.s32.totalorder %s36, 1
      %p447 = scmp.ne.s32.totalorder %s442, %s444
      %p448 = scmp.eq.s32.totalorder %s36, 0
      %p449 = por %p447, %p448
      %p450 = scmp.ne.s32.totalorder %s442, %s444
      %p451 = scmp.eq.s32.totalorder %s41, 1
      %p452 = por %p450, %p451
      %p453 = scmp.ne.s32.totalorder %s444, %s445
      %p454 = scmp.eq.s32.totalorder %s41, 0
      %p455 = por %p453, %p454
      %p456 = scmp.ne.s32.totalorder %s444, %s445
      %p457 = scmp.eq.s32.totalorder %s42, 1
      %p458 = por %p456, %p457
      %p460 = scmp.ne.s32.totalorder %s445, %s459
      %p461 = scmp.eq.s32.totalorder %s42, 0
      %p462 = por %p460, %p461
      %s464 = sadd.s32 %s463, 1
      %p467 = scmp.eq.s32.totalorder %s36, 1
      %p468 = scmp.ne.s32.totalorder %s463, %s465
      %p469 = scmp.eq.s32.totalorder %s36, 0
      %p470 = por %p468, %p469
      %p471 = scmp.ne.s32.totalorder %s463, %s465
      %p472 = scmp.eq.s32.totalorder %s41, 1
      %p473 = por %p471, %p472
      %p474 = scmp.ne.s32.totalorder %s465, %s466
      %p475 = scmp.eq.s32.totalorder %s41, 0
      %p476 = por %p474, %p475
      %p477 = scmp.ne.s32.totalorder %s465, %s466
      %p478 = scmp.eq.s32.totalorder %s42, 1
      %p479 = por %p477, %p478
      %p481 = scmp.ne.s32.totalorder %s466, %s480
      %p482 = scmp.eq.s32.totalorder %s42, 0
      %p483 = por %p481, %p482
      %s485 = sadd.s32 %s484, 1
      %p488 = scmp.eq.s32.totalorder %s36, 1
      %p489 = scmp.ne.s32.totalorder %s484, %s486
      %p490 = scmp.eq.s32.totalorder %s36, 0
      %p491 = por %p489, %p490
      %p492 = scmp.ne.s32.totalorder %s484, %s486
      %p493 = scmp.eq.s32.totalorder %s41, 1
      %p494 = por %p492, %p493
      %p495 = scmp.ne.s32.totalorder %s486, %s487
      %p496 = scmp.eq.s32.totalorder %s41, 0
      %p497 = por %p495, %p496
      %p498 = scmp.ne.s32.totalorder %s486, %s487
      %p499 = scmp.eq.s32.totalorder %s42, 1
      %p500 = por %p498, %p499
      %p502 = scmp.ne.s32.totalorder %s487, %s501
      %p503 = scmp.eq.s32.totalorder %s42, 0
      %p504 = por %p502, %p503
      %s506 = sadd.s32 %s505, 1
      %p509 = scmp.eq.s32.totalorder %s36, 1
      %p510 = scmp.ne.s32.totalorder %s505, %s507
      %p511 = scmp.eq.s32.totalorder %s36, 0
      %p512 = por %p510, %p511
      %p513 = scmp.ne.s32.totalorder %s505, %s507
      %p514 = scmp.eq.s32.totalorder %s41, 1
      %p515 = por %p513, %p514
      %p516 = scmp.ne.s32.totalorder %s507, %s508
      %p517 = scmp.eq.s32.totalorder %s41, 0
      %p518 = por %p516, %p517
      %p519 = scmp.ne.s32.totalorder %s507, %s508
      %p520 = scmp.eq.s32.totalorder %s42, 1
      %p521 = por %p519, %p520
      %p523 = scmp.ne.s32.totalorder %s508, %s522
      %p524 = scmp.eq.s32.totalorder %s42, 0
      %p525 = por %p523, %p524
      %s527 = sadd.s32 %s526, 1
      %p530 = scmp.eq.s32.totalorder %s36, 1
      %p531 = scmp.ne.s32.totalorder %s526, %s528
      %p532 = scmp.eq.s32.totalorder %s36, 0
      %p533 = por %p531, %p532
      %p534 = scmp.ne.s32.totalorder %s526, %s528
      %p535 = scmp.eq.s32.totalorder %s41, 1
      %p536 = por %p534, %p535
      %p537 = scmp.ne.s32.totalorder %s528, %s529
      %p538 = scmp.eq.s32.totalorder %s41, 0
      %p539 = por %p537, %p538
      %p540 = scmp.ne.s32.totalorder %s528, %s529
      %p541 = scmp.eq.s32.totalorder %s42, 1
      %p542 = por %p540, %p541
      %p544 = scmp.ne.s32.totalorder %s529, %s543
      %p545 = scmp.eq.s32.totalorder %s42, 0
      %p546 = por %p544, %p545
      %s548 = sadd.s32 %s547, 1
      %p551 = scmp.eq.s32.totalorder %s36, 1
      %p552 = scmp.ne.s32.totalorder %s547, %s549
      %p553 = scmp.eq.s32.totalorder %s36, 0
      %p554 = por %p552, %p553
      %p555 = scmp.ne.s32.totalorder %s547, %s549
      %p556 = scmp.eq.s32.totalorder %s41, 1
      %p557 = por %p555, %p556
      %p558 = scmp.ne.s32.totalorder %s549, %s550
      %p559 = scmp.eq.s32.totalorder %s41, 0
      %p560 = por %p558, %p559
      %p561 = scmp.ne.s32.totalorder %s549, %s550
      %p562 = scmp.eq.s32.totalorder %s42, 1
      %p563 = por %p561, %p562
      %p565 = scmp.ne.s32.totalorder %s550, %s564
      %p566 = scmp.eq.s32.totalorder %s42, 0
      %p567 = por %p565, %p566
      %s568 = ssub.s32 %s36, %s43
      %p569 = scmp.eq.s32.totalorder %s568, 0
      %s571 = sadd.s32 %s570, 1
      %s572 = scalar_select %p569, %s570, %s571
      %p575 = pneg %p569
      %p576 = scmp.eq.s32.totalorder %s36, 1
      %p577 = por %p575, %p576
      %p578 = scmp.ne.s32.totalorder %s570, %s573
      %p579 = scmp.eq.s32.totalorder %s36, 0
      %p580 = por %p578, %p579
      %p581 = scmp.ne.s32.totalorder %s570, %s573
      %p582 = scmp.eq.s32.totalorder %s41, 1
      %p583 = por %p581, %p582
      %p584 = scmp.ne.s32.totalorder %s573, %s574
      %p585 = scmp.eq.s32.totalorder %s41, 0
      %p586 = por %p584, %p585
      %p587 = scmp.ne.s32.totalorder %s573, %s574
      %p588 = scmp.eq.s32.totalorder %s42, 1
      %p589 = por %p587, %p588
      %p591 = scmp.ne.s32.totalorder %s574, %s590
      %p592 = scmp.eq.s32.totalorder %s42, 0
      %p593 = por %p591, %p592
      %s594 = ssub.s32 %s36, %s43
      %p595 = scmp.eq.s32.totalorder %s594, 0
      %s597 = sadd.s32 %s596, 1
      %s598 = scalar_select %p595, %s596, %s597
      %p601 = pneg %p595
      %p602 = scmp.eq.s32.totalorder %s36, 1
      %p603 = por %p601, %p602
      %p604 = scmp.ne.s32.totalorder %s596, %s599
      %p605 = scmp.eq.s32.totalorder %s36, 0
      %p606 = por %p604, %p605
      %p607 = scmp.ne.s32.totalorder %s596, %s599
      %p608 = scmp.eq.s32.totalorder %s41, 1
      %p609 = por %p607, %p608
      %p610 = scmp.ne.s32.totalorder %s599, %s600
      %p611 = scmp.eq.s32.totalorder %s41, 0
      %p612 = por %p610, %p611
      %p613 = scmp.ne.s32.totalorder %s599, %s600
      %p614 = scmp.eq.s32.totalorder %s42, 1
      %p615 = por %p613, %p614
      %p617 = scmp.ne.s32.totalorder %s600, %s616
      %p618 = scmp.eq.s32.totalorder %s42, 0
      %p619 = por %p617, %p618
      %s620 = ssub.s32 %s36, %s43
      %p621 = scmp.eq.s32.totalorder %s620, 0
      %s623 = sadd.s32 %s622, 1
      %s624 = scalar_select %p621, %s622, %s623
      %p627 = pneg %p621
      %p628 = scmp.eq.s32.totalorder %s36, 1
      %p629 = por %p627, %p628
      %p630 = scmp.ne.s32.totalorder %s622, %s625
      %p631 = scmp.eq.s32.totalorder %s36, 0
      %p632 = por %p630, %p631
      %p633 = scmp.ne.s32.totalorder %s622, %s625
      %p634 = scmp.eq.s32.totalorder %s41, 1
      %p635 = por %p633, %p634
      %p636 = scmp.ne.s32.totalorder %s625, %s626
      %p637 = scmp.eq.s32.totalorder %s41, 0
      %p638 = por %p636, %p637
      %p639 = scmp.ne.s32.totalorder %s625, %s626
      %p640 = scmp.eq.s32.totalorder %s42, 1
      %p641 = por %p639, %p640
      %p643 = scmp.ne.s32.totalorder %s626, %s642
      %p644 = scmp.eq.s32.totalorder %s42, 0
      %p645 = por %p643, %p644
      %p646 = scmp.le.s32.totalorder 1, %s36
      %p647 = scmp.lt.s32.totalorder %s36, 3
      %p648 = pnand %p646, %p647
      %p649 = pneg %p648
      // Predicated region
      $region9: #{transformer_forward_from_tokens.3} parent=5 // pred_check
        _
      $region10: #{transformer_forward_from_tokens.3} parent=5 // pred_check_branch
        %651 = sbr.rel (%p648) target = $region12
      $region11: #{transformer_forward_from_tokens.3} parent=5 // pred_region
        %s652 = ssub.s32 %s36, 1
        // Predicated region
        $region13: #{transformer_forward_from_tokens.3} parent=11 // pred_check
          %p653 = pneg %p161
        $region14: #{transformer_forward_from_tokens.3} parent=11 // pred_check_branch
          %655 = sbr.rel (%p653) target = $region16
        $region15: #{transformer_forward_from_tokens.3} parent=11 // pred_region
          _
        $region16: #{transformer_forward_from_tokens.3} parent=11 // pred_fallthru
          _
        // Predicated region
        $region17: #{transformer_forward_from_tokens.3} parent=11 // pred_check
          %p656 = pneg %p182
        $region18: #{transformer_forward_from_tokens.3} parent=11 // pred_check_branch
          %658 = sbr.rel (%p656) target = $region20
        $region19: #{transformer_forward_from_tokens.3} parent=11 // pred_region
          _
        $region20: #{transformer_forward_from_tokens.3} parent=11 // pred_fallthru
          _
        // Predicated region
        $region21: #{transformer_forward_from_tokens.3} parent=11 // pred_check
          %p659 = pneg %p203
        $region22: #{transformer_forward_from_tokens.3} parent=11 // pred_check_branch
          %661 = sbr.rel (%p659) target = $region24
        $region23: #{transformer_forward_from_tokens.3} parent=11 // pred_region
          _
        $region24: #{transformer_forward_from_tokens.3} parent=11 // pred_fallthru
          _
        // Predicated region
        $region25: #{transformer_forward_from_tokens.3} parent=11 // pred_check
          %p662 = pneg %p224
        $region26: #{transformer_forward_from_tokens.3} parent=11 // pred_check_branch
          %664 = sbr.rel (%p662) target = $region28
        $region27: #{transformer_forward_from_tokens.3} parent=11 // pred_region
          _
        $region28: #{transformer_forward_from_tokens.3} parent=11 // pred_fallthru
          _
        // Predicated region
        $region29: #{transformer_forward_from_tokens.3} parent=11 // pred_check
          %p665 = pneg %p245
        $region30: #{transformer_forward_from_tokens.3} parent=11 // pred_check_branch
          %667 = sbr.rel (%p665) target = $region32
        $region31: #{transformer_forward_from_tokens.3} parent=11 // pred_region
          _
        $region32: #{transformer_forward_from_tokens.3} parent=11 // pred_fallthru
          _
        // Predicated region
        $region33: #{transformer_forward_from_tokens.3} parent=11 // pred_check
          %p668 = pneg %p266
        $region34: #{transformer_forward_from_tokens.3} parent=11 // pred_check_branch
          %670 = sbr.rel (%p668) target = $region36
        $region35: #{transformer_forward_from_tokens.3} parent=11 // pred_region
          _
        $region36: #{transformer_forward_from_tokens.3} parent=11 // pred_fallthru
          _
        // Predicated region
        $region37: #{transformer_forward_from_tokens.3} parent=11 // pred_check
          %p671 = pneg %p287
        $region38: #{transformer_forward_from_tokens.3} parent=11 // pred_check_branch
          %673 = sbr.rel (%p671) target = $region40
        $region39: #{transformer_forward_from_tokens.3} parent=11 // pred_region
          _
        $region40: #{transformer_forward_from_tokens.3} parent=11 // pred_fallthru
          _
        // Predicated region
        $region41: #{transformer_forward_from_tokens.3} parent=11 // pred_check
          %p674 = pneg %p308
        $region42: #{transformer_forward_from_tokens.3} parent=11 // pred_check_branch
          %676 = sbr.rel (%p674) target = $region44
        $region43: #{transformer_forward_from_tokens.3} parent=11 // pred_region
          _
        $region44: #{transformer_forward_from_tokens.3} parent=11 // pred_fallthru
          _
        // Predicated region
        $region45: #{transformer_forward_from_tokens.3} parent=11 // pred_check
          %p677 = pneg %p329
        $region46: #{transformer_forward_from_tokens.3} parent=11 // pred_check_branch
          %679 = sbr.rel (%p677) target = $region48
        $region47: #{transformer_forward_from_tokens.3} parent=11 // pred_region
          _
        $region48: #{transformer_forward_from_tokens.3} parent=11 // pred_fallthru
          _
        // Predicated region
        $region49: #{transformer_forward_from_tokens.3} parent=11 // pred_check
          %p680 = pneg %p350
        $region50: #{transformer_forward_from_tokens.3} parent=11 // pred_check_branch
          %682 = sbr.rel (%p680) target = $region52
        $region51: #{transformer_forward_from_tokens.3} parent=11 // pred_region
          _
        $region52: #{transformer_forward_from_tokens.3} parent=11 // pred_fallthru
          _
        // Predicated region
        $region53: #{transformer_forward_from_tokens.3} parent=11 // pred_check
          %p683 = pneg %p371
        $region54: #{transformer_forward_from_tokens.3} parent=11 // pred_check_branch
          %685 = sbr.rel (%p683) target = $region56
        $region55: #{transformer_forward_from_tokens.3} parent=11 // pred_region
          _
        $region56: #{transformer_forward_from_tokens.3} parent=11 // pred_fallthru
          _
        // Predicated region
        $region57: #{transformer_forward_from_tokens.3} parent=11 // pred_check
          %p686 = pneg %p392
        $region58: #{transformer_forward_from_tokens.3} parent=11 // pred_check_branch
          %688 = sbr.rel (%p686) target = $region60
        $region59: #{transformer_forward_from_tokens.3} parent=11 // pred_region
          _
        $region60: #{transformer_forward_from_tokens.3} parent=11 // pred_fallthru
          _
        // Predicated region
        $region61: #{transformer_forward_from_tokens.3} parent=11 // pred_check
          %p689 = pneg %p413
        $region62: #{transformer_forward_from_tokens.3} parent=11 // pred_check_branch
          %691 = sbr.rel (%p689) target = $region64
        $region63: #{transformer_forward_from_tokens.3} parent=11 // pred_region
          _
        $region64: #{transformer_forward_from_tokens.3} parent=11 // pred_fallthru
          _
        // Predicated region
        $region65: #{transformer_forward_from_tokens.3} parent=11 // pred_check
          %p692 = pneg %p434
        $region66: #{transformer_forward_from_tokens.3} parent=11 // pred_check_branch
          %694 = sbr.rel (%p692) target = $region68
        $region67: #{transformer_forward_from_tokens.3} parent=11 // pred_region
          _
        $region68: #{transformer_forward_from_tokens.3} parent=11 // pred_fallthru
          _
        // Predicated region
        $region69: #{transformer_forward_from_tokens.3} parent=11 // pred_check
          %p695 = pneg %p455
        $region70: #{transformer_forward_from_tokens.3} parent=11 // pred_check_branch
          %697 = sbr.rel (%p695) target = $region72
        $region71: #{transformer_forward_from_tokens.3} parent=11 // pred_region
          _
        $region72: #{transformer_forward_from_tokens.3} parent=11 // pred_fallthru
          _
        // Predicated region
        $region73: #{transformer_forward_from_tokens.3} parent=11 // pred_check
          %p698 = pneg %p476
        $region74: #{transformer_forward_from_tokens.3} parent=11 // pred_check_branch
          %700 = sbr.rel (%p698) target = $region76
        $region75: #{transformer_forward_from_tokens.3} parent=11 // pred_region
          _
        $region76: #{transformer_forward_from_tokens.3} parent=11 // pred_fallthru
          _
        // Predicated region
        $region77: #{transformer_forward_from_tokens.3} parent=11 // pred_check
          %p701 = pneg %p497
        $region78: #{transformer_forward_from_tokens.3} parent=11 // pred_check_branch
          %703 = sbr.rel (%p701) target = $region80
        $region79: #{transformer_forward_from_tokens.3} parent=11 // pred_region
          _
        $region80: #{transformer_forward_from_tokens.3} parent=11 // pred_fallthru
          _
        // Predicated region
        $region81: #{transformer_forward_from_tokens.3} parent=11 // pred_check
          %p704 = pneg %p518
        $region82: #{transformer_forward_from_tokens.3} parent=11 // pred_check_branch
          %706 = sbr.rel (%p704) target = $region84
        $region83: #{transformer_forward_from_tokens.3} parent=11 // pred_region
          _
        $region84: #{transformer_forward_from_tokens.3} parent=11 // pred_fallthru
          _
        // Predicated region
        $region85: #{transformer_forward_from_tokens.3} parent=11 // pred_check
          %p707 = pneg %p539
        $region86: #{transformer_forward_from_tokens.3} parent=11 // pred_check_branch
          %709 = sbr.rel (%p707) target = $region88
        $region87: #{transformer_forward_from_tokens.3} parent=11 // pred_region
          _
        $region88: #{transformer_forward_from_tokens.3} parent=11 // pred_fallthru
          _
        // Predicated region
        $region89: #{transformer_forward_from_tokens.3} parent=11 // pred_check
          %p710 = pneg %p560
        $region90: #{transformer_forward_from_tokens.3} parent=11 // pred_check_branch
          %712 = sbr.rel (%p710) target = $region92
        $region91: #{transformer_forward_from_tokens.3} parent=11 // pred_region
          _
        $region92: #{transformer_forward_from_tokens.3} parent=11 // pred_fallthru
          _
      $region12: #{transformer_forward_from_tokens.3} parent=5 // pred_fallthru
        _
      %p713 = scmp.lt.s32.totalorder %s36, 2
      // Predicated region
      $region93: #{transformer_forward_from_tokens.3} parent=5 // pred_check
        %p714 = pneg %p713
      $region94: #{transformer_forward_from_tokens.3} parent=5 // pred_check_branch
        %716 = sbr.rel (%p714) target = $region96
      $region95: #{transformer_forward_from_tokens.3} parent=5 // pred_region
        // Predicated region
        $region97: #{transformer_forward_from_tokens.3} parent=95 // pred_check
          %p717 = pneg %p56
        $region98: #{transformer_forward_from_tokens.3} parent=95 // pred_check_branch
          %719 = sbr.rel (%p717) target = $region100
        $region99: #{transformer_forward_from_tokens.3} parent=95 // pred_region
          %p720 = scmp.lt.s32.totalorder %s36, 1
          %s721 = scalar_select %p720, %s36, 1
          %s722 = smul.addr %s721, 8
          %s723 = scalar_lea.vmem %s0, %s722
        $region100: #{transformer_forward_from_tokens.3} parent=95 // pred_fallthru
          _
        // Predicated region
        $region101: #{transformer_forward_from_tokens.3} parent=95 // pred_check
          %p724 = pneg %p82
        $region102: #{transformer_forward_from_tokens.3} parent=95 // pred_check_branch
          %726 = sbr.rel (%p724) target = $region104
        $region103: #{transformer_forward_from_tokens.3} parent=95 // pred_region
          %p727 = scmp.lt.s32.totalorder %s36, 1
          %s728 = scalar_select %p727, %s36, 1
          %s729 = smul.addr %s728, 8
          %s730 = scalar_lea.vmem %s1, %s729
        $region104: #{transformer_forward_from_tokens.3} parent=95 // pred_fallthru
          _
        // Predicated region
        $region105: #{transformer_forward_from_tokens.3} parent=95 // pred_check
          %p731 = pneg %p108
        $region106: #{transformer_forward_from_tokens.3} parent=95 // pred_check_branch
          %733 = sbr.rel (%p731) target = $region108
        $region107: #{transformer_forward_from_tokens.3} parent=95 // pred_region
          %p734 = scmp.lt.s32.totalorder %s36, 1
          %s735 = scalar_select %p734, %s36, 1
          %s736 = smul.addr %s735, 8
          %s737 = scalar_lea.vmem %s2, %s736
        $region108: #{transformer_forward_from_tokens.3} parent=95 // pred_fallthru
          _
        // Predicated region
        $region109: #{transformer_forward_from_tokens.3} parent=95 // pred_check
          %p738 = pneg %p134
        $region110: #{transformer_forward_from_tokens.3} parent=95 // pred_check_branch
          %740 = sbr.rel (%p738) target = $region112
        $region111: #{transformer_forward_from_tokens.3} parent=95 // pred_region
          %p741 = scmp.lt.s32.totalorder %s36, 1
          %s742 = scalar_select %p741, %s36, 1
          %s743 = scalar_lea.vmem %s3, %s742
        $region112: #{transformer_forward_from_tokens.3} parent=95 // pred_fallthru
          _
      $region96: #{transformer_forward_from_tokens.3} parent=5 // pred_fallthru
        _
      %p744 = scmp.le.s32.totalorder 1, %s36
      %p745 = scmp.lt.s32.totalorder %s36, 3
      %p746 = pnand %p744, %p745
      %p747 = pneg %p746
      // Predicated region
      $region113: #{transformer_forward_from_tokens.3} parent=5 // pred_check
        _
      $region114: #{transformer_forward_from_tokens.3} parent=5 // pred_check_branch
        %749 = sbr.rel (%p746) target = $region116
      $region115: #{transformer_forward_from_tokens.3} parent=5 // pred_region
        %s750 = ssub.s32 %s36, 1
        %p751 = scmp.lt.s32.totalorder %s41, 1
        %s752 = scalar_select %p751, %s41, 1
        %s753 = smul.addr %s752, 8
        %s754 = scalar_lea.vmem %s0, %s753
        %p755 = pneg %p62
        %p756 = pneg %p59
        %p757 = scmp.lt.s32.totalorder %s41, 1
        %s758 = scalar_select %p757, %s41, 1
        %s759 = smul.addr %s758, 8
        %s760 = scalar_lea.vmem %s1, %s759
        %p761 = pneg %p88
        %p762 = pneg %p85
        %p763 = scmp.lt.s32.totalorder %s41, 1
        %s764 = scalar_select %p763, %s41, 1
        %s765 = smul.addr %s764, 8
        %s766 = scalar_lea.vmem %s2, %s765
        %p767 = pneg %p114
        %p768 = pneg %p111
        %p769 = scmp.lt.s32.totalorder %s41, 1
        %s770 = scalar_select %p769, %s41, 1
        %s771 = scalar_lea.vmem %s3, %s770
        %p772 = pneg %p140
        %p773 = pneg %p137
        %p774 = pneg %p161
        %p775 = pneg %p158
        %p776 = pneg %p182
        %p777 = pneg %p179
        %p778 = pneg %p203
        %p779 = pneg %p200
        %p780 = pneg %p224
        %p781 = pneg %p221
        %p782 = pneg %p245
        %p783 = pneg %p242
        %p784 = pneg %p266
        %p785 = pneg %p263
        %p786 = pneg %p287
        %p787 = pneg %p284
        %p788 = pneg %p308
        %p789 = pneg %p305
        %p790 = pneg %p329
        %p791 = pneg %p326
        %p792 = pneg %p350
        %p793 = pneg %p347
        %p794 = pneg %p371
        %p795 = pneg %p368
        %p796 = pneg %p392
        %p797 = pneg %p389
        %p798 = pneg %p413
        %p799 = pneg %p410
        %p800 = pneg %p434
        %p801 = pneg %p431
        %p802 = pneg %p455
        %p803 = pneg %p452
        %p804 = pneg %p476
        %p805 = pneg %p473
        %p806 = pneg %p497
        %p807 = pneg %p494
        %p808 = pneg %p518
        %p809 = pneg %p515
        %p810 = pneg %p539
        %p811 = pneg %p536
        %p812 = pneg %p560
        %p813 = pneg %p557
        %p814 = pneg %p586
        %p815 = pneg %p583
        %s816 = sand.u32 %s573, 1
        %s817 = scalar_lea.sflag [#allocation3], %s816
        %s818 = sand.u32 %s573, 1
        %s819 = smul.addr %s818, 8
        %s820 = scalar_lea.vmem [#allocation2], %s819
        %p821 = pneg %p612
        %p822 = pneg %p609
        %s823 = sand.u32 %s599, 1
        %s824 = sand.u32 %s599, 1
        %s825 = smul.addr %s824, 16
        %s826 = scalar_lea.vmem [#allocation4], %s825
        %p827 = pneg %p638
        %p828 = pneg %p635
        %s829 = sand.u32 %s625, 1
        %s830 = sand.u32 %s625, 1
        %s831 = smul.addr %s830, 16
        %s832 = scalar_lea.vmem [#allocation5], %s831
        %p833 = scmp.lt.s32.totalorder %s41, 1
        %s834 = scalar_select %p833, %s41, 1
        %s835 = smul.addr %s834, 8
        %s836 = scalar_lea.vmem %s0, %s835
        %p837 = scmp.lt.s32.totalorder %s41, 1
        %s838 = scalar_select %p837, %s41, 1
        %s839 = smul.addr %s838, 8
        %s840 = scalar_lea.vmem %s1, %s839
        %p841 = scmp.lt.s32.totalorder %s41, 1
        %s842 = scalar_select %p841, %s41, 1
        %s843 = smul.addr %s842, 8
        %s844 = scalar_lea.vmem %s2, %s843
        %p845 = scmp.lt.s32.totalorder %s41, 1
        %s846 = scalar_select %p845, %s41, 1
        %s847 = scalar_lea.vmem %s3, %s846
        %v848 = vld [vmem:[%s836] sm:$0xff]
        %v849 = vld [vmem:[%s840] sm:$0xff]
        %v850 = vld [vmem:[%s844] sm:$0xff]
        %v851 = vmul.f32 %v850, -1e+09
        %v852 = vld [vmem:[%s847] sm:$0x1]
        %v853 = vmul.f32 %v852, -1e+09
        %v854 = vld [vmem:[%s4] sm:$0xff]
        %v855 = vld [vmem:[%s4 + $0x8] sm:$0xff]
        %v856 = vld [vmem:[%s4 + $0x10] sm:$0xff]
        %v857 = vld [vmem:[%s4 + $0x18] sm:$0xff]
        %v858 = vld [vmem:[%s5] sm:$0x1]
        %v859 = vld [vmem:[%s6] sm:$0xff]
        %v860 = vld [vmem:[%s6 + $0x8] sm:$0xff]
        %v861 = vld [vmem:[%s6 + $0x10] sm:$0xff]
        %v862 = vld [vmem:[%s6 + $0x18] sm:$0xff]
        %v863 = vld [vmem:[%s7] sm:$0x1]
        %v865 = vperm.slane %v858, 0
        %vm867 = vcmask 261120
        %v869 = vsel %vm867, %v848, 0
        %871 = vmatpush.msra.mxu0 0.0
        %872 = vmatpush.msra.mxu0 0.0
        %873 = vmatpush.msra.mxu0 0.0
        %874 = vmatpush.msra.mxu0 0.0
        %875 = vmatpush.msra.mxu0 0.0
        %876 = vmatpush.msra.mxu0 0.0
        %877 = vmatpush.msra.mxu0 0.0
        %878 = vmatpush.msra.mxu0 0.0
        %879 = vmatpush.msra.mxu0 0.0
        %880 = vmatpush.msra.mxu0 0.0
        %881 = vmatpush.msra.mxu0 0.0
        %882 = vmatpush.msra.mxu0 0.0
        %883 = vmatpush.msra.mxu0 %v857
        %884 = vmatpush.msra.mxu0 %v856
        %885 = vmatpush.msra.mxu0 %v855
        %886 = vmatpush.msra.mxu0 %v854
        %887 = vmatmul.f32.gmra.mxu0 %v869
        %v888 = vpop.f32.mrf.mxu0
        %v889 = vadd.f32 %v865, %v888
        %890 = vdwg.mxu0
        %v891 = vmul.f32 %v889, 0.35355338
        %893 = vrot.lane.b32.xlu0 %v889, 96
        %v894 = vpop.permute.xlu0 %893
        %vm895 = vcmask 64512
        %v897 = vsel %vm895, %v891, 0
        %v899 = vsel %vm895, %v894, 0
        %901 = vmatpush.xpose.msra.mxu0 0.0
        %902 = vmatpush.xpose.msra.mxu0 0.0
        %903 = vmatpush.xpose.msra.mxu0 0.0
        %904 = vmatpush.xpose.msra.mxu0 0.0
        %905 = vmatpush.xpose.msra.mxu0 0.0
        %906 = vmatpush.xpose.msra.mxu0 0.0
        %907 = vmatpush.xpose.msra.mxu0 0.0
        %908 = vmatpush.xpose.msra.mxu0 0.0
        %909 = vmatpush.xpose.msra.mxu0 0.0
        %910 = vmatpush.xpose.msra.mxu0 0.0
        %911 = vmatpush.xpose.msra.mxu0 0.0
        %912 = vmatpush.xpose.msra.mxu0 0.0
        %913 = vmatpush.xpose.msra.mxu0 0.0
        %914 = vmatpush.xpose.msra.mxu0 0.0
        %915 = vmatpush.xpose.msra.mxu0 0.0
        %916 = vmatpush.xpose.msra.mxu0 %v899
        %917 = vmatmul.f32.gmra.mxu0 %v897
        %v918 = vpop.f32.mrf.mxu0
        %v919 = vadd.f32 %v851, %v918
        %920 = vdwg.mxu0
        %v921 = vsel %vm895, %v919, -inf
        %922 = vmax.xlane.f32.xlu0 %v921
        %v923 = vpop.xlane.xlu0 %922
        %v924 = vsub.f32 %v919, %v923
        %v925 = vmul.f32 %v924, 1.442695
        %v926 = vpow.pop %v925
        %v927 = vsel %vm895, %v926, 0.0
        %928 = vadd.xlane.f32.xlu0 %v927
        %v929 = vpop.xlane.xlu0 %928
        %v930 = vrcp.pop %v929
        %v931 = vmul.f32 %v926, %v930
        %932 = vrot.lane.b32.xlu0 %v889, 64
        %v933 = vpop.permute.xlu0 %932
        %v936 = vsel %vm895, %v931, 0
        %938 = vmatpush.msra.mxu0 0.0
        %939 = vmatpush.msra.mxu0 0.0
        %940 = vmatpush.msra.mxu0 0.0
        %941 = vmatpush.msra.mxu0 0.0
        %942 = vmatpush.msra.mxu0 0.0
        %943 = vmatpush.msra.mxu0 0.0
        %944 = vmatpush.msra.mxu0 0.0
        %945 = vmatpush.msra.mxu0 0.0
        %946 = vmatpush.msra.mxu0 0.0
        %947 = vmatpush.msra.mxu0 0.0
        %948 = vmatpush.msra.mxu0 0.0
        %949 = vmatpush.msra.mxu0 0.0
        %950 = vmatpush.msra.mxu0 0.0
        %951 = vmatpush.msra.mxu0 0.0
        %952 = vmatpush.msra.mxu0 0.0
        %953 = vmatpush.msra.mxu0 %v933
        %954 = vmatmul.f32.gmra.mxu0 %v936
        %v955 = vpop.f32.mrf.mxu0
        %v956 = vadd.f32 0.0, %v955
        %957 = vdwg.mxu0
        %958 = vrot.lane.b32.xlu0 %v891, 120
        %v959 = vpop.permute.xlu0 %958
        %960 = vrot.lane.b32.xlu0 %v889, 88
        %v961 = vpop.permute.xlu0 %960
        %v962 = vsel %vm895, %v959, 0
        %v964 = vsel %vm895, %v961, 0
        %966 = vmatpush.xpose.msra.mxu0 0.0
        %967 = vmatpush.xpose.msra.mxu0 0.0
        %968 = vmatpush.xpose.msra.mxu0 0.0
        %969 = vmatpush.xpose.msra.mxu0 0.0
        %970 = vmatpush.xpose.msra.mxu0 0.0
        %971 = vmatpush.xpose.msra.mxu0 0.0
        %972 = vmatpush.xpose.msra.mxu0 0.0
        %973 = vmatpush.xpose.msra.mxu0 0.0
        %974 = vmatpush.xpose.msra.mxu0 0.0
        %975 = vmatpush.xpose.msra.mxu0 0.0
        %976 = vmatpush.xpose.msra.mxu0 0.0
        %977 = vmatpush.xpose.msra.mxu0 0.0
        %978 = vmatpush.xpose.msra.mxu0 0.0
        %979 = vmatpush.xpose.msra.mxu0 0.0
        %980 = vmatpush.xpose.msra.mxu0 0.0
        %981 = vmatpush.xpose.msra.mxu0 %v964
        %982 = vmatmul.f32.gmra.mxu0 %v962
        %v983 = vpop.f32.mrf.mxu0
        %v984 = vadd.f32 %v851, %v983
        %985 = vdwg.mxu0
        %v986 = vsel %vm895, %v984, -inf
        %987 = vmax.xlane.f32.xlu0 %v986
        %v988 = vpop.xlane.xlu0 %987
        %v989 = vsub.f32 %v984, %v988
        %v990 = vmul.f32 %v989, 1.442695
        %v991 = vpow.pop %v990
        %v992 = vsel %vm895, %v991, 0.0
        %993 = vadd.xlane.f32.xlu0 %v992
        %v994 = vpop.xlane.xlu0 %993
        %v995 = vrcp.pop %v994
        %v996 = vmul.f32 %v991, %v995
        %997 = vrot.lane.b32.xlu0 %v889, 56
        %v998 = vpop.permute.xlu0 %997
        %v1001 = vsel %vm895, %v996, 0
        %1003 = vmatpush.msra.mxu0 0.0
        %1004 = vmatpush.msra.mxu0 0.0
        %1005 = vmatpush.msra.mxu0 0.0
        %1006 = vmatpush.msra.mxu0 0.0
        %1007 = vmatpush.msra.mxu0 0.0
        %1008 = vmatpush.msra.mxu0 0.0
        %1009 = vmatpush.msra.mxu0 0.0
        %1010 = vmatpush.msra.mxu0 0.0
        %1011 = vmatpush.msra.mxu0 0.0
        %1012 = vmatpush.msra.mxu0 0.0
        %1013 = vmatpush.msra.mxu0 0.0
        %1014 = vmatpush.msra.mxu0 0.0
        %1015 = vmatpush.msra.mxu0 0.0
        %1016 = vmatpush.msra.mxu0 0.0
        %1017 = vmatpush.msra.mxu0 0.0
        %1018 = vmatpush.msra.mxu0 %v998
        %1019 = vmatmul.f32.gmra.mxu0 %v1001
        %v1020 = vpop.f32.mrf.mxu0
        %v1021 = vadd.f32 0.0, %v1020
        %1022 = vdwg.mxu0
        %1023 = vrot.lane.b32.xlu0 %v891, 112
        %v1024 = vpop.permute.xlu0 %1023
        %1025 = vrot.lane.b32.xlu0 %v889, 80
        %v1026 = vpop.permute.xlu0 %1025
        %v1027 = vsel %vm895, %v1024, 0
        %v1029 = vsel %vm895, %v1026, 0
        %1031 = vmatpush.xpose.msra.mxu0 0.0
        %1032 = vmatpush.xpose.msra.mxu0 0.0
        %1033 = vmatpush.xpose.msra.mxu0 0.0
        %1034 = vmatpush.xpose.msra.mxu0 0.0
        %1035 = vmatpush.xpose.msra.mxu0 0.0
        %1036 = vmatpush.xpose.msra.mxu0 0.0
        %1037 = vmatpush.xpose.msra.mxu0 0.0
        %1038 = vmatpush.xpose.msra.mxu0 0.0
        %1039 = vmatpush.xpose.msra.mxu0 0.0
        %1040 = vmatpush.xpose.msra.mxu0 0.0
        %1041 = vmatpush.xpose.msra.mxu0 0.0
        %1042 = vmatpush.xpose.msra.mxu0 0.0
        %1043 = vmatpush.xpose.msra.mxu0 0.0
        %1044 = vmatpush.xpose.msra.mxu0 0.0
        %1045 = vmatpush.xpose.msra.mxu0 0.0
        %1046 = vmatpush.xpose.msra.mxu0 %v1029
        %1047 = vmatmul.f32.gmra.mxu0 %v1027
        %v1048 = vpop.f32.mrf.mxu0
        %v1049 = vadd.f32 %v851, %v1048
        %1050 = vdwg.mxu0
        %v1051 = vsel %vm895, %v1049, -inf
        %1052 = vmax.xlane.f32.xlu0 %v1051
        %v1053 = vpop.xlane.xlu0 %1052
        %v1054 = vsub.f32 %v1049, %v1053
        %v1055 = vmul.f32 %v1054, 1.442695
        %v1056 = vpow.pop %v1055
        %v1057 = vsel %vm895, %v1056, 0.0
        %1058 = vadd.xlane.f32.xlu0 %v1057
        %v1059 = vpop.xlane.xlu0 %1058
        %v1060 = vrcp.pop %v1059
        %v1061 = vmul.f32 %v1056, %v1060
        %1062 = vrot.lane.b32.xlu0 %v889, 48
        %v1063 = vpop.permute.xlu0 %1062
        %v1066 = vsel %vm895, %v1061, 0
        %1068 = vmatpush.msra.mxu0 0.0
        %1069 = vmatpush.msra.mxu0 0.0
        %1070 = vmatpush.msra.mxu0 0.0
        %1071 = vmatpush.msra.mxu0 0.0
        %1072 = vmatpush.msra.mxu0 0.0
        %1073 = vmatpush.msra.mxu0 0.0
        %1074 = vmatpush.msra.mxu0 0.0
        %1075 = vmatpush.msra.mxu0 0.0
        %1076 = vmatpush.msra.mxu0 0.0
        %1077 = vmatpush.msra.mxu0 0.0
        %1078 = vmatpush.msra.mxu0 0.0
        %1079 = vmatpush.msra.mxu0 0.0
        %1080 = vmatpush.msra.mxu0 0.0
        %1081 = vmatpush.msra.mxu0 0.0
        %1082 = vmatpush.msra.mxu0 0.0
        %1083 = vmatpush.msra.mxu0 %v1063
        %1084 = vmatmul.f32.gmra.mxu0 %v1066
        %v1085 = vpop.f32.mrf.mxu0
        %v1086 = vadd.f32 0.0, %v1085
        %1087 = vdwg.mxu0
        %1088 = vrot.lane.b32.xlu0 %v891, 104
        %v1089 = vpop.permute.xlu0 %1088
        %1090 = vrot.lane.b32.xlu0 %v889, 72
        %v1091 = vpop.permute.xlu0 %1090
        %v1092 = vsel %vm895, %v1089, 0
        %v1094 = vsel %vm895, %v1091, 0
        %1096 = vmatpush.xpose.msra.mxu0 0.0
        %1097 = vmatpush.xpose.msra.mxu0 0.0
        %1098 = vmatpush.xpose.msra.mxu0 0.0
        %1099 = vmatpush.xpose.msra.mxu0 0.0
        %1100 = vmatpush.xpose.msra.mxu0 0.0
        %1101 = vmatpush.xpose.msra.mxu0 0.0
        %1102 = vmatpush.xpose.msra.mxu0 0.0
        %1103 = vmatpush.xpose.msra.mxu0 0.0
        %1104 = vmatpush.xpose.msra.mxu0 0.0
        %1105 = vmatpush.xpose.msra.mxu0 0.0
        %1106 = vmatpush.xpose.msra.mxu0 0.0
        %1107 = vmatpush.xpose.msra.mxu0 0.0
        %1108 = vmatpush.xpose.msra.mxu0 0.0
        %1109 = vmatpush.xpose.msra.mxu0 0.0
        %1110 = vmatpush.xpose.msra.mxu0 0.0
        %1111 = vmatpush.xpose.msra.mxu0 %v1094
        %1112 = vmatmul.f32.gmra.mxu0 %v1092
        %v1113 = vpop.f32.mrf.mxu0
        %v1114 = vadd.f32 %v851, %v1113
        %1115 = vdwg.mxu0
        %v1116 = vsel %vm895, %v1114, -inf
        %1117 = vmax.xlane.f32.xlu0 %v1116
        %v1118 = vpop.xlane.xlu0 %1117
        %v1119 = vsub.f32 %v1114, %v1118
        %v1120 = vmul.f32 %v1119, 1.442695
        %v1121 = vpow.pop %v1120
        %v1122 = vsel %vm895, %v1121, 0.0
        %1123 = vadd.xlane.f32.xlu0 %v1122
        %v1124 = vpop.xlane.xlu0 %1123
        %v1125 = vrcp.pop %v1124
        %v1126 = vmul.f32 %v1121, %v1125
        %1127 = vrot.lane.b32.xlu0 %v889, 40
        %v1128 = vpop.permute.xlu0 %1127
        %v1131 = vsel %vm895, %v1126, 0
        %1133 = vmatpush.msra.mxu0 0.0
        %1134 = vmatpush.msra.mxu0 0.0
        %1135 = vmatpush.msra.mxu0 0.0
        %1136 = vmatpush.msra.mxu0 0.0
        %1137 = vmatpush.msra.mxu0 0.0
        %1138 = vmatpush.msra.mxu0 0.0
        %1139 = vmatpush.msra.mxu0 0.0
        %1140 = vmatpush.msra.mxu0 0.0
        %1141 = vmatpush.msra.mxu0 0.0
        %1142 = vmatpush.msra.mxu0 0.0
        %1143 = vmatpush.msra.mxu0 0.0
        %1144 = vmatpush.msra.mxu0 0.0
        %1145 = vmatpush.msra.mxu0 0.0
        %1146 = vmatpush.msra.mxu0 0.0
        %1147 = vmatpush.msra.mxu0 0.0
        %1148 = vmatpush.msra.mxu0 %v1128
        %1149 = vmatmul.f32.gmra.mxu0 %v1131
        %v1150 = vpop.f32.mrf.mxu0
        %v1151 = vadd.f32 0.0, %v1150
        %1152 = vdwg.mxu0
        %1154 = vrot.lane.b32.xlu0 %v1021, 8
        %v1155 = vpop.permute.xlu0 %1154
        %1158 = vrot.lane.b32.xlu0 %v1086, 16
        %v1159 = vpop.permute.xlu0 %1158
        %1162 = vrot.lane.b32.xlu0 %v1151, 24
        %v1163 = vpop.permute.xlu0 %1162
        %v1165 = vsel %vm895, %v956, %v1155
        %vm1166 = vcmask 130048
        %v1167 = vsel %vm1166, %v1165, %v1159
        %vm1168 = vcmask 195584
        %v1169 = vsel %vm1168, %v1167, %v1163
        %v1171 = vperm.slane %v863, 0
        %v1174 = vsel %vm867, %v1169, 0
        %1176 = vmatpush.msra.mxu0 0.0
        %1177 = vmatpush.msra.mxu0 0.0
        %1178 = vmatpush.msra.mxu0 0.0
        %1179 = vmatpush.msra.mxu0 0.0
        %1180 = vmatpush.msra.mxu0 0.0
        %1181 = vmatpush.msra.mxu0 0.0
        %1182 = vmatpush.msra.mxu0 0.0
        %1183 = vmatpush.msra.mxu0 0.0
        %1184 = vmatpush.msra.mxu0 0.0
        %1185 = vmatpush.msra.mxu0 0.0
        %1186 = vmatpush.msra.mxu0 0.0
        %1187 = vmatpush.msra.mxu0 0.0
        %1188 = vmatpush.msra.mxu0 %v862
        %1189 = vmatpush.msra.mxu0 %v861
        %1190 = vmatpush.msra.mxu0 %v860
        %1191 = vmatpush.msra.mxu0 %v859
        %1192 = vmatmul.f32.gmra.mxu0 %v1174
        %v1193 = vpop.f32.mrf.mxu0
        %v1194 = vadd.f32 %v1171, %v1193
        %1195 = vdwg.mxu0
        %1196 = vrot.lane.b32.xlu0 %v996, 8
        %v1197 = vpop.permute.xlu0 %1196
        %1199 = vrot.lane.b32.xlu0 %v1061, 16
        %v1200 = vpop.permute.xlu0 %1199
        %1202 = vrot.lane.b32.xlu0 %v1126, 24
        %v1203 = vpop.permute.xlu0 %1202
        %v1205 = vsel %vm895, %v931, %v1197
        %v1206 = vsel %vm1166, %v1205, %v1200
        %v1207 = vsel %vm1168, %v1206, %v1203
        %v1208 = vadd.f32 %v1194, %v848
        %v1209 = vld [vmem:[%s16] sm:$0xff]
        %v1210 = vld [vmem:[%s17] sm:$0xff]
        %v1211 = vsel %vm867, %v1208, 0.0
        %1212 = vadd.xlane.f32.xlu0 %v1211
        %v1213 = vpop.xlane.xlu0 %1212
        %v1214 = vrot.slane %v1213, 4
        %v1215 = vadd.f32 %v1213, %v1214
        %v1216 = vrot.slane %v1215, 2
        %v1217 = vadd.f32 %v1215, %v1216
        %v1218 = vrot.slane %v1217, 1
        %v1219 = vadd.f32 %v1217, %v1218
        %s1220 = vtos %v1219
        %v1221 = vrcp.pop 256.0
        %v1222 = vmul.f32 256.0, %v1221
        %v1223 = vsub.f32 1.0, %v1222
        %v1224 = vmul.f32 %v1221, %v1223
        %v1225 = vadd.f32 %v1221, %v1224
        %vm1226 = vweird.f32 %v1221
        %v1227 = vsel %vm1226, %v1221, %v1225
        %s1228 = vtos %v1227
        %s1229 = smul.f32 %s1220, %s1228
        %v1230 = vstv %s1229
        %v1231 = vsub.f32 %v1208, %v1230
        %v1232 = vmul.f32 %v1231, %v1231
        %v1233 = vsel %vm867, %v1232, 0.0
        %1234 = vadd.xlane.f32.xlu0 %v1233
        %v1235 = vpop.xlane.xlu0 %1234
        %v1236 = vrot.slane %v1235, 4
        %v1237 = vadd.f32 %v1235, %v1236
        %v1238 = vrot.slane %v1237, 2
        %v1239 = vadd.f32 %v1237, %v1238
        %v1240 = vrot.slane %v1239, 1
        %v1241 = vadd.f32 %v1239, %v1240
        %s1242 = vtos %v1241
        %v1243 = vrcp.pop 256.0
        %v1244 = vmul.f32 256.0, %v1243
        %v1245 = vsub.f32 1.0, %v1244
        %v1246 = vmul.f32 %v1243, %v1245
        %v1247 = vadd.f32 %v1243, %v1246
        %vm1248 = vweird.f32 %v1243
        %v1249 = vsel %vm1248, %v1243, %v1247
        %s1250 = vtos %v1249
        %s1251 = smul.f32 %s1242, %s1250
        %s1252 = sadd.f32 %s1251, 1e-05
        %v1253 = vstv %s1252
        %v1254 = vrsqrt.pop %v1253
        %v1255 = vmul.f32 %v1254, %v1253
        %v1256 = vmul.f32 %v1255, %v1254
        %v1257 = vmul.f32 0.5, %v1256
        %v1258 = vsub.f32 1.5, %v1257
        %v1259 = vmul.f32 %v1254, %v1258
        %vm1260 = vweird.f32 %v1253
        %vm1261 = vweird.f32 %v1254
        %vm1262 = vmor %vm1260, %vm1261
        %v1263 = vsel %vm1262, %v1254, %v1259
        %s1264 = vtos %v1263
        %v1265 = vstv %s1264
        %v1266 = vmul.f32 %v1231, %v1265
        %v1267 = vmul.f32 %v1266, %v1209
        %v1268 = vadd.f32 %v1267, %v1210
        %v1269 = vld [vmem:[%s8] sm:$0xff]
        %v1270 = vld [vmem:[%s8 + $0x8] sm:$0xff]
        %v1271 = vld [vmem:[%s8 + $0x10] sm:$0xff]
        %v1272 = vld [vmem:[%s8 + $0x18] sm:$0xff]
        %v1273 = vld [vmem:[%s9] sm:$0x1]
        %v1274 = vld [vmem:[%s10] sm:$0xff]
        %v1275 = vld [vmem:[%s10 + $0x8] sm:$0xff]
        %v1276 = vld [vmem:[%s10 + $0x10] sm:$0xff]
        %v1277 = vld [vmem:[%s10 + $0x18] sm:$0xff]
        %v1278 = vld [vmem:[%s11] sm:$0x1]
        %v1280 = vperm.slane %v1273, 0
        %v1283 = vsel %vm867, %v1268, 0
        %1285 = vmatpush.msra.mxu0 0.0
        %1286 = vmatpush.msra.mxu0 0.0
        %1287 = vmatpush.msra.mxu0 0.0
        %1288 = vmatpush.msra.mxu0 0.0
        %1289 = vmatpush.msra.mxu0 0.0
        %1290 = vmatpush.msra.mxu0 0.0
        %1291 = vmatpush.msra.mxu0 0.0
        %1292 = vmatpush.msra.mxu0 0.0
        %1293 = vmatpush.msra.mxu0 0.0
        %1294 = vmatpush.msra.mxu0 0.0
        %1295 = vmatpush.msra.mxu0 0.0
        %1296 = vmatpush.msra.mxu0 0.0
        %1297 = vmatpush.msra.mxu0 %v1272
        %1298 = vmatpush.msra.mxu0 %v1271
        %1299 = vmatpush.msra.mxu0 %v1270
        %1300 = vmatpush.msra.mxu0 %v1269
        %1301 = vmatmul.f32.gmra.mxu0 %v1283
        %v1302 = vpop.f32.mrf.mxu0
        %v1303 = vadd.f32 %v1280, %v1302
        %1304 = vdwg.mxu0
        %1309 = vrot.lane.b32.xlu0 %v1269, 96
        %v1310 = vpop.permute.xlu0 %1309
        %1311 = vrot.lane.b32.xlu0 %v1270, 96
        %v1312 = vpop.permute.xlu0 %1311
        %1313 = vrot.lane.b32.xlu0 %v1271, 96
        %v1314 = vpop.permute.xlu0 %1313
        %1315 = vrot.lane.b32.xlu0 %v1272, 96
        %v1316 = vpop.permute.xlu0 %1315
        %1321 = vrot.lane.b32.xlu0 %v1280, 96
        %v1322 = vpop.permute.xlu0 %1321
        %v1325 = vsel %vm867, %v849, 0
        %1327 = vmatpush.msra.mxu0 0.0
        %1328 = vmatpush.msra.mxu0 0.0
        %1329 = vmatpush.msra.mxu0 0.0
        %1330 = vmatpush.msra.mxu0 0.0
        %1331 = vmatpush.msra.mxu0 0.0
        %1332 = vmatpush.msra.mxu0 0.0
        %1333 = vmatpush.msra.mxu0 0.0
        %1334 = vmatpush.msra.mxu0 0.0
        %1335 = vmatpush.msra.mxu0 0.0
        %1336 = vmatpush.msra.mxu0 0.0
        %1337 = vmatpush.msra.mxu0 0.0
        %1338 = vmatpush.msra.mxu0 0.0
        %1339 = vmatpush.msra.mxu0 %v1316
        %1340 = vmatpush.msra.mxu0 %v1314
        %1341 = vmatpush.msra.mxu0 %v1312
        %1342 = vmatpush.msra.mxu0 %v1310
        %1343 = vmatmul.f32.gmra.mxu0 %v1325
        %v1344 = vpop.f32.mrf.mxu0
        %v1345 = vadd.f32 %v1322, %v1344
        %1346 = vdwg.mxu0
        %v1347 = vmul.f32 %v1303, 0.35355338
        %v1349 = vperm.slane %v853, 0
        %v1352 = vsel %vm895, %v1347, 0
        %v1355 = vsel %vm895, %v1345, 0
        %1357 = vmatpush.xpose.msra.mxu0 0.0
        %1358 = vmatpush.xpose.msra.mxu0 0.0
        %1359 = vmatpush.xpose.msra.mxu0 0.0
        %1360 = vmatpush.xpose.msra.mxu0 0.0
        %1361 = vmatpush.xpose.msra.mxu0 0.0
        %1362 = vmatpush.xpose.msra.mxu0 0.0
        %1363 = vmatpush.xpose.msra.mxu0 0.0
        %1364 = vmatpush.xpose.msra.mxu0 0.0
        %1365 = vmatpush.xpose.msra.mxu0 0.0
        %1366 = vmatpush.xpose.msra.mxu0 0.0
        %1367 = vmatpush.xpose.msra.mxu0 0.0
        %1368 = vmatpush.xpose.msra.mxu0 0.0
        %1369 = vmatpush.xpose.msra.mxu0 0.0
        %1370 = vmatpush.xpose.msra.mxu0 0.0
        %1371 = vmatpush.xpose.msra.mxu0 0.0
        %1372 = vmatpush.xpose.msra.mxu0 %v1355
        %1373 = vmatmul.f32.gmra.mxu0 %v1352
        %v1374 = vpop.f32.mrf.mxu0
        %v1375 = vadd.f32 %v1349, %v1374
        %1376 = vdwg.mxu0
        %v1377 = vsel %vm895, %v1375, -inf
        %1378 = vmax.xlane.f32.xlu0 %v1377
        %v1379 = vpop.xlane.xlu0 %1378
        %v1380 = vsub.f32 %v1375, %v1379
        %v1381 = vmul.f32 %v1380, 1.442695
        %v1382 = vpow.pop %v1381
        %v1383 = vsel %vm895, %v1382, 0.0
        %1384 = vadd.xlane.f32.xlu0 %v1383
        %v1385 = vpop.xlane.xlu0 %1384
        %v1386 = vrcp.pop %v1385
        %v1387 = vmul.f32 %v1382, %v1386
        %1388 = vrot.lane.b32.xlu0 %v1345, 96
        %v1389 = vpop.permute.xlu0 %1388
        %v1392 = vsel %vm895, %v1387, 0
        %1394 = vmatpush.msra.mxu0 0.0
        %1395 = vmatpush.msra.mxu0 0.0
        %1396 = vmatpush.msra.mxu0 0.0
        %1397 = vmatpush.msra.mxu0 0.0
        %1398 = vmatpush.msra.mxu0 0.0
        %1399 = vmatpush.msra.mxu0 0.0
        %1400 = vmatpush.msra.mxu0 0.0
        %1401 = vmatpush.msra.mxu0 0.0
        %1402 = vmatpush.msra.mxu0 0.0
        %1403 = vmatpush.msra.mxu0 0.0
        %1404 = vmatpush.msra.mxu0 0.0
        %1405 = vmatpush.msra.mxu0 0.0
        %1406 = vmatpush.msra.mxu0 0.0
        %1407 = vmatpush.msra.mxu0 0.0
        %1408 = vmatpush.msra.mxu0 0.0
        %1409 = vmatpush.msra.mxu0 %v1389
        %1410 = vmatmul.f32.gmra.mxu0 %v1392
        %v1411 = vpop.f32.mrf.mxu0
        %v1412 = vadd.f32 0.0, %v1411
        %1413 = vdwg.mxu0
        %1414 = vrot.lane.b32.xlu0 %v1347, 120
        %v1415 = vpop.permute.xlu0 %1414
        %1416 = vrot.lane.b32.xlu0 %v1345, 120
        %v1417 = vpop.permute.xlu0 %1416
        %v1418 = vsel %vm895, %v1415, 0
        %v1420 = vsel %vm895, %v1417, 0
        %1422 = vmatpush.xpose.msra.mxu0 0.0
        %1423 = vmatpush.xpose.msra.mxu0 0.0
        %1424 = vmatpush.xpose.msra.mxu0 0.0
        %1425 = vmatpush.xpose.msra.mxu0 0.0
        %1426 = vmatpush.xpose.msra.mxu0 0.0
        %1427 = vmatpush.xpose.msra.mxu0 0.0
        %1428 = vmatpush.xpose.msra.mxu0 0.0
        %1429 = vmatpush.xpose.msra.mxu0 0.0
        %1430 = vmatpush.xpose.msra.mxu0 0.0
        %1431 = vmatpush.xpose.msra.mxu0 0.0
        %1432 = vmatpush.xpose.msra.mxu0 0.0
        %1433 = vmatpush.xpose.msra.mxu0 0.0
        %1434 = vmatpush.xpose.msra.mxu0 0.0
        %1435 = vmatpush.xpose.msra.mxu0 0.0
        %1436 = vmatpush.xpose.msra.mxu0 0.0
        %1437 = vmatpush.xpose.msra.mxu0 %v1420
        %1438 = vmatmul.f32.gmra.mxu0 %v1418
        %v1439 = vpop.f32.mrf.mxu0
        %v1440 = vadd.f32 %v1349, %v1439
        %1441 = vdwg.mxu0
        %v1442 = vsel %vm895, %v1440, -inf
        %1443 = vmax.xlane.f32.xlu0 %v1442
        %v1444 = vpop.xlane.xlu0 %1443
        %v1445 = vsub.f32 %v1440, %v1444
        %v1446 = vmul.f32 %v1445, 1.442695
        %v1447 = vpow.pop %v1446
        %v1448 = vsel %vm895, %v1447, 0.0
        %1449 = vadd.xlane.f32.xlu0 %v1448
        %v1450 = vpop.xlane.xlu0 %1449
        %v1451 = vrcp.pop %v1450
        %v1452 = vmul.f32 %v1447, %v1451
        %1453 = vrot.lane.b32.xlu0 %v1345, 88
        %v1454 = vpop.permute.xlu0 %1453
        %v1457 = vsel %vm895, %v1452, 0
        %1459 = vmatpush.msra.mxu0 0.0
        %1460 = vmatpush.msra.mxu0 0.0
        %1461 = vmatpush.msra.mxu0 0.0
        %1462 = vmatpush.msra.mxu0 0.0
        %1463 = vmatpush.msra.mxu0 0.0
        %1464 = vmatpush.msra.mxu0 0.0
        %1465 = vmatpush.msra.mxu0 0.0
        %1466 = vmatpush.msra.mxu0 0.0
        %1467 = vmatpush.msra.mxu0 0.0
        %1468 = vmatpush.msra.mxu0 0.0
        %1469 = vmatpush.msra.mxu0 0.0
        %1470 = vmatpush.msra.mxu0 0.0
        %1471 = vmatpush.msra.mxu0 0.0
        %1472 = vmatpush.msra.mxu0 0.0
        %1473 = vmatpush.msra.mxu0 0.0
        %1474 = vmatpush.msra.mxu0 %v1454
        %1475 = vmatmul.f32.gmra.mxu0 %v1457
        %v1476 = vpop.f32.mrf.mxu0
        %v1477 = vadd.f32 0.0, %v1476
        %1478 = vdwg.mxu0
        %1479 = vrot.lane.b32.xlu0 %v1347, 112
        %v1480 = vpop.permute.xlu0 %1479
        %1481 = vrot.lane.b32.xlu0 %v1345, 112
        %v1482 = vpop.permute.xlu0 %1481
        %v1483 = vsel %vm895, %v1480, 0
        %v1485 = vsel %vm895, %v1482, 0
        %1487 = vmatpush.xpose.msra.mxu0 0.0
        %1488 = vmatpush.xpose.msra.mxu0 0.0
        %1489 = vmatpush.xpose.msra.mxu0 0.0
        %1490 = vmatpush.xpose.msra.mxu0 0.0
        %1491 = vmatpush.xpose.msra.mxu0 0.0
        %1492 = vmatpush.xpose.msra.mxu0 0.0
        %1493 = vmatpush.xpose.msra.mxu0 0.0
        %1494 = vmatpush.xpose.msra.mxu0 0.0
        %1495 = vmatpush.xpose.msra.mxu0 0.0
        %1496 = vmatpush.xpose.msra.mxu0 0.0
        %1497 = vmatpush.xpose.msra.mxu0 0.0
        %1498 = vmatpush.xpose.msra.mxu0 0.0
        %1499 = vmatpush.xpose.msra.mxu0 0.0
        %1500 = vmatpush.xpose.msra.mxu0 0.0
        %1501 = vmatpush.xpose.msra.mxu0 0.0
        %1502 = vmatpush.xpose.msra.mxu0 %v1485
        %1503 = vmatmul.f32.gmra.mxu0 %v1483
        %v1504 = vpop.f32.mrf.mxu0
        %v1505 = vadd.f32 %v1349, %v1504
        %1506 = vdwg.mxu0
        %v1507 = vsel %vm895, %v1505, -inf
        %1508 = vmax.xlane.f32.xlu0 %v1507
        %v1509 = vpop.xlane.xlu0 %1508
        %v1510 = vsub.f32 %v1505, %v1509
        %v1511 = vmul.f32 %v1510, 1.442695
        %v1512 = vpow.pop %v1511
        %v1513 = vsel %vm895, %v1512, 0.0
        %1514 = vadd.xlane.f32.xlu0 %v1513
        %v1515 = vpop.xlane.xlu0 %1514
        %v1516 = vrcp.pop %v1515
        %v1517 = vmul.f32 %v1512, %v1516
        %1518 = vrot.lane.b32.xlu0 %v1345, 80
        %v1519 = vpop.permute.xlu0 %1518
        %v1522 = vsel %vm895, %v1517, 0
        %1524 = vmatpush.msra.mxu0 0.0
        %1525 = vmatpush.msra.mxu0 0.0
        %1526 = vmatpush.msra.mxu0 0.0
        %1527 = vmatpush.msra.mxu0 0.0
        %1528 = vmatpush.msra.mxu0 0.0
        %1529 = vmatpush.msra.mxu0 0.0
        %1530 = vmatpush.msra.mxu0 0.0
        %1531 = vmatpush.msra.mxu0 0.0
        %1532 = vmatpush.msra.mxu0 0.0
        %1533 = vmatpush.msra.mxu0 0.0
        %1534 = vmatpush.msra.mxu0 0.0
        %1535 = vmatpush.msra.mxu0 0.0
        %1536 = vmatpush.msra.mxu0 0.0
        %1537 = vmatpush.msra.mxu0 0.0
        %1538 = vmatpush.msra.mxu0 0.0
        %1539 = vmatpush.msra.mxu0 %v1519
        %1540 = vmatmul.f32.gmra.mxu0 %v1522
        %v1541 = vpop.f32.mrf.mxu0
        %v1542 = vadd.f32 0.0, %v1541
        %1543 = vdwg.mxu0
        %1544 = vrot.lane.b32.xlu0 %v1347, 104
        %v1545 = vpop.permute.xlu0 %1544
        %1546 = vrot.lane.b32.xlu0 %v1345, 104
        %v1547 = vpop.permute.xlu0 %1546
        %v1548 = vsel %vm895, %v1545, 0
        %v1550 = vsel %vm895, %v1547, 0
        %1552 = vmatpush.xpose.msra.mxu0 0.0
        %1553 = vmatpush.xpose.msra.mxu0 0.0
        %1554 = vmatpush.xpose.msra.mxu0 0.0
        %1555 = vmatpush.xpose.msra.mxu0 0.0
        %1556 = vmatpush.xpose.msra.mxu0 0.0
        %1557 = vmatpush.xpose.msra.mxu0 0.0
        %1558 = vmatpush.xpose.msra.mxu0 0.0
        %1559 = vmatpush.xpose.msra.mxu0 0.0
        %1560 = vmatpush.xpose.msra.mxu0 0.0
        %1561 = vmatpush.xpose.msra.mxu0 0.0
        %1562 = vmatpush.xpose.msra.mxu0 0.0
        %1563 = vmatpush.xpose.msra.mxu0 0.0
        %1564 = vmatpush.xpose.msra.mxu0 0.0
        %1565 = vmatpush.xpose.msra.mxu0 0.0
        %1566 = vmatpush.xpose.msra.mxu0 0.0
        %1567 = vmatpush.xpose.msra.mxu0 %v1550
        %1568 = vmatmul.f32.gmra.mxu0 %v1548
        %v1569 = vpop.f32.mrf.mxu0
        %v1570 = vadd.f32 %v1349, %v1569
        %1571 = vdwg.mxu0
        %v1572 = vsel %vm895, %v1570, -inf
        %1573 = vmax.xlane.f32.xlu0 %v1572
        %v1574 = vpop.xlane.xlu0 %1573
        %v1575 = vsub.f32 %v1570, %v1574
        %v1576 = vmul.f32 %v1575, 1.442695
        %v1577 = vpow.pop %v1576
        %v1578 = vsel %vm895, %v1577, 0.0
        %1579 = vadd.xlane.f32.xlu0 %v1578
        %v1580 = vpop.xlane.xlu0 %1579
        %v1581 = vrcp.pop %v1580
        %v1582 = vmul.f32 %v1577, %v1581
        %1583 = vrot.lane.b32.xlu0 %v1345, 72
        %v1584 = vpop.permute.xlu0 %1583
        %v1587 = vsel %vm895, %v1582, 0
        %1589 = vmatpush.msra.mxu0 0.0
        %1590 = vmatpush.msra.mxu0 0.0
        %1591 = vmatpush.msra.mxu0 0.0
        %1592 = vmatpush.msra.mxu0 0.0
        %1593 = vmatpush.msra.mxu0 0.0
        %1594 = vmatpush.msra.mxu0 0.0
        %1595 = vmatpush.msra.mxu0 0.0
        %1596 = vmatpush.msra.mxu0 0.0
        %1597 = vmatpush.msra.mxu0 0.0
        %1598 = vmatpush.msra.mxu0 0.0
        %1599 = vmatpush.msra.mxu0 0.0
        %1600 = vmatpush.msra.mxu0 0.0
        %1601 = vmatpush.msra.mxu0 0.0
        %1602 = vmatpush.msra.mxu0 0.0
        %1603 = vmatpush.msra.mxu0 0.0
        %1604 = vmatpush.msra.mxu0 %v1584
        %1605 = vmatmul.f32.gmra.mxu0 %v1587
        %v1606 = vpop.f32.mrf.mxu0
        %v1607 = vadd.f32 0.0, %v1606
        %1608 = vdwg.mxu0
        %1610 = vrot.lane.b32.xlu0 %v1477, 8
        %v1611 = vpop.permute.xlu0 %1610
        %1614 = vrot.lane.b32.xlu0 %v1542, 16
        %v1615 = vpop.permute.xlu0 %1614
        %1618 = vrot.lane.b32.xlu0 %v1607, 24
        %v1619 = vpop.permute.xlu0 %1618
        %v1621 = vsel %vm895, %v1412, %v1611
        %v1622 = vsel %vm1166, %v1621, %v1615
        %v1623 = vsel %vm1168, %v1622, %v1619
        %v1625 = vperm.slane %v1278, 0
        %v1628 = vsel %vm867, %v1623, 0
        %1630 = vmatpush.msra.mxu0 0.0
        %1631 = vmatpush.msra.mxu0 0.0
        %1632 = vmatpush.msra.mxu0 0.0
        %1633 = vmatpush.msra.mxu0 0.0
        %1634 = vmatpush.msra.mxu0 0.0
        %1635 = vmatpush.msra.mxu0 0.0
        %1636 = vmatpush.msra.mxu0 0.0
        %1637 = vmatpush.msra.mxu0 0.0
        %1638 = vmatpush.msra.mxu0 0.0
        %1639 = vmatpush.msra.mxu0 0.0
        %1640 = vmatpush.msra.mxu0 0.0
        %1641 = vmatpush.msra.mxu0 0.0
        %1642 = vmatpush.msra.mxu0 %v1277
        %1643 = vmatpush.msra.mxu0 %v1276
        %1644 = vmatpush.msra.mxu0 %v1275
        %1645 = vmatpush.msra.mxu0 %v1274
        %1646 = vmatmul.f32.gmra.mxu0 %v1628
        %v1647 = vpop.f32.mrf.mxu0
        %v1648 = vadd.f32 %v1625, %v1647
        %1649 = vdwg.mxu0
        %1650 = vrot.lane.b32.xlu0 %v1452, 8
        %v1651 = vpop.permute.xlu0 %1650
        %1653 = vrot.lane.b32.xlu0 %v1517, 16
        %v1654 = vpop.permute.xlu0 %1653
        %1656 = vrot.lane.b32.xlu0 %v1582, 24
        %v1657 = vpop.permute.xlu0 %1656
        %v1659 = vsel %vm895, %v1387, %v1651
        %v1660 = vsel %vm1166, %v1659, %v1654
        %v1661 = vsel %vm1168, %v1660, %v1657
        %v1662 = vadd.f32 %v1648, %v1268
        %v1663 = vld [vmem:[%s18] sm:$0xff]
        %v1664 = vld [vmem:[%s19] sm:$0xff]
        %v1665 = vsel %vm867, %v1662, 0.0
        %1666 = vadd.xlane.f32.xlu0 %v1665
        %v1667 = vpop.xlane.xlu0 %1666
        %v1668 = vrot.slane %v1667, 4
        %v1669 = vadd.f32 %v1667, %v1668
        %v1670 = vrot.slane %v1669, 2
        %v1671 = vadd.f32 %v1669, %v1670
        %v1672 = vrot.slane %v1671, 1
        %v1673 = vadd.f32 %v1671, %v1672
        %s1674 = vtos %v1673
        %v1675 = vrcp.pop 256.0
        %v1676 = vmul.f32 256.0, %v1675
        %v1677 = vsub.f32 1.0, %v1676
        %v1678 = vmul.f32 %v1675, %v1677
        %v1679 = vadd.f32 %v1675, %v1678
        %vm1680 = vweird.f32 %v1675
        %v1681 = vsel %vm1680, %v1675, %v1679
        %s1682 = vtos %v1681
        %s1683 = smul.f32 %s1674, %s1682
        %v1684 = vstv %s1683
        %v1685 = vsub.f32 %v1662, %v1684
        %v1686 = vmul.f32 %v1685, %v1685
        %v1687 = vsel %vm867, %v1686, 0.0
        %1688 = vadd.xlane.f32.xlu0 %v1687
        %v1689 = vpop.xlane.xlu0 %1688
        %v1690 = vrot.slane %v1689, 4
        %v1691 = vadd.f32 %v1689, %v1690
        %v1692 = vrot.slane %v1691, 2
        %v1693 = vadd.f32 %v1691, %v1692
        %v1694 = vrot.slane %v1693, 1
        %v1695 = vadd.f32 %v1693, %v1694
        %s1696 = vtos %v1695
        %v1697 = vrcp.pop 256.0
        %v1698 = vmul.f32 256.0, %v1697
        %v1699 = vsub.f32 1.0, %v1698
        %v1700 = vmul.f32 %v1697, %v1699
        %v1701 = vadd.f32 %v1697, %v1700
        %vm1702 = vweird.f32 %v1697
        %v1703 = vsel %vm1702, %v1697, %v1701
        %s1704 = vtos %v1703
        %s1705 = smul.f32 %s1696, %s1704
        %s1706 = sadd.f32 %s1705, 1e-05
        %v1707 = vstv %s1706
        %v1708 = vrsqrt.pop %v1707
        %v1709 = vmul.f32 %v1708, %v1707
        %v1710 = vmul.f32 %v1709, %v1708
        %v1711 = vmul.f32 0.5, %v1710
        %v1712 = vsub.f32 1.5, %v1711
        %v1713 = vmul.f32 %v1708, %v1712
        %vm1714 = vweird.f32 %v1707
        %vm1715 = vweird.f32 %v1708
        %vm1716 = vmor %vm1714, %vm1715
        %v1717 = vsel %vm1716, %v1708, %v1713
        %s1718 = vtos %v1717
        %v1719 = vstv %s1718
        %v1720 = vmul.f32 %v1685, %v1719
        %v1721 = vmul.f32 %v1720, %v1663
        %v1722 = vadd.f32 %v1721, %v1664
        %v1723 = vld [vmem:[%s12] sm:$0xff]
        %v1724 = vld [vmem:[%s12 + $0x8] sm:$0xff]
        %v1725 = vld [vmem:[%s12 + $0x10] sm:$0xff]
        %v1726 = vld [vmem:[%s12 + $0x18] sm:$0xff]
        %v1727 = vld [vmem:[%s13] sm:$0x1]
        %v1728 = vld [vmem:[%s14] sm:$0xff]
        %v1729 = vld [vmem:[%s14 + $0x8] sm:$0xff]
        %v1730 = vld [vmem:[%s14 + $0x10] sm:$0xff]
        %v1731 = vld [vmem:[%s14 + $0x18] sm:$0xff]
        %v1732 = vld [vmem:[%s14 + $0x20] sm:$0xff]
        %v1733 = vld [vmem:[%s14 + $0x28] sm:$0xff]
        %v1734 = vld [vmem:[%s14 + $0x30] sm:$0xff]
        %v1735 = vld [vmem:[%s14 + $0x38] sm:$0xff]
        %v1736 = vld [vmem:[%s15] sm:$0x1]
        %v1738 = vperm.slane %v1727, 0
        %v1741 = vsel %vm867, %v1722, 0
        %1743 = vmatpush.msra.mxu0 0.0
        %1744 = vmatpush.msra.mxu0 0.0
        %1745 = vmatpush.msra.mxu0 0.0
        %1746 = vmatpush.msra.mxu0 0.0
        %1747 = vmatpush.msra.mxu0 0.0
        %1748 = vmatpush.msra.mxu0 0.0
        %1749 = vmatpush.msra.mxu0 0.0
        %1750 = vmatpush.msra.mxu0 0.0
        %1751 = vmatpush.msra.mxu0 0.0
        %1752 = vmatpush.msra.mxu0 0.0
        %1753 = vmatpush.msra.mxu0 0.0
        %1754 = vmatpush.msra.mxu0 0.0
        %1755 = vmatpush.msra.mxu0 %v1726
        %1756 = vmatpush.msra.mxu0 %v1725
        %1757 = vmatpush.msra.mxu0 %v1724
        %1758 = vmatpush.msra.mxu0 %v1723
        %1759 = vmatmul.f32.gmra.mxu0 %v1741
        %v1760 = vpop.f32.mrf.mxu0
        %v1761 = vadd.f32 %v1738, %v1760
        %1762 = vdwg.mxu0
        %v1763 = vmax.f32 %v1761, 0.0
        %v1765 = vperm.slane %v1736, 0
        %vm1767 = vcmask 523264
        %v1769 = vsel %vm1767, %v1763, 0
        %1771 = vmatpush.msra.mxu0 0.0
        %1772 = vmatpush.msra.mxu0 0.0
        %1773 = vmatpush.msra.mxu0 0.0
        %1774 = vmatpush.msra.mxu0 0.0
        %1775 = vmatpush.msra.mxu0 0.0
        %1776 = vmatpush.msra.mxu0 0.0
        %1777 = vmatpush.msra.mxu0 0.0
        %1778 = vmatpush.msra.mxu0 0.0
        %1779 = vmatpush.msra.mxu0 %v1735
        %1780 = vmatpush.msra.mxu0 %v1734
        %1781 = vmatpush.msra.mxu0 %v1733
        %1782 = vmatpush.msra.mxu0 %v1732
        %1783 = vmatpush.msra.mxu0 %v1731
        %1784 = vmatpush.msra.mxu0 %v1730
        %1785 = vmatpush.msra.mxu0 %v1729
        %1786 = vmatpush.msra.mxu0 %v1728
        %1787 = vmatmul.f32.gmra.mxu0 %v1769
        %v1788 = vpop.f32.mrf.mxu0
        %v1789 = vadd.f32 %v1765, %v1788
        %1790 = vdwg.mxu0
        %v1791 = vadd.f32 %v1789, %v1722
        %v1792 = vld [vmem:[%s20] sm:$0xff]
        %v1793 = vld [vmem:[%s21] sm:$0xff]
        %v1794 = vsel %vm867, %v1791, 0.0
        %1795 = vadd.xlane.f32.xlu0 %v1794
        %v1796 = vpop.xlane.xlu0 %1795
        %v1797 = vrot.slane %v1796, 4
        %v1798 = vadd.f32 %v1796, %v1797
        %v1799 = vrot.slane %v1798, 2
        %v1800 = vadd.f32 %v1798, %v1799
        %v1801 = vrot.slane %v1800, 1
        %v1802 = vadd.f32 %v1800, %v1801
        %s1803 = vtos %v1802
        %v1804 = vrcp.pop 256.0
        %v1805 = vmul.f32 256.0, %v1804
        %v1806 = vsub.f32 1.0, %v1805
        %v1807 = vmul.f32 %v1804, %v1806
        %v1808 = vadd.f32 %v1804, %v1807
        %vm1809 = vweird.f32 %v1804
        %v1810 = vsel %vm1809, %v1804, %v1808
        %s1811 = vtos %v1810
        %s1812 = smul.f32 %s1803, %s1811
        %v1813 = vstv %s1812
        %v1814 = vsub.f32 %v1791, %v1813
        %v1815 = vmul.f32 %v1814, %v1814
        %v1816 = vsel %vm867, %v1815, 0.0
        %1817 = vadd.xlane.f32.xlu0 %v1816
        %v1818 = vpop.xlane.xlu0 %1817
        %v1819 = vrot.slane %v1818, 4
        %v1820 = vadd.f32 %v1818, %v1819
        %v1821 = vrot.slane %v1820, 2
        %v1822 = vadd.f32 %v1820, %v1821
        %v1823 = vrot.slane %v1822, 1
        %v1824 = vadd.f32 %v1822, %v1823
        %s1825 = vtos %v1824
        %v1826 = vrcp.pop 256.0
        %v1827 = vmul.f32 256.0, %v1826
        %v1828 = vsub.f32 1.0, %v1827
        %v1829 = vmul.f32 %v1826, %v1828
        %v1830 = vadd.f32 %v1826, %v1829
        %vm1831 = vweird.f32 %v1826
        %v1832 = vsel %vm1831, %v1826, %v1830
        %s1833 = vtos %v1832
        %s1834 = smul.f32 %s1825, %s1833
        %s1835 = sadd.f32 %s1834, 1e-05
        %v1836 = vstv %s1835
        %v1837 = vrsqrt.pop %v1836
        %v1838 = vmul.f32 %v1837, %v1836
        %v1839 = vmul.f32 %v1838, %v1837
        %v1840 = vmul.f32 0.5, %v1839
        %v1841 = vsub.f32 1.5, %v1840
        %v1842 = vmul.f32 %v1837, %v1841
        %vm1843 = vweird.f32 %v1836
        %vm1844 = vweird.f32 %v1837
        %vm1845 = vmor %vm1843, %vm1844
        %v1846 = vsel %vm1845, %v1837, %v1842
        %s1847 = vtos %v1846
        %v1848 = vstv %s1847
        %v1849 = vmul.f32 %v1814, %v1848
        %v1850 = vmul.f32 %v1849, %v1792
        %v1851 = vadd.f32 %v1850, %v1793
        %1852 = vst.msk [vmem:[%s826] sm:$0xff] %vm867, %v1207
        %1853 = vst.msk [vmem:[%s832] sm:$0xff] %vm867, %v1661
        %s1854 = scalar_lea.vmem %s4, 32
        %v1855 = vld [vmem:[%s1854] sm:$0xff]
        %v1856 = vld [vmem:[%s1854 + $0x8] sm:$0xff]
        %v1857 = vld [vmem:[%s1854 + $0x10] sm:$0xff]
        %v1858 = vld [vmem:[%s1854 + $0x18] sm:$0xff]
        %s1859 = scalar_lea.vmem %s5, 1
        %v1860 = vld [vmem:[%s1859] sm:$0x1]
        %s1861 = scalar_lea.vmem %s6, 32
        %v1862 = vld [vmem:[%s1861] sm:$0xff]
        %v1863 = vld [vmem:[%s1861 + $0x8] sm:$0xff]
        %v1864 = vld [vmem:[%s1861 + $0x10] sm:$0xff]
        %v1865 = vld [vmem:[%s1861 + $0x18] sm:$0xff]
        %s1866 = scalar_lea.vmem %s7, 1
        %v1867 = vld [vmem:[%s1866] sm:$0x1]
        %v1869 = vperm.slane %v1860, 0
        %v1872 = vsel %vm867, %v1851, 0
        %1874 = vmatpush.msra.mxu0 0.0
        %1875 = vmatpush.msra.mxu0 0.0
        %1876 = vmatpush.msra.mxu0 0.0
        %1877 = vmatpush.msra.mxu0 0.0
        %1878 = vmatpush.msra.mxu0 0.0
        %1879 = vmatpush.msra.mxu0 0.0
        %1880 = vmatpush.msra.mxu0 0.0
        %1881 = vmatpush.msra.mxu0 0.0
        %1882 = vmatpush.msra.mxu0 0.0
        %1883 = vmatpush.msra.mxu0 0.0
        %1884 = vmatpush.msra.mxu0 0.0
        %1885 = vmatpush.msra.mxu0 0.0
        %1886 = vmatpush.msra.mxu0 %v1858
        %1887 = vmatpush.msra.mxu0 %v1857
        %1888 = vmatpush.msra.mxu0 %v1856
        %1889 = vmatpush.msra.mxu0 %v1855
        %1890 = vmatmul.f32.gmra.mxu0 %v1872
        %v1891 = vpop.f32.mrf.mxu0
        %v1892 = vadd.f32 %v1869, %v1891
        %1893 = vdwg.mxu0
        %v1894 = vmul.f32 %v1892, 0.35355338
        %1896 = vrot.lane.b32.xlu0 %v1892, 96
        %v1897 = vpop.permute.xlu0 %1896
        %v1899 = vsel %vm895, %v1894, 0
        %v1901 = vsel %vm895, %v1897, 0
        %1903 = vmatpush.xpose.msra.mxu0 0.0
        %1904 = vmatpush.xpose.msra.mxu0 0.0
        %1905 = vmatpush.xpose.msra.mxu0 0.0
        %1906 = vmatpush.xpose.msra.mxu0 0.0
        %1907 = vmatpush.xpose.msra.mxu0 0.0
        %1908 = vmatpush.xpose.msra.mxu0 0.0
        %1909 = vmatpush.xpose.msra.mxu0 0.0
        %1910 = vmatpush.xpose.msra.mxu0 0.0
        %1911 = vmatpush.xpose.msra.mxu0 0.0
        %1912 = vmatpush.xpose.msra.mxu0 0.0
        %1913 = vmatpush.xpose.msra.mxu0 0.0
        %1914 = vmatpush.xpose.msra.mxu0 0.0
        %1915 = vmatpush.xpose.msra.mxu0 0.0
        %1916 = vmatpush.xpose.msra.mxu0 0.0
        %1917 = vmatpush.xpose.msra.mxu0 0.0
        %1918 = vmatpush.xpose.msra.mxu0 %v1901
        %1919 = vmatmul.f32.gmra.mxu0 %v1899
        %v1920 = vpop.f32.mrf.mxu0
        %v1921 = vadd.f32 %v851, %v1920
        %1922 = vdwg.mxu0
        %v1923 = vsel %vm895, %v1921, -inf
        %1924 = vmax.xlane.f32.xlu0 %v1923
        %v1925 = vpop.xlane.xlu0 %1924
        %v1926 = vsub.f32 %v1921, %v1925
        %v1927 = vmul.f32 %v1926, 1.442695
        %v1928 = vpow.pop %v1927
        %v1929 = vsel %vm895, %v1928, 0.0
        %1930 = vadd.xlane.f32.xlu0 %v1929
        %v1931 = vpop.xlane.xlu0 %1930
        %v1932 = vrcp.pop %v1931
        %v1933 = vmul.f32 %v1928, %v1932
        %1934 = vrot.lane.b32.xlu0 %v1892, 64
        %v1935 = vpop.permute.xlu0 %1934
        %v1938 = vsel %vm895, %v1933, 0
        %1940 = vmatpush.msra.mxu0 0.0
        %1941 = vmatpush.msra.mxu0 0.0
        %1942 = vmatpush.msra.mxu0 0.0
        %1943 = vmatpush.msra.mxu0 0.0
        %1944 = vmatpush.msra.mxu0 0.0
        %1945 = vmatpush.msra.mxu0 0.0
        %1946 = vmatpush.msra.mxu0 0.0
        %1947 = vmatpush.msra.mxu0 0.0
        %1948 = vmatpush.msra.mxu0 0.0
        %1949 = vmatpush.msra.mxu0 0.0
        %1950 = vmatpush.msra.mxu0 0.0
        %1951 = vmatpush.msra.mxu0 0.0
        %1952 = vmatpush.msra.mxu0 0.0
        %1953 = vmatpush.msra.mxu0 0.0
        %1954 = vmatpush.msra.mxu0 0.0
        %1955 = vmatpush.msra.mxu0 %v1935
        %1956 = vmatmul.f32.gmra.mxu0 %v1938
        %v1957 = vpop.f32.mrf.mxu0
        %v1958 = vadd.f32 0.0, %v1957
        %1959 = vdwg.mxu0
        %1960 = vrot.lane.b32.xlu0 %v1894, 120
        %v1961 = vpop.permute.xlu0 %1960
        %1962 = vrot.lane.b32.xlu0 %v1892, 88
        %v1963 = vpop.permute.xlu0 %1962
        %v1964 = vsel %vm895, %v1961, 0
        %v1966 = vsel %vm895, %v1963, 0
        %1968 = vmatpush.xpose.msra.mxu0 0.0
        %1969 = vmatpush.xpose.msra.mxu0 0.0
        %1970 = vmatpush.xpose.msra.mxu0 0.0
        %1971 = vmatpush.xpose.msra.mxu0 0.0
        %1972 = vmatpush.xpose.msra.mxu0 0.0
        %1973 = vmatpush.xpose.msra.mxu0 0.0
        %1974 = vmatpush.xpose.msra.mxu0 0.0
        %1975 = vmatpush.xpose.msra.mxu0 0.0
        %1976 = vmatpush.xpose.msra.mxu0 0.0
        %1977 = vmatpush.xpose.msra.mxu0 0.0
        %1978 = vmatpush.xpose.msra.mxu0 0.0
        %1979 = vmatpush.xpose.msra.mxu0 0.0
        %1980 = vmatpush.xpose.msra.mxu0 0.0
        %1981 = vmatpush.xpose.msra.mxu0 0.0
        %1982 = vmatpush.xpose.msra.mxu0 0.0
        %1983 = vmatpush.xpose.msra.mxu0 %v1966
        %1984 = vmatmul.f32.gmra.mxu0 %v1964
        %v1985 = vpop.f32.mrf.mxu0
        %v1986 = vadd.f32 %v851, %v1985
        %1987 = vdwg.mxu0
        %v1988 = vsel %vm895, %v1986, -inf
        %1989 = vmax.xlane.f32.xlu0 %v1988
        %v1990 = vpop.xlane.xlu0 %1989
        %v1991 = vsub.f32 %v1986, %v1990
        %v1992 = vmul.f32 %v1991, 1.442695
        %v1993 = vpow.pop %v1992
        %v1994 = vsel %vm895, %v1993, 0.0
        %1995 = vadd.xlane.f32.xlu0 %v1994
        %v1996 = vpop.xlane.xlu0 %1995
        %v1997 = vrcp.pop %v1996
        %v1998 = vmul.f32 %v1993, %v1997
        %1999 = vrot.lane.b32.xlu0 %v1892, 56
        %v2000 = vpop.permute.xlu0 %1999
        %v2003 = vsel %vm895, %v1998, 0
        %2005 = vmatpush.msra.mxu0 0.0
        %2006 = vmatpush.msra.mxu0 0.0
        %2007 = vmatpush.msra.mxu0 0.0
        %2008 = vmatpush.msra.mxu0 0.0
        %2009 = vmatpush.msra.mxu0 0.0
        %2010 = vmatpush.msra.mxu0 0.0
        %2011 = vmatpush.msra.mxu0 0.0
        %2012 = vmatpush.msra.mxu0 0.0
        %2013 = vmatpush.msra.mxu0 0.0
        %2014 = vmatpush.msra.mxu0 0.0
        %2015 = vmatpush.msra.mxu0 0.0
        %2016 = vmatpush.msra.mxu0 0.0
        %2017 = vmatpush.msra.mxu0 0.0
        %2018 = vmatpush.msra.mxu0 0.0
        %2019 = vmatpush.msra.mxu0 0.0
        %2020 = vmatpush.msra.mxu0 %v2000
        %2021 = vmatmul.f32.gmra.mxu0 %v2003
        %v2022 = vpop.f32.mrf.mxu0
        %v2023 = vadd.f32 0.0, %v2022
        %2024 = vdwg.mxu0
        %2025 = vrot.lane.b32.xlu0 %v1894, 112
        %v2026 = vpop.permute.xlu0 %2025
        %2027 = vrot.lane.b32.xlu0 %v1892, 80
        %v2028 = vpop.permute.xlu0 %2027
        %v2029 = vsel %vm895, %v2026, 0
        %v2031 = vsel %vm895, %v2028, 0
        %2033 = vmatpush.xpose.msra.mxu0 0.0
        %2034 = vmatpush.xpose.msra.mxu0 0.0
        %2035 = vmatpush.xpose.msra.mxu0 0.0
        %2036 = vmatpush.xpose.msra.mxu0 0.0
        %2037 = vmatpush.xpose.msra.mxu0 0.0
        %2038 = vmatpush.xpose.msra.mxu0 0.0
        %2039 = vmatpush.xpose.msra.mxu0 0.0
        %2040 = vmatpush.xpose.msra.mxu0 0.0
        %2041 = vmatpush.xpose.msra.mxu0 0.0
        %2042 = vmatpush.xpose.msra.mxu0 0.0
        %2043 = vmatpush.xpose.msra.mxu0 0.0
        %2044 = vmatpush.xpose.msra.mxu0 0.0
        %2045 = vmatpush.xpose.msra.mxu0 0.0
        %2046 = vmatpush.xpose.msra.mxu0 0.0
        %2047 = vmatpush.xpose.msra.mxu0 0.0
        %2048 = vmatpush.xpose.msra.mxu0 %v2031
        %2049 = vmatmul.f32.gmra.mxu0 %v2029
        %v2050 = vpop.f32.mrf.mxu0
        %v2051 = vadd.f32 %v851, %v2050
        %2052 = vdwg.mxu0
        %v2053 = vsel %vm895, %v2051, -inf
        %2054 = vmax.xlane.f32.xlu0 %v2053
        %v2055 = vpop.xlane.xlu0 %2054
        %v2056 = vsub.f32 %v2051, %v2055
        %v2057 = vmul.f32 %v2056, 1.442695
        %v2058 = vpow.pop %v2057
        %v2059 = vsel %vm895, %v2058, 0.0
        %2060 = vadd.xlane.f32.xlu0 %v2059
        %v2061 = vpop.xlane.xlu0 %2060
        %v2062 = vrcp.pop %v2061
        %v2063 = vmul.f32 %v2058, %v2062
        %2064 = vrot.lane.b32.xlu0 %v1892, 48
        %v2065 = vpop.permute.xlu0 %2064
        %v2068 = vsel %vm895, %v2063, 0
        %2070 = vmatpush.msra.mxu0 0.0
        %2071 = vmatpush.msra.mxu0 0.0
        %2072 = vmatpush.msra.mxu0 0.0
        %2073 = vmatpush.msra.mxu0 0.0
        %2074 = vmatpush.msra.mxu0 0.0
        %2075 = vmatpush.msra.mxu0 0.0
        %2076 = vmatpush.msra.mxu0 0.0
        %2077 = vmatpush.msra.mxu0 0.0
        %2078 = vmatpush.msra.mxu0 0.0
        %2079 = vmatpush.msra.mxu0 0.0
        %2080 = vmatpush.msra.mxu0 0.0
        %2081 = vmatpush.msra.mxu0 0.0
        %2082 = vmatpush.msra.mxu0 0.0
        %2083 = vmatpush.msra.mxu0 0.0
        %2084 = vmatpush.msra.mxu0 0.0
        %2085 = vmatpush.msra.mxu0 %v2065
        %2086 = vmatmul.f32.gmra.mxu0 %v2068
        %v2087 = vpop.f32.mrf.mxu0
        %v2088 = vadd.f32 0.0, %v2087
        %2089 = vdwg.mxu0
        %2090 = vrot.lane.b32.xlu0 %v1894, 104
        %v2091 = vpop.permute.xlu0 %2090
        %2092 = vrot.lane.b32.xlu0 %v1892, 72
        %v2093 = vpop.permute.xlu0 %2092
        %v2094 = vsel %vm895, %v2091, 0
        %v2096 = vsel %vm895, %v2093, 0
        %2098 = vmatpush.xpose.msra.mxu0 0.0
        %2099 = vmatpush.xpose.msra.mxu0 0.0
        %2100 = vmatpush.xpose.msra.mxu0 0.0
        %2101 = vmatpush.xpose.msra.mxu0 0.0
        %2102 = vmatpush.xpose.msra.mxu0 0.0
        %2103 = vmatpush.xpose.msra.mxu0 0.0
        %2104 = vmatpush.xpose.msra.mxu0 0.0
        %2105 = vmatpush.xpose.msra.mxu0 0.0
        %2106 = vmatpush.xpose.msra.mxu0 0.0
        %2107 = vmatpush.xpose.msra.mxu0 0.0
        %2108 = vmatpush.xpose.msra.mxu0 0.0
        %2109 = vmatpush.xpose.msra.mxu0 0.0
        %2110 = vmatpush.xpose.msra.mxu0 0.0
        %2111 = vmatpush.xpose.msra.mxu0 0.0
        %2112 = vmatpush.xpose.msra.mxu0 0.0
        %2113 = vmatpush.xpose.msra.mxu0 %v2096
        %2114 = vmatmul.f32.gmra.mxu0 %v2094
        %v2115 = vpop.f32.mrf.mxu0
        %v2116 = vadd.f32 %v851, %v2115
        %2117 = vdwg.mxu0
        %v2118 = vsel %vm895, %v2116, -inf
        %2119 = vmax.xlane.f32.xlu0 %v2118
        %v2120 = vpop.xlane.xlu0 %2119
        %v2121 = vsub.f32 %v2116, %v2120
        %v2122 = vmul.f32 %v2121, 1.442695
        %v2123 = vpow.pop %v2122
        %v2124 = vsel %vm895, %v2123, 0.0
        %2125 = vadd.xlane.f32.xlu0 %v2124
        %v2126 = vpop.xlane.xlu0 %2125
        %v2127 = vrcp.pop %v2126
        %v2128 = vmul.f32 %v2123, %v2127
        %2129 = vrot.lane.b32.xlu0 %v1892, 40
        %v2130 = vpop.permute.xlu0 %2129
        %v2133 = vsel %vm895, %v2128, 0
        %2135 = vmatpush.msra.mxu0 0.0
        %2136 = vmatpush.msra.mxu0 0.0
        %2137 = vmatpush.msra.mxu0 0.0
        %2138 = vmatpush.msra.mxu0 0.0
        %2139 = vmatpush.msra.mxu0 0.0
        %2140 = vmatpush.msra.mxu0 0.0
        %2141 = vmatpush.msra.mxu0 0.0
        %2142 = vmatpush.msra.mxu0 0.0
        %2143 = vmatpush.msra.mxu0 0.0
        %2144 = vmatpush.msra.mxu0 0.0
        %2145 = vmatpush.msra.mxu0 0.0
        %2146 = vmatpush.msra.mxu0 0.0
        %2147 = vmatpush.msra.mxu0 0.0
        %2148 = vmatpush.msra.mxu0 0.0
        %2149 = vmatpush.msra.mxu0 0.0
        %2150 = vmatpush.msra.mxu0 %v2130
        %2151 = vmatmul.f32.gmra.mxu0 %v2133
        %v2152 = vpop.f32.mrf.mxu0
        %v2153 = vadd.f32 0.0, %v2152
        %2154 = vdwg.mxu0
        %2156 = vrot.lane.b32.xlu0 %v2023, 8
        %v2157 = vpop.permute.xlu0 %2156
        %2160 = vrot.lane.b32.xlu0 %v2088, 16
        %v2161 = vpop.permute.xlu0 %2160
        %2164 = vrot.lane.b32.xlu0 %v2153, 24
        %v2165 = vpop.permute.xlu0 %2164
        %v2167 = vsel %vm895, %v1958, %v2157
        %v2168 = vsel %vm1166, %v2167, %v2161
        %v2169 = vsel %vm1168, %v2168, %v2165
        %v2171 = vperm.slane %v1867, 0
        %v2174 = vsel %vm867, %v2169, 0
        %2176 = vmatpush.msra.mxu0 0.0
        %2177 = vmatpush.msra.mxu0 0.0
        %2178 = vmatpush.msra.mxu0 0.0
        %2179 = vmatpush.msra.mxu0 0.0
        %2180 = vmatpush.msra.mxu0 0.0
        %2181 = vmatpush.msra.mxu0 0.0
        %2182 = vmatpush.msra.mxu0 0.0
        %2183 = vmatpush.msra.mxu0 0.0
        %2184 = vmatpush.msra.mxu0 0.0
        %2185 = vmatpush.msra.mxu0 0.0
        %2186 = vmatpush.msra.mxu0 0.0
        %2187 = vmatpush.msra.mxu0 0.0
        %2188 = vmatpush.msra.mxu0 %v1865
        %2189 = vmatpush.msra.mxu0 %v1864
        %2190 = vmatpush.msra.mxu0 %v1863
        %2191 = vmatpush.msra.mxu0 %v1862
        %2192 = vmatmul.f32.gmra.mxu0 %v2174
        %v2193 = vpop.f32.mrf.mxu0
        %v2194 = vadd.f32 %v2171, %v2193
        %2195 = vdwg.mxu0
        %2196 = vrot.lane.b32.xlu0 %v1998, 8
        %v2197 = vpop.permute.xlu0 %2196
        %2199 = vrot.lane.b32.xlu0 %v2063, 16
        %v2200 = vpop.permute.xlu0 %2199
        %2202 = vrot.lane.b32.xlu0 %v2128, 24
        %v2203 = vpop.permute.xlu0 %2202
        %v2205 = vsel %vm895, %v1933, %v2197
        %v2206 = vsel %vm1166, %v2205, %v2200
        %v2207 = vsel %vm1168, %v2206, %v2203
        %v2208 = vadd.f32 %v2194, %v1851
        %s2209 = scalar_lea.vmem %s16, 8
        %v2210 = vld [vmem:[%s2209] sm:$0xff]
        %s2211 = scalar_lea.vmem %s17, 8
        %v2212 = vld [vmem:[%s2211] sm:$0xff]
        %v2213 = vsel %vm867, %v2208, 0.0
        %2214 = vadd.xlane.f32.xlu0 %v2213
        %v2215 = vpop.xlane.xlu0 %2214
        %v2216 = vrot.slane %v2215, 4
        %v2217 = vadd.f32 %v2215, %v2216
        %v2218 = vrot.slane %v2217, 2
        %v2219 = vadd.f32 %v2217, %v2218
        %v2220 = vrot.slane %v2219, 1
        %v2221 = vadd.f32 %v2219, %v2220
        %s2222 = vtos %v2221
        %v2223 = vrcp.pop 256.0
        %v2224 = vmul.f32 256.0, %v2223
        %v2225 = vsub.f32 1.0, %v2224
        %v2226 = vmul.f32 %v2223, %v2225
        %v2227 = vadd.f32 %v2223, %v2226
        %vm2228 = vweird.f32 %v2223
        %v2229 = vsel %vm2228, %v2223, %v2227
        %s2230 = vtos %v2229
        %s2231 = smul.f32 %s2222, %s2230
        %v2232 = vstv %s2231
        %v2233 = vsub.f32 %v2208, %v2232
        %v2234 = vmul.f32 %v2233, %v2233
        %v2235 = vsel %vm867, %v2234, 0.0
        %2236 = vadd.xlane.f32.xlu0 %v2235
        %v2237 = vpop.xlane.xlu0 %2236
        %v2238 = vrot.slane %v2237, 4
        %v2239 = vadd.f32 %v2237, %v2238
        %v2240 = vrot.slane %v2239, 2
        %v2241 = vadd.f32 %v2239, %v2240
        %v2242 = vrot.slane %v2241, 1
        %v2243 = vadd.f32 %v2241, %v2242
        %s2244 = vtos %v2243
        %v2245 = vrcp.pop 256.0
        %v2246 = vmul.f32 256.0, %v2245
        %v2247 = vsub.f32 1.0, %v2246
        %v2248 = vmul.f32 %v2245, %v2247
        %v2249 = vadd.f32 %v2245, %v2248
        %vm2250 = vweird.f32 %v2245
        %v2251 = vsel %vm2250, %v2245, %v2249
        %s2252 = vtos %v2251
        %s2253 = smul.f32 %s2244, %s2252
        %s2254 = sadd.f32 %s2253, 1e-05
        %v2255 = vstv %s2254
        %v2256 = vrsqrt.pop %v2255
        %v2257 = vmul.f32 %v2256, %v2255
        %v2258 = vmul.f32 %v2257, %v2256
        %v2259 = vmul.f32 0.5, %v2258
        %v2260 = vsub.f32 1.5, %v2259
        %v2261 = vmul.f32 %v2256, %v2260
        %vm2262 = vweird.f32 %v2255
        %vm2263 = vweird.f32 %v2256
        %vm2264 = vmor %vm2262, %vm2263
        %v2265 = vsel %vm2264, %v2256, %v2261
        %s2266 = vtos %v2265
        %v2267 = vstv %s2266
        %v2268 = vmul.f32 %v2233, %v2267
        %v2269 = vmul.f32 %v2268, %v2210
        %v2270 = vadd.f32 %v2269, %v2212
        %s2271 = scalar_lea.vmem %s8, 32
        %v2272 = vld [vmem:[%s2271] sm:$0xff]
        %v2273 = vld [vmem:[%s2271 + $0x8] sm:$0xff]
        %v2274 = vld [vmem:[%s2271 + $0x10] sm:$0xff]
        %v2275 = vld [vmem:[%s2271 + $0x18] sm:$0xff]
        %s2276 = scalar_lea.vmem %s9, 1
        %v2277 = vld [vmem:[%s2276] sm:$0x1]
        %s2278 = scalar_lea.vmem %s10, 32
        %v2279 = vld [vmem:[%s2278] sm:$0xff]
        %v2280 = vld [vmem:[%s2278 + $0x8] sm:$0xff]
        %v2281 = vld [vmem:[%s2278 + $0x10] sm:$0xff]
        %v2282 = vld [vmem:[%s2278 + $0x18] sm:$0xff]
        %s2283 = scalar_lea.vmem %s11, 1
        %v2284 = vld [vmem:[%s2283] sm:$0x1]
        %v2286 = vperm.slane %v2277, 0
        %v2289 = vsel %vm867, %v2270, 0
        %2291 = vmatpush.msra.mxu0 0.0
        %2292 = vmatpush.msra.mxu0 0.0
        %2293 = vmatpush.msra.mxu0 0.0
        %2294 = vmatpush.msra.mxu0 0.0
        %2295 = vmatpush.msra.mxu0 0.0
        %2296 = vmatpush.msra.mxu0 0.0
        %2297 = vmatpush.msra.mxu0 0.0
        %2298 = vmatpush.msra.mxu0 0.0
        %2299 = vmatpush.msra.mxu0 0.0
        %2300 = vmatpush.msra.mxu0 0.0
        %2301 = vmatpush.msra.mxu0 0.0
        %2302 = vmatpush.msra.mxu0 0.0
        %2303 = vmatpush.msra.mxu0 %v2275
        %2304 = vmatpush.msra.mxu0 %v2274
        %2305 = vmatpush.msra.mxu0 %v2273
        %2306 = vmatpush.msra.mxu0 %v2272
        %2307 = vmatmul.f32.gmra.mxu0 %v2289
        %v2308 = vpop.f32.mrf.mxu0
        %v2309 = vadd.f32 %v2286, %v2308
        %2310 = vdwg.mxu0
        %2315 = vrot.lane.b32.xlu0 %v2272, 96
        %v2316 = vpop.permute.xlu0 %2315
        %2317 = vrot.lane.b32.xlu0 %v2273, 96
        %v2318 = vpop.permute.xlu0 %2317
        %2319 = vrot.lane.b32.xlu0 %v2274, 96
        %v2320 = vpop.permute.xlu0 %2319
        %2321 = vrot.lane.b32.xlu0 %v2275, 96
        %v2322 = vpop.permute.xlu0 %2321
        %2327 = vrot.lane.b32.xlu0 %v2286, 96
        %v2328 = vpop.permute.xlu0 %2327
        %2330 = vmatpush.msra.mxu0 0.0
        %2331 = vmatpush.msra.mxu0 0.0
        %2332 = vmatpush.msra.mxu0 0.0
        %2333 = vmatpush.msra.mxu0 0.0
        %2334 = vmatpush.msra.mxu0 0.0
        %2335 = vmatpush.msra.mxu0 0.0
        %2336 = vmatpush.msra.mxu0 0.0
        %2337 = vmatpush.msra.mxu0 0.0
        %2338 = vmatpush.msra.mxu0 0.0
        %2339 = vmatpush.msra.mxu0 0.0
        %2340 = vmatpush.msra.mxu0 0.0
        %2341 = vmatpush.msra.mxu0 0.0
        %2342 = vmatpush.msra.mxu0 %v2322
        %2343 = vmatpush.msra.mxu0 %v2320
        %2344 = vmatpush.msra.mxu0 %v2318
        %2345 = vmatpush.msra.mxu0 %v2316
        %2346 = vmatmul.f32.gmra.mxu0 %v1325
        %v2347 = vpop.f32.mrf.mxu0
        %v2348 = vadd.f32 %v2328, %v2347
        %2349 = vdwg.mxu0
        %v2350 = vmul.f32 %v2309, 0.35355338
        %v2352 = vsel %vm895, %v2350, 0
        %v2355 = vsel %vm895, %v2348, 0
        %2357 = vmatpush.xpose.msra.mxu0 0.0
        %2358 = vmatpush.xpose.msra.mxu0 0.0
        %2359 = vmatpush.xpose.msra.mxu0 0.0
        %2360 = vmatpush.xpose.msra.mxu0 0.0
        %2361 = vmatpush.xpose.msra.mxu0 0.0
        %2362 = vmatpush.xpose.msra.mxu0 0.0
        %2363 = vmatpush.xpose.msra.mxu0 0.0
        %2364 = vmatpush.xpose.msra.mxu0 0.0
        %2365 = vmatpush.xpose.msra.mxu0 0.0
        %2366 = vmatpush.xpose.msra.mxu0 0.0
        %2367 = vmatpush.xpose.msra.mxu0 0.0
        %2368 = vmatpush.xpose.msra.mxu0 0.0
        %2369 = vmatpush.xpose.msra.mxu0 0.0
        %2370 = vmatpush.xpose.msra.mxu0 0.0
        %2371 = vmatpush.xpose.msra.mxu0 0.0
        %2372 = vmatpush.xpose.msra.mxu0 %v2355
        %2373 = vmatmul.f32.gmra.mxu0 %v2352
        %v2374 = vpop.f32.mrf.mxu0
        %v2375 = vadd.f32 %v1349, %v2374
        %2376 = vdwg.mxu0
        %v2377 = vsel %vm895, %v2375, -inf
        %2378 = vmax.xlane.f32.xlu0 %v2377
        %v2379 = vpop.xlane.xlu0 %2378
        %v2380 = vsub.f32 %v2375, %v2379
        %v2381 = vmul.f32 %v2380, 1.442695
        %v2382 = vpow.pop %v2381
        %v2383 = vsel %vm895, %v2382, 0.0
        %2384 = vadd.xlane.f32.xlu0 %v2383
        %v2385 = vpop.xlane.xlu0 %2384
        %v2386 = vrcp.pop %v2385
        %v2387 = vmul.f32 %v2382, %v2386
        %2388 = vrot.lane.b32.xlu0 %v2348, 96
        %v2389 = vpop.permute.xlu0 %2388
        %v2392 = vsel %vm895, %v2387, 0
        %2394 = vmatpush.msra.mxu0 0.0
        %2395 = vmatpush.msra.mxu0 0.0
        %2396 = vmatpush.msra.mxu0 0.0
        %2397 = vmatpush.msra.mxu0 0.0
        %2398 = vmatpush.msra.mxu0 0.0
        %2399 = vmatpush.msra.mxu0 0.0
        %2400 = vmatpush.msra.mxu0 0.0
        %2401 = vmatpush.msra.mxu0 0.0
        %2402 = vmatpush.msra.mxu0 0.0
        %2403 = vmatpush.msra.mxu0 0.0
        %2404 = vmatpush.msra.mxu0 0.0
        %2405 = vmatpush.msra.mxu0 0.0
        %2406 = vmatpush.msra.mxu0 0.0
        %2407 = vmatpush.msra.mxu0 0.0
        %2408 = vmatpush.msra.mxu0 0.0
        %2409 = vmatpush.msra.mxu0 %v2389
        %2410 = vmatmul.f32.gmra.mxu0 %v2392
        %v2411 = vpop.f32.mrf.mxu0
        %v2412 = vadd.f32 0.0, %v2411
        %2413 = vdwg.mxu0
        %2414 = vrot.lane.b32.xlu0 %v2350, 120
        %v2415 = vpop.permute.xlu0 %2414
        %2416 = vrot.lane.b32.xlu0 %v2348, 120
        %v2417 = vpop.permute.xlu0 %2416
        %v2418 = vsel %vm895, %v2415, 0
        %v2420 = vsel %vm895, %v2417, 0
        %2422 = vmatpush.xpose.msra.mxu0 0.0
        %2423 = vmatpush.xpose.msra.mxu0 0.0
        %2424 = vmatpush.xpose.msra.mxu0 0.0
        %2425 = vmatpush.xpose.msra.mxu0 0.0
        %2426 = vmatpush.xpose.msra.mxu0 0.0
        %2427 = vmatpush.xpose.msra.mxu0 0.0
        %2428 = vmatpush.xpose.msra.mxu0 0.0
        %2429 = vmatpush.xpose.msra.mxu0 0.0
        %2430 = vmatpush.xpose.msra.mxu0 0.0
        %2431 = vmatpush.xpose.msra.mxu0 0.0
        %2432 = vmatpush.xpose.msra.mxu0 0.0
        %2433 = vmatpush.xpose.msra.mxu0 0.0
        %2434 = vmatpush.xpose.msra.mxu0 0.0
        %2435 = vmatpush.xpose.msra.mxu0 0.0
        %2436 = vmatpush.xpose.msra.mxu0 0.0
        %2437 = vmatpush.xpose.msra.mxu0 %v2420
        %2438 = vmatmul.f32.gmra.mxu0 %v2418
        %v2439 = vpop.f32.mrf.mxu0
        %v2440 = vadd.f32 %v1349, %v2439
        %2441 = vdwg.mxu0
        %v2442 = vsel %vm895, %v2440, -inf
        %2443 = vmax.xlane.f32.xlu0 %v2442
        %v2444 = vpop.xlane.xlu0 %2443
        %v2445 = vsub.f32 %v2440, %v2444
        %v2446 = vmul.f32 %v2445, 1.442695
        %v2447 = vpow.pop %v2446
        %v2448 = vsel %vm895, %v2447, 0.0
        %2449 = vadd.xlane.f32.xlu0 %v2448
        %v2450 = vpop.xlane.xlu0 %2449
        %v2451 = vrcp.pop %v2450
        %v2452 = vmul.f32 %v2447, %v2451
        %2453 = vrot.lane.b32.xlu0 %v2348, 88
        %v2454 = vpop.permute.xlu0 %2453
        %v2457 = vsel %vm895, %v2452, 0
        %2459 = vmatpush.msra.mxu0 0.0
        %2460 = vmatpush.msra.mxu0 0.0
        %2461 = vmatpush.msra.mxu0 0.0
        %2462 = vmatpush.msra.mxu0 0.0
        %2463 = vmatpush.msra.mxu0 0.0
        %2464 = vmatpush.msra.mxu0 0.0
        %2465 = vmatpush.msra.mxu0 0.0
        %2466 = vmatpush.msra.mxu0 0.0
        %2467 = vmatpush.msra.mxu0 0.0
        %2468 = vmatpush.msra.mxu0 0.0
        %2469 = vmatpush.msra.mxu0 0.0
        %2470 = vmatpush.msra.mxu0 0.0
        %2471 = vmatpush.msra.mxu0 0.0
        %2472 = vmatpush.msra.mxu0 0.0
        %2473 = vmatpush.msra.mxu0 0.0
        %2474 = vmatpush.msra.mxu0 %v2454
        %2475 = vmatmul.f32.gmra.mxu0 %v2457
        %v2476 = vpop.f32.mrf.mxu0
        %v2477 = vadd.f32 0.0, %v2476
        %2478 = vdwg.mxu0
        %2479 = vrot.lane.b32.xlu0 %v2350, 112
        %v2480 = vpop.permute.xlu0 %2479
        %2481 = vrot.lane.b32.xlu0 %v2348, 112
        %v2482 = vpop.permute.xlu0 %2481
        %v2483 = vsel %vm895, %v2480, 0
        %v2485 = vsel %vm895, %v2482, 0
        %2487 = vmatpush.xpose.msra.mxu0 0.0
        %2488 = vmatpush.xpose.msra.mxu0 0.0
        %2489 = vmatpush.xpose.msra.mxu0 0.0
        %2490 = vmatpush.xpose.msra.mxu0 0.0
        %2491 = vmatpush.xpose.msra.mxu0 0.0
        %2492 = vmatpush.xpose.msra.mxu0 0.0
        %2493 = vmatpush.xpose.msra.mxu0 0.0
        %2494 = vmatpush.xpose.msra.mxu0 0.0
        %2495 = vmatpush.xpose.msra.mxu0 0.0
        %2496 = vmatpush.xpose.msra.mxu0 0.0
        %2497 = vmatpush.xpose.msra.mxu0 0.0
        %2498 = vmatpush.xpose.msra.mxu0 0.0
        %2499 = vmatpush.xpose.msra.mxu0 0.0
        %2500 = vmatpush.xpose.msra.mxu0 0.0
        %2501 = vmatpush.xpose.msra.mxu0 0.0
        %2502 = vmatpush.xpose.msra.mxu0 %v2485
        %2503 = vmatmul.f32.gmra.mxu0 %v2483
        %v2504 = vpop.f32.mrf.mxu0
        %v2505 = vadd.f32 %v1349, %v2504
        %2506 = vdwg.mxu0
        %v2507 = vsel %vm895, %v2505, -inf
        %2508 = vmax.xlane.f32.xlu0 %v2507
        %v2509 = vpop.xlane.xlu0 %2508
        %v2510 = vsub.f32 %v2505, %v2509
        %v2511 = vmul.f32 %v2510, 1.442695
        %v2512 = vpow.pop %v2511
        %v2513 = vsel %vm895, %v2512, 0.0
        %2514 = vadd.xlane.f32.xlu0 %v2513
        %v2515 = vpop.xlane.xlu0 %2514
        %v2516 = vrcp.pop %v2515
        %v2517 = vmul.f32 %v2512, %v2516
        %2518 = vrot.lane.b32.xlu0 %v2348, 80
        %v2519 = vpop.permute.xlu0 %2518
        %v2522 = vsel %vm895, %v2517, 0
        %2524 = vmatpush.msra.mxu0 0.0
        %2525 = vmatpush.msra.mxu0 0.0
        %2526 = vmatpush.msra.mxu0 0.0
        %2527 = vmatpush.msra.mxu0 0.0
        %2528 = vmatpush.msra.mxu0 0.0
        %2529 = vmatpush.msra.mxu0 0.0
        %2530 = vmatpush.msra.mxu0 0.0
        %2531 = vmatpush.msra.mxu0 0.0
        %2532 = vmatpush.msra.mxu0 0.0
        %2533 = vmatpush.msra.mxu0 0.0
        %2534 = vmatpush.msra.mxu0 0.0
        %2535 = vmatpush.msra.mxu0 0.0
        %2536 = vmatpush.msra.mxu0 0.0
        %2537 = vmatpush.msra.mxu0 0.0
        %2538 = vmatpush.msra.mxu0 0.0
        %2539 = vmatpush.msra.mxu0 %v2519
        %2540 = vmatmul.f32.gmra.mxu0 %v2522
        %v2541 = vpop.f32.mrf.mxu0
        %v2542 = vadd.f32 0.0, %v2541
        %2543 = vdwg.mxu0
        %2544 = vrot.lane.b32.xlu0 %v2350, 104
        %v2545 = vpop.permute.xlu0 %2544
        %2546 = vrot.lane.b32.xlu0 %v2348, 104
        %v2547 = vpop.permute.xlu0 %2546
        %v2548 = vsel %vm895, %v2545, 0
        %v2550 = vsel %vm895, %v2547, 0
        %2552 = vmatpush.xpose.msra.mxu0 0.0
        %2553 = vmatpush.xpose.msra.mxu0 0.0
        %2554 = vmatpush.xpose.msra.mxu0 0.0
        %2555 = vmatpush.xpose.msra.mxu0 0.0
        %2556 = vmatpush.xpose.msra.mxu0 0.0
        %2557 = vmatpush.xpose.msra.mxu0 0.0
        %2558 = vmatpush.xpose.msra.mxu0 0.0
        %2559 = vmatpush.xpose.msra.mxu0 0.0
        %2560 = vmatpush.xpose.msra.mxu0 0.0
        %2561 = vmatpush.xpose.msra.mxu0 0.0
        %2562 = vmatpush.xpose.msra.mxu0 0.0
        %2563 = vmatpush.xpose.msra.mxu0 0.0
        %2564 = vmatpush.xpose.msra.mxu0 0.0
        %2565 = vmatpush.xpose.msra.mxu0 0.0
        %2566 = vmatpush.xpose.msra.mxu0 0.0
        %2567 = vmatpush.xpose.msra.mxu0 %v2550
        %2568 = vmatmul.f32.gmra.mxu0 %v2548
        %v2569 = vpop.f32.mrf.mxu0
        %v2570 = vadd.f32 %v1349, %v2569
        %2571 = vdwg.mxu0
        %v2572 = vsel %vm895, %v2570, -inf
        %2573 = vmax.xlane.f32.xlu0 %v2572
        %v2574 = vpop.xlane.xlu0 %2573
        %v2575 = vsub.f32 %v2570, %v2574
        %v2576 = vmul.f32 %v2575, 1.442695
        %v2577 = vpow.pop %v2576
        %v2578 = vsel %vm895, %v2577, 0.0
        %2579 = vadd.xlane.f32.xlu0 %v2578
        %v2580 = vpop.xlane.xlu0 %2579
        %v2581 = vrcp.pop %v2580
        %v2582 = vmul.f32 %v2577, %v2581
        %2583 = vrot.lane.b32.xlu0 %v2348, 72
        %v2584 = vpop.permute.xlu0 %2583
        %v2587 = vsel %vm895, %v2582, 0
        %2589 = vmatpush.msra.mxu0 0.0
        %2590 = vmatpush.msra.mxu0 0.0
        %2591 = vmatpush.msra.mxu0 0.0
        %2592 = vmatpush.msra.mxu0 0.0
        %2593 = vmatpush.msra.mxu0 0.0
        %2594 = vmatpush.msra.mxu0 0.0
        %2595 = vmatpush.msra.mxu0 0.0
        %2596 = vmatpush.msra.mxu0 0.0
        %2597 = vmatpush.msra.mxu0 0.0
        %2598 = vmatpush.msra.mxu0 0.0
        %2599 = vmatpush.msra.mxu0 0.0
        %2600 = vmatpush.msra.mxu0 0.0
        %2601 = vmatpush.msra.mxu0 0.0
        %2602 = vmatpush.msra.mxu0 0.0
        %2603 = vmatpush.msra.mxu0 0.0
        %2604 = vmatpush.msra.mxu0 %v2584
        %2605 = vmatmul.f32.gmra.mxu0 %v2587
        %v2606 = vpop.f32.mrf.mxu0
        %v2607 = vadd.f32 0.0, %v2606
        %2608 = vdwg.mxu0
        %2610 = vrot.lane.b32.xlu0 %v2477, 8
        %v2611 = vpop.permute.xlu0 %2610
        %2614 = vrot.lane.b32.xlu0 %v2542, 16
        %v2615 = vpop.permute.xlu0 %2614
        %2618 = vrot.lane.b32.xlu0 %v2607, 24
        %v2619 = vpop.permute.xlu0 %2618
        %v2621 = vsel %vm895, %v2412, %v2611
        %v2622 = vsel %vm1166, %v2621, %v2615
        %v2623 = vsel %vm1168, %v2622, %v2619
        %v2625 = vperm.slane %v2284, 0
        %v2628 = vsel %vm867, %v2623, 0
        %2630 = vmatpush.msra.mxu0 0.0
        %2631 = vmatpush.msra.mxu0 0.0
        %2632 = vmatpush.msra.mxu0 0.0
        %2633 = vmatpush.msra.mxu0 0.0
        %2634 = vmatpush.msra.mxu0 0.0
        %2635 = vmatpush.msra.mxu0 0.0
        %2636 = vmatpush.msra.mxu0 0.0
        %2637 = vmatpush.msra.mxu0 0.0
        %2638 = vmatpush.msra.mxu0 0.0
        %2639 = vmatpush.msra.mxu0 0.0
        %2640 = vmatpush.msra.mxu0 0.0
        %2641 = vmatpush.msra.mxu0 0.0
        %2642 = vmatpush.msra.mxu0 %v2282
        %2643 = vmatpush.msra.mxu0 %v2281
        %2644 = vmatpush.msra.mxu0 %v2280
        %2645 = vmatpush.msra.mxu0 %v2279
        %2646 = vmatmul.f32.gmra.mxu0 %v2628
        %v2647 = vpop.f32.mrf.mxu0
        %v2648 = vadd.f32 %v2625, %v2647
        %2649 = vdwg.mxu0
        %2650 = vrot.lane.b32.xlu0 %v2452, 8
        %v2651 = vpop.permute.xlu0 %2650
        %2653 = vrot.lane.b32.xlu0 %v2517, 16
        %v2654 = vpop.permute.xlu0 %2653
        %2656 = vrot.lane.b32.xlu0 %v2582, 24
        %v2657 = vpop.permute.xlu0 %2656
        %v2659 = vsel %vm895, %v2387, %v2651
        %v2660 = vsel %vm1166, %v2659, %v2654
        %v2661 = vsel %vm1168, %v2660, %v2657
        %v2662 = vadd.f32 %v2648, %v2270
        %s2663 = scalar_lea.vmem %s18, 8
        %v2664 = vld [vmem:[%s2663] sm:$0xff]
        %s2665 = scalar_lea.vmem %s19, 8
        %v2666 = vld [vmem:[%s2665] sm:$0xff]
        %v2667 = vsel %vm867, %v2662, 0.0
        %2668 = vadd.xlane.f32.xlu0 %v2667
        %v2669 = vpop.xlane.xlu0 %2668
        %v2670 = vrot.slane %v2669, 4
        %v2671 = vadd.f32 %v2669, %v2670
        %v2672 = vrot.slane %v2671, 2
        %v2673 = vadd.f32 %v2671, %v2672
        %v2674 = vrot.slane %v2673, 1
        %v2675 = vadd.f32 %v2673, %v2674
        %s2676 = vtos %v2675
        %v2677 = vrcp.pop 256.0
        %v2678 = vmul.f32 256.0, %v2677
        %v2679 = vsub.f32 1.0, %v2678
        %v2680 = vmul.f32 %v2677, %v2679
        %v2681 = vadd.f32 %v2677, %v2680
        %vm2682 = vweird.f32 %v2677
        %v2683 = vsel %vm2682, %v2677, %v2681
        %s2684 = vtos %v2683
        %s2685 = smul.f32 %s2676, %s2684
        %v2686 = vstv %s2685
        %v2687 = vsub.f32 %v2662, %v2686
        %v2688 = vmul.f32 %v2687, %v2687
        %v2689 = vsel %vm867, %v2688, 0.0
        %2690 = vadd.xlane.f32.xlu0 %v2689
        %v2691 = vpop.xlane.xlu0 %2690
        %v2692 = vrot.slane %v2691, 4
        %v2693 = vadd.f32 %v2691, %v2692
        %v2694 = vrot.slane %v2693, 2
        %v2695 = vadd.f32 %v2693, %v2694
        %v2696 = vrot.slane %v2695, 1
        %v2697 = vadd.f32 %v2695, %v2696
        %s2698 = vtos %v2697
        %v2699 = vrcp.pop 256.0
        %v2700 = vmul.f32 256.0, %v2699
        %v2701 = vsub.f32 1.0, %v2700
        %v2702 = vmul.f32 %v2699, %v2701
        %v2703 = vadd.f32 %v2699, %v2702
        %vm2704 = vweird.f32 %v2699
        %v2705 = vsel %vm2704, %v2699, %v2703
        %s2706 = vtos %v2705
        %s2707 = smul.f32 %s2698, %s2706
        %s2708 = sadd.f32 %s2707, 1e-05
        %v2709 = vstv %s2708
        %v2710 = vrsqrt.pop %v2709
        %v2711 = vmul.f32 %v2710, %v2709
        %v2712 = vmul.f32 %v2711, %v2710
        %v2713 = vmul.f32 0.5, %v2712
        %v2714 = vsub.f32 1.5, %v2713
        %v2715 = vmul.f32 %v2710, %v2714
        %vm2716 = vweird.f32 %v2709
        %vm2717 = vweird.f32 %v2710
        %vm2718 = vmor %vm2716, %vm2717
        %v2719 = vsel %vm2718, %v2710, %v2715
        %s2720 = vtos %v2719
        %v2721 = vstv %s2720
        %v2722 = vmul.f32 %v2687, %v2721
        %v2723 = vmul.f32 %v2722, %v2664
        %v2724 = vadd.f32 %v2723, %v2666
        %s2725 = scalar_lea.vmem %s12, 32
        %v2726 = vld [vmem:[%s2725] sm:$0xff]
        %v2727 = vld [vmem:[%s2725 + $0x8] sm:$0xff]
        %v2728 = vld [vmem:[%s2725 + $0x10] sm:$0xff]
        %v2729 = vld [vmem:[%s2725 + $0x18] sm:$0xff]
        %s2730 = scalar_lea.vmem %s13, 1
        %v2731 = vld [vmem:[%s2730] sm:$0x1]
        %s2732 = scalar_lea.vmem %s14, 64
        %v2733 = vld [vmem:[%s2732] sm:$0xff]
        %v2734 = vld [vmem:[%s2732 + $0x8] sm:$0xff]
        %v2735 = vld [vmem:[%s2732 + $0x10] sm:$0xff]
        %v2736 = vld [vmem:[%s2732 + $0x18] sm:$0xff]
        %v2737 = vld [vmem:[%s2732 + $0x20] sm:$0xff]
        %v2738 = vld [vmem:[%s2732 + $0x28] sm:$0xff]
        %v2739 = vld [vmem:[%s2732 + $0x30] sm:$0xff]
        %v2740 = vld [vmem:[%s2732 + $0x38] sm:$0xff]
        %s2741 = scalar_lea.vmem %s15, 1
        %v2742 = vld [vmem:[%s2741] sm:$0x1]
        %v2744 = vperm.slane %v2731, 0
        %v2747 = vsel %vm867, %v2724, 0
        %2749 = vmatpush.msra.mxu0 0.0
        %2750 = vmatpush.msra.mxu0 0.0
        %2751 = vmatpush.msra.mxu0 0.0
        %2752 = vmatpush.msra.mxu0 0.0
        %2753 = vmatpush.msra.mxu0 0.0
        %2754 = vmatpush.msra.mxu0 0.0
        %2755 = vmatpush.msra.mxu0 0.0
        %2756 = vmatpush.msra.mxu0 0.0
        %2757 = vmatpush.msra.mxu0 0.0
        %2758 = vmatpush.msra.mxu0 0.0
        %2759 = vmatpush.msra.mxu0 0.0
        %2760 = vmatpush.msra.mxu0 0.0
        %2761 = vmatpush.msra.mxu0 %v2729
        %2762 = vmatpush.msra.mxu0 %v2728
        %2763 = vmatpush.msra.mxu0 %v2727
        %2764 = vmatpush.msra.mxu0 %v2726
        %2765 = vmatmul.f32.gmra.mxu0 %v2747
        %v2766 = vpop.f32.mrf.mxu0
        %v2767 = vadd.f32 %v2744, %v2766
        %2768 = vdwg.mxu0
        %v2769 = vmax.f32 %v2767, 0.0
        %v2771 = vperm.slane %v2742, 0
        %v2774 = vsel %vm1767, %v2769, 0
        %2776 = vmatpush.msra.mxu0 0.0
        %2777 = vmatpush.msra.mxu0 0.0
        %2778 = vmatpush.msra.mxu0 0.0
        %2779 = vmatpush.msra.mxu0 0.0
        %2780 = vmatpush.msra.mxu0 0.0
        %2781 = vmatpush.msra.mxu0 0.0
        %2782 = vmatpush.msra.mxu0 0.0
        %2783 = vmatpush.msra.mxu0 0.0
        %2784 = vmatpush.msra.mxu0 %v2740
        %2785 = vmatpush.msra.mxu0 %v2739
        %2786 = vmatpush.msra.mxu0 %v2738
        %2787 = vmatpush.msra.mxu0 %v2737
        %2788 = vmatpush.msra.mxu0 %v2736
        %2789 = vmatpush.msra.mxu0 %v2735
        %2790 = vmatpush.msra.mxu0 %v2734
        %2791 = vmatpush.msra.mxu0 %v2733
        %2792 = vmatmul.f32.gmra.mxu0 %v2774
        %v2793 = vpop.f32.mrf.mxu0
        %v2794 = vadd.f32 %v2771, %v2793
        %2795 = vdwg.mxu0
        %v2796 = vadd.f32 %v2794, %v2724
        %s2797 = scalar_lea.vmem %s20, 8
        %v2798 = vld [vmem:[%s2797] sm:$0xff]
        %s2799 = scalar_lea.vmem %s21, 8
        %v2800 = vld [vmem:[%s2799] sm:$0xff]
        %v2801 = vsel %vm867, %v2796, 0.0
        %2802 = vadd.xlane.f32.xlu0 %v2801
        %v2803 = vpop.xlane.xlu0 %2802
        %v2804 = vrot.slane %v2803, 4
        %v2805 = vadd.f32 %v2803, %v2804
        %v2806 = vrot.slane %v2805, 2
        %v2807 = vadd.f32 %v2805, %v2806
        %v2808 = vrot.slane %v2807, 1
        %v2809 = vadd.f32 %v2807, %v2808
        %s2810 = vtos %v2809
        %v2811 = vrcp.pop 256.0
        %v2812 = vmul.f32 256.0, %v2811
        %v2813 = vsub.f32 1.0, %v2812
        %v2814 = vmul.f32 %v2811, %v2813
        %v2815 = vadd.f32 %v2811, %v2814
        %vm2816 = vweird.f32 %v2811
        %v2817 = vsel %vm2816, %v2811, %v2815
        %s2818 = vtos %v2817
        %s2819 = smul.f32 %s2810, %s2818
        %v2820 = vstv %s2819
        %v2821 = vsub.f32 %v2796, %v2820
        %v2822 = vmul.f32 %v2821, %v2821
        %v2823 = vsel %vm867, %v2822, 0.0
        %2824 = vadd.xlane.f32.xlu0 %v2823
        %v2825 = vpop.xlane.xlu0 %2824
        %v2826 = vrot.slane %v2825, 4
        %v2827 = vadd.f32 %v2825, %v2826
        %v2828 = vrot.slane %v2827, 2
        %v2829 = vadd.f32 %v2827, %v2828
        %v2830 = vrot.slane %v2829, 1
        %v2831 = vadd.f32 %v2829, %v2830
        %s2832 = vtos %v2831
        %v2833 = vrcp.pop 256.0
        %v2834 = vmul.f32 256.0, %v2833
        %v2835 = vsub.f32 1.0, %v2834
        %v2836 = vmul.f32 %v2833, %v2835
        %v2837 = vadd.f32 %v2833, %v2836
        %vm2838 = vweird.f32 %v2833
        %v2839 = vsel %vm2838, %v2833, %v2837
        %s2840 = vtos %v2839
        %s2841 = smul.f32 %s2832, %s2840
        %s2842 = sadd.f32 %s2841, 1e-05
        %v2843 = vstv %s2842
        %v2844 = vrsqrt.pop %v2843
        %v2845 = vmul.f32 %v2844, %v2843
        %v2846 = vmul.f32 %v2845, %v2844
        %v2847 = vmul.f32 0.5, %v2846
        %v2848 = vsub.f32 1.5, %v2847
        %v2849 = vmul.f32 %v2844, %v2848
        %vm2850 = vweird.f32 %v2843
        %vm2851 = vweird.f32 %v2844
        %vm2852 = vmor %vm2850, %vm2851
        %v2853 = vsel %vm2852, %v2844, %v2849
        %s2854 = vtos %v2853
        %v2855 = vstv %s2854
        %v2856 = vmul.f32 %v2821, %v2855
        %v2857 = vmul.f32 %v2856, %v2798
        %v2858 = vadd.f32 %v2857, %v2800
        %s2859 = scalar_lea.vmem %s826, 8 [#allocation4]
        %2860 = vst.msk [vmem:[%s2859] sm:$0xff] %vm867, %v2207
        %s2861 = scalar_lea.vmem %s832, 8 [#allocation5]
        %2862 = vst.msk [vmem:[%s2861] sm:$0xff] %vm867, %v2661
        %v2863 = vld [vmem:[%s22] sm:$0xff]
        %v2864 = vld [vmem:[%s22 + $0x8] sm:$0xff]
        %v2865 = vld [vmem:[%s22 + $0x10] sm:$0xff]
        %v2866 = vld [vmem:[%s22 + $0x18] sm:$0xff]
        %v2867 = vld [vmem:[%s23] sm:$0x1]
        %v2869 = vperm.slane %v2867, 0
        %v2872 = vsel %vm867, %v2858, 0
        %2874 = vmatpush.msra.mxu0 0.0
        %2875 = vmatpush.msra.mxu0 0.0
        %2876 = vmatpush.msra.mxu0 0.0
        %2877 = vmatpush.msra.mxu0 0.0
        %2878 = vmatpush.msra.mxu0 0.0
        %2879 = vmatpush.msra.mxu0 0.0
        %2880 = vmatpush.msra.mxu0 0.0
        %2881 = vmatpush.msra.mxu0 0.0
        %2882 = vmatpush.msra.mxu0 0.0
        %2883 = vmatpush.msra.mxu0 0.0
        %2884 = vmatpush.msra.mxu0 0.0
        %2885 = vmatpush.msra.mxu0 0.0
        %2886 = vmatpush.msra.mxu0 %v2866
        %2887 = vmatpush.msra.mxu0 %v2865
        %2888 = vmatpush.msra.mxu0 %v2864
        %2889 = vmatpush.msra.mxu0 %v2863
        %2890 = vmatmul.f32.gmra.mxu0 %v2872
        %v2891 = vpop.f32.mrf.mxu0
        %v2892 = vadd.f32 %v2869, %v2891
        %2893 = vdwg.mxu0
        %vm2894 = vcmask 326656
        %2895 = vst.msk [vmem:[%s820] sm:$0xff] %vm2894, %v2892
        %s2896 = sand.u32 %s573, 1
        %s2897 = scalar_lea.sflag [#allocation3], %s2896
        %s2898 = sand.u32 %s573, 1
        %s2899 = smul.addr %s2898, 8
        %s2900 = scalar_lea.vmem [#allocation2], %s2899
        %s2901 = sand.u32 %s599, 1
        %s2902 = sand.u32 %s599, 1
        %s2903 = smul.addr %s2902, 16
        %s2904 = scalar_lea.vmem [#allocation4], %s2903
        %s2905 = sand.u32 %s625, 1
        %s2906 = sand.u32 %s625, 1
        %s2907 = smul.addr %s2906, 16
        %s2908 = scalar_lea.vmem [#allocation5], %s2907
        // Predicated region
        $region117: #{transformer_forward_from_tokens.3} parent=115 // pred_check
          %p2909 = pneg %p583
        $region118: #{transformer_forward_from_tokens.3} parent=115 // pred_check_branch
          %2911 = sbr.rel (%p2909) target = $region120
        $region119: #{transformer_forward_from_tokens.3} parent=115 // pred_region
          %2913 = vsyncadd %s2897, 0
          %s2914 = smul.addr %s41, 8
          %s2915 = scalar_lea.hbm %s24, %s2914
          %s2917 = sshll.u32 %s2900, 4
          %s2918 = int_to_ptr.vmem [resolvable:$true] %s2917
          %s2919 = sshll.u32 %s2915, 4
          %s2920 = int_to_ptr.hbm [resolvable:$true] %s2919
          %2922 = dma.vmem_to_hbm [thread:$0]  %s2918, 128, %s2920, %s2897
        $region120: #{transformer_forward_from_tokens.3} parent=115 // pred_fallthru
          _
        // Predicated region
        $region121: #{transformer_forward_from_tokens.3} parent=115 // pred_check
          %p2923 = pneg %p609
        $region122: #{transformer_forward_from_tokens.3} parent=115 // pred_check_branch
          %2925 = sbr.rel (%p2923) target = $region124
        $region123: #{transformer_forward_from_tokens.3} parent=115 // pred_region
          %s2926 = smul.addr %s41, 8
          %s2927 = scalar_lea.vmem %s25, %s2926
          // Predicated region
          $region125: #{transformer_forward_from_tokens.3} parent=123 // pred_check
            _
          $region126: #{transformer_forward_from_tokens.3} parent=123 // pred_check_branch
            %2929 = sbr.rel (0) target = $region128
          $region127: #{transformer_forward_from_tokens.3} parent=123 // pred_region
            // Predicated region
            $region129: #{transformer_forward_from_tokens.3} parent=127 // pred_check
              _
            $region130: #{transformer_forward_from_tokens.3} parent=127 // pred_check_branch
              %2931 = sbr.rel (0) target = $region132
            $region131: #{transformer_forward_from_tokens.3} parent=127 // pred_region
              // Predicated region
              $region144: #{transformer_forward_from_tokens.3} parent=131 // pred_check
                _
              $region145: #{transformer_forward_from_tokens.3} parent=131 // pred_check_branch
                %2949 = sbr.rel (0) target = $region147
              $region146: #{transformer_forward_from_tokens.3} parent=131 // pred_region
                loop: start=0, step=1, limit=1
                $region148: #{transformer_forward_from_tokens.3} parent=146 // loop_pre_header
                  _
                $region149: #{transformer_forward_from_tokens.3} parent=146 // loop_header
                  %s2951 = sphi 0, %s2955
                  %p2952 = scmp.ge.s32.totalorder %s2951, 1
                  %s2956 = sphi %s2904, %s2904
                  %s2957 = sphi %s2927, %s2927
                $region150: #{transformer_forward_from_tokens.3} parent=146 // loop_header_branch
                  %2954 = sbr.rel (%p2952) target = $region154
                $region151: #{transformer_forward_from_tokens.3} parent=146 // loop_body
                  %v2958 = vld [vmem:[%s2956] sm:$0xff]
                  %2959 = vst [vmem:[%s2957] sm:$0xff] %v2958
                  %v2960 = vld [vmem:[%s2956 + $0x8] sm:$0xff]
                  %2961 = vst [vmem:[%s2957 + $0x10] sm:$0xff] %v2960
                $region152: #{transformer_forward_from_tokens.3} parent=146 // loop_footer
                  %s2955 = sadd.s32 1, %s2951
                $region153: #{transformer_forward_from_tokens.3} parent=146 // loop_footer_branch
                  %2950 = sbr.rel target = $region149
                $region154: #{transformer_forward_from_tokens.3} parent=146 // loop_exit
                  _
              $region147: #{transformer_forward_from_tokens.3} parent=131 // pred_fallthru
                _
              // Predicated region
              $region155: #{transformer_forward_from_tokens.3} parent=131 // pred_check
                _
              $region156: #{transformer_forward_from_tokens.3} parent=131 // pred_check_branch
                %2963 = sbr.rel target = $region158
              $region157: #{transformer_forward_from_tokens.3} parent=131 // pred_region
                _
              $region158: #{transformer_forward_from_tokens.3} parent=131 // pred_fallthru
                _
            $region132: #{transformer_forward_from_tokens.3} parent=127 // pred_fallthru
              _
            // Predicated region
            $region133: #{transformer_forward_from_tokens.3} parent=127 // pred_check
              _
            $region134: #{transformer_forward_from_tokens.3} parent=127 // pred_check_branch
              %2933 = sbr.rel target = $region136
            $region135: #{transformer_forward_from_tokens.3} parent=127 // pred_region
              %s2935 = ssub.s32 256, 1
              loop: start=0, step=1, limit=1
              $region137: #{transformer_forward_from_tokens.3} parent=135 // loop_pre_header
                _
              $region138: #{transformer_forward_from_tokens.3} parent=135 // loop_header
                %s2937 = sphi 0, %s2941
                %p2938 = scmp.ge.s32.totalorder %s2937, 1
                %s2942 = sphi %s2904, %s2904
                %s2943 = sphi %s2927, %s2927
              $region139: #{transformer_forward_from_tokens.3} parent=135 // loop_header_branch
                %2940 = sbr.rel (%p2938) target = $region143
              $region140: #{transformer_forward_from_tokens.3} parent=135 // loop_body
                %v2944 = vld [vmem:[%s2942] sm:%s2935]
                %2945 = vst [vmem:[%s2943] sm:%s2935] %v2944
                %v2946 = vld [vmem:[%s2942 + $0x8] sm:%s2935]
                %2947 = vst [vmem:[%s2943 + $0x10] sm:%s2935] %v2946
              $region141: #{transformer_forward_from_tokens.3} parent=135 // loop_footer
                %s2941 = sadd.s32 1, %s2937
              $region142: #{transformer_forward_from_tokens.3} parent=135 // loop_footer_branch
                %2936 = sbr.rel target = $region138
              $region143: #{transformer_forward_from_tokens.3} parent=135 // loop_exit
                _
            $region136: #{transformer_forward_from_tokens.3} parent=127 // pred_fallthru
              _
          $region128: #{transformer_forward_from_tokens.3} parent=123 // pred_fallthru
            _
          %2964 = vnop
        $region124: #{transformer_forward_from_tokens.3} parent=115 // pred_fallthru
          _
        // Predicated region
        $region159: #{transformer_forward_from_tokens.3} parent=115 // pred_check
          %p2965 = pneg %p635
        $region160: #{transformer_forward_from_tokens.3} parent=115 // pred_check_branch
          %2967 = sbr.rel (%p2965) target = $region162
        $region161: #{transformer_forward_from_tokens.3} parent=115 // pred_region
          %s2968 = smul.addr %s41, 8
          %s2969 = scalar_lea.vmem %s26, %s2968
          // Predicated region
          $region163: #{transformer_forward_from_tokens.3} parent=161 // pred_check
            _
          $region164: #{transformer_forward_from_tokens.3} parent=161 // pred_check_branch
            %2971 = sbr.rel (0) target = $region166
          $region165: #{transformer_forward_from_tokens.3} parent=161 // pred_region
            // Predicated region
            $region167: #{transformer_forward_from_tokens.3} parent=165 // pred_check
              _
            $region168: #{transformer_forward_from_tokens.3} parent=165 // pred_check_branch
              %2973 = sbr.rel (0) target = $region170
            $region169: #{transformer_forward_from_tokens.3} parent=165 // pred_region
              // Predicated region
              $region182: #{transformer_forward_from_tokens.3} parent=169 // pred_check
                _
              $region183: #{transformer_forward_from_tokens.3} parent=169 // pred_check_branch
                %2991 = sbr.rel (0) target = $region185
              $region184: #{transformer_forward_from_tokens.3} parent=169 // pred_region
                loop: start=0, step=1, limit=1
                $region186: #{transformer_forward_from_tokens.3} parent=184 // loop_pre_header
                  _
                $region187: #{transformer_forward_from_tokens.3} parent=184 // loop_header
                  %s2993 = sphi 0, %s2997
                  %p2994 = scmp.ge.s32.totalorder %s2993, 1
                  %s2998 = sphi %s2908, %s2908
                  %s2999 = sphi %s2969, %s2969
                $region188: #{transformer_forward_from_tokens.3} parent=184 // loop_header_branch
                  %2996 = sbr.rel (%p2994) target = $region192
                $region189: #{transformer_forward_from_tokens.3} parent=184 // loop_body
                  %v3000 = vld [vmem:[%s2998] sm:$0xff]
                  %3001 = vst [vmem:[%s2999] sm:$0xff] %v3000
                  %v3002 = vld [vmem:[%s2998 + $0x8] sm:$0xff]
                  %3003 = vst [vmem:[%s2999 + $0x10] sm:$0xff] %v3002
                $region190: #{transformer_forward_from_tokens.3} parent=184 // loop_footer
                  %s2997 = sadd.s32 1, %s2993
                $region191: #{transformer_forward_from_tokens.3} parent=184 // loop_footer_branch
                  %2992 = sbr.rel target = $region187
                $region192: #{transformer_forward_from_tokens.3} parent=184 // loop_exit
                  _
              $region185: #{transformer_forward_from_tokens.3} parent=169 // pred_fallthru
                _
              // Predicated region
              $region193: #{transformer_forward_from_tokens.3} parent=169 // pred_check
                _
              $region194: #{transformer_forward_from_tokens.3} parent=169 // pred_check_branch
                %3005 = sbr.rel target = $region196
              $region195: #{transformer_forward_from_tokens.3} parent=169 // pred_region
                _
              $region196: #{transformer_forward_from_tokens.3} parent=169 // pred_fallthru
                _
            $region170: #{transformer_forward_from_tokens.3} parent=165 // pred_fallthru
              _
            // Predicated region
            $region171: #{transformer_forward_from_tokens.3} parent=165 // pred_check
              _
            $region172: #{transformer_forward_from_tokens.3} parent=165 // pred_check_branch
              %2975 = sbr.rel target = $region174
            $region173: #{transformer_forward_from_tokens.3} parent=165 // pred_region
              %s2977 = ssub.s32 256, 1
              loop: start=0, step=1, limit=1
              $region175: #{transformer_forward_from_tokens.3} parent=173 // loop_pre_header
                _
              $region176: #{transformer_forward_from_tokens.3} parent=173 // loop_header
                %s2979 = sphi 0, %s2983
                %p2980 = scmp.ge.s32.totalorder %s2979, 1
                %s2984 = sphi %s2908, %s2908
                %s2985 = sphi %s2969, %s2969
              $region177: #{transformer_forward_from_tokens.3} parent=173 // loop_header_branch
                %2982 = sbr.rel (%p2980) target = $region181
              $region178: #{transformer_forward_from_tokens.3} parent=173 // loop_body
                %v2986 = vld [vmem:[%s2984] sm:%s2977]
                %2987 = vst [vmem:[%s2985] sm:%s2977] %v2986
                %v2988 = vld [vmem:[%s2984 + $0x8] sm:%s2977]
                %2989 = vst [vmem:[%s2985 + $0x10] sm:%s2977] %v2988
              $region179: #{transformer_forward_from_tokens.3} parent=173 // loop_footer
                %s2983 = sadd.s32 1, %s2979
              $region180: #{transformer_forward_from_tokens.3} parent=173 // loop_footer_branch
                %2978 = sbr.rel target = $region176
              $region181: #{transformer_forward_from_tokens.3} parent=173 // loop_exit
                _
            $region174: #{transformer_forward_from_tokens.3} parent=165 // pred_fallthru
              _
          $region166: #{transformer_forward_from_tokens.3} parent=161 // pred_fallthru
            _
          %3006 = vnop
        $region162: #{transformer_forward_from_tokens.3} parent=115 // pred_fallthru
          _
      $region116: #{transformer_forward_from_tokens.3} parent=5 // pred_fallthru
        _
      %p3007 = scmp.le.s32.totalorder 2, %s36
      // Predicated region
      $region197: #{transformer_forward_from_tokens.3} parent=5 // pred_check
        %p3008 = pneg %p3007
      $region198: #{transformer_forward_from_tokens.3} parent=5 // pred_check_branch
        %3010 = sbr.rel (%p3008) target = $region200
      $region199: #{transformer_forward_from_tokens.3} parent=5 // pred_region
        %s3011 = ssub.s32 %s36, 2
        // Predicated region
        $region201: #{transformer_forward_from_tokens.3} parent=199 // pred_check
          %p3012 = pneg %p589
        $region202: #{transformer_forward_from_tokens.3} parent=199 // pred_check_branch
          %3014 = sbr.rel (%p3012) target = $region204
        $region203: #{transformer_forward_from_tokens.3} parent=199 // pred_region
          %s3015 = sand.u32 %s574, 1
          %s3016 = scalar_lea.sflag [#allocation3], %s3015
          %s3017 = sand.u32 %s574, 1
          %s3018 = smul.addr %s3017, 8
          %s3019 = scalar_lea.vmem [#allocation2], %s3018
          %3021 = dma.done %s3016, 128
        $region204: #{transformer_forward_from_tokens.3} parent=199 // pred_fallthru
          _
        // Predicated region
        $region205: #{transformer_forward_from_tokens.3} parent=199 // pred_check
          %p3022 = pneg %p615
        $region206: #{transformer_forward_from_tokens.3} parent=199 // pred_check_branch
          %3024 = sbr.rel (%p3022) target = $region208
        $region207: #{transformer_forward_from_tokens.3} parent=199 // pred_region
          %s3025 = sand.u32 %s600, 1
          %s3026 = sand.u32 %s600, 1
          %s3027 = smul.addr %s3026, 16
          %s3028 = scalar_lea.vmem [#allocation4], %s3027
        $region208: #{transformer_forward_from_tokens.3} parent=199 // pred_fallthru
          _
        // Predicated region
        $region209: #{transformer_forward_from_tokens.3} parent=199 // pred_check
          %p3029 = pneg %p641
        $region210: #{transformer_forward_from_tokens.3} parent=199 // pred_check_branch
          %3031 = sbr.rel (%p3029) target = $region212
        $region211: #{transformer_forward_from_tokens.3} parent=199 // pred_region
          %s3032 = sand.u32 %s626, 1
          %s3033 = sand.u32 %s626, 1
          %s3034 = smul.addr %s3033, 16
          %s3035 = scalar_lea.vmem [#allocation5], %s3034
        $region212: #{transformer_forward_from_tokens.3} parent=199 // pred_fallthru
          _
      $region200: #{transformer_forward_from_tokens.3} parent=5 // pred_fallthru
        _
    $region6: #{transformer_forward_from_tokens.3} parent=1 // loop_footer
      %s40 = sadd.s32 1, %s36
    $region7: #{transformer_forward_from_tokens.3} parent=1 // loop_footer_branch
      %35 = sbr.rel target = $region3
    $region8: #{transformer_forward_from_tokens.3} parent=1 // loop_exit
      _
    %3036 = vsyncpa [#allocation3], 1
    %s3037 = scalar_lea.sflag [#allocation3], 1
    %3038 = vsyncpa %s3037, 1

</llo_original>
